<compile_context>
chip_gen: v6e
topology: v6e:2x2x1
jax: 0.10.0
libtpu: 0.0.40
codegen_flags: <defaults>
</compile_context>

<pallas_src>
import functools

import jax
import jax.numpy as jnp
from jax.experimental import pallas as pl
from jax.experimental.pallas import tpu as pltpu

_K = 5  # conv kernel size


# ----------------------------------------------------------------------------
# Fused kernel: conv1 + ReLU + pool + conv2 + ReLU + pool + FC, B samples/step
# ----------------------------------------------------------------------------
def _ocrnum_kernel(xr_ref, w1_ref, b1_ref, w2_ref, b2_ref, fw_ref, fb_ref,
                   o_ref, x2e_ref, x2o_ref, *, bb):
    f32 = jnp.float32
    bf16 = jnp.bfloat16

    # ---- conv1 (1->16, 5x5, pad 2) + bias + ReLU + 2x2 maxpool --------------
    # xr_ref[0, g, t*bb + n, :] holds padded input row 4*t + g of sample n.
    # Conv rows are produced per row-residue group so the pool's row direction
    # is an elementwise max; its column direction is a 224-lane slice because
    # the band matrices order output lanes as [w-parity, w', oc].
    b1 = b1_ref[...]                                           # (1, 448) f32

    def conv1_rows(g):
        acc = jnp.zeros((7 * bb, 448), f32)
        for kh in range(_K):
            src = (g + kh) % 4
            off = (g + kh) // 4
            rows = xr_ref[0, src, off * bb:(off + 7) * bb, :]  # (7B, 32) bf16
            acc = acc + jnp.dot(rows, w1_ref[kh],
                                preferred_element_type=f32)
        return acc

    def pool_cols(y):                                          # [parity,w',oc]
        return jnp.maximum(y[:, :224], y[:, 224:])

    # pooled conv1 rows with even index m = 2t   (conv rows 4t, 4t+1)
    yh_e = jnp.maximum(jnp.maximum(conv1_rows(0), conv1_rows(1)) + b1, 0.0)
    p1e = pool_cols(yh_e).astype(bf16)                         # (7B, 224)
    # pooled conv1 rows with odd index  m = 2t+1 (conv rows 4t+2, 4t+3)
    yh_o = jnp.maximum(jnp.maximum(conv1_rows(2), conv1_rows(3)) + b1, 0.0)
    p1o = pool_cols(yh_o).astype(bf16)                         # (7B, 224)

    # ---- stage conv2 input (14x14x16 per sample, row-padded) in VMEM --------
    # x2e holds padded-height rows 0,2,...,16; x2o rows 1,3,...,17.  Row index
    # is e*bb + n.  Data rows e=1..7, zero pad rows e=0 and e=8 (re-zeroed
    # every step so the kernel is safe when grid steps split across cores).
    zrow = jnp.zeros((bb, 224), bf16)
    x2e_ref[0:bb, :] = zrow
    x2e_ref[8 * bb:9 * bb, :] = zrow
    x2e_ref[bb:8 * bb, :] = p1e
    x2o_ref[0:bb, :] = zrow
    x2o_ref[8 * bb:9 * bb, :] = zrow
    x2o_ref[bb:8 * bb, :] = p1o

    # ---- conv2 (16->32, 5x5, pad 2) + bias + ReLU + 2x2 maxpool -------------
    acc_e = jnp.zeros((7 * bb, 448), f32)                      # conv rows 2m'
    acc_o = jnp.zeros((7 * bb, 448), f32)                      # conv rows 2m'+1
    for kh in range(_K):
        w_kh = w2_ref[kh]                                      # (224, 448) bf16
        a = kh // 2
        if kh % 2 == 0:
            rows_e = x2e_ref[a * bb:(a + 7) * bb, :]
            rows_o = x2o_ref[a * bb:(a + 7) * bb, :]
        else:
            rows_e = x2o_ref[a * bb:(a + 7) * bb, :]
            rows_o = x2e_ref[(a + 1) * bb:(a + 8) * bb, :]
        acc_e = acc_e + jnp.dot(rows_e, w_kh, preferred_element_type=f32)
        acc_o = acc_o + jnp.dot(rows_o, w_kh, preferred_element_type=f32)
    yh2 = jnp.maximum(jnp.maximum(acc_e, acc_o) + b2_ref[...], 0.0)
    p2 = pool_cols(yh2).astype(bf16)                           # (7B, 224)

    # ---- fully connected 1568 -> 10 -----------------------------------------
    acc_fc = jnp.zeros((bb, 10), f32)
    for h in range(7):
        acc_fc = acc_fc + jnp.dot(p2[h * bb:(h + 1) * bb, :], fw_ref[h],
                                  preferred_element_type=f32)
    o_ref[0] = (acc_fc + fb_ref[...]).astype(o_ref.dtype)


# ----------------------------------------------------------------------------
# One-time parameter preparation (pure JAX, constant-folds under jit)
# ----------------------------------------------------------------------------
def _band_matrices(w_oihw, in_w, out_w, pad):
    """Per-kh banded matrices M[kh]: (in_w*IC, out_w*OC) such that
    conv_out[h, col*OC+oc] = sum_kh x_row[h+kh] @ M[kh], where x_row is the
    (in_w*IC)-wide feature vector of one (height-padded) input row.
    Output column blocks are ordered [w-parity, w'] (w = 2*w' + parity) so the
    2x2 pool's column direction is a half-lane slice inside the kernel.
    Width-boundary padding is folded into the matrices via `pad`."""
    OC, IC, KH, KW = w_oihw.shape
    w_t = jnp.transpose(w_oihw.astype(jnp.float32), (2, 3, 1, 0))  # (KH,KW,IC,OC)
    half = out_w // 2
    wprime = jnp.arange(half)
    wpos = jnp.concatenate([2 * wprime, 2 * wprime + 1])           # w per col block
    i = jnp.arange(in_w)[:, None]                                  # input col index
    kwid = i - (wpos[None, :] - pad)                               # (in_w, out_w)
    valid = (kwid >= 0) & (kwid < KW)
    kw_safe = jnp.clip(kwid, 0, KW - 1)
    mats = []
    for kh in range(KH):
        taps = w_t[kh]                                             # (KW, IC, OC)
        m = jnp.where(valid[:, :, None, None], taps[kw_safe], 0.0) # (iW,oW,IC,OC)
        m = jnp.transpose(m, (0, 2, 1, 3)).reshape(in_w * IC, out_w * OC)
        mats.append(m)
    return jnp.stack(mats)                                         # (KH, iW*IC, oW*OC)


def _prepare_params(params):
    bf16 = jnp.bfloat16
    # conv1: input already column-padded to 32 in the wrapper -> pad=0 here.
    w1m = _band_matrices(params["conv1_w"], in_w=32, out_w=28, pad=0).astype(bf16)
    # conv2: column padding folded into the band matrices -> K = 14*16 = 224.
    w2m = _band_matrices(params["conv2_w"], in_w=14, out_w=14, pad=2).astype(bf16)
    b1 = jnp.tile(params["conv1_b"].astype(jnp.float32), 28).reshape(1, 448)
    b2 = jnp.tile(params["conv2_b"].astype(jnp.float32), 14).reshape(1, 448)
    # FC weight permuted once to the kernel's (h, w*32+c) feature order.
    fcw = params["fc_w"].astype(jnp.float32).reshape(10, 32, 7, 7)  # (n, c, h, w)
    fcw = jnp.transpose(fcw, (2, 3, 1, 0)).reshape(7, 224, 10).astype(bf16)
    fcb = params["fc_b"].astype(jnp.float32).reshape(1, 10)
    return w1m, b1, w2m, b2, fcw, fcb


# ----------------------------------------------------------------------------
# Public forward pass (input NCHW (N,1,28,28), output (N,10))
# ----------------------------------------------------------------------------
def ocrnum_forward(x_nchw, params, *, block_batch=16):
    N = x_nchw.shape[0]
    assert x_nchw.shape[1:] == (1, 28, 28), x_nchw.shape
    w1m, b1, w2m, b2, fcw, fcb = _prepare_params(params)

    bb = max(1, min(block_batch, N))            # samples per grid step
    nblk = pl.cdiv(N, bb)
    n_pad = nblk * bb

    # Pad the raw input once, split padded rows into 4 residue groups, and
    # interleave the per-step batch along the sublane axis so every in-kernel
    # read is a contiguous static slice of shape (7*bb, 32).
    x = x_nchw.reshape(N, 28, 28).astype(jnp.bfloat16)
    xp = jnp.pad(x, ((0, n_pad - N), (2, 2), (2, 2)))                # (n_pad,32,32)
    xg = jnp.stack([xp[:, g::4, :] for g in range(4)], axis=1)       # (n_pad,4,8,32)
    xg = xg.reshape(nblk, bb, 4, 8, 32).transpose(0, 2, 3, 1, 4)
    xg = xg.reshape(nblk, 4, 8 * bb, 32)                             # row = t*bb + n

    flops = 2 * n_pad * (20 * 7 * 32 * 448 + 10 * 7 * 224 * 448 + 7 * 224 * 10)
    w_bytes = sum(int(a.size) * a.dtype.itemsize
                  for a in (w1m, b1, w2m, b2, fcw, fcb))
    cost = pl.CostEstimate(
        flops=flops, transcendentals=0,
        bytes_accessed=int(xg.size) * xg.dtype.itemsize + w_bytes + n_pad * 10 * 4)

    out = pl.pallas_call(
        functools.partial(_ocrnum_kernel, bb=bb),
        out_shape=jax.ShapeDtypeStruct((nblk, bb, 10), jnp.float32),
        grid=(nblk,),
        in_specs=[
            pl.BlockSpec((1, 4, 8 * bb, 32), lambda b: (b, 0, 0, 0)),  # images
            pl.BlockSpec((5, 32, 448), lambda b: (0, 0, 0)),           # conv1 bands
            pl.BlockSpec((1, 448), lambda b: (0, 0)),                  # conv1 bias
            pl.BlockSpec((5, 224, 448), lambda b: (0, 0, 0)),          # conv2 bands
            pl.BlockSpec((1, 448), lambda b: (0, 0)),                  # conv2 bias
            pl.BlockSpec((7, 224, 10), lambda b: (0, 0, 0)),           # FC weights
            pl.BlockSpec((1, 10), lambda b: (0, 0)),                   # FC bias
        ],
        out_specs=pl.BlockSpec((1, bb, 10), lambda b: (b, 0, 0)),
        scratch_shapes=[
            pltpu.VMEM((9 * bb, 224), jnp.bfloat16),   # conv2 input, even rows
            pltpu.VMEM((9 * bb, 224), jnp.bfloat16),   # conv2 input, odd rows
        ],
        compiler_params=pltpu.CompilerParams(
            dimension_semantics=("parallel",)),        # batch blocks across TCs
        cost_estimate=cost,
    )(xg, w1m, b1, w2m, b2, fcw, fcb)
    return out.reshape(n_pad, 10)[:N]


# ----------------------------------------------------------------------------
# Parameter init (matches the PyTorch module's shapes)
# ----------------------------------------------------------------------------
def init_params(key):
    k1, k2, k3, k4, k5, k6 = jax.random.split(key, 6)
    scale = 0.05
    return {
        "conv1_w": scale * jax.random.normal(k1, (16, 1, 5, 5), jnp.float32),
        "conv1_b": scale * jax.random.normal(k2, (16,), jnp.float32),
        "conv2_w": scale * jax.random.normal(k3, (32, 16, 5, 5), jnp.float32),
        "conv2_b": scale * jax.random.normal(k4, (32,), jnp.float32),
        "fc_w":   scale * jax.random.normal(k5, (10, 32 * 7 * 7), jnp.float32),
        "fc_b":   scale * jax.random.normal(k6, (10,), jnp.float32),
    }


# ----------------------------------------------------------------------------
# Pure-JAX f32 reference (correctness cross-check only)
# ----------------------------------------------------------------------------
def ocrnum_reference(x_nchw, params):
    def block(x, w, b):
        y = jax.lax.conv_general_dilated(
            x, w, window_strides=(1, 1), padding=((2, 2), (2, 2)),
            dimension_numbers=("NCHW", "OIHW", "NCHW"))
        y = jax.nn.relu(y + b[None, :, None, None])
        y = jax.lax.reduce_window(y, -jnp.inf, jax.lax.max,
                                  (1, 1, 2, 2), (1, 1, 2, 2), "VALID")
        return y

    y = block(x_nchw, params["conv1_w"], params["conv1_b"])
    y = block(y, params["conv2_w"], params["conv2_b"])
    flat = y.reshape(y.shape[0], -1)
    return flat @ params["fc_w"].T + params["fc_b"]


if __name__ == "__main__":
    key = jax.random.PRNGKey(0)
    kx, kp = jax.random.split(key)
    # MNIST-like input (1x28x28 is required by the 32*7*7 FC).  N=10 with
    # block_batch=4 exercises multiple grid steps plus batch padding.
    N = 10
    x = jax.random.normal(kx, (N, 1, 28, 28), jnp.float32)
    params = init_params(kp)

    fwd = jax.jit(functools.partial(ocrnum_forward, block_batch=4))
    out = jax.block_until_ready(fwd(x, params))
    ref = jax.block_until_ready(ocrnum_reference(x, params))

    assert out.shape == (N, 10), out.shape
    # bf16 MXU operands (f32 accumulate) -> allow ~bf16-level deviation.
    max_err = float(jnp.max(jnp.abs(out - ref)))
    tol = 0.05 * (1.0 + float(jnp.max(jnp.abs(ref))))
    assert max_err < tol, ("mismatch", max_err, tol)

    print("KERNEL_OK")
</pallas_src>

<mosaic_0001>
module attributes {stable_mosaic.version = 11 : i64} {
  func.func @_ocrnum_kernel(%arg0: i32, %arg1: memref<1x4x32x32xbf16, #tpu.memory_space<vmem>>, %arg2: memref<5x32x448xbf16, #tpu.memory_space<vmem>>, %arg3: memref<1x448xf32, #tpu.memory_space<vmem>>, %arg4: memref<5x224x448xbf16, #tpu.memory_space<vmem>>, %arg5: memref<1x448xf32, #tpu.memory_space<vmem>>, %arg6: memref<7x224x10xbf16, #tpu.memory_space<vmem>>, %arg7: memref<1x10xf32, #tpu.memory_space<vmem>>, %arg8: memref<1x4x10xf32, #tpu.memory_space<vmem>>, %arg9: memref<36x224xbf16, #tpu.memory_space<vmem>>, %arg10: memref<36x224xbf16, #tpu.memory_space<vmem>>) attributes {dimension_semantics = [#tpu.dimension_semantics<parallel>], iteration_bounds = array<i64: 3>, scalar_prefetch = 0 : i64, scratch_operands = 2 : i64, tpu.core_type = #tpu.core_type<tc>, window_params = [{transform_indices = @transform_0, window_bounds = array<i64: 1, 4, 32, 32>}, {pipeline_mode = #tpu.pipeline_mode<synchronous>, transform_indices = @transform_1, window_bounds = array<i64: 5, 32, 448>}, {pipeline_mode = #tpu.pipeline_mode<synchronous>, transform_indices = @transform_2, window_bounds = array<i64: 1, 448>}, {pipeline_mode = #tpu.pipeline_mode<synchronous>, transform_indices = @transform_3, window_bounds = array<i64: 5, 224, 448>}, {pipeline_mode = #tpu.pipeline_mode<synchronous>, transform_indices = @transform_4, window_bounds = array<i64: 1, 448>}, {pipeline_mode = #tpu.pipeline_mode<synchronous>, transform_indices = @transform_5, window_bounds = array<i64: 7, 224, 10>}, {pipeline_mode = #tpu.pipeline_mode<synchronous>, transform_indices = @transform_6, window_bounds = array<i64: 1, 10>}, {transform_indices = @transform_7, window_bounds = array<i64: 1, 4, 10>}]} {
    %c0 = arith.constant 0 : index
    %c0_0 = arith.constant 0 : index
    %0 = vector.load %arg3[%c0, %c0_0] : memref<1x448xf32, #tpu.memory_space<vmem>>, vector<1x448xf32>
    %cst = arith.constant 0.000000e+00 : f32
    %1 = vector.broadcast %cst : f32 to vector<28x448xf32>
    %c0_1 = arith.constant 0 : index
    %c0_2 = arith.constant 0 : index
    %c0_3 = arith.constant 0 : index
    %c0_4 = arith.constant 0 : index
    %2 = vector.load %arg1[%c0_1, %c0_2, %c0_3, %c0_4] : memref<1x4x32x32xbf16, #tpu.memory_space<vmem>>, vector<1x1x28x32xbf16>
    %3 = vector.shape_cast %2 : vector<1x1x28x32xbf16> to vector<28x32xbf16>
    %c0_5 = arith.constant 0 : index
    %c0_6 = arith.constant 0 : index
    %c0_7 = arith.constant 0 : index
    %4 = vector.load %arg2[%c0_5, %c0_6, %c0_7] : memref<5x32x448xbf16, #tpu.memory_space<vmem>>, vector<1x32x448xbf16>
    %5 = vector.shape_cast %4 : vector<1x32x448xbf16> to vector<32x448xbf16>
    %cst_8 = arith.constant dense<0.000000e+00> : vector<28x448xf32>
    %6 = tpu.matmul %3, %5, %cst_8 {dimension_numbers = #tpu.dot_dimension_numbers<[1], [0], [0], [1], [0, 0, 1, 1], [], []>} : vector<28x32xbf16>, vector<32x448xbf16>, vector<28x448xf32> -> vector<28x448xf32>
    %7 = arith.addf %1, %6 : vector<28x448xf32>
    %c0_9 = arith.constant 0 : index
    %c1 = arith.constant 1 : index
    %c0_10 = arith.constant 0 : index
    %c0_11 = arith.constant 0 : index
    %8 = vector.load %arg1[%c0_9, %c1, %c0_10, %c0_11] : memref<1x4x32x32xbf16, #tpu.memory_space<vmem>>, vector<1x1x28x32xbf16>
    %9 = vector.shape_cast %8 : vector<1x1x28x32xbf16> to vector<28x32xbf16>
    %c1_12 = arith.constant 1 : index
    %c0_13 = arith.constant 0 : index
    %c0_14 = arith.constant 0 : index
    %10 = vector.load %arg2[%c1_12, %c0_13, %c0_14] : memref<5x32x448xbf16, #tpu.memory_space<vmem>>, vector<1x32x448xbf16>
    %11 = vector.shape_cast %10 : vector<1x32x448xbf16> to vector<32x448xbf16>
    %cst_15 = arith.constant dense<0.000000e+00> : vector<28x448xf32>
    %12 = tpu.matmul %9, %11, %cst_15 {dimension_numbers = #tpu.dot_dimension_numbers<[1], [0], [0], [1], [0, 0, 1, 1], [], []>} : vector<28x32xbf16>, vector<32x448xbf16>, vector<28x448xf32> -> vector<28x448xf32>
    %13 = arith.addf %7, %12 : vector<28x448xf32>
    %c0_16 = arith.constant 0 : index
    %c2 = arith.constant 2 : index
    %c0_17 = arith.constant 0 : index
    %c0_18 = arith.constant 0 : index
    %14 = vector.load %arg1[%c0_16, %c2, %c0_17, %c0_18] : memref<1x4x32x32xbf16, #tpu.memory_space<vmem>>, vector<1x1x28x32xbf16>
    %15 = vector.shape_cast %14 : vector<1x1x28x32xbf16> to vector<28x32xbf16>
    %c2_19 = arith.constant 2 : index
    %c0_20 = arith.constant 0 : index
    %c0_21 = arith.constant 0 : index
    %16 = vector.load %arg2[%c2_19, %c0_20, %c0_21] : memref<5x32x448xbf16, #tpu.memory_space<vmem>>, vector<1x32x448xbf16>
    %17 = vector.shape_cast %16 : vector<1x32x448xbf16> to vector<32x448xbf16>
    %cst_22 = arith.constant dense<0.000000e+00> : vector<28x448xf32>
    %18 = tpu.matmul %15, %17, %cst_22 {dimension_numbers = #tpu.dot_dimension_numbers<[1], [0], [0], [1], [0, 0, 1, 1], [], []>} : vector<28x32xbf16>, vector<32x448xbf16>, vector<28x448xf32> -> vector<28x448xf32>
    %19 = arith.addf %13, %18 : vector<28x448xf32>
    %c0_23 = arith.constant 0 : index
    %c3 = arith.constant 3 : index
    %c0_24 = arith.constant 0 : index
    %c0_25 = arith.constant 0 : index
    %20 = vector.load %arg1[%c0_23, %c3, %c0_24, %c0_25] : memref<1x4x32x32xbf16, #tpu.memory_space<vmem>>, vector<1x1x28x32xbf16>
    %21 = vector.shape_cast %20 : vector<1x1x28x32xbf16> to vector<28x32xbf16>
    %c3_26 = arith.constant 3 : index
    %c0_27 = arith.constant 0 : index
    %c0_28 = arith.constant 0 : index
    %22 = vector.load %arg2[%c3_26, %c0_27, %c0_28] : memref<5x32x448xbf16, #tpu.memory_space<vmem>>, vector<1x32x448xbf16>
    %23 = vector.shape_cast %22 : vector<1x32x448xbf16> to vector<32x448xbf16>
    %cst_29 = arith.constant dense<0.000000e+00> : vector<28x448xf32>
    %24 = tpu.matmul %21, %23, %cst_29 {dimension_numbers = #tpu.dot_dimension_numbers<[1], [0], [0], [1], [0, 0, 1, 1], [], []>} : vector<28x32xbf16>, vector<32x448xbf16>, vector<28x448xf32> -> vector<28x448xf32>
    %25 = arith.addf %19, %24 : vector<28x448xf32>
    %c0_30 = arith.constant 0 : index
    %c0_31 = arith.constant 0 : index
    %c4 = arith.constant 4 : index
    %c0_32 = arith.constant 0 : index
    %26 = vector.load %arg1[%c0_30, %c0_31, %c4, %c0_32] : memref<1x4x32x32xbf16, #tpu.memory_space<vmem>>, vector<1x1x28x32xbf16>
    %27 = vector.shape_cast %26 : vector<1x1x28x32xbf16> to vector<28x32xbf16>
    %c4_33 = arith.constant 4 : index
    %c0_34 = arith.constant 0 : index
    %c0_35 = arith.constant 0 : index
    %28 = vector.load %arg2[%c4_33, %c0_34, %c0_35] : memref<5x32x448xbf16, #tpu.memory_space<vmem>>, vector<1x32x448xbf16>
    %29 = vector.shape_cast %28 : vector<1x32x448xbf16> to vector<32x448xbf16>
    %cst_36 = arith.constant dense<0.000000e+00> : vector<28x448xf32>
    %30 = tpu.matmul %27, %29, %cst_36 {dimension_numbers = #tpu.dot_dimension_numbers<[1], [0], [0], [1], [0, 0, 1, 1], [], []>} : vector<28x32xbf16>, vector<32x448xbf16>, vector<28x448xf32> -> vector<28x448xf32>
    %31 = arith.addf %25, %30 : vector<28x448xf32>
    %cst_37 = arith.constant 0.000000e+00 : f32
    %32 = vector.broadcast %cst_37 : f32 to vector<28x448xf32>
    %c0_38 = arith.constant 0 : index
    %c1_39 = arith.constant 1 : index
    %c0_40 = arith.constant 0 : index
    %c0_41 = arith.constant 0 : index
    %33 = vector.load %arg1[%c0_38, %c1_39, %c0_40, %c0_41] : memref<1x4x32x32xbf16, #tpu.memory_space<vmem>>, vector<1x1x28x32xbf16>
    %34 = vector.shape_cast %33 : vector<1x1x28x32xbf16> to vector<28x32xbf16>
    %c0_42 = arith.constant 0 : index
    %c0_43 = arith.constant 0 : index
    %c0_44 = arith.constant 0 : index
    %35 = vector.load %arg2[%c0_42, %c0_43, %c0_44] : memref<5x32x448xbf16, #tpu.memory_space<vmem>>, vector<1x32x448xbf16>
    %36 = vector.shape_cast %35 : vector<1x32x448xbf16> to vector<32x448xbf16>
    %cst_45 = arith.constant dense<0.000000e+00> : vector<28x448xf32>
    %37 = tpu.matmul %34, %36, %cst_45 {dimension_numbers = #tpu.dot_dimension_numbers<[1], [0], [0], [1], [0, 0, 1, 1], [], []>} : vector<28x32xbf16>, vector<32x448xbf16>, vector<28x448xf32> -> vector<28x448xf32>
    %38 = arith.addf %32, %37 : vector<28x448xf32>
    %c0_46 = arith.constant 0 : index
    %c2_47 = arith.constant 2 : index
    %c0_48 = arith.constant 0 : index
    %c0_49 = arith.constant 0 : index
    %39 = vector.load %arg1[%c0_46, %c2_47, %c0_48, %c0_49] : memref<1x4x32x32xbf16, #tpu.memory_space<vmem>>, vector<1x1x28x32xbf16>
    %40 = vector.shape_cast %39 : vector<1x1x28x32xbf16> to vector<28x32xbf16>
    %c1_50 = arith.constant 1 : index
    %c0_51 = arith.constant 0 : index
    %c0_52 = arith.constant 0 : index
    %41 = vector.load %arg2[%c1_50, %c0_51, %c0_52] : memref<5x32x448xbf16, #tpu.memory_space<vmem>>, vector<1x32x448xbf16>
    %42 = vector.shape_cast %41 : vector<1x32x448xbf16> to vector<32x448xbf16>
    %cst_53 = arith.constant dense<0.000000e+00> : vector<28x448xf32>
    %43 = tpu.matmul %40, %42, %cst_53 {dimension_numbers = #tpu.dot_dimension_numbers<[1], [0], [0], [1], [0, 0, 1, 1], [], []>} : vector<28x32xbf16>, vector<32x448xbf16>, vector<28x448xf32> -> vector<28x448xf32>
    %44 = arith.addf %38, %43 : vector<28x448xf32>
    %c0_54 = arith.constant 0 : index
    %c3_55 = arith.constant 3 : index
    %c0_56 = arith.constant 0 : index
    %c0_57 = arith.constant 0 : index
    %45 = vector.load %arg1[%c0_54, %c3_55, %c0_56, %c0_57] : memref<1x4x32x32xbf16, #tpu.memory_space<vmem>>, vector<1x1x28x32xbf16>
    %46 = vector.shape_cast %45 : vector<1x1x28x32xbf16> to vector<28x32xbf16>
    %c2_58 = arith.constant 2 : index
    %c0_59 = arith.constant 0 : index
    %c0_60 = arith.constant 0 : index
    %47 = vector.load %arg2[%c2_58, %c0_59, %c0_60] : memref<5x32x448xbf16, #tpu.memory_space<vmem>>, vector<1x32x448xbf16>
    %48 = vector.shape_cast %47 : vector<1x32x448xbf16> to vector<32x448xbf16>
    %cst_61 = arith.constant dense<0.000000e+00> : vector<28x448xf32>
    %49 = tpu.matmul %46, %48, %cst_61 {dimension_numbers = #tpu.dot_dimension_numbers<[1], [0], [0], [1], [0, 0, 1, 1], [], []>} : vector<28x32xbf16>, vector<32x448xbf16>, vector<28x448xf32> -> vector<28x448xf32>
    %50 = arith.addf %44, %49 : vector<28x448xf32>
    %c0_62 = arith.constant 0 : index
    %c0_63 = arith.constant 0 : index
    %c4_64 = arith.constant 4 : index
    %c0_65 = arith.constant 0 : index
    %51 = vector.load %arg1[%c0_62, %c0_63, %c4_64, %c0_65] : memref<1x4x32x32xbf16, #tpu.memory_space<vmem>>, vector<1x1x28x32xbf16>
    %52 = vector.shape_cast %51 : vector<1x1x28x32xbf16> to vector<28x32xbf16>
    %c3_66 = arith.constant 3 : index
    %c0_67 = arith.constant 0 : index
    %c0_68 = arith.constant 0 : index
    %53 = vector.load %arg2[%c3_66, %c0_67, %c0_68] : memref<5x32x448xbf16, #tpu.memory_space<vmem>>, vector<1x32x448xbf16>
    %54 = vector.shape_cast %53 : vector<1x32x448xbf16> to vector<32x448xbf16>
    %cst_69 = arith.constant dense<0.000000e+00> : vector<28x448xf32>
    %55 = tpu.matmul %52, %54, %cst_69 {dimension_numbers = #tpu.dot_dimension_numbers<[1], [0], [0], [1], [0, 0, 1, 1], [], []>} : vector<28x32xbf16>, vector<32x448xbf16>, vector<28x448xf32> -> vector<28x448xf32>
    %56 = arith.addf %50, %55 : vector<28x448xf32>
    %c0_70 = arith.constant 0 : index
    %c1_71 = arith.constant 1 : index
    %c4_72 = arith.constant 4 : index
    %c0_73 = arith.constant 0 : index
    %57 = vector.load %arg1[%c0_70, %c1_71, %c4_72, %c0_73] : memref<1x4x32x32xbf16, #tpu.memory_space<vmem>>, vector<1x1x28x32xbf16>
    %58 = vector.shape_cast %57 : vector<1x1x28x32xbf16> to vector<28x32xbf16>
    %c4_74 = arith.constant 4 : index
    %c0_75 = arith.constant 0 : index
    %c0_76 = arith.constant 0 : index
    %59 = vector.load %arg2[%c4_74, %c0_75, %c0_76] : memref<5x32x448xbf16, #tpu.memory_space<vmem>>, vector<1x32x448xbf16>
    %60 = vector.shape_cast %59 : vector<1x32x448xbf16> to vector<32x448xbf16>
    %cst_77 = arith.constant dense<0.000000e+00> : vector<28x448xf32>
    %61 = tpu.matmul %58, %60, %cst_77 {dimension_numbers = #tpu.dot_dimension_numbers<[1], [0], [0], [1], [0, 0, 1, 1], [], []>} : vector<28x32xbf16>, vector<32x448xbf16>, vector<28x448xf32> -> vector<28x448xf32>
    %62 = arith.addf %56, %61 : vector<28x448xf32>
    %63 = arith.maximumf %31, %62 : vector<28x448xf32>
    %64 = vector.broadcast %0 : vector<1x448xf32> to vector<28x448xf32>
    %65 = arith.addf %63, %64 : vector<28x448xf32>
    %cst_78 = arith.constant 0.000000e+00 : f32
    %66 = vector.broadcast %cst_78 : f32 to vector<28x448xf32>
    %67 = arith.maximumf %65, %66 : vector<28x448xf32>
    %68 = vector.extract_strided_slice %67 {offsets = [0, 0], sizes = [28, 224], strides = [1, 1]} : vector<28x448xf32> to vector<28x224xf32>
    %69 = vector.extract_strided_slice %67 {offsets = [0, 224], sizes = [28, 224], strides = [1, 1]} : vector<28x448xf32> to vector<28x224xf32>
    %70 = arith.maximumf %68, %69 : vector<28x224xf32>
    %71 = arith.truncf %70 : vector<28x224xf32> to vector<28x224xbf16>
    %cst_79 = arith.constant 0.000000e+00 : f32
    %72 = vector.broadcast %cst_79 : f32 to vector<28x448xf32>
    %c0_80 = arith.constant 0 : index
    %c2_81 = arith.constant 2 : index
    %c0_82 = arith.constant 0 : index
    %c0_83 = arith.constant 0 : index
    %73 = vector.load %arg1[%c0_80, %c2_81, %c0_82, %c0_83] : memref<1x4x32x32xbf16, #tpu.memory_space<vmem>>, vector<1x1x28x32xbf16>
    %74 = vector.shape_cast %73 : vector<1x1x28x32xbf16> to vector<28x32xbf16>
    %c0_84 = arith.constant 0 : index
    %c0_85 = arith.constant 0 : index
    %c0_86 = arith.constant 0 : index
    %75 = vector.load %arg2[%c0_84, %c0_85, %c0_86] : memref<5x32x448xbf16, #tpu.memory_space<vmem>>, vector<1x32x448xbf16>
    %76 = vector.shape_cast %75 : vector<1x32x448xbf16> to vector<32x448xbf16>
    %cst_87 = arith.constant dense<0.000000e+00> : vector<28x448xf32>
    %77 = tpu.matmul %74, %76, %cst_87 {dimension_numbers = #tpu.dot_dimension_numbers<[1], [0], [0], [1], [0, 0, 1, 1], [], []>} : vector<28x32xbf16>, vector<32x448xbf16>, vector<28x448xf32> -> vector<28x448xf32>
    %78 = arith.addf %72, %77 : vector<28x448xf32>
    %c0_88 = arith.constant 0 : index
    %c3_89 = arith.constant 3 : index
    %c0_90 = arith.constant 0 : index
    %c0_91 = arith.constant 0 : index
    %79 = vector.load %arg1[%c0_88, %c3_89, %c0_90, %c0_91] : memref<1x4x32x32xbf16, #tpu.memory_space<vmem>>, vector<1x1x28x32xbf16>
    %80 = vector.shape_cast %79 : vector<1x1x28x32xbf16> to vector<28x32xbf16>
    %c1_92 = arith.constant 1 : index
    %c0_93 = arith.constant 0 : index
    %c0_94 = arith.constant 0 : index
    %81 = vector.load %arg2[%c1_92, %c0_93, %c0_94] : memref<5x32x448xbf16, #tpu.memory_space<vmem>>, vector<1x32x448xbf16>
    %82 = vector.shape_cast %81 : vector<1x32x448xbf16> to vector<32x448xbf16>
    %cst_95 = arith.constant dense<0.000000e+00> : vector<28x448xf32>
    %83 = tpu.matmul %80, %82, %cst_95 {dimension_numbers = #tpu.dot_dimension_numbers<[1], [0], [0], [1], [0, 0, 1, 1], [], []>} : vector<28x32xbf16>, vector<32x448xbf16>, vector<28x448xf32> -> vector<28x448xf32>
    %84 = arith.addf %78, %83 : vector<28x448xf32>
    %c0_96 = arith.constant 0 : index
    %c0_97 = arith.constant 0 : index
    %c4_98 = arith.constant 4 : index
    %c0_99 = arith.constant 0 : index
    %85 = vector.load %arg1[%c0_96, %c0_97, %c4_98, %c0_99] : memref<1x4x32x32xbf16, #tpu.memory_space<vmem>>, vector<1x1x28x32xbf16>
    %86 = vector.shape_cast %85 : vector<1x1x28x32xbf16> to vector<28x32xbf16>
    %c2_100 = arith.constant 2 : index
    %c0_101 = arith.constant 0 : index
    %c0_102 = arith.constant 0 : index
    %87 = vector.load %arg2[%c2_100, %c0_101, %c0_102] : memref<5x32x448xbf16, #tpu.memory_space<vmem>>, vector<1x32x448xbf16>
    %88 = vector.shape_cast %87 : vector<1x32x448xbf16> to vector<32x448xbf16>
    %cst_103 = arith.constant dense<0.000000e+00> : vector<28x448xf32>
    %89 = tpu.matmul %86, %88, %cst_103 {dimension_numbers = #tpu.dot_dimension_numbers<[1], [0], [0], [1], [0, 0, 1, 1], [], []>} : vector<28x32xbf16>, vector<32x448xbf16>, vector<28x448xf32> -> vector<28x448xf32>
    %90 = arith.addf %84, %89 : vector<28x448xf32>
    %c0_104 = arith.constant 0 : index
    %c1_105 = arith.constant 1 : index
    %c4_106 = arith.constant 4 : index
    %c0_107 = arith.constant 0 : index
    %91 = vector.load %arg1[%c0_104, %c1_105, %c4_106, %c0_107] : memref<1x4x32x32xbf16, #tpu.memory_space<vmem>>, vector<1x1x28x32xbf16>
    %92 = vector.shape_cast %91 : vector<1x1x28x32xbf16> to vector<28x32xbf16>
    %c3_108 = arith.constant 3 : index
    %c0_109 = arith.constant 0 : index
    %c0_110 = arith.constant 0 : index
    %93 = vector.load %arg2[%c3_108, %c0_109, %c0_110] : memref<5x32x448xbf16, #tpu.memory_space<vmem>>, vector<1x32x448xbf16>
    %94 = vector.shape_cast %93 : vector<1x32x448xbf16> to vector<32x448xbf16>
    %cst_111 = arith.constant dense<0.000000e+00> : vector<28x448xf32>
    %95 = tpu.matmul %92, %94, %cst_111 {dimension_numbers = #tpu.dot_dimension_numbers<[1], [0], [0], [1], [0, 0, 1, 1], [], []>} : vector<28x32xbf16>, vector<32x448xbf16>, vector<28x448xf32> -> vector<28x448xf32>
    %96 = arith.addf %90, %95 : vector<28x448xf32>
    %c0_112 = arith.constant 0 : index
    %c2_113 = arith.constant 2 : index
    %c4_114 = arith.constant 4 : index
    %c0_115 = arith.constant 0 : index
    %97 = vector.load %arg1[%c0_112, %c2_113, %c4_114, %c0_115] : memref<1x4x32x32xbf16, #tpu.memory_space<vmem>>, vector<1x1x28x32xbf16>
    %98 = vector.shape_cast %97 : vector<1x1x28x32xbf16> to vector<28x32xbf16>
    %c4_116 = arith.constant 4 : index
    %c0_117 = arith.constant 0 : index
    %c0_118 = arith.constant 0 : index
    %99 = vector.load %arg2[%c4_116, %c0_117, %c0_118] : memref<5x32x448xbf16, #tpu.memory_space<vmem>>, vector<1x32x448xbf16>
    %100 = vector.shape_cast %99 : vector<1x32x448xbf16> to vector<32x448xbf16>
    %cst_119 = arith.constant dense<0.000000e+00> : vector<28x448xf32>
    %101 = tpu.matmul %98, %100, %cst_119 {dimension_numbers = #tpu.dot_dimension_numbers<[1], [0], [0], [1], [0, 0, 1, 1], [], []>} : vector<28x32xbf16>, vector<32x448xbf16>, vector<28x448xf32> -> vector<28x448xf32>
    %102 = arith.addf %96, %101 : vector<28x448xf32>
    %cst_120 = arith.constant 0.000000e+00 : f32
    %103 = vector.broadcast %cst_120 : f32 to vector<28x448xf32>
    %c0_121 = arith.constant 0 : index
    %c3_122 = arith.constant 3 : index
    %c0_123 = arith.constant 0 : index
    %c0_124 = arith.constant 0 : index
    %104 = vector.load %arg1[%c0_121, %c3_122, %c0_123, %c0_124] : memref<1x4x32x32xbf16, #tpu.memory_space<vmem>>, vector<1x1x28x32xbf16>
    %105 = vector.shape_cast %104 : vector<1x1x28x32xbf16> to vector<28x32xbf16>
    %c0_125 = arith.constant 0 : index
    %c0_126 = arith.constant 0 : index
    %c0_127 = arith.constant 0 : index
    %106 = vector.load %arg2[%c0_125, %c0_126, %c0_127] : memref<5x32x448xbf16, #tpu.memory_space<vmem>>, vector<1x32x448xbf16>
    %107 = vector.shape_cast %106 : vector<1x32x448xbf16> to vector<32x448xbf16>
    %cst_128 = arith.constant dense<0.000000e+00> : vector<28x448xf32>
    %108 = tpu.matmul %105, %107, %cst_128 {dimension_numbers = #tpu.dot_dimension_numbers<[1], [0], [0], [1], [0, 0, 1, 1], [], []>} : vector<28x32xbf16>, vector<32x448xbf16>, vector<28x448xf32> -> vector<28x448xf32>
    %109 = arith.addf %103, %108 : vector<28x448xf32>
    %c0_129 = arith.constant 0 : index
    %c0_130 = arith.constant 0 : index
    %c4_131 = arith.constant 4 : index
    %c0_132 = arith.constant 0 : index
    %110 = vector.load %arg1[%c0_129, %c0_130, %c4_131, %c0_132] : memref<1x4x32x32xbf16, #tpu.memory_space<vmem>>, vector<1x1x28x32xbf16>
    %111 = vector.shape_cast %110 : vector<1x1x28x32xbf16> to vector<28x32xbf16>
    %c1_133 = arith.constant 1 : index
    %c0_134 = arith.constant 0 : index
    %c0_135 = arith.constant 0 : index
    %112 = vector.load %arg2[%c1_133, %c0_134, %c0_135] : memref<5x32x448xbf16, #tpu.memory_space<vmem>>, vector<1x32x448xbf16>
    %113 = vector.shape_cast %112 : vector<1x32x448xbf16> to vector<32x448xbf16>
    %cst_136 = arith.constant dense<0.000000e+00> : vector<28x448xf32>
    %114 = tpu.matmul %111, %113, %cst_136 {dimension_numbers = #tpu.dot_dimension_numbers<[1], [0], [0], [1], [0, 0, 1, 1], [], []>} : vector<28x32xbf16>, vector<32x448xbf16>, vector<28x448xf32> -> vector<28x448xf32>
    %115 = arith.addf %109, %114 : vector<28x448xf32>
    %c0_137 = arith.constant 0 : index
    %c1_138 = arith.constant 1 : index
    %c4_139 = arith.constant 4 : index
    %c0_140 = arith.constant 0 : index
    %116 = vector.load %arg1[%c0_137, %c1_138, %c4_139, %c0_140] : memref<1x4x32x32xbf16, #tpu.memory_space<vmem>>, vector<1x1x28x32xbf16>
    %117 = vector.shape_cast %116 : vector<1x1x28x32xbf16> to vector<28x32xbf16>
    %c2_141 = arith.constant 2 : index
    %c0_142 = arith.constant 0 : index
    %c0_143 = arith.constant 0 : index
    %118 = vector.load %arg2[%c2_141, %c0_142, %c0_143] : memref<5x32x448xbf16, #tpu.memory_space<vmem>>, vector<1x32x448xbf16>
    %119 = vector.shape_cast %118 : vector<1x32x448xbf16> to vector<32x448xbf16>
    %cst_144 = arith.constant dense<0.000000e+00> : vector<28x448xf32>
    %120 = tpu.matmul %117, %119, %cst_144 {dimension_numbers = #tpu.dot_dimension_numbers<[1], [0], [0], [1], [0, 0, 1, 1], [], []>} : vector<28x32xbf16>, vector<32x448xbf16>, vector<28x448xf32> -> vector<28x448xf32>
    %121 = arith.addf %115, %120 : vector<28x448xf32>
    %c0_145 = arith.constant 0 : index
    %c2_146 = arith.constant 2 : index
    %c4_147 = arith.constant 4 : index
    %c0_148 = arith.constant 0 : index
    %122 = vector.load %arg1[%c0_145, %c2_146, %c4_147, %c0_148] : memref<1x4x32x32xbf16, #tpu.memory_space<vmem>>, vector<1x1x28x32xbf16>
    %123 = vector.shape_cast %122 : vector<1x1x28x32xbf16> to vector<28x32xbf16>
    %c3_149 = arith.constant 3 : index
    %c0_150 = arith.constant 0 : index
    %c0_151 = arith.constant 0 : index
    %124 = vector.load %arg2[%c3_149, %c0_150, %c0_151] : memref<5x32x448xbf16, #tpu.memory_space<vmem>>, vector<1x32x448xbf16>
    %125 = vector.shape_cast %124 : vector<1x32x448xbf16> to vector<32x448xbf16>
    %cst_152 = arith.constant dense<0.000000e+00> : vector<28x448xf32>
    %126 = tpu.matmul %123, %125, %cst_152 {dimension_numbers = #tpu.dot_dimension_numbers<[1], [0], [0], [1], [0, 0, 1, 1], [], []>} : vector<28x32xbf16>, vector<32x448xbf16>, vector<28x448xf32> -> vector<28x448xf32>
    %127 = arith.addf %121, %126 : vector<28x448xf32>
    %c0_153 = arith.constant 0 : index
    %c3_154 = arith.constant 3 : index
    %c4_155 = arith.constant 4 : index
    %c0_156 = arith.constant 0 : index
    %128 = vector.load %arg1[%c0_153, %c3_154, %c4_155, %c0_156] : memref<1x4x32x32xbf16, #tpu.memory_space<vmem>>, vector<1x1x28x32xbf16>
    %129 = vector.shape_cast %128 : vector<1x1x28x32xbf16> to vector<28x32xbf16>
    %c4_157 = arith.constant 4 : index
    %c0_158 = arith.constant 0 : index
    %c0_159 = arith.constant 0 : index
    %130 = vector.load %arg2[%c4_157, %c0_158, %c0_159] : memref<5x32x448xbf16, #tpu.memory_space<vmem>>, vector<1x32x448xbf16>
    %131 = vector.shape_cast %130 : vector<1x32x448xbf16> to vector<32x448xbf16>
    %cst_160 = arith.constant dense<0.000000e+00> : vector<28x448xf32>
    %132 = tpu.matmul %129, %131, %cst_160 {dimension_numbers = #tpu.dot_dimension_numbers<[1], [0], [0], [1], [0, 0, 1, 1], [], []>} : vector<28x32xbf16>, vector<32x448xbf16>, vector<28x448xf32> -> vector<28x448xf32>
    %133 = arith.addf %127, %132 : vector<28x448xf32>
    %134 = arith.maximumf %102, %133 : vector<28x448xf32>
    %135 = vector.broadcast %0 : vector<1x448xf32> to vector<28x448xf32>
    %136 = arith.addf %134, %135 : vector<28x448xf32>
    %cst_161 = arith.constant 0.000000e+00 : f32
    %137 = vector.broadcast %cst_161 : f32 to vector<28x448xf32>
    %138 = arith.maximumf %136, %137 : vector<28x448xf32>
    %139 = vector.extract_strided_slice %138 {offsets = [0, 0], sizes = [28, 224], strides = [1, 1]} : vector<28x448xf32> to vector<28x224xf32>
    %140 = vector.extract_strided_slice %138 {offsets = [0, 224], sizes = [28, 224], strides = [1, 1]} : vector<28x448xf32> to vector<28x224xf32>
    %141 = arith.maximumf %139, %140 : vector<28x224xf32>
    %142 = arith.truncf %141 : vector<28x224xf32> to vector<28x224xbf16>
    %cst_162 = arith.constant 0.000000e+00 : bf16
    %143 = vector.broadcast %cst_162 : bf16 to vector<4x224xbf16>
    %c0_163 = arith.constant 0 : index
    %c0_164 = arith.constant 0 : index
    %144 = vector.load %arg9[%c0_163, %c0_164] : memref<36x224xbf16, #tpu.memory_space<vmem>>, vector<4x224xbf16>
    tpu.vector_store %arg9[%c0_163, %c0_164], %143 {strides = array<i32>} : memref<36x224xbf16, #tpu.memory_space<vmem>>, vector<4x224xbf16>,
    %c32 = arith.constant 32 : index
    %c0_165 = arith.constant 0 : index
    %145 = vector.load %arg9[%c32, %c0_165] : memref<36x224xbf16, #tpu.memory_space<vmem>>, vector<4x224xbf16>
    tpu.vector_store %arg9[%c32, %c0_165], %143 {strides = array<i32>} : memref<36x224xbf16, #tpu.memory_space<vmem>>, vector<4x224xbf16>,
    %c4_166 = arith.constant 4 : index
    %c0_167 = arith.constant 0 : index
    %146 = vector.load %arg9[%c4_166, %c0_167] : memref<36x224xbf16, #tpu.memory_space<vmem>>, vector<28x224xbf16>
    tpu.vector_store %arg9[%c4_166, %c0_167], %71 {strides = array<i32>} : memref<36x224xbf16, #tpu.memory_space<vmem>>, vector<28x224xbf16>,
    %c0_168 = arith.constant 0 : index
    %c0_169 = arith.constant 0 : index
    %147 = vector.load %arg10[%c0_168, %c0_169] : memref<36x224xbf16, #tpu.memory_space<vmem>>, vector<4x224xbf16>
    tpu.vector_store %arg10[%c0_168, %c0_169], %143 {strides = array<i32>} : memref<36x224xbf16, #tpu.memory_space<vmem>>, vector<4x224xbf16>,
    %c32_170 = arith.constant 32 : index
    %c0_171 = arith.constant 0 : index
    %148 = vector.load %arg10[%c32_170, %c0_171] : memref<36x224xbf16, #tpu.memory_space<vmem>>, vector<4x224xbf16>
    tpu.vector_store %arg10[%c32_170, %c0_171], %143 {strides = array<i32>} : memref<36x224xbf16, #tpu.memory_space<vmem>>, vector<4x224xbf16>,
    %c4_172 = arith.constant 4 : index
    %c0_173 = arith.constant 0 : index
    %149 = vector.load %arg10[%c4_172, %c0_173] : memref<36x224xbf16, #tpu.memory_space<vmem>>, vector<28x224xbf16>
    tpu.vector_store %arg10[%c4_172, %c0_173], %142 {strides = array<i32>} : memref<36x224xbf16, #tpu.memory_space<vmem>>, vector<28x224xbf16>,
    %cst_174 = arith.constant 0.000000e+00 : f32
    %150 = vector.broadcast %cst_174 : f32 to vector<28x448xf32>
    %cst_175 = arith.constant 0.000000e+00 : f32
    %151 = vector.broadcast %cst_175 : f32 to vector<28x448xf32>
    %c0_176 = arith.constant 0 : index
    %c0_177 = arith.constant 0 : index
    %c0_178 = arith.constant 0 : index
    %152 = vector.load %arg4[%c0_176, %c0_177, %c0_178] : memref<5x224x448xbf16, #tpu.memory_space<vmem>>, vector<1x224x448xbf16>
    %153 = vector.shape_cast %152 : vector<1x224x448xbf16> to vector<224x448xbf16>
    %c0_179 = arith.constant 0 : index
    %c0_180 = arith.constant 0 : index
    %154 = vector.load %arg9[%c0_179, %c0_180] : memref<36x224xbf16, #tpu.memory_space<vmem>>, vector<28x224xbf16>
    %c0_181 = arith.constant 0 : index
    %c0_182 = arith.constant 0 : index
    %155 = vector.load %arg10[%c0_181, %c0_182] : memref<36x224xbf16, #tpu.memory_space<vmem>>, vector<28x224xbf16>
    %cst_183 = arith.constant dense<0.000000e+00> : vector<28x448xf32>
    %156 = tpu.matmul %154, %153, %cst_183 {dimension_numbers = #tpu.dot_dimension_numbers<[1], [0], [0], [1], [0, 0, 1, 1], [], []>} : vector<28x224xbf16>, vector<224x448xbf16>, vector<28x448xf32> -> vector<28x448xf32>
    %157 = arith.addf %150, %156 : vector<28x448xf32>
    %cst_184 = arith.constant dense<0.000000e+00> : vector<28x448xf32>
    %158 = tpu.matmul %155, %153, %cst_184 {dimension_numbers = #tpu.dot_dimension_numbers<[1], [0], [0], [1], [0, 0, 1, 1], [], []>} : vector<28x224xbf16>, vector<224x448xbf16>, vector<28x448xf32> -> vector<28x448xf32>
    %159 = arith.addf %151, %158 : vector<28x448xf32>
    %c1_185 = arith.constant 1 : index
    %c0_186 = arith.constant 0 : index
    %c0_187 = arith.constant 0 : index
    %160 = vector.load %arg4[%c1_185, %c0_186, %c0_187] : memref<5x224x448xbf16, #tpu.memory_space<vmem>>, vector<1x224x448xbf16>
    %161 = vector.shape_cast %160 : vector<1x224x448xbf16> to vector<224x448xbf16>
    %c0_188 = arith.constant 0 : index
    %c0_189 = arith.constant 0 : index
    %162 = vector.load %arg10[%c0_188, %c0_189] : memref<36x224xbf16, #tpu.memory_space<vmem>>, vector<28x224xbf16>
    %c4_190 = arith.constant 4 : index
    %c0_191 = arith.constant 0 : index
    %163 = vector.load %arg9[%c4_190, %c0_191] : memref<36x224xbf16, #tpu.memory_space<vmem>>, vector<28x224xbf16>
    %cst_192 = arith.constant dense<0.000000e+00> : vector<28x448xf32>
    %164 = tpu.matmul %162, %161, %cst_192 {dimension_numbers = #tpu.dot_dimension_numbers<[1], [0], [0], [1], [0, 0, 1, 1], [], []>} : vector<28x224xbf16>, vector<224x448xbf16>, vector<28x448xf32> -> vector<28x448xf32>
    %165 = arith.addf %157, %164 : vector<28x448xf32>
    %cst_193 = arith.constant dense<0.000000e+00> : vector<28x448xf32>
    %166 = tpu.matmul %163, %161, %cst_193 {dimension_numbers = #tpu.dot_dimension_numbers<[1], [0], [0], [1], [0, 0, 1, 1], [], []>} : vector<28x224xbf16>, vector<224x448xbf16>, vector<28x448xf32> -> vector<28x448xf32>
    %167 = arith.addf %159, %166 : vector<28x448xf32>
    %c2_194 = arith.constant 2 : index
    %c0_195 = arith.constant 0 : index
    %c0_196 = arith.constant 0 : index
    %168 = vector.load %arg4[%c2_194, %c0_195, %c0_196] : memref<5x224x448xbf16, #tpu.memory_space<vmem>>, vector<1x224x448xbf16>
    %169 = vector.shape_cast %168 : vector<1x224x448xbf16> to vector<224x448xbf16>
    %c4_197 = arith.constant 4 : index
    %c0_198 = arith.constant 0 : index
    %170 = vector.load %arg9[%c4_197, %c0_198] : memref<36x224xbf16, #tpu.memory_space<vmem>>, vector<28x224xbf16>
    %c4_199 = arith.constant 4 : index
    %c0_200 = arith.constant 0 : index
    %171 = vector.load %arg10[%c4_199, %c0_200] : memref<36x224xbf16, #tpu.memory_space<vmem>>, vector<28x224xbf16>
    %cst_201 = arith.constant dense<0.000000e+00> : vector<28x448xf32>
    %172 = tpu.matmul %170, %169, %cst_201 {dimension_numbers = #tpu.dot_dimension_numbers<[1], [0], [0], [1], [0, 0, 1, 1], [], []>} : vector<28x224xbf16>, vector<224x448xbf16>, vector<28x448xf32> -> vector<28x448xf32>
    %173 = arith.addf %165, %172 : vector<28x448xf32>
    %cst_202 = arith.constant dense<0.000000e+00> : vector<28x448xf32>
    %174 = tpu.matmul %171, %169, %cst_202 {dimension_numbers = #tpu.dot_dimension_numbers<[1], [0], [0], [1], [0, 0, 1, 1], [], []>} : vector<28x224xbf16>, vector<224x448xbf16>, vector<28x448xf32> -> vector<28x448xf32>
    %175 = arith.addf %167, %174 : vector<28x448xf32>
    %c3_203 = arith.constant 3 : index
    %c0_204 = arith.constant 0 : index
    %c0_205 = arith.constant 0 : index
    %176 = vector.load %arg4[%c3_203, %c0_204, %c0_205] : memref<5x224x448xbf16, #tpu.memory_space<vmem>>, vector<1x224x448xbf16>
    %177 = vector.shape_cast %176 : vector<1x224x448xbf16> to vector<224x448xbf16>
    %c4_206 = arith.constant 4 : index
    %c0_207 = arith.constant 0 : index
    %178 = vector.load %arg10[%c4_206, %c0_207] : memref<36x224xbf16, #tpu.memory_space<vmem>>, vector<28x224xbf16>
    %c8 = arith.constant 8 : index
    %c0_208 = arith.constant 0 : index
    %179 = vector.load %arg9[%c8, %c0_208] : memref<36x224xbf16, #tpu.memory_space<vmem>>, vector<28x224xbf16>
    %cst_209 = arith.constant dense<0.000000e+00> : vector<28x448xf32>
    %180 = tpu.matmul %178, %177, %cst_209 {dimension_numbers = #tpu.dot_dimension_numbers<[1], [0], [0], [1], [0, 0, 1, 1], [], []>} : vector<28x224xbf16>, vector<224x448xbf16>, vector<28x448xf32> -> vector<28x448xf32>
    %181 = arith.addf %173, %180 : vector<28x448xf32>
    %cst_210 = arith.constant dense<0.000000e+00> : vector<28x448xf32>
    %182 = tpu.matmul %179, %177, %cst_210 {dimension_numbers = #tpu.dot_dimension_numbers<[1], [0], [0], [1], [0, 0, 1, 1], [], []>} : vector<28x224xbf16>, vector<224x448xbf16>, vector<28x448xf32> -> vector<28x448xf32>
    %183 = arith.addf %175, %182 : vector<28x448xf32>
    %c4_211 = arith.constant 4 : index
    %c0_212 = arith.constant 0 : index
    %c0_213 = arith.constant 0 : index
    %184 = vector.load %arg4[%c4_211, %c0_212, %c0_213] : memref<5x224x448xbf16, #tpu.memory_space<vmem>>, vector<1x224x448xbf16>
    %185 = vector.shape_cast %184 : vector<1x224x448xbf16> to vector<224x448xbf16>
    %c8_214 = arith.constant 8 : index
    %c0_215 = arith.constant 0 : index
    %186 = vector.load %arg9[%c8_214, %c0_215] : memref<36x224xbf16, #tpu.memory_space<vmem>>, vector<28x224xbf16>
    %c8_216 = arith.constant 8 : index
    %c0_217 = arith.constant 0 : index
    %187 = vector.load %arg10[%c8_216, %c0_217] : memref<36x224xbf16, #tpu.memory_space<vmem>>, vector<28x224xbf16>
    %cst_218 = arith.constant dense<0.000000e+00> : vector<28x448xf32>
    %188 = tpu.matmul %186, %185, %cst_218 {dimension_numbers = #tpu.dot_dimension_numbers<[1], [0], [0], [1], [0, 0, 1, 1], [], []>} : vector<28x224xbf16>, vector<224x448xbf16>, vector<28x448xf32> -> vector<28x448xf32>
    %189 = arith.addf %181, %188 : vector<28x448xf32>
    %cst_219 = arith.constant dense<0.000000e+00> : vector<28x448xf32>
    %190 = tpu.matmul %187, %185, %cst_219 {dimension_numbers = #tpu.dot_dimension_numbers<[1], [0], [0], [1], [0, 0, 1, 1], [], []>} : vector<28x224xbf16>, vector<224x448xbf16>, vector<28x448xf32> -> vector<28x448xf32>
    %191 = arith.addf %183, %190 : vector<28x448xf32>
    %192 = arith.maximumf %189, %191 : vector<28x448xf32>
    %c0_220 = arith.constant 0 : index
    %c0_221 = arith.constant 0 : index
    %193 = vector.load %arg5[%c0_220, %c0_221] : memref<1x448xf32, #tpu.memory_space<vmem>>, vector<1x448xf32>
    %194 = vector.broadcast %193 : vector<1x448xf32> to vector<28x448xf32>
    %195 = arith.addf %192, %194 : vector<28x448xf32>
    %cst_222 = arith.constant 0.000000e+00 : f32
    %196 = vector.broadcast %cst_222 : f32 to vector<28x448xf32>
    %197 = arith.maximumf %195, %196 : vector<28x448xf32>
    %198 = vector.extract_strided_slice %197 {offsets = [0, 0], sizes = [28, 224], strides = [1, 1]} : vector<28x448xf32> to vector<28x224xf32>
    %199 = vector.extract_strided_slice %197 {offsets = [0, 224], sizes = [28, 224], strides = [1, 1]} : vector<28x448xf32> to vector<28x224xf32>
    %200 = arith.maximumf %198, %199 : vector<28x224xf32>
    %201 = arith.truncf %200 : vector<28x224xf32> to vector<28x224xbf16>
    %cst_223 = arith.constant 0.000000e+00 : f32
    %202 = vector.broadcast %cst_223 : f32 to vector<4x10xf32>
    %203 = vector.extract_strided_slice %201 {offsets = [0, 0], sizes = [4, 224], strides = [1, 1]} : vector<28x224xbf16> to vector<4x224xbf16>
    %c0_224 = arith.constant 0 : index
    %c0_225 = arith.constant 0 : index
    %c0_226 = arith.constant 0 : index
    %204 = vector.load %arg6[%c0_224, %c0_225, %c0_226] : memref<7x224x10xbf16, #tpu.memory_space<vmem>>, vector<1x224x10xbf16>
    %205 = vector.shape_cast %204 : vector<1x224x10xbf16> to vector<224x10xbf16>
    %cst_227 = arith.constant dense<0.000000e+00> : vector<4x10xf32>
    %206 = tpu.matmul %203, %205, %cst_227 {dimension_numbers = #tpu.dot_dimension_numbers<[1], [0], [0], [1], [0, 0, 1, 1], [], []>} : vector<4x224xbf16>, vector<224x10xbf16>, vector<4x10xf32> -> vector<4x10xf32>
    %207 = arith.addf %202, %206 : vector<4x10xf32>
    %208 = vector.extract_strided_slice %201 {offsets = [4, 0], sizes = [4, 224], strides = [1, 1]} : vector<28x224xbf16> to vector<4x224xbf16>
    %c1_228 = arith.constant 1 : index
    %c0_229 = arith.constant 0 : index
    %c0_230 = arith.constant 0 : index
    %209 = vector.load %arg6[%c1_228, %c0_229, %c0_230] : memref<7x224x10xbf16, #tpu.memory_space<vmem>>, vector<1x224x10xbf16>
    %210 = vector.shape_cast %209 : vector<1x224x10xbf16> to vector<224x10xbf16>
    %cst_231 = arith.constant dense<0.000000e+00> : vector<4x10xf32>
    %211 = tpu.matmul %208, %210, %cst_231 {dimension_numbers = #tpu.dot_dimension_numbers<[1], [0], [0], [1], [0, 0, 1, 1], [], []>} : vector<4x224xbf16>, vector<224x10xbf16>, vector<4x10xf32> -> vector<4x10xf32>
    %212 = arith.addf %207, %211 : vector<4x10xf32>
    %213 = vector.extract_strided_slice %201 {offsets = [8, 0], sizes = [4, 224], strides = [1, 1]} : vector<28x224xbf16> to vector<4x224xbf16>
    %c2_232 = arith.constant 2 : index
    %c0_233 = arith.constant 0 : index
    %c0_234 = arith.constant 0 : index
    %214 = vector.load %arg6[%c2_232, %c0_233, %c0_234] : memref<7x224x10xbf16, #tpu.memory_space<vmem>>, vector<1x224x10xbf16>
    %215 = vector.shape_cast %214 : vector<1x224x10xbf16> to vector<224x10xbf16>
    %cst_235 = arith.constant dense<0.000000e+00> : vector<4x10xf32>
    %216 = tpu.matmul %213, %215, %cst_235 {dimension_numbers = #tpu.dot_dimension_numbers<[1], [0], [0], [1], [0, 0, 1, 1], [], []>} : vector<4x224xbf16>, vector<224x10xbf16>, vector<4x10xf32> -> vector<4x10xf32>
    %217 = arith.addf %212, %216 : vector<4x10xf32>
    %218 = vector.extract_strided_slice %201 {offsets = [12, 0], sizes = [4, 224], strides = [1, 1]} : vector<28x224xbf16> to vector<4x224xbf16>
    %c3_236 = arith.constant 3 : index
    %c0_237 = arith.constant 0 : index
    %c0_238 = arith.constant 0 : index
    %219 = vector.load %arg6[%c3_236, %c0_237, %c0_238] : memref<7x224x10xbf16, #tpu.memory_space<vmem>>, vector<1x224x10xbf16>
    %220 = vector.shape_cast %219 : vector<1x224x10xbf16> to vector<224x10xbf16>
    %cst_239 = arith.constant dense<0.000000e+00> : vector<4x10xf32>
    %221 = tpu.matmul %218, %220, %cst_239 {dimension_numbers = #tpu.dot_dimension_numbers<[1], [0], [0], [1], [0, 0, 1, 1], [], []>} : vector<4x224xbf16>, vector<224x10xbf16>, vector<4x10xf32> -> vector<4x10xf32>
    %222 = arith.addf %217, %221 : vector<4x10xf32>
    %223 = vector.extract_strided_slice %201 {offsets = [16, 0], sizes = [4, 224], strides = [1, 1]} : vector<28x224xbf16> to vector<4x224xbf16>
    %c4_240 = arith.constant 4 : index
    %c0_241 = arith.constant 0 : index
    %c0_242 = arith.constant 0 : index
    %224 = vector.load %arg6[%c4_240, %c0_241, %c0_242] : memref<7x224x10xbf16, #tpu.memory_space<vmem>>, vector<1x224x10xbf16>
    %225 = vector.shape_cast %224 : vector<1x224x10xbf16> to vector<224x10xbf16>
    %cst_243 = arith.constant dense<0.000000e+00> : vector<4x10xf32>
    %226 = tpu.matmul %223, %225, %cst_243 {dimension_numbers = #tpu.dot_dimension_numbers<[1], [0], [0], [1], [0, 0, 1, 1], [], []>} : vector<4x224xbf16>, vector<224x10xbf16>, vector<4x10xf32> -> vector<4x10xf32>
    %227 = arith.addf %222, %226 : vector<4x10xf32>
    %228 = vector.extract_strided_slice %201 {offsets = [20, 0], sizes = [4, 224], strides = [1, 1]} : vector<28x224xbf16> to vector<4x224xbf16>
    %c5 = arith.constant 5 : index
    %c0_244 = arith.constant 0 : index
    %c0_245 = arith.constant 0 : index
    %229 = vector.load %arg6[%c5, %c0_244, %c0_245] : memref<7x224x10xbf16, #tpu.memory_space<vmem>>, vector<1x224x10xbf16>
    %230 = vector.shape_cast %229 : vector<1x224x10xbf16> to vector<224x10xbf16>
    %cst_246 = arith.constant dense<0.000000e+00> : vector<4x10xf32>
    %231 = tpu.matmul %228, %230, %cst_246 {dimension_numbers = #tpu.dot_dimension_numbers<[1], [0], [0], [1], [0, 0, 1, 1], [], []>} : vector<4x224xbf16>, vector<224x10xbf16>, vector<4x10xf32> -> vector<4x10xf32>
    %232 = arith.addf %227, %231 : vector<4x10xf32>
    %233 = vector.extract_strided_slice %201 {offsets = [24, 0], sizes = [4, 224], strides = [1, 1]} : vector<28x224xbf16> to vector<4x224xbf16>
    %c6 = arith.constant 6 : index
    %c0_247 = arith.constant 0 : index
    %c0_248 = arith.constant 0 : index
    %234 = vector.load %arg6[%c6, %c0_247, %c0_248] : memref<7x224x10xbf16, #tpu.memory_space<vmem>>, vector<1x224x10xbf16>
    %235 = vector.shape_cast %234 : vector<1x224x10xbf16> to vector<224x10xbf16>
    %cst_249 = arith.constant dense<0.000000e+00> : vector<4x10xf32>
    %236 = tpu.matmul %233, %235, %cst_249 {dimension_numbers = #tpu.dot_dimension_numbers<[1], [0], [0], [1], [0, 0, 1, 1], [], []>} : vector<4x224xbf16>, vector<224x10xbf16>, vector<4x10xf32> -> vector<4x10xf32>
    %237 = arith.addf %232, %236 : vector<4x10xf32>
    %c0_250 = arith.constant 0 : index
    %c0_251 = arith.constant 0 : index
    %238 = vector.load %arg7[%c0_250, %c0_251] : memref<1x10xf32, #tpu.memory_space<vmem>>, vector<1x10xf32>
    %239 = vector.broadcast %238 : vector<1x10xf32> to vector<4x10xf32>
    %240 = arith.addf %237, %239 : vector<4x10xf32>
    %c0_252 = arith.constant 0 : index
    %c0_253 = arith.constant 0 : index
    %c0_254 = arith.constant 0 : index
    %241 = vector.load %arg8[%c0_252, %c0_253, %c0_254] : memref<1x4x10xf32, #tpu.memory_space<vmem>>, vector<1x4x10xf32>
    %242 = vector.shape_cast %241 : vector<1x4x10xf32> to vector<4x10xf32>
    %243 = vector.shape_cast %240 : vector<4x10xf32> to vector<1x4x10xf32>
    tpu.vector_store %arg8[%c0_252, %c0_253, %c0_254], %243 {strides = array<i32>} : memref<1x4x10xf32, #tpu.memory_space<vmem>>, vector<1x4x10xf32>,
    return
  }
  func.func @transform_0(%arg0: i32) -> (i32, i32, i32, i32) {
    %c0_i32 = arith.constant 0 : i32
    %c0_i32_0 = arith.constant 0 : i32
    %c0_i32_1 = arith.constant 0 : i32
    %c0_i32_2 = arith.constant 0 : i32
    return %arg0, %c0_i32, %c0_i32_0, %c0_i32_1 : i32, i32, i32, i32
  }
  func.func @transform_1(%arg0: i32) -> (i32, i32, i32) {
    %c0_i32 = arith.constant 0 : i32
    %c0_i32_0 = arith.constant 0 : i32
    %c0_i32_1 = arith.constant 0 : i32
    %c0_i32_2 = arith.constant 0 : i32
    return %c0_i32, %c0_i32_0, %c0_i32_1 : i32, i32, i32
  }
  func.func @transform_2(%arg0: i32) -> (i32, i32) {
    %c0_i32 = arith.constant 0 : i32
    %c0_i32_0 = arith.constant 0 : i32
    %c0_i32_1 = arith.constant 0 : i32
    return %c0_i32, %c0_i32_0 : i32, i32
  }
  func.func @transform_3(%arg0: i32) -> (i32, i32, i32) {
    %c0_i32 = arith.constant 0 : i32
    %c0_i32_0 = arith.constant 0 : i32
    %c0_i32_1 = arith.constant 0 : i32
    %c0_i32_2 = arith.constant 0 : i32
    return %c0_i32, %c0_i32_0, %c0_i32_1 : i32, i32, i32
  }
  func.func @transform_4(%arg0: i32) -> (i32, i32) {
    %c0_i32 = arith.constant 0 : i32
    %c0_i32_0 = arith.constant 0 : i32
    %c0_i32_1 = arith.constant 0 : i32
    return %c0_i32, %c0_i32_0 : i32, i32
  }
  func.func @transform_5(%arg0: i32) -> (i32, i32, i32) {
    %c0_i32 = arith.constant 0 : i32
    %c0_i32_0 = arith.constant 0 : i32
    %c0_i32_1 = arith.constant 0 : i32
    %c0_i32_2 = arith.constant 0 : i32
    return %c0_i32, %c0_i32_0, %c0_i32_1 : i32, i32, i32
  }
  func.func @transform_6(%arg0: i32) -> (i32, i32) {
    %c0_i32 = arith.constant 0 : i32
    %c0_i32_0 = arith.constant 0 : i32
    %c0_i32_1 = arith.constant 0 : i32
    return %c0_i32, %c0_i32_0 : i32, i32
  }
  func.func @transform_7(%arg0: i32) -> (i32, i32, i32) {
    %c0_i32 = arith.constant 0 : i32
    %c0_i32_0 = arith.constant 0 : i32
    %c0_i32_1 = arith.constant 0 : i32
    return %arg0, %c0_i32, %c0_i32_0 : i32, i32, i32
  }
}

</mosaic_0001>

<llo_original>
// kernel: tile.13
$region0: #{tile.13}
  #allocation0 [shape = 's32[1]{0}', space=sflag, size = 0x4, scoped, tag = 'scoped memory for tile.13']
  %s0 = inlined_call_operand.vmem [shape: f32[16], index: 0, kind: input, shape index: {}]
  %s1 = inlined_call_operand.vmem [shape: f32[28,16], index: 1, kind: output, shape index: {}]
  // Predicated region
  $region2: #{tile.13} parent=0 // pred_check
    _
  $region3: #{tile.13} parent=0 // pred_check_branch
    %3 = sbr.rel (0) target = $region5
  $region4: #{tile.13} parent=0 // pred_region
    _
  $region5: #{tile.13} parent=0 // pred_fallthru
    _
  %v4 = vld [vmem:[%s0] ss:$0 sm:$0xff]
  %5 = vst [vmem:[%s1] sm:$0xff] %v4
  %s6 = scalar_lea.vmem %s1, 8
  %7 = vst [vmem:[%s6] sm:$0xff] %v4
  %s8 = scalar_lea.vmem %s1, 16
  %9 = vst [vmem:[%s8] sm:$0xff] %v4
  %s10 = scalar_lea.vmem %s1, 24
  %11 = vst [vmem:[%s10] sm:$0xff] %v4

// kernel: tile.14
$region0: #{tile.14}
  %s0 = inlined_call_operand.vmem [shape: f32[28,16], index: 0, kind: input, shape index: {}]
  %s1 = inlined_call_operand.vmem [shape: f32[1,448], index: 1, kind: output, shape index: {}]
  $region1: #{tile.14} parent=0
    #allocation0 [shape = 'u8[16384]{0}', space=vmem, size = 0x4000, scoped, tag = 'scoped mem for output reshape']
    %v2 = vld [vmem:[%s0] ss:$8 sm:$0xf]
    %vm3 = vcmask 130048
    %4 = vst.msk [vmem:[#allocation0] ss:$8 sm:$0xf] %vm3, %v2
    %s5 = scalar_lea.vmem %s0, 7
    %v6 = vld [vmem:[%s5] ss:$8 sm:$0x7]
    %7 = vrot.lane.b32.xlu0 %v6, 112
    %v8 = vpop.permute.xlu0 %7
    %vm9 = vcmask 1048448
    %10 = vst.msk [vmem:[#allocation0] ss:$8 sm:$0x7] %vm9, %v8
    %s11 = scalar_lea.vmem %s0, 6
    %v12 = vld [vmem:[%s11] ss:$8 sm:$0x7]
    %13 = vrot.lane.b32.xlu0 %v12, 96
    %v14 = vpop.permute.xlu0 %13
    %vm15 = vcmask 917248
    %16 = vst.msk [vmem:[#allocation0] ss:$8 sm:$0x7] %vm15, %v14
    %s17 = scalar_lea.vmem %s0, 5
    %v18 = vld [vmem:[%s17] ss:$8 sm:$0x7]
    %19 = vrot.lane.b32.xlu0 %v18, 80
    %v20 = vpop.permute.xlu0 %19
    %vm21 = vcmask 786048
    %22 = vst.msk [vmem:[#allocation0] ss:$8 sm:$0x7] %vm21, %v20
    %s23 = scalar_lea.vmem %s0, 4
    %v24 = vld [vmem:[%s23] ss:$8 sm:$0x7]
    %25 = vrot.lane.b32.xlu0 %v24, 64
    %v26 = vpop.permute.xlu0 %25
    %vm27 = vcmask 654848
    %28 = vst.msk [vmem:[#allocation0] ss:$8 sm:$0x7] %vm27, %v26
    %s29 = scalar_lea.vmem %s0, 3
    %v30 = vld [vmem:[%s29] ss:$8 sm:$0xf]
    %31 = vrot.lane.b32.xlu0 %v30, 48
    %v32 = vpop.permute.xlu0 %31
    %vm33 = vcmask 523648
    %34 = vst.msk [vmem:[#allocation0] ss:$8 sm:$0xf] %vm33, %v32
    %s35 = scalar_lea.vmem %s0, 2
    %v36 = vld [vmem:[%s35] ss:$8 sm:$0xf]
    %37 = vrot.lane.b32.xlu0 %v36, 32
    %v38 = vpop.permute.xlu0 %37
    %vm39 = vcmask 392448
    %40 = vst.msk [vmem:[#allocation0] ss:$8 sm:$0xf] %vm39, %v38
    %s41 = scalar_lea.vmem %s0, 1
    %v42 = vld [vmem:[%s41] ss:$8 sm:$0xf]
    %43 = vrot.lane.b32.xlu0 %v42, 16
    %v44 = vpop.permute.xlu0 %43
    %vm45 = vcmask 261248
    %46 = vst.msk [vmem:[#allocation0] ss:$8 sm:$0xf] %vm45, %v44
    %s48 = sshll.u32 1, 1
    %s49 = ssub.s32 %s48, 1
    %v51 = vld [vmem:[#allocation0] sm:%s49]
    %s52 = sshll.u32 1, 1
    %s53 = ssub.s32 %s52, 1
    %54 = vst [vmem:[%s1] sm:%s53] %v51
    %s55 = scalar_lea.vmem [#allocation0], 8
    %v56 = vld [vmem:[%s55] sm:%s49]
    %s57 = sshll.u32 1, 1
    %s58 = ssub.s32 %s57, 1
    %s59 = scalar_lea.vmem %s1, 1
    %60 = vst [vmem:[%s59] sm:%s58] %v56
    %s61 = scalar_lea.vmem [#allocation0], 16
    %v62 = vld [vmem:[%s61] sm:%s49]
    %s63 = sshll.u32 1, 1
    %s64 = ssub.s32 %s63, 1
    %s65 = smul.addr 1, 2
    %s66 = scalar_lea.vmem %s1, %s65
    %67 = vst [vmem:[%s66] sm:%s64] %v62
    %s68 = scalar_lea.vmem [#allocation0], 24
    %v69 = vld [vmem:[%s68] sm:%s49]
    %s70 = sshll.u32 1, 1
    %s71 = ssub.s32 %s70, 1
    %s72 = smul.addr 1, 3
    %s73 = scalar_lea.vmem %s1, %s72
    %74 = vst [vmem:[%s73] sm:%s71] %v69

// kernel: tile.18
$region0: #{tile.18}
  #allocation0 [shape = 's32[1]{0}', space=sflag, size = 0x4, scoped, tag = 'scoped memory for tile.18']
  %s0 = inlined_call_operand.vmem [shape: f32[32], index: 0, kind: input, shape index: {}]
  %s1 = inlined_call_operand.vmem [shape: f32[14,32], index: 1, kind: output, shape index: {}]
  // Predicated region
  $region2: #{tile.18} parent=0 // pred_check
    _
  $region3: #{tile.18} parent=0 // pred_check_branch
    %3 = sbr.rel (0) target = $region5
  $region4: #{tile.18} parent=0 // pred_region
    _
  $region5: #{tile.18} parent=0 // pred_fallthru
    _
  %v4 = vld [vmem:[%s0] ss:$0 sm:$0xff]
  %5 = vst [vmem:[%s1] sm:$0xff] %v4
  %s6 = scalar_lea.vmem %s1, 8
  %7 = vst [vmem:[%s6] sm:$0xff] %v4

// kernel: tile.19
$region0: #{tile.19}
  %s0 = inlined_call_operand.vmem [shape: f32[14,32], index: 0, kind: input, shape index: {}]
  %s1 = inlined_call_operand.vmem [shape: f32[1,448], index: 1, kind: output, shape index: {}]
  $region1: #{tile.19} parent=0
    #allocation0 [shape = 'u8[16384]{0}', space=vmem, size = 0x4000, scoped, tag = 'scoped mem for output reshape']
    %v2 = vld [vmem:[%s0] ss:$4 sm:$0xf]
    %vm3 = vcmask 261120
    %4 = vst.msk [vmem:[#allocation0] ss:$8 sm:$0xf] %vm3, %v2
    %s5 = scalar_lea.vmem %s0, 3
    %v6 = vld [vmem:[%s5] ss:$4 sm:$0x7]
    %7 = vrot.lane.b32.xlu0 %v6, 96
    %v8 = vpop.permute.xlu0 %7
    %vm9 = vcmask 1048320
    %10 = vst.msk [vmem:[#allocation0] ss:$8 sm:$0x7] %vm9, %v8
    %s11 = scalar_lea.vmem %s0, 2
    %v12 = vld [vmem:[%s11] ss:$4 sm:$0x7]
    %13 = vrot.lane.b32.xlu0 %v12, 64
    %v14 = vpop.permute.xlu0 %13
    %vm15 = vcmask 785920
    %16 = vst.msk [vmem:[#allocation0] ss:$8 sm:$0x7] %vm15, %v14
    %s17 = scalar_lea.vmem %s0, 1
    %v18 = vld [vmem:[%s17] ss:$4 sm:$0xf]
    %19 = vrot.lane.b32.xlu0 %v18, 32
    %v20 = vpop.permute.xlu0 %19
    %vm21 = vcmask 523520
    %22 = vst.msk [vmem:[#allocation0] ss:$8 sm:$0xf] %vm21, %v20
    %s24 = sshll.u32 1, 1
    %s25 = ssub.s32 %s24, 1
    %v27 = vld [vmem:[#allocation0] sm:%s25]
    %s28 = sshll.u32 1, 1
    %s29 = ssub.s32 %s28, 1
    %30 = vst [vmem:[%s1] sm:%s29] %v27
    %s31 = scalar_lea.vmem [#allocation0], 8
    %v32 = vld [vmem:[%s31] sm:%s25]
    %s33 = sshll.u32 1, 1
    %s34 = ssub.s32 %s33, 1
    %s35 = scalar_lea.vmem %s1, 1
    %36 = vst [vmem:[%s35] sm:%s34] %v32
    %s37 = scalar_lea.vmem [#allocation0], 16
    %v38 = vld [vmem:[%s37] sm:%s25]
    %s39 = sshll.u32 1, 1
    %s40 = ssub.s32 %s39, 1
    %s41 = smul.addr 1, 2
    %s42 = scalar_lea.vmem %s1, %s41
    %43 = vst [vmem:[%s42] sm:%s40] %v38
    %s44 = scalar_lea.vmem [#allocation0], 24
    %v45 = vld [vmem:[%s44] sm:%s25]
    %s46 = sshll.u32 1, 1
    %s47 = ssub.s32 %s46, 1
    %s48 = smul.addr 1, 3
    %s49 = scalar_lea.vmem %s1, %s48
    %50 = vst [vmem:[%s49] sm:%s47] %v45

// kernel: ocrnum_forward.1
$region0: #{ocrnum_forward.1}
  #allocation0 [shape = 'u32[]', space=smem, size = 0x4, offset = 0x4, fixed_abs, tag = 'smem constant byte address 0x4 - core index']
  #allocation1 [shape = 'u32[144,128]{1,0:T(1,128)}', space=vmem, size = 0x12000, scoped, tag = 'internal scratch']
  #allocation2 [shape = 'bf16[36,224]{1,0:T(8,128)(2,1)}', space=vmem, size = 0x5000, scoped, tag = 'scratch operand']
  #allocation3 [shape = 'bf16[36,224]{1,0:T(8,128)(2,1)}', space=vmem, size = 0x5000, scoped, tag = 'scratch operand']
  %s0 = inlined_call_operand.vmem [shape: bf16[3,4,32,32], index: 0, kind: input, shape index: {}]
  %s1 = inlined_call_operand.vmem [shape: bf16[5,32,448], index: 1, kind: input, shape index: {}]
  %s2 = inlined_call_operand.vmem [shape: f32[1,448], index: 2, kind: input, shape index: {}]
  %s3 = inlined_call_operand.vmem [shape: bf16[5,224,448], index: 3, kind: input, shape index: {}]
  %s4 = inlined_call_operand.vmem [shape: f32[1,448], index: 4, kind: input, shape index: {}]
  %s5 = inlined_call_operand.vmem [shape: bf16[7,224,10], index: 5, kind: input, shape index: {}]
  %s6 = inlined_call_operand.vmem [shape: f32[1,10], index: 6, kind: input, shape index: {}]
  %s7 = inlined_call_operand.vmem [shape: f32[3,4,10], index: 7, kind: output, shape index: {}]
  %s8 = sld [smem:[#allocation0]]
  $region61: #{ocrnum_forward.1} parent=0
    _
  %s10 = ssub.s32 1, %s8
  %s11 = scalar_select 0, %s10, %s8
  loop: start=0, step=1, limit=5
  $region2: #{ocrnum_forward.1} parent=0 // loop_pre_header
    _
  $region3: #{ocrnum_forward.1} parent=0 // loop_header
    %s13 = sphi 0, %s17
    %p14 = scmp.ge.s32.totalorder %s13, 5
    %s23 = sphi 0, %s25
    %s26 = sphi 0, %s23
    %s27 = sphi 0, %s26
    %s43 = sphi 0, %s27
    %s47 = sphi 0, %s47
    %s49 = sphi 0, %s47
    %s50 = sphi 0, %s49
    %s64 = sphi 0, %s50
    %s68 = sphi 0, %s68
    %s70 = sphi 0, %s68
    %s71 = sphi 0, %s70
    %s85 = sphi 0, %s71
    %s89 = sphi 0, %s89
    %s91 = sphi 0, %s89
    %s92 = sphi 0, %s91
    %s106 = sphi 0, %s92
    %s110 = sphi 0, %s110
    %s112 = sphi 0, %s110
    %s113 = sphi 0, %s112
    %s127 = sphi 0, %s113
    %s131 = sphi 0, %s131
    %s133 = sphi 0, %s131
    %s134 = sphi 0, %s133
    %s148 = sphi 0, %s134
    %s152 = sphi 0, %s152
    %s154 = sphi 0, %s152
    %s155 = sphi 0, %s154
    %s169 = sphi 0, %s155
    %s175 = sphi 0, %s177
    %s178 = sphi 0, %s175
    %s179 = sphi 0, %s178
    %s195 = sphi 0, %s179
  $region4: #{ocrnum_forward.1} parent=0 // loop_header_branch
    %16 = sbr.rel (%p14) target = $region8
  $region5: #{ocrnum_forward.1} parent=0 // loop_body
    %s18 = ssub.s32 %s13, 1
    %s19 = ssub.s32 %s13, 2
    %s20 = sadd.s32 %s13, 1
    %s21 = ssub.s32 %s13, %s20
    %p22 = scmp.eq.s32.totalorder %s21, 0
    %s24 = sadd.s32 %s23, 1
    %s25 = scalar_select %p22, %s23, %s24
    %p28 = pneg %p22
    %p29 = scmp.eq.s32.totalorder %s13, 2
    %p30 = por %p28, %p29
    %p31 = scmp.ne.s32.totalorder %s23, %s26
    %p32 = scmp.eq.s32.totalorder %s13, 0
    %p33 = por %p31, %p32
    %p34 = scmp.ne.s32.totalorder %s23, %s26
    %p35 = scmp.eq.s32.totalorder %s18, 2
    %p36 = por %p34, %p35
    %p37 = scmp.ne.s32.totalorder %s26, %s27
    %p38 = scmp.eq.s32.totalorder %s18, 0
    %p39 = por %p37, %p38
    %p40 = scmp.ne.s32.totalorder %s26, %s27
    %p41 = scmp.eq.s32.totalorder %s19, 2
    %p42 = por %p40, %p41
    %p44 = scmp.ne.s32.totalorder %s27, %s43
    %p45 = scmp.eq.s32.totalorder %s19, 0
    %p46 = por %p44, %p45
    %s48 = sadd.s32 %s47, 1
    %p51 = scmp.eq.s32.totalorder %s13, 2
    %p52 = scmp.ne.s32.totalorder %s47, %s49
    %p53 = scmp.eq.s32.totalorder %s13, 0
    %p54 = por %p52, %p53
    %p55 = scmp.ne.s32.totalorder %s47, %s49
    %p56 = scmp.eq.s32.totalorder %s18, 2
    %p57 = por %p55, %p56
    %p58 = scmp.ne.s32.totalorder %s49, %s50
    %p59 = scmp.eq.s32.totalorder %s18, 0
    %p60 = por %p58, %p59
    %p61 = scmp.ne.s32.totalorder %s49, %s50
    %p62 = scmp.eq.s32.totalorder %s19, 2
    %p63 = por %p61, %p62
    %p65 = scmp.ne.s32.totalorder %s50, %s64
    %p66 = scmp.eq.s32.totalorder %s19, 0
    %p67 = por %p65, %p66
    %s69 = sadd.s32 %s68, 1
    %p72 = scmp.eq.s32.totalorder %s13, 2
    %p73 = scmp.ne.s32.totalorder %s68, %s70
    %p74 = scmp.eq.s32.totalorder %s13, 0
    %p75 = por %p73, %p74
    %p76 = scmp.ne.s32.totalorder %s68, %s70
    %p77 = scmp.eq.s32.totalorder %s18, 2
    %p78 = por %p76, %p77
    %p79 = scmp.ne.s32.totalorder %s70, %s71
    %p80 = scmp.eq.s32.totalorder %s18, 0
    %p81 = por %p79, %p80
    %p82 = scmp.ne.s32.totalorder %s70, %s71
    %p83 = scmp.eq.s32.totalorder %s19, 2
    %p84 = por %p82, %p83
    %p86 = scmp.ne.s32.totalorder %s71, %s85
    %p87 = scmp.eq.s32.totalorder %s19, 0
    %p88 = por %p86, %p87
    %s90 = sadd.s32 %s89, 1
    %p93 = scmp.eq.s32.totalorder %s13, 2
    %p94 = scmp.ne.s32.totalorder %s89, %s91
    %p95 = scmp.eq.s32.totalorder %s13, 0
    %p96 = por %p94, %p95
    %p97 = scmp.ne.s32.totalorder %s89, %s91
    %p98 = scmp.eq.s32.totalorder %s18, 2
    %p99 = por %p97, %p98
    %p100 = scmp.ne.s32.totalorder %s91, %s92
    %p101 = scmp.eq.s32.totalorder %s18, 0
    %p102 = por %p100, %p101
    %p103 = scmp.ne.s32.totalorder %s91, %s92
    %p104 = scmp.eq.s32.totalorder %s19, 2
    %p105 = por %p103, %p104
    %p107 = scmp.ne.s32.totalorder %s92, %s106
    %p108 = scmp.eq.s32.totalorder %s19, 0
    %p109 = por %p107, %p108
    %s111 = sadd.s32 %s110, 1
    %p114 = scmp.eq.s32.totalorder %s13, 2
    %p115 = scmp.ne.s32.totalorder %s110, %s112
    %p116 = scmp.eq.s32.totalorder %s13, 0
    %p117 = por %p115, %p116
    %p118 = scmp.ne.s32.totalorder %s110, %s112
    %p119 = scmp.eq.s32.totalorder %s18, 2
    %p120 = por %p118, %p119
    %p121 = scmp.ne.s32.totalorder %s112, %s113
    %p122 = scmp.eq.s32.totalorder %s18, 0
    %p123 = por %p121, %p122
    %p124 = scmp.ne.s32.totalorder %s112, %s113
    %p125 = scmp.eq.s32.totalorder %s19, 2
    %p126 = por %p124, %p125
    %p128 = scmp.ne.s32.totalorder %s113, %s127
    %p129 = scmp.eq.s32.totalorder %s19, 0
    %p130 = por %p128, %p129
    %s132 = sadd.s32 %s131, 1
    %p135 = scmp.eq.s32.totalorder %s13, 2
    %p136 = scmp.ne.s32.totalorder %s131, %s133
    %p137 = scmp.eq.s32.totalorder %s13, 0
    %p138 = por %p136, %p137
    %p139 = scmp.ne.s32.totalorder %s131, %s133
    %p140 = scmp.eq.s32.totalorder %s18, 2
    %p141 = por %p139, %p140
    %p142 = scmp.ne.s32.totalorder %s133, %s134
    %p143 = scmp.eq.s32.totalorder %s18, 0
    %p144 = por %p142, %p143
    %p145 = scmp.ne.s32.totalorder %s133, %s134
    %p146 = scmp.eq.s32.totalorder %s19, 2
    %p147 = por %p145, %p146
    %p149 = scmp.ne.s32.totalorder %s134, %s148
    %p150 = scmp.eq.s32.totalorder %s19, 0
    %p151 = por %p149, %p150
    %s153 = sadd.s32 %s152, 1
    %p156 = scmp.eq.s32.totalorder %s13, 2
    %p157 = scmp.ne.s32.totalorder %s152, %s154
    %p158 = scmp.eq.s32.totalorder %s13, 0
    %p159 = por %p157, %p158
    %p160 = scmp.ne.s32.totalorder %s152, %s154
    %p161 = scmp.eq.s32.totalorder %s18, 2
    %p162 = por %p160, %p161
    %p163 = scmp.ne.s32.totalorder %s154, %s155
    %p164 = scmp.eq.s32.totalorder %s18, 0
    %p165 = por %p163, %p164
    %p166 = scmp.ne.s32.totalorder %s154, %s155
    %p167 = scmp.eq.s32.totalorder %s19, 2
    %p168 = por %p166, %p167
    %p170 = scmp.ne.s32.totalorder %s155, %s169
    %p171 = scmp.eq.s32.totalorder %s19, 0
    %p172 = por %p170, %p171
    %s173 = ssub.s32 %s13, %s20
    %p174 = scmp.eq.s32.totalorder %s173, 0
    %s176 = sadd.s32 %s175, 1
    %s177 = scalar_select %p174, %s175, %s176
    %p180 = pneg %p174
    %p181 = scmp.eq.s32.totalorder %s13, 2
    %p182 = por %p180, %p181
    %p183 = scmp.ne.s32.totalorder %s175, %s178
    %p184 = scmp.eq.s32.totalorder %s13, 0
    %p185 = por %p183, %p184
    %p186 = scmp.ne.s32.totalorder %s175, %s178
    %p187 = scmp.eq.s32.totalorder %s18, 2
    %p188 = por %p186, %p187
    %p189 = scmp.ne.s32.totalorder %s178, %s179
    %p190 = scmp.eq.s32.totalorder %s18, 0
    %p191 = por %p189, %p190
    %p192 = scmp.ne.s32.totalorder %s178, %s179
    %p193 = scmp.eq.s32.totalorder %s19, 2
    %p194 = por %p192, %p193
    %p196 = scmp.ne.s32.totalorder %s179, %s195
    %p197 = scmp.eq.s32.totalorder %s19, 0
    %p198 = por %p196, %p197
    %p199 = scmp.le.s32.totalorder 1, %s13
    %p200 = scmp.lt.s32.totalorder %s13, 4
    %p201 = pnand %p199, %p200
    %p202 = pneg %p201
    // Predicated region
    $region9: #{ocrnum_forward.1} parent=5 // pred_check
      _
    $region10: #{ocrnum_forward.1} parent=5 // pred_check_branch
      %204 = sbr.rel (%p201) target = $region12
    $region11: #{ocrnum_forward.1} parent=5 // pred_region
      %s205 = ssub.s32 %s13, 1
      // Predicated region
      $region13: #{ocrnum_forward.1} parent=11 // pred_check
        %p206 = pneg %p60
      $region14: #{ocrnum_forward.1} parent=11 // pred_check_branch
        %208 = sbr.rel (%p206) target = $region16
      $region15: #{ocrnum_forward.1} parent=11 // pred_region
        _
      $region16: #{ocrnum_forward.1} parent=11 // pred_fallthru
        _
      // Predicated region
      $region17: #{ocrnum_forward.1} parent=11 // pred_check
        %p209 = pneg %p81
      $region18: #{ocrnum_forward.1} parent=11 // pred_check_branch
        %211 = sbr.rel (%p209) target = $region20
      $region19: #{ocrnum_forward.1} parent=11 // pred_region
        _
      $region20: #{ocrnum_forward.1} parent=11 // pred_fallthru
        _
      // Predicated region
      $region21: #{ocrnum_forward.1} parent=11 // pred_check
        %p212 = pneg %p102
      $region22: #{ocrnum_forward.1} parent=11 // pred_check_branch
        %214 = sbr.rel (%p212) target = $region24
      $region23: #{ocrnum_forward.1} parent=11 // pred_region
        _
      $region24: #{ocrnum_forward.1} parent=11 // pred_fallthru
        _
      // Predicated region
      $region25: #{ocrnum_forward.1} parent=11 // pred_check
        %p215 = pneg %p123
      $region26: #{ocrnum_forward.1} parent=11 // pred_check_branch
        %217 = sbr.rel (%p215) target = $region28
      $region27: #{ocrnum_forward.1} parent=11 // pred_region
        _
      $region28: #{ocrnum_forward.1} parent=11 // pred_fallthru
        _
      // Predicated region
      $region29: #{ocrnum_forward.1} parent=11 // pred_check
        %p218 = pneg %p144
      $region30: #{ocrnum_forward.1} parent=11 // pred_check_branch
        %220 = sbr.rel (%p218) target = $region32
      $region31: #{ocrnum_forward.1} parent=11 // pred_region
        _
      $region32: #{ocrnum_forward.1} parent=11 // pred_fallthru
        _
      // Predicated region
      $region33: #{ocrnum_forward.1} parent=11 // pred_check
        %p221 = pneg %p165
      $region34: #{ocrnum_forward.1} parent=11 // pred_check_branch
        %223 = sbr.rel (%p221) target = $region36
      $region35: #{ocrnum_forward.1} parent=11 // pred_region
        _
      $region36: #{ocrnum_forward.1} parent=11 // pred_fallthru
        _
    $region12: #{ocrnum_forward.1} parent=5 // pred_fallthru
      _
    %p224 = scmp.lt.s32.totalorder %s13, 3
    // Predicated region
    $region37: #{ocrnum_forward.1} parent=5 // pred_check
      %p225 = pneg %p224
    $region38: #{ocrnum_forward.1} parent=5 // pred_check_branch
      %227 = sbr.rel (%p225) target = $region40
    $region39: #{ocrnum_forward.1} parent=5 // pred_region
      // Predicated region
      $region41: #{ocrnum_forward.1} parent=39 // pred_check
        %p228 = pneg %p33
      $region42: #{ocrnum_forward.1} parent=39 // pred_check_branch
        %230 = sbr.rel (%p228) target = $region44
      $region43: #{ocrnum_forward.1} parent=39 // pred_region
        %p231 = scmp.lt.s32.totalorder %s13, 2
        %s232 = scalar_select %p231, %s13, 2
        %s233 = smul.addr %s232, 16
        %s234 = smul.addr %s233, 4
        %s235 = scalar_lea.vmem %s0, %s234
      $region44: #{ocrnum_forward.1} parent=39 // pred_fallthru
        _
    $region40: #{ocrnum_forward.1} parent=5 // pred_fallthru
      _
    %p236 = scmp.le.s32.totalorder 1, %s13
    %p237 = scmp.lt.s32.totalorder %s13, 4
    %p238 = pnand %p236, %p237
    %p239 = pneg %p238
    // Predicated region
    $region45: #{ocrnum_forward.1} parent=5 // pred_check
      _
    $region46: #{ocrnum_forward.1} parent=5 // pred_check_branch
      %241 = sbr.rel (%p238) target = $region48
    $region47: #{ocrnum_forward.1} parent=5 // pred_region
      %s242 = ssub.s32 %s13, 1
      %p243 = scmp.lt.s32.totalorder %s18, 2
      %s244 = scalar_select %p243, %s18, 2
      %s245 = smul.addr %s244, 16
      %s246 = smul.addr %s245, 4
      %s247 = scalar_lea.vmem %s0, %s246
      %p248 = pneg %p39
      %p249 = pneg %p36
      %p250 = pneg %p60
      %p251 = pneg %p57
      %p252 = pneg %p81
      %p253 = pneg %p78
      %p254 = pneg %p102
      %p255 = pneg %p99
      %p256 = pneg %p123
      %p257 = pneg %p120
      %p258 = pneg %p144
      %p259 = pneg %p141
      %p260 = pneg %p165
      %p261 = pneg %p162
      %p262 = pneg %p191
      %p263 = pneg %p188
      %p264 = scmp.lt.s32.totalorder %s18, 2
      %s265 = scalar_select %p264, %s18, 2
      %s266 = smul.addr %s265, 4
      %s267 = scalar_lea.vmem %s7, %s266
      %p268 = scmp.lt.s32.totalorder %s18, 2
      %s269 = scalar_select %p268, %s18, 2
      %s270 = smul.addr %s269, 16
      %s271 = smul.addr %s270, 4
      %s272 = scalar_lea.vmem %s0, %s271
      %p273 = scmp.lt.s32.totalorder %s18, 2
      %s274 = scalar_select %p273, %s18, 2
      %s275 = smul.addr %s274, 4
      %s276 = scalar_lea.vmem %s7, %s275
      %v278 = vld [vmem:[%s2] sm:$0xf]
      %v279 = vld [vmem:[%s272] sm:$0xf]
      %v280 = vld [vmem:[%s272 + $0x4] sm:$0xf]
      %v281 = vld [vmem:[%s272 + $0x8] sm:$0xf]
      %v282 = vld [vmem:[%s272 + $0xc] sm:$0x3]
      %v283 = vld [vmem:[%s1] sm:$0xff]
      %v284 = vld [vmem:[%s1 + $0x8] sm:$0xff]
      %v285 = vld [vmem:[%s1 + $0x10] sm:$0xff]
      %v286 = vld [vmem:[%s1 + $0x18] sm:$0xff]
      %v287 = vld [vmem:[%s1 + $0x20] sm:$0xff]
      %v288 = vld [vmem:[%s1 + $0x28] sm:$0xff]
      %v289 = vld [vmem:[%s1 + $0x30] sm:$0xff]
      %v290 = vld [vmem:[%s1 + $0x38] sm:$0xff]
      %s291 = scalar_lea.vmem %s272, 16
      %v292 = vld [vmem:[%s291] sm:$0xf]
      %v293 = vld [vmem:[%s291 + $0x4] sm:$0xf]
      %v294 = vld [vmem:[%s291 + $0x8] sm:$0xf]
      %v295 = vld [vmem:[%s291 + $0xc] sm:$0x3]
      %s296 = scalar_lea.vmem %s1, 64
      %v297 = vld [vmem:[%s296] sm:$0xff]
      %v298 = vld [vmem:[%s296 + $0x8] sm:$0xff]
      %v299 = vld [vmem:[%s296 + $0x10] sm:$0xff]
      %v300 = vld [vmem:[%s296 + $0x18] sm:$0xff]
      %v301 = vld [vmem:[%s296 + $0x20] sm:$0xff]
      %v302 = vld [vmem:[%s296 + $0x28] sm:$0xff]
      %v303 = vld [vmem:[%s296 + $0x30] sm:$0xff]
      %v304 = vld [vmem:[%s296 + $0x38] sm:$0xff]
      %v309 = vunpack.c.l.b16 %v292
      %v310 = vunpack.c.l.b16 %v293
      %v311 = vunpack.c.l.b16 %v294
      %v312 = vunpack.c.l.b16 %v295
      %v313 = vpack.c.b16 %v310, %v309
      %v314 = vpack.c.b16 %v312, %v311
      %v323 = vunpack.c.l.b16 %v297
      %v324 = vunpack.c.h.b16 %v297
      %v325 = vunpack.c.l.b16 %v298
      %v326 = vunpack.c.h.b16 %v298
      %v327 = vunpack.c.l.b16 %v299
      %v328 = vunpack.c.h.b16 %v299
      %v329 = vunpack.c.l.b16 %v300
      %v330 = vunpack.c.h.b16 %v300
      %v331 = vunpack.c.l.b16 %v301
      %v332 = vunpack.c.h.b16 %v301
      %v333 = vunpack.c.l.b16 %v302
      %v334 = vunpack.c.h.b16 %v302
      %v335 = vunpack.c.l.b16 %v303
      %v336 = vunpack.c.h.b16 %v303
      %v337 = vunpack.c.l.b16 %v304
      %v338 = vunpack.c.h.b16 %v304
      %v339 = vpack.c.b16 %v327, %v323
      %v340 = vpack.c.b16 %v328, %v324
      %v341 = vpack.c.b16 %v329, %v325
      %v342 = vpack.c.b16 %v330, %v326
      %v343 = vpack.c.b16 %v335, %v331
      %v344 = vpack.c.b16 %v336, %v332
      %v345 = vpack.c.b16 %v337, %v333
      %v346 = vpack.c.b16 %v338, %v334
      %vm355 = vcmask 261120
      %v357 = vsel %vm355, %v313, 0
      %v360 = vsel %vm355, %v314, 0
      %362 = vmatprep.subr.bf16.mxu0 0
      %363 = vmatpush1.bf16.msra.mxu0 0
      %364 = vmatprep.subr.bf16.mxu0 0
      %365 = vmatpush1.bf16.msra.mxu0 0
      %366 = vmatprep.subr.bf16.mxu0 0
      %367 = vmatpush1.bf16.msra.mxu0 0
      %368 = vmatprep.subr.bf16.mxu0 0
      %369 = vmatpush1.bf16.msra.mxu0 0
      %370 = vmatprep.subr.bf16.mxu0 0
      %371 = vmatpush1.bf16.msra.mxu0 0
      %372 = vmatprep.subr.bf16.mxu0 0
      %373 = vmatpush1.bf16.msra.mxu0 0
      %374 = vmatprep.subr.bf16.mxu0 %v344
      %375 = vmatpush1.bf16.msra.mxu0 %v343
      %376 = vmatprep.subr.bf16.mxu0 %v340
      %377 = vmatpush1.bf16.msra.mxu0 %v339
      %378 = vmatprep.subr.bf16.mxu0 0
      %379 = vmatpush2.bf16.msra.mxu0 0
      %380 = vmatprep.subr.bf16.mxu0 0
      %381 = vmatpush2.bf16.msra.mxu0 0
      %382 = vmatprep.subr.bf16.mxu0 0
      %383 = vmatpush2.bf16.msra.mxu0 0
      %384 = vmatprep.subr.bf16.mxu0 0
      %385 = vmatpush2.bf16.msra.mxu0 0
      %386 = vmatprep.subr.bf16.mxu0 0
      %387 = vmatpush2.bf16.msra.mxu0 0
      %388 = vmatprep.subr.bf16.mxu0 0
      %389 = vmatpush2.bf16.msra.mxu0 0
      %390 = vmatprep.subr.bf16.mxu0 0
      %391 = vmatpush2.bf16.msra.mxu0 0
      %392 = vmatprep.subr.bf16.mxu0 0
      %393 = vmatpush2.bf16.msra.mxu0 0
      %394 = vmatprep.mubr.bf16.mxu0 0
      %395 = vmatmul.mubr.bf16.gmra.mxu0 %v357
      %v396 = vpop.f32.mrf.mxu0
      %v397 = vadd.f32 0.0, %v396
      %v398 = vpop.f32.mrf.mxu0
      %v399 = vadd.f32 0.0, %v398
      %v400 = vpop.f32.mrf.mxu0
      %v401 = vadd.f32 0.0, %v400
      %v402 = vpop.f32.mrf.mxu0
      %v403 = vadd.f32 0.0, %v402
      %404 = vmatprep.mubr.bf16.mxu0 0
      %405 = vmatmul.mubr.bf16.gmra.mxu0 %v360
      %v406 = vpop.f32.mrf.mxu0
      %v407 = vadd.f32 0.0, %v406
      %v408 = vpop.f32.mrf.mxu0
      %v409 = vadd.f32 0.0, %v408
      %v410 = vpop.f32.mrf.mxu0
      %v411 = vadd.f32 0.0, %v410
      %v412 = vpop.f32.mrf.mxu0
      %v413 = vadd.f32 0.0, %v412
      %414 = vdwg.mxu0
      %415 = vmatprep.subr.bf16.mxu0 0
      %416 = vmatpush1.bf16.msra.mxu0 0
      %417 = vmatprep.subr.bf16.mxu0 0
      %418 = vmatpush1.bf16.msra.mxu0 0
      %419 = vmatprep.subr.bf16.mxu0 0
      %420 = vmatpush1.bf16.msra.mxu0 0
      %421 = vmatprep.subr.bf16.mxu0 0
      %422 = vmatpush1.bf16.msra.mxu0 0
      %423 = vmatprep.subr.bf16.mxu0 0
      %424 = vmatpush1.bf16.msra.mxu0 0
      %425 = vmatprep.subr.bf16.mxu0 0
      %426 = vmatpush1.bf16.msra.mxu0 0
      %427 = vmatprep.subr.bf16.mxu0 %v346
      %428 = vmatpush1.bf16.msra.mxu0 %v345
      %429 = vmatprep.subr.bf16.mxu0 %v342
      %430 = vmatpush1.bf16.msra.mxu0 %v341
      %431 = vmatprep.subr.bf16.mxu0 0
      %432 = vmatpush2.bf16.msra.mxu0 0
      %433 = vmatprep.subr.bf16.mxu0 0
      %434 = vmatpush2.bf16.msra.mxu0 0
      %435 = vmatprep.subr.bf16.mxu0 0
      %436 = vmatpush2.bf16.msra.mxu0 0
      %437 = vmatprep.subr.bf16.mxu0 0
      %438 = vmatpush2.bf16.msra.mxu0 0
      %439 = vmatprep.subr.bf16.mxu0 0
      %440 = vmatpush2.bf16.msra.mxu0 0
      %441 = vmatprep.subr.bf16.mxu0 0
      %442 = vmatpush2.bf16.msra.mxu0 0
      %443 = vmatprep.subr.bf16.mxu0 0
      %444 = vmatpush2.bf16.msra.mxu0 0
      %445 = vmatprep.subr.bf16.mxu0 0
      %446 = vmatpush2.bf16.msra.mxu0 0
      %447 = vmatprep.mubr.bf16.mxu0 0
      %448 = vmatmul.mubr.bf16.gmra.mxu0 %v357
      %v449 = vpop.f32.mrf.mxu0
      %v450 = vadd.f32 0.0, %v449
      %v451 = vpop.f32.mrf.mxu0
      %v452 = vadd.f32 0.0, %v451
      %v453 = vpop.f32.mrf.mxu0
      %v454 = vadd.f32 0.0, %v453
      %v455 = vpop.f32.mrf.mxu0
      %v456 = vadd.f32 0.0, %v455
      %457 = vmatprep.mubr.bf16.mxu0 0
      %458 = vmatmul.mubr.bf16.gmra.mxu0 %v360
      %v459 = vpop.f32.mrf.mxu0
      %v460 = vadd.f32 0.0, %v459
      %v461 = vpop.f32.mrf.mxu0
      %v462 = vadd.f32 0.0, %v461
      %v463 = vpop.f32.mrf.mxu0
      %v464 = vadd.f32 0.0, %v463
      %v465 = vpop.f32.mrf.mxu0
      %v466 = vadd.f32 0.0, %v465
      %467 = vdwg.mxu0
      %v472 = vunpack.c.l.b16 %v279
      %v473 = vunpack.c.l.b16 %v280
      %v474 = vunpack.c.l.b16 %v281
      %v475 = vunpack.c.l.b16 %v282
      %v476 = vpack.c.b16 %v473, %v472
      %v477 = vpack.c.b16 %v475, %v474
      %v486 = vunpack.c.l.b16 %v283
      %v487 = vunpack.c.h.b16 %v283
      %v488 = vunpack.c.l.b16 %v284
      %v489 = vunpack.c.h.b16 %v284
      %v490 = vunpack.c.l.b16 %v285
      %v491 = vunpack.c.h.b16 %v285
      %v492 = vunpack.c.l.b16 %v286
      %v493 = vunpack.c.h.b16 %v286
      %v494 = vunpack.c.l.b16 %v287
      %v495 = vunpack.c.h.b16 %v287
      %v496 = vunpack.c.l.b16 %v288
      %v497 = vunpack.c.h.b16 %v288
      %v498 = vunpack.c.l.b16 %v289
      %v499 = vunpack.c.h.b16 %v289
      %v500 = vunpack.c.l.b16 %v290
      %v501 = vunpack.c.h.b16 %v290
      %v502 = vpack.c.b16 %v490, %v486
      %v503 = vpack.c.b16 %v491, %v487
      %v504 = vpack.c.b16 %v492, %v488
      %v505 = vpack.c.b16 %v493, %v489
      %v506 = vpack.c.b16 %v498, %v494
      %v507 = vpack.c.b16 %v499, %v495
      %v508 = vpack.c.b16 %v500, %v496
      %v509 = vpack.c.b16 %v501, %v497
      %v519 = vsel %vm355, %v476, 0
      %v522 = vsel %vm355, %v477, 0
      %524 = vmatprep.subr.bf16.mxu0 0
      %525 = vmatpush1.bf16.msra.mxu0 0
      %526 = vmatprep.subr.bf16.mxu0 0
      %527 = vmatpush1.bf16.msra.mxu0 0
      %528 = vmatprep.subr.bf16.mxu0 0
      %529 = vmatpush1.bf16.msra.mxu0 0
      %530 = vmatprep.subr.bf16.mxu0 0
      %531 = vmatpush1.bf16.msra.mxu0 0
      %532 = vmatprep.subr.bf16.mxu0 0
      %533 = vmatpush1.bf16.msra.mxu0 0
      %534 = vmatprep.subr.bf16.mxu0 0
      %535 = vmatpush1.bf16.msra.mxu0 0
      %536 = vmatprep.subr.bf16.mxu0 %v507
      %537 = vmatpush1.bf16.msra.mxu0 %v506
      %538 = vmatprep.subr.bf16.mxu0 %v503
      %539 = vmatpush1.bf16.msra.mxu0 %v502
      %540 = vmatprep.subr.bf16.mxu0 0
      %541 = vmatpush2.bf16.msra.mxu0 0
      %542 = vmatprep.subr.bf16.mxu0 0
      %543 = vmatpush2.bf16.msra.mxu0 0
      %544 = vmatprep.subr.bf16.mxu0 0
      %545 = vmatpush2.bf16.msra.mxu0 0
      %546 = vmatprep.subr.bf16.mxu0 0
      %547 = vmatpush2.bf16.msra.mxu0 0
      %548 = vmatprep.subr.bf16.mxu0 0
      %549 = vmatpush2.bf16.msra.mxu0 0
      %550 = vmatprep.subr.bf16.mxu0 0
      %551 = vmatpush2.bf16.msra.mxu0 0
      %552 = vmatprep.subr.bf16.mxu0 0
      %553 = vmatpush2.bf16.msra.mxu0 0
      %554 = vmatprep.subr.bf16.mxu0 0
      %555 = vmatpush2.bf16.msra.mxu0 0
      %556 = vmatprep.mubr.bf16.mxu0 0
      %557 = vmatmul.mubr.bf16.gmra.mxu0 %v519
      %v558 = vpop.f32.mrf.mxu0
      %v559 = vadd.f32 %v397, %v558
      %v560 = vpop.f32.mrf.mxu0
      %v561 = vadd.f32 %v399, %v560
      %v562 = vpop.f32.mrf.mxu0
      %v563 = vadd.f32 %v401, %v562
      %v564 = vpop.f32.mrf.mxu0
      %v565 = vadd.f32 %v403, %v564
      %566 = vmatprep.mubr.bf16.mxu0 0
      %567 = vmatmul.mubr.bf16.gmra.mxu0 %v522
      %v568 = vpop.f32.mrf.mxu0
      %v569 = vadd.f32 %v407, %v568
      %v570 = vpop.f32.mrf.mxu0
      %v571 = vadd.f32 %v409, %v570
      %v572 = vpop.f32.mrf.mxu0
      %v573 = vadd.f32 %v411, %v572
      %v574 = vpop.f32.mrf.mxu0
      %v575 = vadd.f32 %v413, %v574
      %576 = vdwg.mxu0
      %577 = vmatprep.subr.bf16.mxu0 0
      %578 = vmatpush1.bf16.msra.mxu0 0
      %579 = vmatprep.subr.bf16.mxu0 0
      %580 = vmatpush1.bf16.msra.mxu0 0
      %581 = vmatprep.subr.bf16.mxu0 0
      %582 = vmatpush1.bf16.msra.mxu0 0
      %583 = vmatprep.subr.bf16.mxu0 0
      %584 = vmatpush1.bf16.msra.mxu0 0
      %585 = vmatprep.subr.bf16.mxu0 0
      %586 = vmatpush1.bf16.msra.mxu0 0
      %587 = vmatprep.subr.bf16.mxu0 0
      %588 = vmatpush1.bf16.msra.mxu0 0
      %589 = vmatprep.subr.bf16.mxu0 %v509
      %590 = vmatpush1.bf16.msra.mxu0 %v508
      %591 = vmatprep.subr.bf16.mxu0 %v505
      %592 = vmatpush1.bf16.msra.mxu0 %v504
      %593 = vmatprep.subr.bf16.mxu0 0
      %594 = vmatpush2.bf16.msra.mxu0 0
      %595 = vmatprep.subr.bf16.mxu0 0
      %596 = vmatpush2.bf16.msra.mxu0 0
      %597 = vmatprep.subr.bf16.mxu0 0
      %598 = vmatpush2.bf16.msra.mxu0 0
      %599 = vmatprep.subr.bf16.mxu0 0
      %600 = vmatpush2.bf16.msra.mxu0 0
      %601 = vmatprep.subr.bf16.mxu0 0
      %602 = vmatpush2.bf16.msra.mxu0 0
      %603 = vmatprep.subr.bf16.mxu0 0
      %604 = vmatpush2.bf16.msra.mxu0 0
      %605 = vmatprep.subr.bf16.mxu0 0
      %606 = vmatpush2.bf16.msra.mxu0 0
      %607 = vmatprep.subr.bf16.mxu0 0
      %608 = vmatpush2.bf16.msra.mxu0 0
      %609 = vmatprep.mubr.bf16.mxu0 0
      %610 = vmatmul.mubr.bf16.gmra.mxu0 %v519
      %v611 = vpop.f32.mrf.mxu0
      %v612 = vadd.f32 %v450, %v611
      %v613 = vpop.f32.mrf.mxu0
      %v614 = vadd.f32 %v452, %v613
      %v615 = vpop.f32.mrf.mxu0
      %v616 = vadd.f32 %v454, %v615
      %v617 = vpop.f32.mrf.mxu0
      %v618 = vadd.f32 %v456, %v617
      %619 = vmatprep.mubr.bf16.mxu0 0
      %620 = vmatmul.mubr.bf16.gmra.mxu0 %v522
      %v621 = vpop.f32.mrf.mxu0
      %v622 = vadd.f32 %v460, %v621
      %v623 = vpop.f32.mrf.mxu0
      %v624 = vadd.f32 %v462, %v623
      %v625 = vpop.f32.mrf.mxu0
      %v626 = vadd.f32 %v464, %v625
      %v627 = vpop.f32.mrf.mxu0
      %v628 = vadd.f32 %v466, %v627
      %629 = vdwg.mxu0
      %s630 = scalar_lea.vmem %s272, 32
      %v631 = vld [vmem:[%s630] sm:$0xf]
      %v632 = vld [vmem:[%s630 + $0x4] sm:$0xf]
      %v633 = vld [vmem:[%s630 + $0x8] sm:$0xf]
      %v634 = vld [vmem:[%s630 + $0xc] sm:$0x3]
      %s635 = scalar_lea.vmem %s1, 128
      %v636 = vld [vmem:[%s635] sm:$0xff]
      %v637 = vld [vmem:[%s635 + $0x8] sm:$0xff]
      %v638 = vld [vmem:[%s635 + $0x10] sm:$0xff]
      %v639 = vld [vmem:[%s635 + $0x18] sm:$0xff]
      %v640 = vld [vmem:[%s635 + $0x20] sm:$0xff]
      %v641 = vld [vmem:[%s635 + $0x28] sm:$0xff]
      %v642 = vld [vmem:[%s635 + $0x30] sm:$0xff]
      %v643 = vld [vmem:[%s635 + $0x38] sm:$0xff]
      %v648 = vunpack.c.l.b16 %v631
      %v649 = vunpack.c.l.b16 %v632
      %v650 = vunpack.c.l.b16 %v633
      %v651 = vunpack.c.l.b16 %v634
      %v652 = vpack.c.b16 %v649, %v648
      %v653 = vpack.c.b16 %v651, %v650
      %v662 = vunpack.c.l.b16 %v636
      %v663 = vunpack.c.h.b16 %v636
      %v664 = vunpack.c.l.b16 %v637
      %v665 = vunpack.c.h.b16 %v637
      %v666 = vunpack.c.l.b16 %v638
      %v667 = vunpack.c.h.b16 %v638
      %v668 = vunpack.c.l.b16 %v639
      %v669 = vunpack.c.h.b16 %v639
      %v670 = vunpack.c.l.b16 %v640
      %v671 = vunpack.c.h.b16 %v640
      %v672 = vunpack.c.l.b16 %v641
      %v673 = vunpack.c.h.b16 %v641
      %v674 = vunpack.c.l.b16 %v642
      %v675 = vunpack.c.h.b16 %v642
      %v676 = vunpack.c.l.b16 %v643
      %v677 = vunpack.c.h.b16 %v643
      %v678 = vpack.c.b16 %v666, %v662
      %v679 = vpack.c.b16 %v667, %v663
      %v680 = vpack.c.b16 %v668, %v664
      %v681 = vpack.c.b16 %v669, %v665
      %v682 = vpack.c.b16 %v674, %v670
      %v683 = vpack.c.b16 %v675, %v671
      %v684 = vpack.c.b16 %v676, %v672
      %v685 = vpack.c.b16 %v677, %v673
      %v695 = vsel %vm355, %v652, 0
      %v698 = vsel %vm355, %v653, 0
      %700 = vmatprep.subr.bf16.mxu0 0
      %701 = vmatpush1.bf16.msra.mxu0 0
      %702 = vmatprep.subr.bf16.mxu0 0
      %703 = vmatpush1.bf16.msra.mxu0 0
      %704 = vmatprep.subr.bf16.mxu0 0
      %705 = vmatpush1.bf16.msra.mxu0 0
      %706 = vmatprep.subr.bf16.mxu0 0
      %707 = vmatpush1.bf16.msra.mxu0 0
      %708 = vmatprep.subr.bf16.mxu0 0
      %709 = vmatpush1.bf16.msra.mxu0 0
      %710 = vmatprep.subr.bf16.mxu0 0
      %711 = vmatpush1.bf16.msra.mxu0 0
      %712 = vmatprep.subr.bf16.mxu0 %v683
      %713 = vmatpush1.bf16.msra.mxu0 %v682
      %714 = vmatprep.subr.bf16.mxu0 %v679
      %715 = vmatpush1.bf16.msra.mxu0 %v678
      %716 = vmatprep.subr.bf16.mxu0 0
      %717 = vmatpush2.bf16.msra.mxu0 0
      %718 = vmatprep.subr.bf16.mxu0 0
      %719 = vmatpush2.bf16.msra.mxu0 0
      %720 = vmatprep.subr.bf16.mxu0 0
      %721 = vmatpush2.bf16.msra.mxu0 0
      %722 = vmatprep.subr.bf16.mxu0 0
      %723 = vmatpush2.bf16.msra.mxu0 0
      %724 = vmatprep.subr.bf16.mxu0 0
      %725 = vmatpush2.bf16.msra.mxu0 0
      %726 = vmatprep.subr.bf16.mxu0 0
      %727 = vmatpush2.bf16.msra.mxu0 0
      %728 = vmatprep.subr.bf16.mxu0 0
      %729 = vmatpush2.bf16.msra.mxu0 0
      %730 = vmatprep.subr.bf16.mxu0 0
      %731 = vmatpush2.bf16.msra.mxu0 0
      %732 = vmatprep.mubr.bf16.mxu0 0
      %733 = vmatmul.mubr.bf16.gmra.mxu0 %v695
      %v734 = vpop.f32.mrf.mxu0
      %v735 = vadd.f32 0.0, %v734
      %v736 = vpop.f32.mrf.mxu0
      %v737 = vadd.f32 0.0, %v736
      %v738 = vpop.f32.mrf.mxu0
      %v739 = vadd.f32 0.0, %v738
      %v740 = vpop.f32.mrf.mxu0
      %v741 = vadd.f32 0.0, %v740
      %742 = vmatprep.mubr.bf16.mxu0 0
      %743 = vmatmul.mubr.bf16.gmra.mxu0 %v698
      %v744 = vpop.f32.mrf.mxu0
      %v745 = vadd.f32 0.0, %v744
      %v746 = vpop.f32.mrf.mxu0
      %v747 = vadd.f32 0.0, %v746
      %v748 = vpop.f32.mrf.mxu0
      %v749 = vadd.f32 0.0, %v748
      %v750 = vpop.f32.mrf.mxu0
      %v751 = vadd.f32 0.0, %v750
      %752 = vdwg.mxu0
      %753 = vmatprep.subr.bf16.mxu0 0
      %754 = vmatpush1.bf16.msra.mxu0 0
      %755 = vmatprep.subr.bf16.mxu0 0
      %756 = vmatpush1.bf16.msra.mxu0 0
      %757 = vmatprep.subr.bf16.mxu0 0
      %758 = vmatpush1.bf16.msra.mxu0 0
      %759 = vmatprep.subr.bf16.mxu0 0
      %760 = vmatpush1.bf16.msra.mxu0 0
      %761 = vmatprep.subr.bf16.mxu0 0
      %762 = vmatpush1.bf16.msra.mxu0 0
      %763 = vmatprep.subr.bf16.mxu0 0
      %764 = vmatpush1.bf16.msra.mxu0 0
      %765 = vmatprep.subr.bf16.mxu0 %v685
      %766 = vmatpush1.bf16.msra.mxu0 %v684
      %767 = vmatprep.subr.bf16.mxu0 %v681
      %768 = vmatpush1.bf16.msra.mxu0 %v680
      %769 = vmatprep.subr.bf16.mxu0 0
      %770 = vmatpush2.bf16.msra.mxu0 0
      %771 = vmatprep.subr.bf16.mxu0 0
      %772 = vmatpush2.bf16.msra.mxu0 0
      %773 = vmatprep.subr.bf16.mxu0 0
      %774 = vmatpush2.bf16.msra.mxu0 0
      %775 = vmatprep.subr.bf16.mxu0 0
      %776 = vmatpush2.bf16.msra.mxu0 0
      %777 = vmatprep.subr.bf16.mxu0 0
      %778 = vmatpush2.bf16.msra.mxu0 0
      %779 = vmatprep.subr.bf16.mxu0 0
      %780 = vmatpush2.bf16.msra.mxu0 0
      %781 = vmatprep.subr.bf16.mxu0 0
      %782 = vmatpush2.bf16.msra.mxu0 0
      %783 = vmatprep.subr.bf16.mxu0 0
      %784 = vmatpush2.bf16.msra.mxu0 0
      %785 = vmatprep.mubr.bf16.mxu0 0
      %786 = vmatmul.mubr.bf16.gmra.mxu0 %v695
      %v787 = vpop.f32.mrf.mxu0
      %v788 = vadd.f32 0.0, %v787
      %v789 = vpop.f32.mrf.mxu0
      %v790 = vadd.f32 0.0, %v789
      %v791 = vpop.f32.mrf.mxu0
      %v792 = vadd.f32 0.0, %v791
      %v793 = vpop.f32.mrf.mxu0
      %v794 = vadd.f32 0.0, %v793
      %795 = vmatprep.mubr.bf16.mxu0 0
      %796 = vmatmul.mubr.bf16.gmra.mxu0 %v698
      %v797 = vpop.f32.mrf.mxu0
      %v798 = vadd.f32 0.0, %v797
      %v799 = vpop.f32.mrf.mxu0
      %v800 = vadd.f32 0.0, %v799
      %v801 = vpop.f32.mrf.mxu0
      %v802 = vadd.f32 0.0, %v801
      %v803 = vpop.f32.mrf.mxu0
      %v804 = vadd.f32 0.0, %v803
      %805 = vdwg.mxu0
      %v806 = vadd.f32 %v559, %v735
      %v807 = vadd.f32 %v561, %v737
      %v808 = vadd.f32 %v612, %v788
      %v809 = vadd.f32 %v614, %v790
      %v810 = vadd.f32 %v563, %v739
      %v811 = vadd.f32 %v565, %v741
      %v812 = vadd.f32 %v616, %v792
      %v813 = vadd.f32 %v618, %v794
      %v814 = vadd.f32 %v569, %v745
      %v815 = vadd.f32 %v571, %v747
      %v816 = vadd.f32 %v622, %v798
      %v817 = vadd.f32 %v624, %v800
      %v818 = vadd.f32 %v573, %v749
      %v819 = vadd.f32 %v575, %v751
      %v820 = vadd.f32 %v626, %v802
      %v821 = vadd.f32 %v628, %v804
      %s822 = scalar_lea.vmem %s272, 48
      %v823 = vld [vmem:[%s822] sm:$0xf]
      %v824 = vld [vmem:[%s822 + $0x4] sm:$0xf]
      %v825 = vld [vmem:[%s822 + $0x8] sm:$0xf]
      %v826 = vld [vmem:[%s822 + $0xc] sm:$0x3]
      %s827 = scalar_lea.vmem %s1, 192
      %v828 = vld [vmem:[%s827] sm:$0xff]
      %v829 = vld [vmem:[%s827 + $0x8] sm:$0xff]
      %v830 = vld [vmem:[%s827 + $0x10] sm:$0xff]
      %v831 = vld [vmem:[%s827 + $0x18] sm:$0xff]
      %v832 = vld [vmem:[%s827 + $0x20] sm:$0xff]
      %v833 = vld [vmem:[%s827 + $0x28] sm:$0xff]
      %v834 = vld [vmem:[%s827 + $0x30] sm:$0xff]
      %v835 = vld [vmem:[%s827 + $0x38] sm:$0xff]
      %v840 = vunpack.c.l.b16 %v823
      %v841 = vunpack.c.l.b16 %v824
      %v842 = vunpack.c.l.b16 %v825
      %v843 = vunpack.c.l.b16 %v826
      %v844 = vpack.c.b16 %v841, %v840
      %v845 = vpack.c.b16 %v843, %v842
      %v854 = vunpack.c.l.b16 %v828
      %v855 = vunpack.c.h.b16 %v828
      %v856 = vunpack.c.l.b16 %v829
      %v857 = vunpack.c.h.b16 %v829
      %v858 = vunpack.c.l.b16 %v830
      %v859 = vunpack.c.h.b16 %v830
      %v860 = vunpack.c.l.b16 %v831
      %v861 = vunpack.c.h.b16 %v831
      %v862 = vunpack.c.l.b16 %v832
      %v863 = vunpack.c.h.b16 %v832
      %v864 = vunpack.c.l.b16 %v833
      %v865 = vunpack.c.h.b16 %v833
      %v866 = vunpack.c.l.b16 %v834
      %v867 = vunpack.c.h.b16 %v834
      %v868 = vunpack.c.l.b16 %v835
      %v869 = vunpack.c.h.b16 %v835
      %v870 = vpack.c.b16 %v858, %v854
      %v871 = vpack.c.b16 %v859, %v855
      %v872 = vpack.c.b16 %v860, %v856
      %v873 = vpack.c.b16 %v861, %v857
      %v874 = vpack.c.b16 %v866, %v862
      %v875 = vpack.c.b16 %v867, %v863
      %v876 = vpack.c.b16 %v868, %v864
      %v877 = vpack.c.b16 %v869, %v865
      %v887 = vsel %vm355, %v844, 0
      %v890 = vsel %vm355, %v845, 0
      %892 = vmatprep.subr.bf16.mxu0 0
      %893 = vmatpush1.bf16.msra.mxu0 0
      %894 = vmatprep.subr.bf16.mxu0 0
      %895 = vmatpush1.bf16.msra.mxu0 0
      %896 = vmatprep.subr.bf16.mxu0 0
      %897 = vmatpush1.bf16.msra.mxu0 0
      %898 = vmatprep.subr.bf16.mxu0 0
      %899 = vmatpush1.bf16.msra.mxu0 0
      %900 = vmatprep.subr.bf16.mxu0 0
      %901 = vmatpush1.bf16.msra.mxu0 0
      %902 = vmatprep.subr.bf16.mxu0 0
      %903 = vmatpush1.bf16.msra.mxu0 0
      %904 = vmatprep.subr.bf16.mxu0 %v875
      %905 = vmatpush1.bf16.msra.mxu0 %v874
      %906 = vmatprep.subr.bf16.mxu0 %v871
      %907 = vmatpush1.bf16.msra.mxu0 %v870
      %908 = vmatprep.subr.bf16.mxu0 0
      %909 = vmatpush2.bf16.msra.mxu0 0
      %910 = vmatprep.subr.bf16.mxu0 0
      %911 = vmatpush2.bf16.msra.mxu0 0
      %912 = vmatprep.subr.bf16.mxu0 0
      %913 = vmatpush2.bf16.msra.mxu0 0
      %914 = vmatprep.subr.bf16.mxu0 0
      %915 = vmatpush2.bf16.msra.mxu0 0
      %916 = vmatprep.subr.bf16.mxu0 0
      %917 = vmatpush2.bf16.msra.mxu0 0
      %918 = vmatprep.subr.bf16.mxu0 0
      %919 = vmatpush2.bf16.msra.mxu0 0
      %920 = vmatprep.subr.bf16.mxu0 0
      %921 = vmatpush2.bf16.msra.mxu0 0
      %922 = vmatprep.subr.bf16.mxu0 0
      %923 = vmatpush2.bf16.msra.mxu0 0
      %924 = vmatprep.mubr.bf16.mxu0 0
      %925 = vmatmul.mubr.bf16.gmra.mxu0 %v887
      %v926 = vpop.f32.mrf.mxu0
      %v927 = vadd.f32 0.0, %v926
      %v928 = vpop.f32.mrf.mxu0
      %v929 = vadd.f32 0.0, %v928
      %v930 = vpop.f32.mrf.mxu0
      %v931 = vadd.f32 0.0, %v930
      %v932 = vpop.f32.mrf.mxu0
      %v933 = vadd.f32 0.0, %v932
      %934 = vmatprep.mubr.bf16.mxu0 0
      %935 = vmatmul.mubr.bf16.gmra.mxu0 %v890
      %v936 = vpop.f32.mrf.mxu0
      %v937 = vadd.f32 0.0, %v936
      %v938 = vpop.f32.mrf.mxu0
      %v939 = vadd.f32 0.0, %v938
      %v940 = vpop.f32.mrf.mxu0
      %v941 = vadd.f32 0.0, %v940
      %v942 = vpop.f32.mrf.mxu0
      %v943 = vadd.f32 0.0, %v942
      %944 = vdwg.mxu0
      %945 = vmatprep.subr.bf16.mxu0 0
      %946 = vmatpush1.bf16.msra.mxu0 0
      %947 = vmatprep.subr.bf16.mxu0 0
      %948 = vmatpush1.bf16.msra.mxu0 0
      %949 = vmatprep.subr.bf16.mxu0 0
      %950 = vmatpush1.bf16.msra.mxu0 0
      %951 = vmatprep.subr.bf16.mxu0 0
      %952 = vmatpush1.bf16.msra.mxu0 0
      %953 = vmatprep.subr.bf16.mxu0 0
      %954 = vmatpush1.bf16.msra.mxu0 0
      %955 = vmatprep.subr.bf16.mxu0 0
      %956 = vmatpush1.bf16.msra.mxu0 0
      %957 = vmatprep.subr.bf16.mxu0 %v877
      %958 = vmatpush1.bf16.msra.mxu0 %v876
      %959 = vmatprep.subr.bf16.mxu0 %v873
      %960 = vmatpush1.bf16.msra.mxu0 %v872
      %961 = vmatprep.subr.bf16.mxu0 0
      %962 = vmatpush2.bf16.msra.mxu0 0
      %963 = vmatprep.subr.bf16.mxu0 0
      %964 = vmatpush2.bf16.msra.mxu0 0
      %965 = vmatprep.subr.bf16.mxu0 0
      %966 = vmatpush2.bf16.msra.mxu0 0
      %967 = vmatprep.subr.bf16.mxu0 0
      %968 = vmatpush2.bf16.msra.mxu0 0
      %969 = vmatprep.subr.bf16.mxu0 0
      %970 = vmatpush2.bf16.msra.mxu0 0
      %971 = vmatprep.subr.bf16.mxu0 0
      %972 = vmatpush2.bf16.msra.mxu0 0
      %973 = vmatprep.subr.bf16.mxu0 0
      %974 = vmatpush2.bf16.msra.mxu0 0
      %975 = vmatprep.subr.bf16.mxu0 0
      %976 = vmatpush2.bf16.msra.mxu0 0
      %977 = vmatprep.mubr.bf16.mxu0 0
      %978 = vmatmul.mubr.bf16.gmra.mxu0 %v887
      %v979 = vpop.f32.mrf.mxu0
      %v980 = vadd.f32 0.0, %v979
      %v981 = vpop.f32.mrf.mxu0
      %v982 = vadd.f32 0.0, %v981
      %v983 = vpop.f32.mrf.mxu0
      %v984 = vadd.f32 0.0, %v983
      %v985 = vpop.f32.mrf.mxu0
      %v986 = vadd.f32 0.0, %v985
      %987 = vmatprep.mubr.bf16.mxu0 0
      %988 = vmatmul.mubr.bf16.gmra.mxu0 %v890
      %v989 = vpop.f32.mrf.mxu0
      %v990 = vadd.f32 0.0, %v989
      %v991 = vpop.f32.mrf.mxu0
      %v992 = vadd.f32 0.0, %v991
      %v993 = vpop.f32.mrf.mxu0
      %v994 = vadd.f32 0.0, %v993
      %v995 = vpop.f32.mrf.mxu0
      %v996 = vadd.f32 0.0, %v995
      %997 = vdwg.mxu0
      %v998 = vadd.f32 %v806, %v927
      %v999 = vadd.f32 %v807, %v929
      %v1000 = vadd.f32 %v808, %v980
      %v1001 = vadd.f32 %v809, %v982
      %v1002 = vadd.f32 %v810, %v931
      %v1003 = vadd.f32 %v811, %v933
      %v1004 = vadd.f32 %v812, %v984
      %v1005 = vadd.f32 %v813, %v986
      %v1006 = vadd.f32 %v814, %v937
      %v1007 = vadd.f32 %v815, %v939
      %v1008 = vadd.f32 %v816, %v990
      %v1009 = vadd.f32 %v817, %v992
      %v1010 = vadd.f32 %v818, %v941
      %v1011 = vadd.f32 %v819, %v943
      %v1012 = vadd.f32 %v820, %v994
      %v1013 = vadd.f32 %v821, %v996
      %v1014 = vld [vmem:[%s272] sm:$0xc]
      %v1015 = vld [vmem:[%s272 + $0xc] sm:$0xf]
      %s1016 = scalar_lea.vmem %s1, 256
      %v1017 = vld [vmem:[%s1016] sm:$0xff]
      %v1018 = vld [vmem:[%s1016 + $0x8] sm:$0xff]
      %v1019 = vld [vmem:[%s1016 + $0x10] sm:$0xff]
      %v1020 = vld [vmem:[%s1016 + $0x18] sm:$0xff]
      %v1021 = vld [vmem:[%s1016 + $0x20] sm:$0xff]
      %v1022 = vld [vmem:[%s1016 + $0x28] sm:$0xff]
      %v1023 = vld [vmem:[%s1016 + $0x30] sm:$0xff]
      %v1024 = vld [vmem:[%s1016 + $0x38] sm:$0xff]
      %v1027 = vunpack.c.l.b16 %v1014
      %v1028 = vunpack.c.l.b16 %v1015
      %v1029 = vpack.c.b16 %v473, %v1027
      %v1030 = vpack.c.b16 %v1028, %v474
      %vm1031 = vcmask 1045504
      %v1032 = vrot.slane %v1029, 2
      %v1033 = vrot.slane %v1030, 2
      %v1034 = vsel %vm1031, %v1032, %v1033
      %v1043 = vunpack.c.l.b16 %v1017
      %v1044 = vunpack.c.h.b16 %v1017
      %v1045 = vunpack.c.l.b16 %v1018
      %v1046 = vunpack.c.h.b16 %v1018
      %v1047 = vunpack.c.l.b16 %v1019
      %v1048 = vunpack.c.h.b16 %v1019
      %v1049 = vunpack.c.l.b16 %v1020
      %v1050 = vunpack.c.h.b16 %v1020
      %v1051 = vunpack.c.l.b16 %v1021
      %v1052 = vunpack.c.h.b16 %v1021
      %v1053 = vunpack.c.l.b16 %v1022
      %v1054 = vunpack.c.h.b16 %v1022
      %v1055 = vunpack.c.l.b16 %v1023
      %v1056 = vunpack.c.h.b16 %v1023
      %v1057 = vunpack.c.l.b16 %v1024
      %v1058 = vunpack.c.h.b16 %v1024
      %v1059 = vpack.c.b16 %v1047, %v1043
      %v1060 = vpack.c.b16 %v1048, %v1044
      %v1061 = vpack.c.b16 %v1049, %v1045
      %v1062 = vpack.c.b16 %v1050, %v1046
      %v1063 = vpack.c.b16 %v1055, %v1051
      %v1064 = vpack.c.b16 %v1056, %v1052
      %v1065 = vpack.c.b16 %v1057, %v1053
      %v1066 = vpack.c.b16 %v1058, %v1054
      %v1076 = vsel %vm355, %v1034, 0
      %v1079 = vsel %vm355, %v1033, 0
      %1081 = vmatprep.subr.bf16.mxu0 0
      %1082 = vmatpush1.bf16.msra.mxu0 0
      %1083 = vmatprep.subr.bf16.mxu0 0
      %1084 = vmatpush1.bf16.msra.mxu0 0
      %1085 = vmatprep.subr.bf16.mxu0 0
      %1086 = vmatpush1.bf16.msra.mxu0 0
      %1087 = vmatprep.subr.bf16.mxu0 0
      %1088 = vmatpush1.bf16.msra.mxu0 0
      %1089 = vmatprep.subr.bf16.mxu0 0
      %1090 = vmatpush1.bf16.msra.mxu0 0
      %1091 = vmatprep.subr.bf16.mxu0 0
      %1092 = vmatpush1.bf16.msra.mxu0 0
      %1093 = vmatprep.subr.bf16.mxu0 %v1064
      %1094 = vmatpush1.bf16.msra.mxu0 %v1063
      %1095 = vmatprep.subr.bf16.mxu0 %v1060
      %1096 = vmatpush1.bf16.msra.mxu0 %v1059
      %1097 = vmatprep.subr.bf16.mxu0 0
      %1098 = vmatpush2.bf16.msra.mxu0 0
      %1099 = vmatprep.subr.bf16.mxu0 0
      %1100 = vmatpush2.bf16.msra.mxu0 0
      %1101 = vmatprep.subr.bf16.mxu0 0
      %1102 = vmatpush2.bf16.msra.mxu0 0
      %1103 = vmatprep.subr.bf16.mxu0 0
      %1104 = vmatpush2.bf16.msra.mxu0 0
      %1105 = vmatprep.subr.bf16.mxu0 0
      %1106 = vmatpush2.bf16.msra.mxu0 0
      %1107 = vmatprep.subr.bf16.mxu0 0
      %1108 = vmatpush2.bf16.msra.mxu0 0
      %1109 = vmatprep.subr.bf16.mxu0 0
      %1110 = vmatpush2.bf16.msra.mxu0 0
      %1111 = vmatprep.subr.bf16.mxu0 0
      %1112 = vmatpush2.bf16.msra.mxu0 0
      %1113 = vmatprep.mubr.bf16.mxu0 0
      %1114 = vmatmul.mubr.bf16.gmra.mxu0 %v1076
      %v1115 = vpop.f32.mrf.mxu0
      %v1116 = vadd.f32 0.0, %v1115
      %v1117 = vpop.f32.mrf.mxu0
      %v1118 = vadd.f32 0.0, %v1117
      %v1119 = vpop.f32.mrf.mxu0
      %v1120 = vadd.f32 0.0, %v1119
      %v1121 = vpop.f32.mrf.mxu0
      %v1122 = vadd.f32 0.0, %v1121
      %1123 = vmatprep.mubr.bf16.mxu0 0
      %1124 = vmatmul.mubr.bf16.gmra.mxu0 %v1079
      %v1125 = vpop.f32.mrf.mxu0
      %v1126 = vadd.f32 0.0, %v1125
      %v1127 = vpop.f32.mrf.mxu0
      %v1128 = vadd.f32 0.0, %v1127
      %v1129 = vpop.f32.mrf.mxu0
      %v1130 = vadd.f32 0.0, %v1129
      %v1131 = vpop.f32.mrf.mxu0
      %v1132 = vadd.f32 0.0, %v1131
      %1133 = vdwg.mxu0
      %1134 = vmatprep.subr.bf16.mxu0 0
      %1135 = vmatpush1.bf16.msra.mxu0 0
      %1136 = vmatprep.subr.bf16.mxu0 0
      %1137 = vmatpush1.bf16.msra.mxu0 0
      %1138 = vmatprep.subr.bf16.mxu0 0
      %1139 = vmatpush1.bf16.msra.mxu0 0
      %1140 = vmatprep.subr.bf16.mxu0 0
      %1141 = vmatpush1.bf16.msra.mxu0 0
      %1142 = vmatprep.subr.bf16.mxu0 0
      %1143 = vmatpush1.bf16.msra.mxu0 0
      %1144 = vmatprep.subr.bf16.mxu0 0
      %1145 = vmatpush1.bf16.msra.mxu0 0
      %1146 = vmatprep.subr.bf16.mxu0 %v1066
      %1147 = vmatpush1.bf16.msra.mxu0 %v1065
      %1148 = vmatprep.subr.bf16.mxu0 %v1062
      %1149 = vmatpush1.bf16.msra.mxu0 %v1061
      %1150 = vmatprep.subr.bf16.mxu0 0
      %1151 = vmatpush2.bf16.msra.mxu0 0
      %1152 = vmatprep.subr.bf16.mxu0 0
      %1153 = vmatpush2.bf16.msra.mxu0 0
      %1154 = vmatprep.subr.bf16.mxu0 0
      %1155 = vmatpush2.bf16.msra.mxu0 0
      %1156 = vmatprep.subr.bf16.mxu0 0
      %1157 = vmatpush2.bf16.msra.mxu0 0
      %1158 = vmatprep.subr.bf16.mxu0 0
      %1159 = vmatpush2.bf16.msra.mxu0 0
      %1160 = vmatprep.subr.bf16.mxu0 0
      %1161 = vmatpush2.bf16.msra.mxu0 0
      %1162 = vmatprep.subr.bf16.mxu0 0
      %1163 = vmatpush2.bf16.msra.mxu0 0
      %1164 = vmatprep.subr.bf16.mxu0 0
      %1165 = vmatpush2.bf16.msra.mxu0 0
      %1166 = vmatprep.mubr.bf16.mxu0 0
      %1167 = vmatmul.mubr.bf16.gmra.mxu0 %v1076
      %v1168 = vpop.f32.mrf.mxu0
      %v1169 = vadd.f32 0.0, %v1168
      %v1170 = vpop.f32.mrf.mxu0
      %v1171 = vadd.f32 0.0, %v1170
      %v1172 = vpop.f32.mrf.mxu0
      %v1173 = vadd.f32 0.0, %v1172
      %v1174 = vpop.f32.mrf.mxu0
      %v1175 = vadd.f32 0.0, %v1174
      %1176 = vmatprep.mubr.bf16.mxu0 0
      %1177 = vmatmul.mubr.bf16.gmra.mxu0 %v1079
      %v1178 = vpop.f32.mrf.mxu0
      %v1179 = vadd.f32 0.0, %v1178
      %v1180 = vpop.f32.mrf.mxu0
      %v1181 = vadd.f32 0.0, %v1180
      %v1182 = vpop.f32.mrf.mxu0
      %v1183 = vadd.f32 0.0, %v1182
      %v1184 = vpop.f32.mrf.mxu0
      %v1185 = vadd.f32 0.0, %v1184
      %1186 = vdwg.mxu0
      %v1187 = vadd.f32 %v998, %v1116
      %v1188 = vadd.f32 %v999, %v1118
      %v1189 = vadd.f32 %v1000, %v1169
      %v1190 = vadd.f32 %v1001, %v1171
      %v1191 = vadd.f32 %v1002, %v1120
      %v1192 = vadd.f32 %v1003, %v1122
      %v1193 = vadd.f32 %v1004, %v1173
      %v1194 = vadd.f32 %v1005, %v1175
      %v1195 = vadd.f32 %v1006, %v1126
      %v1196 = vadd.f32 %v1007, %v1128
      %v1197 = vadd.f32 %v1008, %v1179
      %v1198 = vadd.f32 %v1009, %v1181
      %v1199 = vadd.f32 %v1010, %v1130
      %v1200 = vadd.f32 %v1011, %v1132
      %v1201 = vadd.f32 %v1012, %v1183
      %v1202 = vadd.f32 %v1013, %v1185
      %1203 = vmatprep.subr.bf16.mxu0 0
      %1204 = vmatpush1.bf16.msra.mxu0 0
      %1205 = vmatprep.subr.bf16.mxu0 0
      %1206 = vmatpush1.bf16.msra.mxu0 0
      %1207 = vmatprep.subr.bf16.mxu0 0
      %1208 = vmatpush1.bf16.msra.mxu0 0
      %1209 = vmatprep.subr.bf16.mxu0 0
      %1210 = vmatpush1.bf16.msra.mxu0 0
      %1211 = vmatprep.subr.bf16.mxu0 0
      %1212 = vmatpush1.bf16.msra.mxu0 0
      %1213 = vmatprep.subr.bf16.mxu0 0
      %1214 = vmatpush1.bf16.msra.mxu0 0
      %1215 = vmatprep.subr.bf16.mxu0 %v344
      %1216 = vmatpush1.bf16.msra.mxu0 %v343
      %1217 = vmatprep.subr.bf16.mxu0 %v340
      %1218 = vmatpush1.bf16.msra.mxu0 %v339
      %1219 = vmatprep.subr.bf16.mxu0 0
      %1220 = vmatpush2.bf16.msra.mxu0 0
      %1221 = vmatprep.subr.bf16.mxu0 0
      %1222 = vmatpush2.bf16.msra.mxu0 0
      %1223 = vmatprep.subr.bf16.mxu0 0
      %1224 = vmatpush2.bf16.msra.mxu0 0
      %1225 = vmatprep.subr.bf16.mxu0 0
      %1226 = vmatpush2.bf16.msra.mxu0 0
      %1227 = vmatprep.subr.bf16.mxu0 0
      %1228 = vmatpush2.bf16.msra.mxu0 0
      %1229 = vmatprep.subr.bf16.mxu0 0
      %1230 = vmatpush2.bf16.msra.mxu0 0
      %1231 = vmatprep.subr.bf16.mxu0 0
      %1232 = vmatpush2.bf16.msra.mxu0 0
      %1233 = vmatprep.subr.bf16.mxu0 0
      %1234 = vmatpush2.bf16.msra.mxu0 0
      %1235 = vmatprep.mubr.bf16.mxu0 0
      %1236 = vmatmul.mubr.bf16.gmra.mxu0 %v695
      %v1237 = vpop.f32.mrf.mxu0
      %v1238 = vadd.f32 0.0, %v1237
      %v1239 = vpop.f32.mrf.mxu0
      %v1240 = vadd.f32 0.0, %v1239
      %v1241 = vpop.f32.mrf.mxu0
      %v1242 = vadd.f32 0.0, %v1241
      %v1243 = vpop.f32.mrf.mxu0
      %v1244 = vadd.f32 0.0, %v1243
      %1245 = vmatprep.mubr.bf16.mxu0 0
      %1246 = vmatmul.mubr.bf16.gmra.mxu0 %v698
      %v1247 = vpop.f32.mrf.mxu0
      %v1248 = vadd.f32 0.0, %v1247
      %v1249 = vpop.f32.mrf.mxu0
      %v1250 = vadd.f32 0.0, %v1249
      %v1251 = vpop.f32.mrf.mxu0
      %v1252 = vadd.f32 0.0, %v1251
      %v1253 = vpop.f32.mrf.mxu0
      %v1254 = vadd.f32 0.0, %v1253
      %1255 = vdwg.mxu0
      %1256 = vmatprep.subr.bf16.mxu0 0
      %1257 = vmatpush1.bf16.msra.mxu0 0
      %1258 = vmatprep.subr.bf16.mxu0 0
      %1259 = vmatpush1.bf16.msra.mxu0 0
      %1260 = vmatprep.subr.bf16.mxu0 0
      %1261 = vmatpush1.bf16.msra.mxu0 0
      %1262 = vmatprep.subr.bf16.mxu0 0
      %1263 = vmatpush1.bf16.msra.mxu0 0
      %1264 = vmatprep.subr.bf16.mxu0 0
      %1265 = vmatpush1.bf16.msra.mxu0 0
      %1266 = vmatprep.subr.bf16.mxu0 0
      %1267 = vmatpush1.bf16.msra.mxu0 0
      %1268 = vmatprep.subr.bf16.mxu0 %v346
      %1269 = vmatpush1.bf16.msra.mxu0 %v345
      %1270 = vmatprep.subr.bf16.mxu0 %v342
      %1271 = vmatpush1.bf16.msra.mxu0 %v341
      %1272 = vmatprep.subr.bf16.mxu0 0
      %1273 = vmatpush2.bf16.msra.mxu0 0
      %1274 = vmatprep.subr.bf16.mxu0 0
      %1275 = vmatpush2.bf16.msra.mxu0 0
      %1276 = vmatprep.subr.bf16.mxu0 0
      %1277 = vmatpush2.bf16.msra.mxu0 0
      %1278 = vmatprep.subr.bf16.mxu0 0
      %1279 = vmatpush2.bf16.msra.mxu0 0
      %1280 = vmatprep.subr.bf16.mxu0 0
      %1281 = vmatpush2.bf16.msra.mxu0 0
      %1282 = vmatprep.subr.bf16.mxu0 0
      %1283 = vmatpush2.bf16.msra.mxu0 0
      %1284 = vmatprep.subr.bf16.mxu0 0
      %1285 = vmatpush2.bf16.msra.mxu0 0
      %1286 = vmatprep.subr.bf16.mxu0 0
      %1287 = vmatpush2.bf16.msra.mxu0 0
      %1288 = vmatprep.mubr.bf16.mxu0 0
      %1289 = vmatmul.mubr.bf16.gmra.mxu0 %v695
      %v1290 = vpop.f32.mrf.mxu0
      %v1291 = vadd.f32 0.0, %v1290
      %v1292 = vpop.f32.mrf.mxu0
      %v1293 = vadd.f32 0.0, %v1292
      %v1294 = vpop.f32.mrf.mxu0
      %v1295 = vadd.f32 0.0, %v1294
      %v1296 = vpop.f32.mrf.mxu0
      %v1297 = vadd.f32 0.0, %v1296
      %1298 = vmatprep.mubr.bf16.mxu0 0
      %1299 = vmatmul.mubr.bf16.gmra.mxu0 %v698
      %v1300 = vpop.f32.mrf.mxu0
      %v1301 = vadd.f32 0.0, %v1300
      %v1302 = vpop.f32.mrf.mxu0
      %v1303 = vadd.f32 0.0, %v1302
      %v1304 = vpop.f32.mrf.mxu0
      %v1305 = vadd.f32 0.0, %v1304
      %v1306 = vpop.f32.mrf.mxu0
      %v1307 = vadd.f32 0.0, %v1306
      %1308 = vdwg.mxu0
      %1309 = vmatprep.subr.bf16.mxu0 0
      %1310 = vmatpush1.bf16.msra.mxu0 0
      %1311 = vmatprep.subr.bf16.mxu0 0
      %1312 = vmatpush1.bf16.msra.mxu0 0
      %1313 = vmatprep.subr.bf16.mxu0 0
      %1314 = vmatpush1.bf16.msra.mxu0 0
      %1315 = vmatprep.subr.bf16.mxu0 0
      %1316 = vmatpush1.bf16.msra.mxu0 0
      %1317 = vmatprep.subr.bf16.mxu0 0
      %1318 = vmatpush1.bf16.msra.mxu0 0
      %1319 = vmatprep.subr.bf16.mxu0 0
      %1320 = vmatpush1.bf16.msra.mxu0 0
      %1321 = vmatprep.subr.bf16.mxu0 %v507
      %1322 = vmatpush1.bf16.msra.mxu0 %v506
      %1323 = vmatprep.subr.bf16.mxu0 %v503
      %1324 = vmatpush1.bf16.msra.mxu0 %v502
      %1325 = vmatprep.subr.bf16.mxu0 0
      %1326 = vmatpush2.bf16.msra.mxu0 0
      %1327 = vmatprep.subr.bf16.mxu0 0
      %1328 = vmatpush2.bf16.msra.mxu0 0
      %1329 = vmatprep.subr.bf16.mxu0 0
      %1330 = vmatpush2.bf16.msra.mxu0 0
      %1331 = vmatprep.subr.bf16.mxu0 0
      %1332 = vmatpush2.bf16.msra.mxu0 0
      %1333 = vmatprep.subr.bf16.mxu0 0
      %1334 = vmatpush2.bf16.msra.mxu0 0
      %1335 = vmatprep.subr.bf16.mxu0 0
      %1336 = vmatpush2.bf16.msra.mxu0 0
      %1337 = vmatprep.subr.bf16.mxu0 0
      %1338 = vmatpush2.bf16.msra.mxu0 0
      %1339 = vmatprep.subr.bf16.mxu0 0
      %1340 = vmatpush2.bf16.msra.mxu0 0
      %1341 = vmatprep.mubr.bf16.mxu0 0
      %1342 = vmatmul.mubr.bf16.gmra.mxu0 %v357
      %v1343 = vpop.f32.mrf.mxu0
      %v1344 = vadd.f32 %v1238, %v1343
      %v1345 = vpop.f32.mrf.mxu0
      %v1346 = vadd.f32 %v1240, %v1345
      %v1347 = vpop.f32.mrf.mxu0
      %v1348 = vadd.f32 %v1242, %v1347
      %v1349 = vpop.f32.mrf.mxu0
      %v1350 = vadd.f32 %v1244, %v1349
      %1351 = vmatprep.mubr.bf16.mxu0 0
      %1352 = vmatmul.mubr.bf16.gmra.mxu0 %v360
      %v1353 = vpop.f32.mrf.mxu0
      %v1354 = vadd.f32 %v1248, %v1353
      %v1355 = vpop.f32.mrf.mxu0
      %v1356 = vadd.f32 %v1250, %v1355
      %v1357 = vpop.f32.mrf.mxu0
      %v1358 = vadd.f32 %v1252, %v1357
      %v1359 = vpop.f32.mrf.mxu0
      %v1360 = vadd.f32 %v1254, %v1359
      %1361 = vdwg.mxu0
      %1362 = vmatprep.subr.bf16.mxu0 0
      %1363 = vmatpush1.bf16.msra.mxu0 0
      %1364 = vmatprep.subr.bf16.mxu0 0
      %1365 = vmatpush1.bf16.msra.mxu0 0
      %1366 = vmatprep.subr.bf16.mxu0 0
      %1367 = vmatpush1.bf16.msra.mxu0 0
      %1368 = vmatprep.subr.bf16.mxu0 0
      %1369 = vmatpush1.bf16.msra.mxu0 0
      %1370 = vmatprep.subr.bf16.mxu0 0
      %1371 = vmatpush1.bf16.msra.mxu0 0
      %1372 = vmatprep.subr.bf16.mxu0 0
      %1373 = vmatpush1.bf16.msra.mxu0 0
      %1374 = vmatprep.subr.bf16.mxu0 %v509
      %1375 = vmatpush1.bf16.msra.mxu0 %v508
      %1376 = vmatprep.subr.bf16.mxu0 %v505
      %1377 = vmatpush1.bf16.msra.mxu0 %v504
      %1378 = vmatprep.subr.bf16.mxu0 0
      %1379 = vmatpush2.bf16.msra.mxu0 0
      %1380 = vmatprep.subr.bf16.mxu0 0
      %1381 = vmatpush2.bf16.msra.mxu0 0
      %1382 = vmatprep.subr.bf16.mxu0 0
      %1383 = vmatpush2.bf16.msra.mxu0 0
      %1384 = vmatprep.subr.bf16.mxu0 0
      %1385 = vmatpush2.bf16.msra.mxu0 0
      %1386 = vmatprep.subr.bf16.mxu0 0
      %1387 = vmatpush2.bf16.msra.mxu0 0
      %1388 = vmatprep.subr.bf16.mxu0 0
      %1389 = vmatpush2.bf16.msra.mxu0 0
      %1390 = vmatprep.subr.bf16.mxu0 0
      %1391 = vmatpush2.bf16.msra.mxu0 0
      %1392 = vmatprep.subr.bf16.mxu0 0
      %1393 = vmatpush2.bf16.msra.mxu0 0
      %1394 = vmatprep.mubr.bf16.mxu0 0
      %1395 = vmatmul.mubr.bf16.gmra.mxu0 %v357
      %v1396 = vpop.f32.mrf.mxu0
      %v1397 = vadd.f32 %v1291, %v1396
      %v1398 = vpop.f32.mrf.mxu0
      %v1399 = vadd.f32 %v1293, %v1398
      %v1400 = vpop.f32.mrf.mxu0
      %v1401 = vadd.f32 %v1295, %v1400
      %v1402 = vpop.f32.mrf.mxu0
      %v1403 = vadd.f32 %v1297, %v1402
      %1404 = vmatprep.mubr.bf16.mxu0 0
      %1405 = vmatmul.mubr.bf16.gmra.mxu0 %v360
      %v1406 = vpop.f32.mrf.mxu0
      %v1407 = vadd.f32 %v1301, %v1406
      %v1408 = vpop.f32.mrf.mxu0
      %v1409 = vadd.f32 %v1303, %v1408
      %v1410 = vpop.f32.mrf.mxu0
      %v1411 = vadd.f32 %v1305, %v1410
      %v1412 = vpop.f32.mrf.mxu0
      %v1413 = vadd.f32 %v1307, %v1412
      %1414 = vdwg.mxu0
      %1415 = vmatprep.subr.bf16.mxu0 0
      %1416 = vmatpush1.bf16.msra.mxu0 0
      %1417 = vmatprep.subr.bf16.mxu0 0
      %1418 = vmatpush1.bf16.msra.mxu0 0
      %1419 = vmatprep.subr.bf16.mxu0 0
      %1420 = vmatpush1.bf16.msra.mxu0 0
      %1421 = vmatprep.subr.bf16.mxu0 0
      %1422 = vmatpush1.bf16.msra.mxu0 0
      %1423 = vmatprep.subr.bf16.mxu0 0
      %1424 = vmatpush1.bf16.msra.mxu0 0
      %1425 = vmatprep.subr.bf16.mxu0 0
      %1426 = vmatpush1.bf16.msra.mxu0 0
      %1427 = vmatprep.subr.bf16.mxu0 %v683
      %1428 = vmatpush1.bf16.msra.mxu0 %v682
      %1429 = vmatprep.subr.bf16.mxu0 %v679
      %1430 = vmatpush1.bf16.msra.mxu0 %v678
      %1431 = vmatprep.subr.bf16.mxu0 0
      %1432 = vmatpush2.bf16.msra.mxu0 0
      %1433 = vmatprep.subr.bf16.mxu0 0
      %1434 = vmatpush2.bf16.msra.mxu0 0
      %1435 = vmatprep.subr.bf16.mxu0 0
      %1436 = vmatpush2.bf16.msra.mxu0 0
      %1437 = vmatprep.subr.bf16.mxu0 0
      %1438 = vmatpush2.bf16.msra.mxu0 0
      %1439 = vmatprep.subr.bf16.mxu0 0
      %1440 = vmatpush2.bf16.msra.mxu0 0
      %1441 = vmatprep.subr.bf16.mxu0 0
      %1442 = vmatpush2.bf16.msra.mxu0 0
      %1443 = vmatprep.subr.bf16.mxu0 0
      %1444 = vmatpush2.bf16.msra.mxu0 0
      %1445 = vmatprep.subr.bf16.mxu0 0
      %1446 = vmatpush2.bf16.msra.mxu0 0
      %1447 = vmatprep.mubr.bf16.mxu0 0
      %1448 = vmatmul.mubr.bf16.gmra.mxu0 %v887
      %v1449 = vpop.f32.mrf.mxu0
      %v1450 = vadd.f32 0.0, %v1449
      %v1451 = vpop.f32.mrf.mxu0
      %v1452 = vadd.f32 0.0, %v1451
      %v1453 = vpop.f32.mrf.mxu0
      %v1454 = vadd.f32 0.0, %v1453
      %v1455 = vpop.f32.mrf.mxu0
      %v1456 = vadd.f32 0.0, %v1455
      %1457 = vmatprep.mubr.bf16.mxu0 0
      %1458 = vmatmul.mubr.bf16.gmra.mxu0 %v890
      %v1459 = vpop.f32.mrf.mxu0
      %v1460 = vadd.f32 0.0, %v1459
      %v1461 = vpop.f32.mrf.mxu0
      %v1462 = vadd.f32 0.0, %v1461
      %v1463 = vpop.f32.mrf.mxu0
      %v1464 = vadd.f32 0.0, %v1463
      %v1465 = vpop.f32.mrf.mxu0
      %v1466 = vadd.f32 0.0, %v1465
      %1467 = vdwg.mxu0
      %1468 = vmatprep.subr.bf16.mxu0 0
      %1469 = vmatpush1.bf16.msra.mxu0 0
      %1470 = vmatprep.subr.bf16.mxu0 0
      %1471 = vmatpush1.bf16.msra.mxu0 0
      %1472 = vmatprep.subr.bf16.mxu0 0
      %1473 = vmatpush1.bf16.msra.mxu0 0
      %1474 = vmatprep.subr.bf16.mxu0 0
      %1475 = vmatpush1.bf16.msra.mxu0 0
      %1476 = vmatprep.subr.bf16.mxu0 0
      %1477 = vmatpush1.bf16.msra.mxu0 0
      %1478 = vmatprep.subr.bf16.mxu0 0
      %1479 = vmatpush1.bf16.msra.mxu0 0
      %1480 = vmatprep.subr.bf16.mxu0 %v685
      %1481 = vmatpush1.bf16.msra.mxu0 %v684
      %1482 = vmatprep.subr.bf16.mxu0 %v681
      %1483 = vmatpush1.bf16.msra.mxu0 %v680
      %1484 = vmatprep.subr.bf16.mxu0 0
      %1485 = vmatpush2.bf16.msra.mxu0 0
      %1486 = vmatprep.subr.bf16.mxu0 0
      %1487 = vmatpush2.bf16.msra.mxu0 0
      %1488 = vmatprep.subr.bf16.mxu0 0
      %1489 = vmatpush2.bf16.msra.mxu0 0
      %1490 = vmatprep.subr.bf16.mxu0 0
      %1491 = vmatpush2.bf16.msra.mxu0 0
      %1492 = vmatprep.subr.bf16.mxu0 0
      %1493 = vmatpush2.bf16.msra.mxu0 0
      %1494 = vmatprep.subr.bf16.mxu0 0
      %1495 = vmatpush2.bf16.msra.mxu0 0
      %1496 = vmatprep.subr.bf16.mxu0 0
      %1497 = vmatpush2.bf16.msra.mxu0 0
      %1498 = vmatprep.subr.bf16.mxu0 0
      %1499 = vmatpush2.bf16.msra.mxu0 0
      %1500 = vmatprep.mubr.bf16.mxu0 0
      %1501 = vmatmul.mubr.bf16.gmra.mxu0 %v887
      %v1502 = vpop.f32.mrf.mxu0
      %v1503 = vadd.f32 0.0, %v1502
      %v1504 = vpop.f32.mrf.mxu0
      %v1505 = vadd.f32 0.0, %v1504
      %v1506 = vpop.f32.mrf.mxu0
      %v1507 = vadd.f32 0.0, %v1506
      %v1508 = vpop.f32.mrf.mxu0
      %v1509 = vadd.f32 0.0, %v1508
      %1510 = vmatprep.mubr.bf16.mxu0 0
      %1511 = vmatmul.mubr.bf16.gmra.mxu0 %v890
      %v1512 = vpop.f32.mrf.mxu0
      %v1513 = vadd.f32 0.0, %v1512
      %v1514 = vpop.f32.mrf.mxu0
      %v1515 = vadd.f32 0.0, %v1514
      %v1516 = vpop.f32.mrf.mxu0
      %v1517 = vadd.f32 0.0, %v1516
      %v1518 = vpop.f32.mrf.mxu0
      %v1519 = vadd.f32 0.0, %v1518
      %1520 = vdwg.mxu0
      %v1521 = vadd.f32 %v1344, %v1450
      %v1522 = vadd.f32 %v1346, %v1452
      %v1523 = vadd.f32 %v1397, %v1503
      %v1524 = vadd.f32 %v1399, %v1505
      %v1525 = vadd.f32 %v1348, %v1454
      %v1526 = vadd.f32 %v1350, %v1456
      %v1527 = vadd.f32 %v1401, %v1507
      %v1528 = vadd.f32 %v1403, %v1509
      %v1529 = vadd.f32 %v1354, %v1460
      %v1530 = vadd.f32 %v1356, %v1462
      %v1531 = vadd.f32 %v1407, %v1513
      %v1532 = vadd.f32 %v1409, %v1515
      %v1533 = vadd.f32 %v1358, %v1464
      %v1534 = vadd.f32 %v1360, %v1466
      %v1535 = vadd.f32 %v1411, %v1517
      %v1536 = vadd.f32 %v1413, %v1519
      %1537 = vmatprep.subr.bf16.mxu0 0
      %1538 = vmatpush1.bf16.msra.mxu0 0
      %1539 = vmatprep.subr.bf16.mxu0 0
      %1540 = vmatpush1.bf16.msra.mxu0 0
      %1541 = vmatprep.subr.bf16.mxu0 0
      %1542 = vmatpush1.bf16.msra.mxu0 0
      %1543 = vmatprep.subr.bf16.mxu0 0
      %1544 = vmatpush1.bf16.msra.mxu0 0
      %1545 = vmatprep.subr.bf16.mxu0 0
      %1546 = vmatpush1.bf16.msra.mxu0 0
      %1547 = vmatprep.subr.bf16.mxu0 0
      %1548 = vmatpush1.bf16.msra.mxu0 0
      %1549 = vmatprep.subr.bf16.mxu0 %v875
      %1550 = vmatpush1.bf16.msra.mxu0 %v874
      %1551 = vmatprep.subr.bf16.mxu0 %v871
      %1552 = vmatpush1.bf16.msra.mxu0 %v870
      %1553 = vmatprep.subr.bf16.mxu0 0
      %1554 = vmatpush2.bf16.msra.mxu0 0
      %1555 = vmatprep.subr.bf16.mxu0 0
      %1556 = vmatpush2.bf16.msra.mxu0 0
      %1557 = vmatprep.subr.bf16.mxu0 0
      %1558 = vmatpush2.bf16.msra.mxu0 0
      %1559 = vmatprep.subr.bf16.mxu0 0
      %1560 = vmatpush2.bf16.msra.mxu0 0
      %1561 = vmatprep.subr.bf16.mxu0 0
      %1562 = vmatpush2.bf16.msra.mxu0 0
      %1563 = vmatprep.subr.bf16.mxu0 0
      %1564 = vmatpush2.bf16.msra.mxu0 0
      %1565 = vmatprep.subr.bf16.mxu0 0
      %1566 = vmatpush2.bf16.msra.mxu0 0
      %1567 = vmatprep.subr.bf16.mxu0 0
      %1568 = vmatpush2.bf16.msra.mxu0 0
      %1569 = vmatprep.mubr.bf16.mxu0 0
      %1570 = vmatmul.mubr.bf16.gmra.mxu0 %v1076
      %v1571 = vpop.f32.mrf.mxu0
      %v1572 = vadd.f32 0.0, %v1571
      %v1573 = vpop.f32.mrf.mxu0
      %v1574 = vadd.f32 0.0, %v1573
      %v1575 = vpop.f32.mrf.mxu0
      %v1576 = vadd.f32 0.0, %v1575
      %v1577 = vpop.f32.mrf.mxu0
      %v1578 = vadd.f32 0.0, %v1577
      %1579 = vmatprep.mubr.bf16.mxu0 0
      %1580 = vmatmul.mubr.bf16.gmra.mxu0 %v1079
      %v1581 = vpop.f32.mrf.mxu0
      %v1582 = vadd.f32 0.0, %v1581
      %v1583 = vpop.f32.mrf.mxu0
      %v1584 = vadd.f32 0.0, %v1583
      %v1585 = vpop.f32.mrf.mxu0
      %v1586 = vadd.f32 0.0, %v1585
      %v1587 = vpop.f32.mrf.mxu0
      %v1588 = vadd.f32 0.0, %v1587
      %1589 = vdwg.mxu0
      %1590 = vmatprep.subr.bf16.mxu0 0
      %1591 = vmatpush1.bf16.msra.mxu0 0
      %1592 = vmatprep.subr.bf16.mxu0 0
      %1593 = vmatpush1.bf16.msra.mxu0 0
      %1594 = vmatprep.subr.bf16.mxu0 0
      %1595 = vmatpush1.bf16.msra.mxu0 0
      %1596 = vmatprep.subr.bf16.mxu0 0
      %1597 = vmatpush1.bf16.msra.mxu0 0
      %1598 = vmatprep.subr.bf16.mxu0 0
      %1599 = vmatpush1.bf16.msra.mxu0 0
      %1600 = vmatprep.subr.bf16.mxu0 0
      %1601 = vmatpush1.bf16.msra.mxu0 0
      %1602 = vmatprep.subr.bf16.mxu0 %v877
      %1603 = vmatpush1.bf16.msra.mxu0 %v876
      %1604 = vmatprep.subr.bf16.mxu0 %v873
      %1605 = vmatpush1.bf16.msra.mxu0 %v872
      %1606 = vmatprep.subr.bf16.mxu0 0
      %1607 = vmatpush2.bf16.msra.mxu0 0
      %1608 = vmatprep.subr.bf16.mxu0 0
      %1609 = vmatpush2.bf16.msra.mxu0 0
      %1610 = vmatprep.subr.bf16.mxu0 0
      %1611 = vmatpush2.bf16.msra.mxu0 0
      %1612 = vmatprep.subr.bf16.mxu0 0
      %1613 = vmatpush2.bf16.msra.mxu0 0
      %1614 = vmatprep.subr.bf16.mxu0 0
      %1615 = vmatpush2.bf16.msra.mxu0 0
      %1616 = vmatprep.subr.bf16.mxu0 0
      %1617 = vmatpush2.bf16.msra.mxu0 0
      %1618 = vmatprep.subr.bf16.mxu0 0
      %1619 = vmatpush2.bf16.msra.mxu0 0
      %1620 = vmatprep.subr.bf16.mxu0 0
      %1621 = vmatpush2.bf16.msra.mxu0 0
      %1622 = vmatprep.mubr.bf16.mxu0 0
      %1623 = vmatmul.mubr.bf16.gmra.mxu0 %v1076
      %v1624 = vpop.f32.mrf.mxu0
      %v1625 = vadd.f32 0.0, %v1624
      %v1626 = vpop.f32.mrf.mxu0
      %v1627 = vadd.f32 0.0, %v1626
      %v1628 = vpop.f32.mrf.mxu0
      %v1629 = vadd.f32 0.0, %v1628
      %v1630 = vpop.f32.mrf.mxu0
      %v1631 = vadd.f32 0.0, %v1630
      %1632 = vmatprep.mubr.bf16.mxu0 0
      %1633 = vmatmul.mubr.bf16.gmra.mxu0 %v1079
      %v1634 = vpop.f32.mrf.mxu0
      %v1635 = vadd.f32 0.0, %v1634
      %v1636 = vpop.f32.mrf.mxu0
      %v1637 = vadd.f32 0.0, %v1636
      %v1638 = vpop.f32.mrf.mxu0
      %v1639 = vadd.f32 0.0, %v1638
      %v1640 = vpop.f32.mrf.mxu0
      %v1641 = vadd.f32 0.0, %v1640
      %1642 = vdwg.mxu0
      %v1643 = vadd.f32 %v1521, %v1572
      %v1644 = vadd.f32 %v1522, %v1574
      %v1645 = vadd.f32 %v1523, %v1625
      %v1646 = vadd.f32 %v1524, %v1627
      %v1647 = vadd.f32 %v1525, %v1576
      %v1648 = vadd.f32 %v1526, %v1578
      %v1649 = vadd.f32 %v1527, %v1629
      %v1650 = vadd.f32 %v1528, %v1631
      %v1651 = vadd.f32 %v1529, %v1582
      %v1652 = vadd.f32 %v1530, %v1584
      %v1653 = vadd.f32 %v1531, %v1635
      %v1654 = vadd.f32 %v1532, %v1637
      %v1655 = vadd.f32 %v1533, %v1586
      %v1656 = vadd.f32 %v1534, %v1588
      %v1657 = vadd.f32 %v1535, %v1639
      %v1658 = vadd.f32 %v1536, %v1641
      %v1659 = vld [vmem:[%s291] sm:$0xc]
      %v1660 = vld [vmem:[%s291 + $0xc] sm:$0xf]
      %v1663 = vunpack.c.l.b16 %v1659
      %v1664 = vunpack.c.l.b16 %v1660
      %v1665 = vpack.c.b16 %v310, %v1663
      %v1666 = vpack.c.b16 %v1664, %v311
      %v1667 = vrot.slane %v1665, 2
      %v1668 = vrot.slane %v1666, 2
      %v1669 = vsel %vm1031, %v1667, %v1668
      %v1671 = vsel %vm355, %v1669, 0
      %v1674 = vsel %vm355, %v1668, 0
      %1676 = vmatprep.subr.bf16.mxu0 0
      %1677 = vmatpush1.bf16.msra.mxu0 0
      %1678 = vmatprep.subr.bf16.mxu0 0
      %1679 = vmatpush1.bf16.msra.mxu0 0
      %1680 = vmatprep.subr.bf16.mxu0 0
      %1681 = vmatpush1.bf16.msra.mxu0 0
      %1682 = vmatprep.subr.bf16.mxu0 0
      %1683 = vmatpush1.bf16.msra.mxu0 0
      %1684 = vmatprep.subr.bf16.mxu0 0
      %1685 = vmatpush1.bf16.msra.mxu0 0
      %1686 = vmatprep.subr.bf16.mxu0 0
      %1687 = vmatpush1.bf16.msra.mxu0 0
      %1688 = vmatprep.subr.bf16.mxu0 %v1064
      %1689 = vmatpush1.bf16.msra.mxu0 %v1063
      %1690 = vmatprep.subr.bf16.mxu0 %v1060
      %1691 = vmatpush1.bf16.msra.mxu0 %v1059
      %1692 = vmatprep.subr.bf16.mxu0 0
      %1693 = vmatpush2.bf16.msra.mxu0 0
      %1694 = vmatprep.subr.bf16.mxu0 0
      %1695 = vmatpush2.bf16.msra.mxu0 0
      %1696 = vmatprep.subr.bf16.mxu0 0
      %1697 = vmatpush2.bf16.msra.mxu0 0
      %1698 = vmatprep.subr.bf16.mxu0 0
      %1699 = vmatpush2.bf16.msra.mxu0 0
      %1700 = vmatprep.subr.bf16.mxu0 0
      %1701 = vmatpush2.bf16.msra.mxu0 0
      %1702 = vmatprep.subr.bf16.mxu0 0
      %1703 = vmatpush2.bf16.msra.mxu0 0
      %1704 = vmatprep.subr.bf16.mxu0 0
      %1705 = vmatpush2.bf16.msra.mxu0 0
      %1706 = vmatprep.subr.bf16.mxu0 0
      %1707 = vmatpush2.bf16.msra.mxu0 0
      %1708 = vmatprep.mubr.bf16.mxu0 0
      %1709 = vmatmul.mubr.bf16.gmra.mxu0 %v1671
      %v1710 = vpop.f32.mrf.mxu0
      %v1711 = vadd.f32 0.0, %v1710
      %v1712 = vpop.f32.mrf.mxu0
      %v1713 = vadd.f32 0.0, %v1712
      %v1714 = vpop.f32.mrf.mxu0
      %v1715 = vadd.f32 0.0, %v1714
      %v1716 = vpop.f32.mrf.mxu0
      %v1717 = vadd.f32 0.0, %v1716
      %1718 = vmatprep.mubr.bf16.mxu0 0
      %1719 = vmatmul.mubr.bf16.gmra.mxu0 %v1674
      %v1720 = vpop.f32.mrf.mxu0
      %v1721 = vadd.f32 0.0, %v1720
      %v1722 = vpop.f32.mrf.mxu0
      %v1723 = vadd.f32 0.0, %v1722
      %v1724 = vpop.f32.mrf.mxu0
      %v1725 = vadd.f32 0.0, %v1724
      %v1726 = vpop.f32.mrf.mxu0
      %v1727 = vadd.f32 0.0, %v1726
      %1728 = vdwg.mxu0
      %1729 = vmatprep.subr.bf16.mxu0 0
      %1730 = vmatpush1.bf16.msra.mxu0 0
      %1731 = vmatprep.subr.bf16.mxu0 0
      %1732 = vmatpush1.bf16.msra.mxu0 0
      %1733 = vmatprep.subr.bf16.mxu0 0
      %1734 = vmatpush1.bf16.msra.mxu0 0
      %1735 = vmatprep.subr.bf16.mxu0 0
      %1736 = vmatpush1.bf16.msra.mxu0 0
      %1737 = vmatprep.subr.bf16.mxu0 0
      %1738 = vmatpush1.bf16.msra.mxu0 0
      %1739 = vmatprep.subr.bf16.mxu0 0
      %1740 = vmatpush1.bf16.msra.mxu0 0
      %1741 = vmatprep.subr.bf16.mxu0 %v1066
      %1742 = vmatpush1.bf16.msra.mxu0 %v1065
      %1743 = vmatprep.subr.bf16.mxu0 %v1062
      %1744 = vmatpush1.bf16.msra.mxu0 %v1061
      %1745 = vmatprep.subr.bf16.mxu0 0
      %1746 = vmatpush2.bf16.msra.mxu0 0
      %1747 = vmatprep.subr.bf16.mxu0 0
      %1748 = vmatpush2.bf16.msra.mxu0 0
      %1749 = vmatprep.subr.bf16.mxu0 0
      %1750 = vmatpush2.bf16.msra.mxu0 0
      %1751 = vmatprep.subr.bf16.mxu0 0
      %1752 = vmatpush2.bf16.msra.mxu0 0
      %1753 = vmatprep.subr.bf16.mxu0 0
      %1754 = vmatpush2.bf16.msra.mxu0 0
      %1755 = vmatprep.subr.bf16.mxu0 0
      %1756 = vmatpush2.bf16.msra.mxu0 0
      %1757 = vmatprep.subr.bf16.mxu0 0
      %1758 = vmatpush2.bf16.msra.mxu0 0
      %1759 = vmatprep.subr.bf16.mxu0 0
      %1760 = vmatpush2.bf16.msra.mxu0 0
      %1761 = vmatprep.mubr.bf16.mxu0 0
      %1762 = vmatmul.mubr.bf16.gmra.mxu0 %v1671
      %v1763 = vpop.f32.mrf.mxu0
      %v1764 = vadd.f32 0.0, %v1763
      %v1765 = vpop.f32.mrf.mxu0
      %v1766 = vadd.f32 0.0, %v1765
      %v1767 = vpop.f32.mrf.mxu0
      %v1768 = vadd.f32 0.0, %v1767
      %v1769 = vpop.f32.mrf.mxu0
      %v1770 = vadd.f32 0.0, %v1769
      %1771 = vmatprep.mubr.bf16.mxu0 0
      %1772 = vmatmul.mubr.bf16.gmra.mxu0 %v1674
      %v1773 = vpop.f32.mrf.mxu0
      %v1774 = vadd.f32 0.0, %v1773
      %v1775 = vpop.f32.mrf.mxu0
      %v1776 = vadd.f32 0.0, %v1775
      %v1777 = vpop.f32.mrf.mxu0
      %v1778 = vadd.f32 0.0, %v1777
      %v1779 = vpop.f32.mrf.mxu0
      %v1780 = vadd.f32 0.0, %v1779
      %1781 = vdwg.mxu0
      %v1782 = vadd.f32 %v1643, %v1711
      %v1783 = vadd.f32 %v1644, %v1713
      %v1784 = vadd.f32 %v1645, %v1764
      %v1785 = vadd.f32 %v1646, %v1766
      %v1786 = vadd.f32 %v1647, %v1715
      %v1787 = vadd.f32 %v1648, %v1717
      %v1788 = vadd.f32 %v1649, %v1768
      %v1789 = vadd.f32 %v1650, %v1770
      %v1790 = vadd.f32 %v1651, %v1721
      %v1791 = vadd.f32 %v1652, %v1723
      %v1792 = vadd.f32 %v1653, %v1774
      %v1793 = vadd.f32 %v1654, %v1776
      %v1794 = vadd.f32 %v1655, %v1725
      %v1795 = vadd.f32 %v1656, %v1727
      %v1796 = vadd.f32 %v1657, %v1778
      %v1797 = vadd.f32 %v1658, %v1780
      %v1798 = vmax.f32 %v1187, %v1782
      %v1799 = vmax.f32 %v1188, %v1783
      %v1800 = vmax.f32 %v1189, %v1784
      %v1801 = vmax.f32 %v1190, %v1785
      %v1802 = vmax.f32 %v1191, %v1786
      %v1803 = vmax.f32 %v1192, %v1787
      %v1804 = vmax.f32 %v1193, %v1788
      %v1805 = vmax.f32 %v1194, %v1789
      %v1806 = vmax.f32 %v1195, %v1790
      %v1807 = vmax.f32 %v1196, %v1791
      %v1808 = vmax.f32 %v1197, %v1792
      %v1809 = vmax.f32 %v1198, %v1793
      %v1810 = vmax.f32 %v1199, %v1794
      %v1811 = vmax.f32 %v1200, %v1795
      %v1812 = vmax.f32 %v1201, %v1796
      %v1813 = vmax.f32 %v1202, %v1797
      %v1815 = vlaneseq
      %v1816 = vshrl.u32 %v1815, 7
      %v1817 = vsub.s32 0, %v1816
      %v1818 = vrot.slane %v278, %v1817
      %v1819 = vlaneseq
      %v1820 = vshrl.u32 %v1819, 7
      %v1821 = vsub.s32 1, %v1820
      %v1822 = vrot.slane %v278, %v1821
      %v1823 = vlaneseq
      %v1824 = vshrl.u32 %v1823, 7
      %v1825 = vsub.s32 2, %v1824
      %v1826 = vrot.slane %v278, %v1825
      %v1827 = vlaneseq
      %v1828 = vshrl.u32 %v1827, 7
      %v1829 = vsub.s32 3, %v1828
      %v1830 = vrot.slane %v278, %v1829
      %v1835 = vadd.f32 %v1798, %v1818
      %v1836 = vadd.f32 %v1799, %v1822
      %v1837 = vadd.f32 %v1800, %v1826
      %v1838 = vadd.f32 %v1801, %v1830
      %v1839 = vadd.f32 %v1802, %v1818
      %v1840 = vadd.f32 %v1803, %v1822
      %v1841 = vadd.f32 %v1804, %v1826
      %v1842 = vadd.f32 %v1805, %v1830
      %v1843 = vadd.f32 %v1806, %v1818
      %v1844 = vadd.f32 %v1807, %v1822
      %v1845 = vadd.f32 %v1808, %v1826
      %v1846 = vadd.f32 %v1809, %v1830
      %v1847 = vadd.f32 %v1810, %v1818
      %v1848 = vadd.f32 %v1811, %v1822
      %v1849 = vadd.f32 %v1812, %v1826
      %v1850 = vadd.f32 %v1813, %v1830
      %v1851 = vmax.f32 %v1835, 0.0
      %v1852 = vmax.f32 %v1836, 0.0
      %v1853 = vmax.f32 %v1837, 0.0
      %v1854 = vmax.f32 %v1838, 0.0
      %v1855 = vmax.f32 %v1839, 0.0
      %v1856 = vmax.f32 %v1840, 0.0
      %v1857 = vmax.f32 %v1841, 0.0
      %v1858 = vmax.f32 %v1842, 0.0
      %v1859 = vmax.f32 %v1843, 0.0
      %v1860 = vmax.f32 %v1844, 0.0
      %v1861 = vmax.f32 %v1845, 0.0
      %v1862 = vmax.f32 %v1846, 0.0
      %v1863 = vmax.f32 %v1847, 0.0
      %v1864 = vmax.f32 %v1848, 0.0
      %v1865 = vmax.f32 %v1849, 0.0
      %v1866 = vmax.f32 %v1850, 0.0
      %1879 = vrot.lane.b32.xlu0 %v1852, 32
      %v1880 = vpop.permute.xlu0 %1879
      %1881 = vrot.lane.b32.xlu0 %v1853, 32
      %v1882 = vpop.permute.xlu0 %1881
      %1883 = vrot.lane.b32.xlu0 %v1854, 32
      %v1884 = vpop.permute.xlu0 %1883
      %1885 = vrot.lane.b32.xlu0 %v1856, 32
      %v1886 = vpop.permute.xlu0 %1885
      %1887 = vrot.lane.b32.xlu0 %v1857, 32
      %v1888 = vpop.permute.xlu0 %1887
      %1889 = vrot.lane.b32.xlu0 %v1858, 32
      %v1890 = vpop.permute.xlu0 %1889
      %1891 = vrot.lane.b32.xlu0 %v1860, 32
      %v1892 = vpop.permute.xlu0 %1891
      %1893 = vrot.lane.b32.xlu0 %v1861, 32
      %v1894 = vpop.permute.xlu0 %1893
      %1895 = vrot.lane.b32.xlu0 %v1862, 32
      %v1896 = vpop.permute.xlu0 %1895
      %1897 = vrot.lane.b32.xlu0 %v1864, 32
      %v1898 = vpop.permute.xlu0 %1897
      %1899 = vrot.lane.b32.xlu0 %v1865, 32
      %v1900 = vpop.permute.xlu0 %1899
      %1901 = vrot.lane.b32.xlu0 %v1866, 32
      %v1902 = vpop.permute.xlu0 %1901
      %v1903 = vsel %vm355, %v1880, %v1882
      %v1904 = vsel %vm355, %v1882, %v1884
      %v1905 = vsel %vm355, %v1886, %v1888
      %v1906 = vsel %vm355, %v1888, %v1890
      %v1907 = vsel %vm355, %v1892, %v1894
      %v1908 = vsel %vm355, %v1894, %v1896
      %v1909 = vsel %vm355, %v1898, %v1900
      %v1910 = vsel %vm355, %v1900, %v1902
      %v1919 = vmax.f32 %v1851, %v1903
      %v1920 = vmax.f32 %v1852, %v1904
      %v1921 = vmax.f32 %v1855, %v1905
      %v1922 = vmax.f32 %v1856, %v1906
      %v1923 = vmax.f32 %v1859, %v1907
      %v1924 = vmax.f32 %v1860, %v1908
      %v1925 = vmax.f32 %v1863, %v1909
      %v1926 = vmax.f32 %v1864, %v1910
      %v1927 = vpack.c.bf16 %v1921, %v1919
      %v1928 = vpack.c.bf16 %v1922, %v1920
      %v1929 = vpack.c.bf16 %v1925, %v1923
      %v1930 = vpack.c.bf16 %v1926, %v1924
      %1931 = vmatprep.subr.bf16.mxu0 0
      %1932 = vmatpush1.bf16.msra.mxu0 0
      %1933 = vmatprep.subr.bf16.mxu0 0
      %1934 = vmatpush1.bf16.msra.mxu0 0
      %1935 = vmatprep.subr.bf16.mxu0 0
      %1936 = vmatpush1.bf16.msra.mxu0 0
      %1937 = vmatprep.subr.bf16.mxu0 0
      %1938 = vmatpush1.bf16.msra.mxu0 0
      %1939 = vmatprep.subr.bf16.mxu0 0
      %1940 = vmatpush1.bf16.msra.mxu0 0
      %1941 = vmatprep.subr.bf16.mxu0 0
      %1942 = vmatpush1.bf16.msra.mxu0 0
      %1943 = vmatprep.subr.bf16.mxu0 %v344
      %1944 = vmatpush1.bf16.msra.mxu0 %v343
      %1945 = vmatprep.subr.bf16.mxu0 %v340
      %1946 = vmatpush1.bf16.msra.mxu0 %v339
      %1947 = vmatprep.subr.bf16.mxu0 0
      %1948 = vmatpush2.bf16.msra.mxu0 0
      %1949 = vmatprep.subr.bf16.mxu0 0
      %1950 = vmatpush2.bf16.msra.mxu0 0
      %1951 = vmatprep.subr.bf16.mxu0 0
      %1952 = vmatpush2.bf16.msra.mxu0 0
      %1953 = vmatprep.subr.bf16.mxu0 0
      %1954 = vmatpush2.bf16.msra.mxu0 0
      %1955 = vmatprep.subr.bf16.mxu0 0
      %1956 = vmatpush2.bf16.msra.mxu0 0
      %1957 = vmatprep.subr.bf16.mxu0 0
      %1958 = vmatpush2.bf16.msra.mxu0 0
      %1959 = vmatprep.subr.bf16.mxu0 0
      %1960 = vmatpush2.bf16.msra.mxu0 0
      %1961 = vmatprep.subr.bf16.mxu0 0
      %1962 = vmatpush2.bf16.msra.mxu0 0
      %1963 = vmatprep.mubr.bf16.mxu0 0
      %1964 = vmatmul.mubr.bf16.gmra.mxu0 %v887
      %v1965 = vpop.f32.mrf.mxu0
      %v1966 = vadd.f32 0.0, %v1965
      %v1967 = vpop.f32.mrf.mxu0
      %v1968 = vadd.f32 0.0, %v1967
      %v1969 = vpop.f32.mrf.mxu0
      %v1970 = vadd.f32 0.0, %v1969
      %v1971 = vpop.f32.mrf.mxu0
      %v1972 = vadd.f32 0.0, %v1971
      %1973 = vmatprep.mubr.bf16.mxu0 0
      %1974 = vmatmul.mubr.bf16.gmra.mxu0 %v890
      %v1975 = vpop.f32.mrf.mxu0
      %v1976 = vadd.f32 0.0, %v1975
      %v1977 = vpop.f32.mrf.mxu0
      %v1978 = vadd.f32 0.0, %v1977
      %v1979 = vpop.f32.mrf.mxu0
      %v1980 = vadd.f32 0.0, %v1979
      %v1981 = vpop.f32.mrf.mxu0
      %v1982 = vadd.f32 0.0, %v1981
      %1983 = vdwg.mxu0
      %1984 = vmatprep.subr.bf16.mxu0 0
      %1985 = vmatpush1.bf16.msra.mxu0 0
      %1986 = vmatprep.subr.bf16.mxu0 0
      %1987 = vmatpush1.bf16.msra.mxu0 0
      %1988 = vmatprep.subr.bf16.mxu0 0
      %1989 = vmatpush1.bf16.msra.mxu0 0
      %1990 = vmatprep.subr.bf16.mxu0 0
      %1991 = vmatpush1.bf16.msra.mxu0 0
      %1992 = vmatprep.subr.bf16.mxu0 0
      %1993 = vmatpush1.bf16.msra.mxu0 0
      %1994 = vmatprep.subr.bf16.mxu0 0
      %1995 = vmatpush1.bf16.msra.mxu0 0
      %1996 = vmatprep.subr.bf16.mxu0 %v346
      %1997 = vmatpush1.bf16.msra.mxu0 %v345
      %1998 = vmatprep.subr.bf16.mxu0 %v342
      %1999 = vmatpush1.bf16.msra.mxu0 %v341
      %2000 = vmatprep.subr.bf16.mxu0 0
      %2001 = vmatpush2.bf16.msra.mxu0 0
      %2002 = vmatprep.subr.bf16.mxu0 0
      %2003 = vmatpush2.bf16.msra.mxu0 0
      %2004 = vmatprep.subr.bf16.mxu0 0
      %2005 = vmatpush2.bf16.msra.mxu0 0
      %2006 = vmatprep.subr.bf16.mxu0 0
      %2007 = vmatpush2.bf16.msra.mxu0 0
      %2008 = vmatprep.subr.bf16.mxu0 0
      %2009 = vmatpush2.bf16.msra.mxu0 0
      %2010 = vmatprep.subr.bf16.mxu0 0
      %2011 = vmatpush2.bf16.msra.mxu0 0
      %2012 = vmatprep.subr.bf16.mxu0 0
      %2013 = vmatpush2.bf16.msra.mxu0 0
      %2014 = vmatprep.subr.bf16.mxu0 0
      %2015 = vmatpush2.bf16.msra.mxu0 0
      %2016 = vmatprep.mubr.bf16.mxu0 0
      %2017 = vmatmul.mubr.bf16.gmra.mxu0 %v887
      %v2018 = vpop.f32.mrf.mxu0
      %v2019 = vadd.f32 0.0, %v2018
      %v2020 = vpop.f32.mrf.mxu0
      %v2021 = vadd.f32 0.0, %v2020
      %v2022 = vpop.f32.mrf.mxu0
      %v2023 = vadd.f32 0.0, %v2022
      %v2024 = vpop.f32.mrf.mxu0
      %v2025 = vadd.f32 0.0, %v2024
      %2026 = vmatprep.mubr.bf16.mxu0 0
      %2027 = vmatmul.mubr.bf16.gmra.mxu0 %v890
      %v2028 = vpop.f32.mrf.mxu0
      %v2029 = vadd.f32 0.0, %v2028
      %v2030 = vpop.f32.mrf.mxu0
      %v2031 = vadd.f32 0.0, %v2030
      %v2032 = vpop.f32.mrf.mxu0
      %v2033 = vadd.f32 0.0, %v2032
      %v2034 = vpop.f32.mrf.mxu0
      %v2035 = vadd.f32 0.0, %v2034
      %2036 = vdwg.mxu0
      %2037 = vmatprep.subr.bf16.mxu0 0
      %2038 = vmatpush1.bf16.msra.mxu0 0
      %2039 = vmatprep.subr.bf16.mxu0 0
      %2040 = vmatpush1.bf16.msra.mxu0 0
      %2041 = vmatprep.subr.bf16.mxu0 0
      %2042 = vmatpush1.bf16.msra.mxu0 0
      %2043 = vmatprep.subr.bf16.mxu0 0
      %2044 = vmatpush1.bf16.msra.mxu0 0
      %2045 = vmatprep.subr.bf16.mxu0 0
      %2046 = vmatpush1.bf16.msra.mxu0 0
      %2047 = vmatprep.subr.bf16.mxu0 0
      %2048 = vmatpush1.bf16.msra.mxu0 0
      %2049 = vmatprep.subr.bf16.mxu0 %v507
      %2050 = vmatpush1.bf16.msra.mxu0 %v506
      %2051 = vmatprep.subr.bf16.mxu0 %v503
      %2052 = vmatpush1.bf16.msra.mxu0 %v502
      %2053 = vmatprep.subr.bf16.mxu0 0
      %2054 = vmatpush2.bf16.msra.mxu0 0
      %2055 = vmatprep.subr.bf16.mxu0 0
      %2056 = vmatpush2.bf16.msra.mxu0 0
      %2057 = vmatprep.subr.bf16.mxu0 0
      %2058 = vmatpush2.bf16.msra.mxu0 0
      %2059 = vmatprep.subr.bf16.mxu0 0
      %2060 = vmatpush2.bf16.msra.mxu0 0
      %2061 = vmatprep.subr.bf16.mxu0 0
      %2062 = vmatpush2.bf16.msra.mxu0 0
      %2063 = vmatprep.subr.bf16.mxu0 0
      %2064 = vmatpush2.bf16.msra.mxu0 0
      %2065 = vmatprep.subr.bf16.mxu0 0
      %2066 = vmatpush2.bf16.msra.mxu0 0
      %2067 = vmatprep.subr.bf16.mxu0 0
      %2068 = vmatpush2.bf16.msra.mxu0 0
      %2069 = vmatprep.mubr.bf16.mxu0 0
      %2070 = vmatmul.mubr.bf16.gmra.mxu0 %v695
      %v2071 = vpop.f32.mrf.mxu0
      %v2072 = vadd.f32 %v1966, %v2071
      %v2073 = vpop.f32.mrf.mxu0
      %v2074 = vadd.f32 %v1968, %v2073
      %v2075 = vpop.f32.mrf.mxu0
      %v2076 = vadd.f32 %v1970, %v2075
      %v2077 = vpop.f32.mrf.mxu0
      %v2078 = vadd.f32 %v1972, %v2077
      %2079 = vmatprep.mubr.bf16.mxu0 0
      %2080 = vmatmul.mubr.bf16.gmra.mxu0 %v698
      %v2081 = vpop.f32.mrf.mxu0
      %v2082 = vadd.f32 %v1976, %v2081
      %v2083 = vpop.f32.mrf.mxu0
      %v2084 = vadd.f32 %v1978, %v2083
      %v2085 = vpop.f32.mrf.mxu0
      %v2086 = vadd.f32 %v1980, %v2085
      %v2087 = vpop.f32.mrf.mxu0
      %v2088 = vadd.f32 %v1982, %v2087
      %2089 = vdwg.mxu0
      %2090 = vmatprep.subr.bf16.mxu0 0
      %2091 = vmatpush1.bf16.msra.mxu0 0
      %2092 = vmatprep.subr.bf16.mxu0 0
      %2093 = vmatpush1.bf16.msra.mxu0 0
      %2094 = vmatprep.subr.bf16.mxu0 0
      %2095 = vmatpush1.bf16.msra.mxu0 0
      %2096 = vmatprep.subr.bf16.mxu0 0
      %2097 = vmatpush1.bf16.msra.mxu0 0
      %2098 = vmatprep.subr.bf16.mxu0 0
      %2099 = vmatpush1.bf16.msra.mxu0 0
      %2100 = vmatprep.subr.bf16.mxu0 0
      %2101 = vmatpush1.bf16.msra.mxu0 0
      %2102 = vmatprep.subr.bf16.mxu0 %v509
      %2103 = vmatpush1.bf16.msra.mxu0 %v508
      %2104 = vmatprep.subr.bf16.mxu0 %v505
      %2105 = vmatpush1.bf16.msra.mxu0 %v504
      %2106 = vmatprep.subr.bf16.mxu0 0
      %2107 = vmatpush2.bf16.msra.mxu0 0
      %2108 = vmatprep.subr.bf16.mxu0 0
      %2109 = vmatpush2.bf16.msra.mxu0 0
      %2110 = vmatprep.subr.bf16.mxu0 0
      %2111 = vmatpush2.bf16.msra.mxu0 0
      %2112 = vmatprep.subr.bf16.mxu0 0
      %2113 = vmatpush2.bf16.msra.mxu0 0
      %2114 = vmatprep.subr.bf16.mxu0 0
      %2115 = vmatpush2.bf16.msra.mxu0 0
      %2116 = vmatprep.subr.bf16.mxu0 0
      %2117 = vmatpush2.bf16.msra.mxu0 0
      %2118 = vmatprep.subr.bf16.mxu0 0
      %2119 = vmatpush2.bf16.msra.mxu0 0
      %2120 = vmatprep.subr.bf16.mxu0 0
      %2121 = vmatpush2.bf16.msra.mxu0 0
      %2122 = vmatprep.mubr.bf16.mxu0 0
      %2123 = vmatmul.mubr.bf16.gmra.mxu0 %v695
      %v2124 = vpop.f32.mrf.mxu0
      %v2125 = vadd.f32 %v2019, %v2124
      %v2126 = vpop.f32.mrf.mxu0
      %v2127 = vadd.f32 %v2021, %v2126
      %v2128 = vpop.f32.mrf.mxu0
      %v2129 = vadd.f32 %v2023, %v2128
      %v2130 = vpop.f32.mrf.mxu0
      %v2131 = vadd.f32 %v2025, %v2130
      %2132 = vmatprep.mubr.bf16.mxu0 0
      %2133 = vmatmul.mubr.bf16.gmra.mxu0 %v698
      %v2134 = vpop.f32.mrf.mxu0
      %v2135 = vadd.f32 %v2029, %v2134
      %v2136 = vpop.f32.mrf.mxu0
      %v2137 = vadd.f32 %v2031, %v2136
      %v2138 = vpop.f32.mrf.mxu0
      %v2139 = vadd.f32 %v2033, %v2138
      %v2140 = vpop.f32.mrf.mxu0
      %v2141 = vadd.f32 %v2035, %v2140
      %2142 = vdwg.mxu0
      %2143 = vmatprep.subr.bf16.mxu0 0
      %2144 = vmatpush1.bf16.msra.mxu0 0
      %2145 = vmatprep.subr.bf16.mxu0 0
      %2146 = vmatpush1.bf16.msra.mxu0 0
      %2147 = vmatprep.subr.bf16.mxu0 0
      %2148 = vmatpush1.bf16.msra.mxu0 0
      %2149 = vmatprep.subr.bf16.mxu0 0
      %2150 = vmatpush1.bf16.msra.mxu0 0
      %2151 = vmatprep.subr.bf16.mxu0 0
      %2152 = vmatpush1.bf16.msra.mxu0 0
      %2153 = vmatprep.subr.bf16.mxu0 0
      %2154 = vmatpush1.bf16.msra.mxu0 0
      %2155 = vmatprep.subr.bf16.mxu0 %v683
      %2156 = vmatpush1.bf16.msra.mxu0 %v682
      %2157 = vmatprep.subr.bf16.mxu0 %v679
      %2158 = vmatpush1.bf16.msra.mxu0 %v678
      %2159 = vmatprep.subr.bf16.mxu0 0
      %2160 = vmatpush2.bf16.msra.mxu0 0
      %2161 = vmatprep.subr.bf16.mxu0 0
      %2162 = vmatpush2.bf16.msra.mxu0 0
      %2163 = vmatprep.subr.bf16.mxu0 0
      %2164 = vmatpush2.bf16.msra.mxu0 0
      %2165 = vmatprep.subr.bf16.mxu0 0
      %2166 = vmatpush2.bf16.msra.mxu0 0
      %2167 = vmatprep.subr.bf16.mxu0 0
      %2168 = vmatpush2.bf16.msra.mxu0 0
      %2169 = vmatprep.subr.bf16.mxu0 0
      %2170 = vmatpush2.bf16.msra.mxu0 0
      %2171 = vmatprep.subr.bf16.mxu0 0
      %2172 = vmatpush2.bf16.msra.mxu0 0
      %2173 = vmatprep.subr.bf16.mxu0 0
      %2174 = vmatpush2.bf16.msra.mxu0 0
      %2175 = vmatprep.mubr.bf16.mxu0 0
      %2176 = vmatmul.mubr.bf16.gmra.mxu0 %v1076
      %v2177 = vpop.f32.mrf.mxu0
      %v2178 = vadd.f32 0.0, %v2177
      %v2179 = vpop.f32.mrf.mxu0
      %v2180 = vadd.f32 0.0, %v2179
      %v2181 = vpop.f32.mrf.mxu0
      %v2182 = vadd.f32 0.0, %v2181
      %v2183 = vpop.f32.mrf.mxu0
      %v2184 = vadd.f32 0.0, %v2183
      %2185 = vmatprep.mubr.bf16.mxu0 0
      %2186 = vmatmul.mubr.bf16.gmra.mxu0 %v1079
      %v2187 = vpop.f32.mrf.mxu0
      %v2188 = vadd.f32 0.0, %v2187
      %v2189 = vpop.f32.mrf.mxu0
      %v2190 = vadd.f32 0.0, %v2189
      %v2191 = vpop.f32.mrf.mxu0
      %v2192 = vadd.f32 0.0, %v2191
      %v2193 = vpop.f32.mrf.mxu0
      %v2194 = vadd.f32 0.0, %v2193
      %2195 = vdwg.mxu0
      %2196 = vmatprep.subr.bf16.mxu0 0
      %2197 = vmatpush1.bf16.msra.mxu0 0
      %2198 = vmatprep.subr.bf16.mxu0 0
      %2199 = vmatpush1.bf16.msra.mxu0 0
      %2200 = vmatprep.subr.bf16.mxu0 0
      %2201 = vmatpush1.bf16.msra.mxu0 0
      %2202 = vmatprep.subr.bf16.mxu0 0
      %2203 = vmatpush1.bf16.msra.mxu0 0
      %2204 = vmatprep.subr.bf16.mxu0 0
      %2205 = vmatpush1.bf16.msra.mxu0 0
      %2206 = vmatprep.subr.bf16.mxu0 0
      %2207 = vmatpush1.bf16.msra.mxu0 0
      %2208 = vmatprep.subr.bf16.mxu0 %v685
      %2209 = vmatpush1.bf16.msra.mxu0 %v684
      %2210 = vmatprep.subr.bf16.mxu0 %v681
      %2211 = vmatpush1.bf16.msra.mxu0 %v680
      %2212 = vmatprep.subr.bf16.mxu0 0
      %2213 = vmatpush2.bf16.msra.mxu0 0
      %2214 = vmatprep.subr.bf16.mxu0 0
      %2215 = vmatpush2.bf16.msra.mxu0 0
      %2216 = vmatprep.subr.bf16.mxu0 0
      %2217 = vmatpush2.bf16.msra.mxu0 0
      %2218 = vmatprep.subr.bf16.mxu0 0
      %2219 = vmatpush2.bf16.msra.mxu0 0
      %2220 = vmatprep.subr.bf16.mxu0 0
      %2221 = vmatpush2.bf16.msra.mxu0 0
      %2222 = vmatprep.subr.bf16.mxu0 0
      %2223 = vmatpush2.bf16.msra.mxu0 0
      %2224 = vmatprep.subr.bf16.mxu0 0
      %2225 = vmatpush2.bf16.msra.mxu0 0
      %2226 = vmatprep.subr.bf16.mxu0 0
      %2227 = vmatpush2.bf16.msra.mxu0 0
      %2228 = vmatprep.mubr.bf16.mxu0 0
      %2229 = vmatmul.mubr.bf16.gmra.mxu0 %v1076
      %v2230 = vpop.f32.mrf.mxu0
      %v2231 = vadd.f32 0.0, %v2230
      %v2232 = vpop.f32.mrf.mxu0
      %v2233 = vadd.f32 0.0, %v2232
      %v2234 = vpop.f32.mrf.mxu0
      %v2235 = vadd.f32 0.0, %v2234
      %v2236 = vpop.f32.mrf.mxu0
      %v2237 = vadd.f32 0.0, %v2236
      %2238 = vmatprep.mubr.bf16.mxu0 0
      %2239 = vmatmul.mubr.bf16.gmra.mxu0 %v1079
      %v2240 = vpop.f32.mrf.mxu0
      %v2241 = vadd.f32 0.0, %v2240
      %v2242 = vpop.f32.mrf.mxu0
      %v2243 = vadd.f32 0.0, %v2242
      %v2244 = vpop.f32.mrf.mxu0
      %v2245 = vadd.f32 0.0, %v2244
      %v2246 = vpop.f32.mrf.mxu0
      %v2247 = vadd.f32 0.0, %v2246
      %2248 = vdwg.mxu0
      %v2249 = vadd.f32 %v2072, %v2178
      %v2250 = vadd.f32 %v2074, %v2180
      %v2251 = vadd.f32 %v2125, %v2231
      %v2252 = vadd.f32 %v2127, %v2233
      %v2253 = vadd.f32 %v2076, %v2182
      %v2254 = vadd.f32 %v2078, %v2184
      %v2255 = vadd.f32 %v2129, %v2235
      %v2256 = vadd.f32 %v2131, %v2237
      %v2257 = vadd.f32 %v2082, %v2188
      %v2258 = vadd.f32 %v2084, %v2190
      %v2259 = vadd.f32 %v2135, %v2241
      %v2260 = vadd.f32 %v2137, %v2243
      %v2261 = vadd.f32 %v2086, %v2192
      %v2262 = vadd.f32 %v2088, %v2194
      %v2263 = vadd.f32 %v2139, %v2245
      %v2264 = vadd.f32 %v2141, %v2247
      %2265 = vmatprep.subr.bf16.mxu0 0
      %2266 = vmatpush1.bf16.msra.mxu0 0
      %2267 = vmatprep.subr.bf16.mxu0 0
      %2268 = vmatpush1.bf16.msra.mxu0 0
      %2269 = vmatprep.subr.bf16.mxu0 0
      %2270 = vmatpush1.bf16.msra.mxu0 0
      %2271 = vmatprep.subr.bf16.mxu0 0
      %2272 = vmatpush1.bf16.msra.mxu0 0
      %2273 = vmatprep.subr.bf16.mxu0 0
      %2274 = vmatpush1.bf16.msra.mxu0 0
      %2275 = vmatprep.subr.bf16.mxu0 0
      %2276 = vmatpush1.bf16.msra.mxu0 0
      %2277 = vmatprep.subr.bf16.mxu0 %v875
      %2278 = vmatpush1.bf16.msra.mxu0 %v874
      %2279 = vmatprep.subr.bf16.mxu0 %v871
      %2280 = vmatpush1.bf16.msra.mxu0 %v870
      %2281 = vmatprep.subr.bf16.mxu0 0
      %2282 = vmatpush2.bf16.msra.mxu0 0
      %2283 = vmatprep.subr.bf16.mxu0 0
      %2284 = vmatpush2.bf16.msra.mxu0 0
      %2285 = vmatprep.subr.bf16.mxu0 0
      %2286 = vmatpush2.bf16.msra.mxu0 0
      %2287 = vmatprep.subr.bf16.mxu0 0
      %2288 = vmatpush2.bf16.msra.mxu0 0
      %2289 = vmatprep.subr.bf16.mxu0 0
      %2290 = vmatpush2.bf16.msra.mxu0 0
      %2291 = vmatprep.subr.bf16.mxu0 0
      %2292 = vmatpush2.bf16.msra.mxu0 0
      %2293 = vmatprep.subr.bf16.mxu0 0
      %2294 = vmatpush2.bf16.msra.mxu0 0
      %2295 = vmatprep.subr.bf16.mxu0 0
      %2296 = vmatpush2.bf16.msra.mxu0 0
      %2297 = vmatprep.mubr.bf16.mxu0 0
      %2298 = vmatmul.mubr.bf16.gmra.mxu0 %v1671
      %v2299 = vpop.f32.mrf.mxu0
      %v2300 = vadd.f32 0.0, %v2299
      %v2301 = vpop.f32.mrf.mxu0
      %v2302 = vadd.f32 0.0, %v2301
      %v2303 = vpop.f32.mrf.mxu0
      %v2304 = vadd.f32 0.0, %v2303
      %v2305 = vpop.f32.mrf.mxu0
      %v2306 = vadd.f32 0.0, %v2305
      %2307 = vmatprep.mubr.bf16.mxu0 0
      %2308 = vmatmul.mubr.bf16.gmra.mxu0 %v1674
      %v2309 = vpop.f32.mrf.mxu0
      %v2310 = vadd.f32 0.0, %v2309
      %v2311 = vpop.f32.mrf.mxu0
      %v2312 = vadd.f32 0.0, %v2311
      %v2313 = vpop.f32.mrf.mxu0
      %v2314 = vadd.f32 0.0, %v2313
      %v2315 = vpop.f32.mrf.mxu0
      %v2316 = vadd.f32 0.0, %v2315
      %2317 = vdwg.mxu0
      %2318 = vmatprep.subr.bf16.mxu0 0
      %2319 = vmatpush1.bf16.msra.mxu0 0
      %2320 = vmatprep.subr.bf16.mxu0 0
      %2321 = vmatpush1.bf16.msra.mxu0 0
      %2322 = vmatprep.subr.bf16.mxu0 0
      %2323 = vmatpush1.bf16.msra.mxu0 0
      %2324 = vmatprep.subr.bf16.mxu0 0
      %2325 = vmatpush1.bf16.msra.mxu0 0
      %2326 = vmatprep.subr.bf16.mxu0 0
      %2327 = vmatpush1.bf16.msra.mxu0 0
      %2328 = vmatprep.subr.bf16.mxu0 0
      %2329 = vmatpush1.bf16.msra.mxu0 0
      %2330 = vmatprep.subr.bf16.mxu0 %v877
      %2331 = vmatpush1.bf16.msra.mxu0 %v876
      %2332 = vmatprep.subr.bf16.mxu0 %v873
      %2333 = vmatpush1.bf16.msra.mxu0 %v872
      %2334 = vmatprep.subr.bf16.mxu0 0
      %2335 = vmatpush2.bf16.msra.mxu0 0
      %2336 = vmatprep.subr.bf16.mxu0 0
      %2337 = vmatpush2.bf16.msra.mxu0 0
      %2338 = vmatprep.subr.bf16.mxu0 0
      %2339 = vmatpush2.bf16.msra.mxu0 0
      %2340 = vmatprep.subr.bf16.mxu0 0
      %2341 = vmatpush2.bf16.msra.mxu0 0
      %2342 = vmatprep.subr.bf16.mxu0 0
      %2343 = vmatpush2.bf16.msra.mxu0 0
      %2344 = vmatprep.subr.bf16.mxu0 0
      %2345 = vmatpush2.bf16.msra.mxu0 0
      %2346 = vmatprep.subr.bf16.mxu0 0
      %2347 = vmatpush2.bf16.msra.mxu0 0
      %2348 = vmatprep.subr.bf16.mxu0 0
      %2349 = vmatpush2.bf16.msra.mxu0 0
      %2350 = vmatprep.mubr.bf16.mxu0 0
      %2351 = vmatmul.mubr.bf16.gmra.mxu0 %v1671
      %v2352 = vpop.f32.mrf.mxu0
      %v2353 = vadd.f32 0.0, %v2352
      %v2354 = vpop.f32.mrf.mxu0
      %v2355 = vadd.f32 0.0, %v2354
      %v2356 = vpop.f32.mrf.mxu0
      %v2357 = vadd.f32 0.0, %v2356
      %v2358 = vpop.f32.mrf.mxu0
      %v2359 = vadd.f32 0.0, %v2358
      %2360 = vmatprep.mubr.bf16.mxu0 0
      %2361 = vmatmul.mubr.bf16.gmra.mxu0 %v1674
      %v2362 = vpop.f32.mrf.mxu0
      %v2363 = vadd.f32 0.0, %v2362
      %v2364 = vpop.f32.mrf.mxu0
      %v2365 = vadd.f32 0.0, %v2364
      %v2366 = vpop.f32.mrf.mxu0
      %v2367 = vadd.f32 0.0, %v2366
      %v2368 = vpop.f32.mrf.mxu0
      %v2369 = vadd.f32 0.0, %v2368
      %2370 = vdwg.mxu0
      %v2371 = vadd.f32 %v2249, %v2300
      %v2372 = vadd.f32 %v2250, %v2302
      %v2373 = vadd.f32 %v2251, %v2353
      %v2374 = vadd.f32 %v2252, %v2355
      %v2375 = vadd.f32 %v2253, %v2304
      %v2376 = vadd.f32 %v2254, %v2306
      %v2377 = vadd.f32 %v2255, %v2357
      %v2378 = vadd.f32 %v2256, %v2359
      %v2379 = vadd.f32 %v2257, %v2310
      %v2380 = vadd.f32 %v2258, %v2312
      %v2381 = vadd.f32 %v2259, %v2363
      %v2382 = vadd.f32 %v2260, %v2365
      %v2383 = vadd.f32 %v2261, %v2314
      %v2384 = vadd.f32 %v2262, %v2316
      %v2385 = vadd.f32 %v2263, %v2367
      %v2386 = vadd.f32 %v2264, %v2369
      %v2387 = vld [vmem:[%s630] sm:$0xc]
      %v2388 = vld [vmem:[%s630 + $0xc] sm:$0xf]
      %v2391 = vunpack.c.l.b16 %v2387
      %v2392 = vunpack.c.l.b16 %v2388
      %v2393 = vpack.c.b16 %v649, %v2391
      %v2394 = vpack.c.b16 %v2392, %v650
      %v2395 = vrot.slane %v2393, 2
      %v2396 = vrot.slane %v2394, 2
      %v2397 = vsel %vm1031, %v2395, %v2396
      %v2399 = vsel %vm355, %v2397, 0
      %v2402 = vsel %vm355, %v2396, 0
      %2404 = vmatprep.subr.bf16.mxu0 0
      %2405 = vmatpush1.bf16.msra.mxu0 0
      %2406 = vmatprep.subr.bf16.mxu0 0
      %2407 = vmatpush1.bf16.msra.mxu0 0
      %2408 = vmatprep.subr.bf16.mxu0 0
      %2409 = vmatpush1.bf16.msra.mxu0 0
      %2410 = vmatprep.subr.bf16.mxu0 0
      %2411 = vmatpush1.bf16.msra.mxu0 0
      %2412 = vmatprep.subr.bf16.mxu0 0
      %2413 = vmatpush1.bf16.msra.mxu0 0
      %2414 = vmatprep.subr.bf16.mxu0 0
      %2415 = vmatpush1.bf16.msra.mxu0 0
      %2416 = vmatprep.subr.bf16.mxu0 %v1064
      %2417 = vmatpush1.bf16.msra.mxu0 %v1063
      %2418 = vmatprep.subr.bf16.mxu0 %v1060
      %2419 = vmatpush1.bf16.msra.mxu0 %v1059
      %2420 = vmatprep.subr.bf16.mxu0 0
      %2421 = vmatpush2.bf16.msra.mxu0 0
      %2422 = vmatprep.subr.bf16.mxu0 0
      %2423 = vmatpush2.bf16.msra.mxu0 0
      %2424 = vmatprep.subr.bf16.mxu0 0
      %2425 = vmatpush2.bf16.msra.mxu0 0
      %2426 = vmatprep.subr.bf16.mxu0 0
      %2427 = vmatpush2.bf16.msra.mxu0 0
      %2428 = vmatprep.subr.bf16.mxu0 0
      %2429 = vmatpush2.bf16.msra.mxu0 0
      %2430 = vmatprep.subr.bf16.mxu0 0
      %2431 = vmatpush2.bf16.msra.mxu0 0
      %2432 = vmatprep.subr.bf16.mxu0 0
      %2433 = vmatpush2.bf16.msra.mxu0 0
      %2434 = vmatprep.subr.bf16.mxu0 0
      %2435 = vmatpush2.bf16.msra.mxu0 0
      %2436 = vmatprep.mubr.bf16.mxu0 0
      %2437 = vmatmul.mubr.bf16.gmra.mxu0 %v2399
      %v2438 = vpop.f32.mrf.mxu0
      %v2439 = vadd.f32 0.0, %v2438
      %v2440 = vpop.f32.mrf.mxu0
      %v2441 = vadd.f32 0.0, %v2440
      %v2442 = vpop.f32.mrf.mxu0
      %v2443 = vadd.f32 0.0, %v2442
      %v2444 = vpop.f32.mrf.mxu0
      %v2445 = vadd.f32 0.0, %v2444
      %2446 = vmatprep.mubr.bf16.mxu0 0
      %2447 = vmatmul.mubr.bf16.gmra.mxu0 %v2402
      %v2448 = vpop.f32.mrf.mxu0
      %v2449 = vadd.f32 0.0, %v2448
      %v2450 = vpop.f32.mrf.mxu0
      %v2451 = vadd.f32 0.0, %v2450
      %v2452 = vpop.f32.mrf.mxu0
      %v2453 = vadd.f32 0.0, %v2452
      %v2454 = vpop.f32.mrf.mxu0
      %v2455 = vadd.f32 0.0, %v2454
      %2456 = vdwg.mxu0
      %2457 = vmatprep.subr.bf16.mxu0 0
      %2458 = vmatpush1.bf16.msra.mxu0 0
      %2459 = vmatprep.subr.bf16.mxu0 0
      %2460 = vmatpush1.bf16.msra.mxu0 0
      %2461 = vmatprep.subr.bf16.mxu0 0
      %2462 = vmatpush1.bf16.msra.mxu0 0
      %2463 = vmatprep.subr.bf16.mxu0 0
      %2464 = vmatpush1.bf16.msra.mxu0 0
      %2465 = vmatprep.subr.bf16.mxu0 0
      %2466 = vmatpush1.bf16.msra.mxu0 0
      %2467 = vmatprep.subr.bf16.mxu0 0
      %2468 = vmatpush1.bf16.msra.mxu0 0
      %2469 = vmatprep.subr.bf16.mxu0 %v1066
      %2470 = vmatpush1.bf16.msra.mxu0 %v1065
      %2471 = vmatprep.subr.bf16.mxu0 %v1062
      %2472 = vmatpush1.bf16.msra.mxu0 %v1061
      %2473 = vmatprep.subr.bf16.mxu0 0
      %2474 = vmatpush2.bf16.msra.mxu0 0
      %2475 = vmatprep.subr.bf16.mxu0 0
      %2476 = vmatpush2.bf16.msra.mxu0 0
      %2477 = vmatprep.subr.bf16.mxu0 0
      %2478 = vmatpush2.bf16.msra.mxu0 0
      %2479 = vmatprep.subr.bf16.mxu0 0
      %2480 = vmatpush2.bf16.msra.mxu0 0
      %2481 = vmatprep.subr.bf16.mxu0 0
      %2482 = vmatpush2.bf16.msra.mxu0 0
      %2483 = vmatprep.subr.bf16.mxu0 0
      %2484 = vmatpush2.bf16.msra.mxu0 0
      %2485 = vmatprep.subr.bf16.mxu0 0
      %2486 = vmatpush2.bf16.msra.mxu0 0
      %2487 = vmatprep.subr.bf16.mxu0 0
      %2488 = vmatpush2.bf16.msra.mxu0 0
      %2489 = vmatprep.mubr.bf16.mxu0 0
      %2490 = vmatmul.mubr.bf16.gmra.mxu0 %v2399
      %v2491 = vpop.f32.mrf.mxu0
      %v2492 = vadd.f32 0.0, %v2491
      %v2493 = vpop.f32.mrf.mxu0
      %v2494 = vadd.f32 0.0, %v2493
      %v2495 = vpop.f32.mrf.mxu0
      %v2496 = vadd.f32 0.0, %v2495
      %v2497 = vpop.f32.mrf.mxu0
      %v2498 = vadd.f32 0.0, %v2497
      %2499 = vmatprep.mubr.bf16.mxu0 0
      %2500 = vmatmul.mubr.bf16.gmra.mxu0 %v2402
      %v2501 = vpop.f32.mrf.mxu0
      %v2502 = vadd.f32 0.0, %v2501
      %v2503 = vpop.f32.mrf.mxu0
      %v2504 = vadd.f32 0.0, %v2503
      %v2505 = vpop.f32.mrf.mxu0
      %v2506 = vadd.f32 0.0, %v2505
      %v2507 = vpop.f32.mrf.mxu0
      %v2508 = vadd.f32 0.0, %v2507
      %2509 = vdwg.mxu0
      %v2510 = vadd.f32 %v2371, %v2439
      %v2511 = vadd.f32 %v2372, %v2441
      %v2512 = vadd.f32 %v2373, %v2492
      %v2513 = vadd.f32 %v2374, %v2494
      %v2514 = vadd.f32 %v2375, %v2443
      %v2515 = vadd.f32 %v2376, %v2445
      %v2516 = vadd.f32 %v2377, %v2496
      %v2517 = vadd.f32 %v2378, %v2498
      %v2518 = vadd.f32 %v2379, %v2449
      %v2519 = vadd.f32 %v2380, %v2451
      %v2520 = vadd.f32 %v2381, %v2502
      %v2521 = vadd.f32 %v2382, %v2504
      %v2522 = vadd.f32 %v2383, %v2453
      %v2523 = vadd.f32 %v2384, %v2455
      %v2524 = vadd.f32 %v2385, %v2506
      %v2525 = vadd.f32 %v2386, %v2508
      %2526 = vmatprep.subr.bf16.mxu0 0
      %2527 = vmatpush1.bf16.msra.mxu0 0
      %2528 = vmatprep.subr.bf16.mxu0 0
      %2529 = vmatpush1.bf16.msra.mxu0 0
      %2530 = vmatprep.subr.bf16.mxu0 0
      %2531 = vmatpush1.bf16.msra.mxu0 0
      %2532 = vmatprep.subr.bf16.mxu0 0
      %2533 = vmatpush1.bf16.msra.mxu0 0
      %2534 = vmatprep.subr.bf16.mxu0 0
      %2535 = vmatpush1.bf16.msra.mxu0 0
      %2536 = vmatprep.subr.bf16.mxu0 0
      %2537 = vmatpush1.bf16.msra.mxu0 0
      %2538 = vmatprep.subr.bf16.mxu0 %v344
      %2539 = vmatpush1.bf16.msra.mxu0 %v343
      %2540 = vmatprep.subr.bf16.mxu0 %v340
      %2541 = vmatpush1.bf16.msra.mxu0 %v339
      %2542 = vmatprep.subr.bf16.mxu0 0
      %2543 = vmatpush2.bf16.msra.mxu0 0
      %2544 = vmatprep.subr.bf16.mxu0 0
      %2545 = vmatpush2.bf16.msra.mxu0 0
      %2546 = vmatprep.subr.bf16.mxu0 0
      %2547 = vmatpush2.bf16.msra.mxu0 0
      %2548 = vmatprep.subr.bf16.mxu0 0
      %2549 = vmatpush2.bf16.msra.mxu0 0
      %2550 = vmatprep.subr.bf16.mxu0 0
      %2551 = vmatpush2.bf16.msra.mxu0 0
      %2552 = vmatprep.subr.bf16.mxu0 0
      %2553 = vmatpush2.bf16.msra.mxu0 0
      %2554 = vmatprep.subr.bf16.mxu0 0
      %2555 = vmatpush2.bf16.msra.mxu0 0
      %2556 = vmatprep.subr.bf16.mxu0 0
      %2557 = vmatpush2.bf16.msra.mxu0 0
      %2558 = vmatprep.mubr.bf16.mxu0 0
      %2559 = vmatmul.mubr.bf16.gmra.mxu0 %v1076
      %v2560 = vpop.f32.mrf.mxu0
      %v2561 = vadd.f32 0.0, %v2560
      %v2562 = vpop.f32.mrf.mxu0
      %v2563 = vadd.f32 0.0, %v2562
      %v2564 = vpop.f32.mrf.mxu0
      %v2565 = vadd.f32 0.0, %v2564
      %v2566 = vpop.f32.mrf.mxu0
      %v2567 = vadd.f32 0.0, %v2566
      %2568 = vmatprep.mubr.bf16.mxu0 0
      %2569 = vmatmul.mubr.bf16.gmra.mxu0 %v1079
      %v2570 = vpop.f32.mrf.mxu0
      %v2571 = vadd.f32 0.0, %v2570
      %v2572 = vpop.f32.mrf.mxu0
      %v2573 = vadd.f32 0.0, %v2572
      %v2574 = vpop.f32.mrf.mxu0
      %v2575 = vadd.f32 0.0, %v2574
      %v2576 = vpop.f32.mrf.mxu0
      %v2577 = vadd.f32 0.0, %v2576
      %2578 = vdwg.mxu0
      %2579 = vmatprep.subr.bf16.mxu0 0
      %2580 = vmatpush1.bf16.msra.mxu0 0
      %2581 = vmatprep.subr.bf16.mxu0 0
      %2582 = vmatpush1.bf16.msra.mxu0 0
      %2583 = vmatprep.subr.bf16.mxu0 0
      %2584 = vmatpush1.bf16.msra.mxu0 0
      %2585 = vmatprep.subr.bf16.mxu0 0
      %2586 = vmatpush1.bf16.msra.mxu0 0
      %2587 = vmatprep.subr.bf16.mxu0 0
      %2588 = vmatpush1.bf16.msra.mxu0 0
      %2589 = vmatprep.subr.bf16.mxu0 0
      %2590 = vmatpush1.bf16.msra.mxu0 0
      %2591 = vmatprep.subr.bf16.mxu0 %v346
      %2592 = vmatpush1.bf16.msra.mxu0 %v345
      %2593 = vmatprep.subr.bf16.mxu0 %v342
      %2594 = vmatpush1.bf16.msra.mxu0 %v341
      %2595 = vmatprep.subr.bf16.mxu0 0
      %2596 = vmatpush2.bf16.msra.mxu0 0
      %2597 = vmatprep.subr.bf16.mxu0 0
      %2598 = vmatpush2.bf16.msra.mxu0 0
      %2599 = vmatprep.subr.bf16.mxu0 0
      %2600 = vmatpush2.bf16.msra.mxu0 0
      %2601 = vmatprep.subr.bf16.mxu0 0
      %2602 = vmatpush2.bf16.msra.mxu0 0
      %2603 = vmatprep.subr.bf16.mxu0 0
      %2604 = vmatpush2.bf16.msra.mxu0 0
      %2605 = vmatprep.subr.bf16.mxu0 0
      %2606 = vmatpush2.bf16.msra.mxu0 0
      %2607 = vmatprep.subr.bf16.mxu0 0
      %2608 = vmatpush2.bf16.msra.mxu0 0
      %2609 = vmatprep.subr.bf16.mxu0 0
      %2610 = vmatpush2.bf16.msra.mxu0 0
      %2611 = vmatprep.mubr.bf16.mxu0 0
      %2612 = vmatmul.mubr.bf16.gmra.mxu0 %v1076
      %v2613 = vpop.f32.mrf.mxu0
      %v2614 = vadd.f32 0.0, %v2613
      %v2615 = vpop.f32.mrf.mxu0
      %v2616 = vadd.f32 0.0, %v2615
      %v2617 = vpop.f32.mrf.mxu0
      %v2618 = vadd.f32 0.0, %v2617
      %v2619 = vpop.f32.mrf.mxu0
      %v2620 = vadd.f32 0.0, %v2619
      %2621 = vmatprep.mubr.bf16.mxu0 0
      %2622 = vmatmul.mubr.bf16.gmra.mxu0 %v1079
      %v2623 = vpop.f32.mrf.mxu0
      %v2624 = vadd.f32 0.0, %v2623
      %v2625 = vpop.f32.mrf.mxu0
      %v2626 = vadd.f32 0.0, %v2625
      %v2627 = vpop.f32.mrf.mxu0
      %v2628 = vadd.f32 0.0, %v2627
      %v2629 = vpop.f32.mrf.mxu0
      %v2630 = vadd.f32 0.0, %v2629
      %2631 = vdwg.mxu0
      %2632 = vmatprep.subr.bf16.mxu0 0
      %2633 = vmatpush1.bf16.msra.mxu0 0
      %2634 = vmatprep.subr.bf16.mxu0 0
      %2635 = vmatpush1.bf16.msra.mxu0 0
      %2636 = vmatprep.subr.bf16.mxu0 0
      %2637 = vmatpush1.bf16.msra.mxu0 0
      %2638 = vmatprep.subr.bf16.mxu0 0
      %2639 = vmatpush1.bf16.msra.mxu0 0
      %2640 = vmatprep.subr.bf16.mxu0 0
      %2641 = vmatpush1.bf16.msra.mxu0 0
      %2642 = vmatprep.subr.bf16.mxu0 0
      %2643 = vmatpush1.bf16.msra.mxu0 0
      %2644 = vmatprep.subr.bf16.mxu0 %v507
      %2645 = vmatpush1.bf16.msra.mxu0 %v506
      %2646 = vmatprep.subr.bf16.mxu0 %v503
      %2647 = vmatpush1.bf16.msra.mxu0 %v502
      %2648 = vmatprep.subr.bf16.mxu0 0
      %2649 = vmatpush2.bf16.msra.mxu0 0
      %2650 = vmatprep.subr.bf16.mxu0 0
      %2651 = vmatpush2.bf16.msra.mxu0 0
      %2652 = vmatprep.subr.bf16.mxu0 0
      %2653 = vmatpush2.bf16.msra.mxu0 0
      %2654 = vmatprep.subr.bf16.mxu0 0
      %2655 = vmatpush2.bf16.msra.mxu0 0
      %2656 = vmatprep.subr.bf16.mxu0 0
      %2657 = vmatpush2.bf16.msra.mxu0 0
      %2658 = vmatprep.subr.bf16.mxu0 0
      %2659 = vmatpush2.bf16.msra.mxu0 0
      %2660 = vmatprep.subr.bf16.mxu0 0
      %2661 = vmatpush2.bf16.msra.mxu0 0
      %2662 = vmatprep.subr.bf16.mxu0 0
      %2663 = vmatpush2.bf16.msra.mxu0 0
      %2664 = vmatprep.mubr.bf16.mxu0 0
      %2665 = vmatmul.mubr.bf16.gmra.mxu0 %v887
      %v2666 = vpop.f32.mrf.mxu0
      %v2667 = vadd.f32 %v2561, %v2666
      %v2668 = vpop.f32.mrf.mxu0
      %v2669 = vadd.f32 %v2563, %v2668
      %v2670 = vpop.f32.mrf.mxu0
      %v2671 = vadd.f32 %v2565, %v2670
      %v2672 = vpop.f32.mrf.mxu0
      %v2673 = vadd.f32 %v2567, %v2672
      %2674 = vmatprep.mubr.bf16.mxu0 0
      %2675 = vmatmul.mubr.bf16.gmra.mxu0 %v890
      %v2676 = vpop.f32.mrf.mxu0
      %v2677 = vadd.f32 %v2571, %v2676
      %v2678 = vpop.f32.mrf.mxu0
      %v2679 = vadd.f32 %v2573, %v2678
      %v2680 = vpop.f32.mrf.mxu0
      %v2681 = vadd.f32 %v2575, %v2680
      %v2682 = vpop.f32.mrf.mxu0
      %v2683 = vadd.f32 %v2577, %v2682
      %2684 = vdwg.mxu0
      %2685 = vmatprep.subr.bf16.mxu0 0
      %2686 = vmatpush1.bf16.msra.mxu0 0
      %2687 = vmatprep.subr.bf16.mxu0 0
      %2688 = vmatpush1.bf16.msra.mxu0 0
      %2689 = vmatprep.subr.bf16.mxu0 0
      %2690 = vmatpush1.bf16.msra.mxu0 0
      %2691 = vmatprep.subr.bf16.mxu0 0
      %2692 = vmatpush1.bf16.msra.mxu0 0
      %2693 = vmatprep.subr.bf16.mxu0 0
      %2694 = vmatpush1.bf16.msra.mxu0 0
      %2695 = vmatprep.subr.bf16.mxu0 0
      %2696 = vmatpush1.bf16.msra.mxu0 0
      %2697 = vmatprep.subr.bf16.mxu0 %v509
      %2698 = vmatpush1.bf16.msra.mxu0 %v508
      %2699 = vmatprep.subr.bf16.mxu0 %v505
      %2700 = vmatpush1.bf16.msra.mxu0 %v504
      %2701 = vmatprep.subr.bf16.mxu0 0
      %2702 = vmatpush2.bf16.msra.mxu0 0
      %2703 = vmatprep.subr.bf16.mxu0 0
      %2704 = vmatpush2.bf16.msra.mxu0 0
      %2705 = vmatprep.subr.bf16.mxu0 0
      %2706 = vmatpush2.bf16.msra.mxu0 0
      %2707 = vmatprep.subr.bf16.mxu0 0
      %2708 = vmatpush2.bf16.msra.mxu0 0
      %2709 = vmatprep.subr.bf16.mxu0 0
      %2710 = vmatpush2.bf16.msra.mxu0 0
      %2711 = vmatprep.subr.bf16.mxu0 0
      %2712 = vmatpush2.bf16.msra.mxu0 0
      %2713 = vmatprep.subr.bf16.mxu0 0
      %2714 = vmatpush2.bf16.msra.mxu0 0
      %2715 = vmatprep.subr.bf16.mxu0 0
      %2716 = vmatpush2.bf16.msra.mxu0 0
      %2717 = vmatprep.mubr.bf16.mxu0 0
      %2718 = vmatmul.mubr.bf16.gmra.mxu0 %v887
      %v2719 = vpop.f32.mrf.mxu0
      %v2720 = vadd.f32 %v2614, %v2719
      %v2721 = vpop.f32.mrf.mxu0
      %v2722 = vadd.f32 %v2616, %v2721
      %v2723 = vpop.f32.mrf.mxu0
      %v2724 = vadd.f32 %v2618, %v2723
      %v2725 = vpop.f32.mrf.mxu0
      %v2726 = vadd.f32 %v2620, %v2725
      %2727 = vmatprep.mubr.bf16.mxu0 0
      %2728 = vmatmul.mubr.bf16.gmra.mxu0 %v890
      %v2729 = vpop.f32.mrf.mxu0
      %v2730 = vadd.f32 %v2624, %v2729
      %v2731 = vpop.f32.mrf.mxu0
      %v2732 = vadd.f32 %v2626, %v2731
      %v2733 = vpop.f32.mrf.mxu0
      %v2734 = vadd.f32 %v2628, %v2733
      %v2735 = vpop.f32.mrf.mxu0
      %v2736 = vadd.f32 %v2630, %v2735
      %2737 = vdwg.mxu0
      %2738 = vmatprep.subr.bf16.mxu0 0
      %2739 = vmatpush1.bf16.msra.mxu0 0
      %2740 = vmatprep.subr.bf16.mxu0 0
      %2741 = vmatpush1.bf16.msra.mxu0 0
      %2742 = vmatprep.subr.bf16.mxu0 0
      %2743 = vmatpush1.bf16.msra.mxu0 0
      %2744 = vmatprep.subr.bf16.mxu0 0
      %2745 = vmatpush1.bf16.msra.mxu0 0
      %2746 = vmatprep.subr.bf16.mxu0 0
      %2747 = vmatpush1.bf16.msra.mxu0 0
      %2748 = vmatprep.subr.bf16.mxu0 0
      %2749 = vmatpush1.bf16.msra.mxu0 0
      %2750 = vmatprep.subr.bf16.mxu0 %v683
      %2751 = vmatpush1.bf16.msra.mxu0 %v682
      %2752 = vmatprep.subr.bf16.mxu0 %v679
      %2753 = vmatpush1.bf16.msra.mxu0 %v678
      %2754 = vmatprep.subr.bf16.mxu0 0
      %2755 = vmatpush2.bf16.msra.mxu0 0
      %2756 = vmatprep.subr.bf16.mxu0 0
      %2757 = vmatpush2.bf16.msra.mxu0 0
      %2758 = vmatprep.subr.bf16.mxu0 0
      %2759 = vmatpush2.bf16.msra.mxu0 0
      %2760 = vmatprep.subr.bf16.mxu0 0
      %2761 = vmatpush2.bf16.msra.mxu0 0
      %2762 = vmatprep.subr.bf16.mxu0 0
      %2763 = vmatpush2.bf16.msra.mxu0 0
      %2764 = vmatprep.subr.bf16.mxu0 0
      %2765 = vmatpush2.bf16.msra.mxu0 0
      %2766 = vmatprep.subr.bf16.mxu0 0
      %2767 = vmatpush2.bf16.msra.mxu0 0
      %2768 = vmatprep.subr.bf16.mxu0 0
      %2769 = vmatpush2.bf16.msra.mxu0 0
      %2770 = vmatprep.mubr.bf16.mxu0 0
      %2771 = vmatmul.mubr.bf16.gmra.mxu0 %v1671
      %v2772 = vpop.f32.mrf.mxu0
      %v2773 = vadd.f32 0.0, %v2772
      %v2774 = vpop.f32.mrf.mxu0
      %v2775 = vadd.f32 0.0, %v2774
      %v2776 = vpop.f32.mrf.mxu0
      %v2777 = vadd.f32 0.0, %v2776
      %v2778 = vpop.f32.mrf.mxu0
      %v2779 = vadd.f32 0.0, %v2778
      %2780 = vmatprep.mubr.bf16.mxu0 0
      %2781 = vmatmul.mubr.bf16.gmra.mxu0 %v1674
      %v2782 = vpop.f32.mrf.mxu0
      %v2783 = vadd.f32 0.0, %v2782
      %v2784 = vpop.f32.mrf.mxu0
      %v2785 = vadd.f32 0.0, %v2784
      %v2786 = vpop.f32.mrf.mxu0
      %v2787 = vadd.f32 0.0, %v2786
      %v2788 = vpop.f32.mrf.mxu0
      %v2789 = vadd.f32 0.0, %v2788
      %2790 = vdwg.mxu0
      %2791 = vmatprep.subr.bf16.mxu0 0
      %2792 = vmatpush1.bf16.msra.mxu0 0
      %2793 = vmatprep.subr.bf16.mxu0 0
      %2794 = vmatpush1.bf16.msra.mxu0 0
      %2795 = vmatprep.subr.bf16.mxu0 0
      %2796 = vmatpush1.bf16.msra.mxu0 0
      %2797 = vmatprep.subr.bf16.mxu0 0
      %2798 = vmatpush1.bf16.msra.mxu0 0
      %2799 = vmatprep.subr.bf16.mxu0 0
      %2800 = vmatpush1.bf16.msra.mxu0 0
      %2801 = vmatprep.subr.bf16.mxu0 0
      %2802 = vmatpush1.bf16.msra.mxu0 0
      %2803 = vmatprep.subr.bf16.mxu0 %v685
      %2804 = vmatpush1.bf16.msra.mxu0 %v684
      %2805 = vmatprep.subr.bf16.mxu0 %v681
      %2806 = vmatpush1.bf16.msra.mxu0 %v680
      %2807 = vmatprep.subr.bf16.mxu0 0
      %2808 = vmatpush2.bf16.msra.mxu0 0
      %2809 = vmatprep.subr.bf16.mxu0 0
      %2810 = vmatpush2.bf16.msra.mxu0 0
      %2811 = vmatprep.subr.bf16.mxu0 0
      %2812 = vmatpush2.bf16.msra.mxu0 0
      %2813 = vmatprep.subr.bf16.mxu0 0
      %2814 = vmatpush2.bf16.msra.mxu0 0
      %2815 = vmatprep.subr.bf16.mxu0 0
      %2816 = vmatpush2.bf16.msra.mxu0 0
      %2817 = vmatprep.subr.bf16.mxu0 0
      %2818 = vmatpush2.bf16.msra.mxu0 0
      %2819 = vmatprep.subr.bf16.mxu0 0
      %2820 = vmatpush2.bf16.msra.mxu0 0
      %2821 = vmatprep.subr.bf16.mxu0 0
      %2822 = vmatpush2.bf16.msra.mxu0 0
      %2823 = vmatprep.mubr.bf16.mxu0 0
      %2824 = vmatmul.mubr.bf16.gmra.mxu0 %v1671
      %v2825 = vpop.f32.mrf.mxu0
      %v2826 = vadd.f32 0.0, %v2825
      %v2827 = vpop.f32.mrf.mxu0
      %v2828 = vadd.f32 0.0, %v2827
      %v2829 = vpop.f32.mrf.mxu0
      %v2830 = vadd.f32 0.0, %v2829
      %v2831 = vpop.f32.mrf.mxu0
      %v2832 = vadd.f32 0.0, %v2831
      %2833 = vmatprep.mubr.bf16.mxu0 0
      %2834 = vmatmul.mubr.bf16.gmra.mxu0 %v1674
      %v2835 = vpop.f32.mrf.mxu0
      %v2836 = vadd.f32 0.0, %v2835
      %v2837 = vpop.f32.mrf.mxu0
      %v2838 = vadd.f32 0.0, %v2837
      %v2839 = vpop.f32.mrf.mxu0
      %v2840 = vadd.f32 0.0, %v2839
      %v2841 = vpop.f32.mrf.mxu0
      %v2842 = vadd.f32 0.0, %v2841
      %2843 = vdwg.mxu0
      %v2844 = vadd.f32 %v2667, %v2773
      %v2845 = vadd.f32 %v2669, %v2775
      %v2846 = vadd.f32 %v2720, %v2826
      %v2847 = vadd.f32 %v2722, %v2828
      %v2848 = vadd.f32 %v2671, %v2777
      %v2849 = vadd.f32 %v2673, %v2779
      %v2850 = vadd.f32 %v2724, %v2830
      %v2851 = vadd.f32 %v2726, %v2832
      %v2852 = vadd.f32 %v2677, %v2783
      %v2853 = vadd.f32 %v2679, %v2785
      %v2854 = vadd.f32 %v2730, %v2836
      %v2855 = vadd.f32 %v2732, %v2838
      %v2856 = vadd.f32 %v2681, %v2787
      %v2857 = vadd.f32 %v2683, %v2789
      %v2858 = vadd.f32 %v2734, %v2840
      %v2859 = vadd.f32 %v2736, %v2842
      %2860 = vmatprep.subr.bf16.mxu0 0
      %2861 = vmatpush1.bf16.msra.mxu0 0
      %2862 = vmatprep.subr.bf16.mxu0 0
      %2863 = vmatpush1.bf16.msra.mxu0 0
      %2864 = vmatprep.subr.bf16.mxu0 0
      %2865 = vmatpush1.bf16.msra.mxu0 0
      %2866 = vmatprep.subr.bf16.mxu0 0
      %2867 = vmatpush1.bf16.msra.mxu0 0
      %2868 = vmatprep.subr.bf16.mxu0 0
      %2869 = vmatpush1.bf16.msra.mxu0 0
      %2870 = vmatprep.subr.bf16.mxu0 0
      %2871 = vmatpush1.bf16.msra.mxu0 0
      %2872 = vmatprep.subr.bf16.mxu0 %v875
      %2873 = vmatpush1.bf16.msra.mxu0 %v874
      %2874 = vmatprep.subr.bf16.mxu0 %v871
      %2875 = vmatpush1.bf16.msra.mxu0 %v870
      %2876 = vmatprep.subr.bf16.mxu0 0
      %2877 = vmatpush2.bf16.msra.mxu0 0
      %2878 = vmatprep.subr.bf16.mxu0 0
      %2879 = vmatpush2.bf16.msra.mxu0 0
      %2880 = vmatprep.subr.bf16.mxu0 0
      %2881 = vmatpush2.bf16.msra.mxu0 0
      %2882 = vmatprep.subr.bf16.mxu0 0
      %2883 = vmatpush2.bf16.msra.mxu0 0
      %2884 = vmatprep.subr.bf16.mxu0 0
      %2885 = vmatpush2.bf16.msra.mxu0 0
      %2886 = vmatprep.subr.bf16.mxu0 0
      %2887 = vmatpush2.bf16.msra.mxu0 0
      %2888 = vmatprep.subr.bf16.mxu0 0
      %2889 = vmatpush2.bf16.msra.mxu0 0
      %2890 = vmatprep.subr.bf16.mxu0 0
      %2891 = vmatpush2.bf16.msra.mxu0 0
      %2892 = vmatprep.mubr.bf16.mxu0 0
      %2893 = vmatmul.mubr.bf16.gmra.mxu0 %v2399
      %v2894 = vpop.f32.mrf.mxu0
      %v2895 = vadd.f32 0.0, %v2894
      %v2896 = vpop.f32.mrf.mxu0
      %v2897 = vadd.f32 0.0, %v2896
      %v2898 = vpop.f32.mrf.mxu0
      %v2899 = vadd.f32 0.0, %v2898
      %v2900 = vpop.f32.mrf.mxu0
      %v2901 = vadd.f32 0.0, %v2900
      %2902 = vmatprep.mubr.bf16.mxu0 0
      %2903 = vmatmul.mubr.bf16.gmra.mxu0 %v2402
      %v2904 = vpop.f32.mrf.mxu0
      %v2905 = vadd.f32 0.0, %v2904
      %v2906 = vpop.f32.mrf.mxu0
      %v2907 = vadd.f32 0.0, %v2906
      %v2908 = vpop.f32.mrf.mxu0
      %v2909 = vadd.f32 0.0, %v2908
      %v2910 = vpop.f32.mrf.mxu0
      %v2911 = vadd.f32 0.0, %v2910
      %2912 = vdwg.mxu0
      %2913 = vmatprep.subr.bf16.mxu0 0
      %2914 = vmatpush1.bf16.msra.mxu0 0
      %2915 = vmatprep.subr.bf16.mxu0 0
      %2916 = vmatpush1.bf16.msra.mxu0 0
      %2917 = vmatprep.subr.bf16.mxu0 0
      %2918 = vmatpush1.bf16.msra.mxu0 0
      %2919 = vmatprep.subr.bf16.mxu0 0
      %2920 = vmatpush1.bf16.msra.mxu0 0
      %2921 = vmatprep.subr.bf16.mxu0 0
      %2922 = vmatpush1.bf16.msra.mxu0 0
      %2923 = vmatprep.subr.bf16.mxu0 0
      %2924 = vmatpush1.bf16.msra.mxu0 0
      %2925 = vmatprep.subr.bf16.mxu0 %v877
      %2926 = vmatpush1.bf16.msra.mxu0 %v876
      %2927 = vmatprep.subr.bf16.mxu0 %v873
      %2928 = vmatpush1.bf16.msra.mxu0 %v872
      %2929 = vmatprep.subr.bf16.mxu0 0
      %2930 = vmatpush2.bf16.msra.mxu0 0
      %2931 = vmatprep.subr.bf16.mxu0 0
      %2932 = vmatpush2.bf16.msra.mxu0 0
      %2933 = vmatprep.subr.bf16.mxu0 0
      %2934 = vmatpush2.bf16.msra.mxu0 0
      %2935 = vmatprep.subr.bf16.mxu0 0
      %2936 = vmatpush2.bf16.msra.mxu0 0
      %2937 = vmatprep.subr.bf16.mxu0 0
      %2938 = vmatpush2.bf16.msra.mxu0 0
      %2939 = vmatprep.subr.bf16.mxu0 0
      %2940 = vmatpush2.bf16.msra.mxu0 0
      %2941 = vmatprep.subr.bf16.mxu0 0
      %2942 = vmatpush2.bf16.msra.mxu0 0
      %2943 = vmatprep.subr.bf16.mxu0 0
      %2944 = vmatpush2.bf16.msra.mxu0 0
      %2945 = vmatprep.mubr.bf16.mxu0 0
      %2946 = vmatmul.mubr.bf16.gmra.mxu0 %v2399
      %v2947 = vpop.f32.mrf.mxu0
      %v2948 = vadd.f32 0.0, %v2947
      %v2949 = vpop.f32.mrf.mxu0
      %v2950 = vadd.f32 0.0, %v2949
      %v2951 = vpop.f32.mrf.mxu0
      %v2952 = vadd.f32 0.0, %v2951
      %v2953 = vpop.f32.mrf.mxu0
      %v2954 = vadd.f32 0.0, %v2953
      %2955 = vmatprep.mubr.bf16.mxu0 0
      %2956 = vmatmul.mubr.bf16.gmra.mxu0 %v2402
      %v2957 = vpop.f32.mrf.mxu0
      %v2958 = vadd.f32 0.0, %v2957
      %v2959 = vpop.f32.mrf.mxu0
      %v2960 = vadd.f32 0.0, %v2959
      %v2961 = vpop.f32.mrf.mxu0
      %v2962 = vadd.f32 0.0, %v2961
      %v2963 = vpop.f32.mrf.mxu0
      %v2964 = vadd.f32 0.0, %v2963
      %2965 = vdwg.mxu0
      %v2966 = vadd.f32 %v2844, %v2895
      %v2967 = vadd.f32 %v2845, %v2897
      %v2968 = vadd.f32 %v2846, %v2948
      %v2969 = vadd.f32 %v2847, %v2950
      %v2970 = vadd.f32 %v2848, %v2899
      %v2971 = vadd.f32 %v2849, %v2901
      %v2972 = vadd.f32 %v2850, %v2952
      %v2973 = vadd.f32 %v2851, %v2954
      %v2974 = vadd.f32 %v2852, %v2905
      %v2975 = vadd.f32 %v2853, %v2907
      %v2976 = vadd.f32 %v2854, %v2958
      %v2977 = vadd.f32 %v2855, %v2960
      %v2978 = vadd.f32 %v2856, %v2909
      %v2979 = vadd.f32 %v2857, %v2911
      %v2980 = vadd.f32 %v2858, %v2962
      %v2981 = vadd.f32 %v2859, %v2964
      %v2982 = vld [vmem:[%s822] sm:$0xc]
      %v2983 = vld [vmem:[%s822 + $0xc] sm:$0xf]
      %v2986 = vunpack.c.l.b16 %v2982
      %v2987 = vunpack.c.l.b16 %v2983
      %v2988 = vpack.c.b16 %v841, %v2986
      %v2989 = vpack.c.b16 %v2987, %v842
      %v2990 = vrot.slane %v2988, 2
      %v2991 = vrot.slane %v2989, 2
      %v2992 = vsel %vm1031, %v2990, %v2991
      %v2994 = vsel %vm355, %v2992, 0
      %v2997 = vsel %vm355, %v2991, 0
      %2999 = vmatprep.subr.bf16.mxu0 0
      %3000 = vmatpush1.bf16.msra.mxu0 0
      %3001 = vmatprep.subr.bf16.mxu0 0
      %3002 = vmatpush1.bf16.msra.mxu0 0
      %3003 = vmatprep.subr.bf16.mxu0 0
      %3004 = vmatpush1.bf16.msra.mxu0 0
      %3005 = vmatprep.subr.bf16.mxu0 0
      %3006 = vmatpush1.bf16.msra.mxu0 0
      %3007 = vmatprep.subr.bf16.mxu0 0
      %3008 = vmatpush1.bf16.msra.mxu0 0
      %3009 = vmatprep.subr.bf16.mxu0 0
      %3010 = vmatpush1.bf16.msra.mxu0 0
      %3011 = vmatprep.subr.bf16.mxu0 %v1064
      %3012 = vmatpush1.bf16.msra.mxu0 %v1063
      %3013 = vmatprep.subr.bf16.mxu0 %v1060
      %3014 = vmatpush1.bf16.msra.mxu0 %v1059
      %3015 = vmatprep.subr.bf16.mxu0 0
      %3016 = vmatpush2.bf16.msra.mxu0 0
      %3017 = vmatprep.subr.bf16.mxu0 0
      %3018 = vmatpush2.bf16.msra.mxu0 0
      %3019 = vmatprep.subr.bf16.mxu0 0
      %3020 = vmatpush2.bf16.msra.mxu0 0
      %3021 = vmatprep.subr.bf16.mxu0 0
      %3022 = vmatpush2.bf16.msra.mxu0 0
      %3023 = vmatprep.subr.bf16.mxu0 0
      %3024 = vmatpush2.bf16.msra.mxu0 0
      %3025 = vmatprep.subr.bf16.mxu0 0
      %3026 = vmatpush2.bf16.msra.mxu0 0
      %3027 = vmatprep.subr.bf16.mxu0 0
      %3028 = vmatpush2.bf16.msra.mxu0 0
      %3029 = vmatprep.subr.bf16.mxu0 0
      %3030 = vmatpush2.bf16.msra.mxu0 0
      %3031 = vmatprep.mubr.bf16.mxu0 0
      %3032 = vmatmul.mubr.bf16.gmra.mxu0 %v2994
      %v3033 = vpop.f32.mrf.mxu0
      %v3034 = vadd.f32 0.0, %v3033
      %v3035 = vpop.f32.mrf.mxu0
      %v3036 = vadd.f32 0.0, %v3035
      %v3037 = vpop.f32.mrf.mxu0
      %v3038 = vadd.f32 0.0, %v3037
      %v3039 = vpop.f32.mrf.mxu0
      %v3040 = vadd.f32 0.0, %v3039
      %3041 = vmatprep.mubr.bf16.mxu0 0
      %3042 = vmatmul.mubr.bf16.gmra.mxu0 %v2997
      %v3043 = vpop.f32.mrf.mxu0
      %v3044 = vadd.f32 0.0, %v3043
      %v3045 = vpop.f32.mrf.mxu0
      %v3046 = vadd.f32 0.0, %v3045
      %v3047 = vpop.f32.mrf.mxu0
      %v3048 = vadd.f32 0.0, %v3047
      %v3049 = vpop.f32.mrf.mxu0
      %v3050 = vadd.f32 0.0, %v3049
      %3051 = vdwg.mxu0
      %3052 = vmatprep.subr.bf16.mxu0 0
      %3053 = vmatpush1.bf16.msra.mxu0 0
      %3054 = vmatprep.subr.bf16.mxu0 0
      %3055 = vmatpush1.bf16.msra.mxu0 0
      %3056 = vmatprep.subr.bf16.mxu0 0
      %3057 = vmatpush1.bf16.msra.mxu0 0
      %3058 = vmatprep.subr.bf16.mxu0 0
      %3059 = vmatpush1.bf16.msra.mxu0 0
      %3060 = vmatprep.subr.bf16.mxu0 0
      %3061 = vmatpush1.bf16.msra.mxu0 0
      %3062 = vmatprep.subr.bf16.mxu0 0
      %3063 = vmatpush1.bf16.msra.mxu0 0
      %3064 = vmatprep.subr.bf16.mxu0 %v1066
      %3065 = vmatpush1.bf16.msra.mxu0 %v1065
      %3066 = vmatprep.subr.bf16.mxu0 %v1062
      %3067 = vmatpush1.bf16.msra.mxu0 %v1061
      %3068 = vmatprep.subr.bf16.mxu0 0
      %3069 = vmatpush2.bf16.msra.mxu0 0
      %3070 = vmatprep.subr.bf16.mxu0 0
      %3071 = vmatpush2.bf16.msra.mxu0 0
      %3072 = vmatprep.subr.bf16.mxu0 0
      %3073 = vmatpush2.bf16.msra.mxu0 0
      %3074 = vmatprep.subr.bf16.mxu0 0
      %3075 = vmatpush2.bf16.msra.mxu0 0
      %3076 = vmatprep.subr.bf16.mxu0 0
      %3077 = vmatpush2.bf16.msra.mxu0 0
      %3078 = vmatprep.subr.bf16.mxu0 0
      %3079 = vmatpush2.bf16.msra.mxu0 0
      %3080 = vmatprep.subr.bf16.mxu0 0
      %3081 = vmatpush2.bf16.msra.mxu0 0
      %3082 = vmatprep.subr.bf16.mxu0 0
      %3083 = vmatpush2.bf16.msra.mxu0 0
      %3084 = vmatprep.mubr.bf16.mxu0 0
      %3085 = vmatmul.mubr.bf16.gmra.mxu0 %v2994
      %v3086 = vpop.f32.mrf.mxu0
      %v3087 = vadd.f32 0.0, %v3086
      %v3088 = vpop.f32.mrf.mxu0
      %v3089 = vadd.f32 0.0, %v3088
      %v3090 = vpop.f32.mrf.mxu0
      %v3091 = vadd.f32 0.0, %v3090
      %v3092 = vpop.f32.mrf.mxu0
      %v3093 = vadd.f32 0.0, %v3092
      %3094 = vmatprep.mubr.bf16.mxu0 0
      %3095 = vmatmul.mubr.bf16.gmra.mxu0 %v2997
      %v3096 = vpop.f32.mrf.mxu0
      %v3097 = vadd.f32 0.0, %v3096
      %v3098 = vpop.f32.mrf.mxu0
      %v3099 = vadd.f32 0.0, %v3098
      %v3100 = vpop.f32.mrf.mxu0
      %v3101 = vadd.f32 0.0, %v3100
      %v3102 = vpop.f32.mrf.mxu0
      %v3103 = vadd.f32 0.0, %v3102
      %3104 = vdwg.mxu0
      %v3105 = vadd.f32 %v2966, %v3034
      %v3106 = vadd.f32 %v2967, %v3036
      %v3107 = vadd.f32 %v2968, %v3087
      %v3108 = vadd.f32 %v2969, %v3089
      %v3109 = vadd.f32 %v2970, %v3038
      %v3110 = vadd.f32 %v2971, %v3040
      %v3111 = vadd.f32 %v2972, %v3091
      %v3112 = vadd.f32 %v2973, %v3093
      %v3113 = vadd.f32 %v2974, %v3044
      %v3114 = vadd.f32 %v2975, %v3046
      %v3115 = vadd.f32 %v2976, %v3097
      %v3116 = vadd.f32 %v2977, %v3099
      %v3117 = vadd.f32 %v2978, %v3048
      %v3118 = vadd.f32 %v2979, %v3050
      %v3119 = vadd.f32 %v2980, %v3101
      %v3120 = vadd.f32 %v2981, %v3103
      %v3121 = vmax.f32 %v2510, %v3105
      %v3122 = vmax.f32 %v2511, %v3106
      %v3123 = vmax.f32 %v2512, %v3107
      %v3124 = vmax.f32 %v2513, %v3108
      %v3125 = vmax.f32 %v2514, %v3109
      %v3126 = vmax.f32 %v2515, %v3110
      %v3127 = vmax.f32 %v2516, %v3111
      %v3128 = vmax.f32 %v2517, %v3112
      %v3129 = vmax.f32 %v2518, %v3113
      %v3130 = vmax.f32 %v2519, %v3114
      %v3131 = vmax.f32 %v2520, %v3115
      %v3132 = vmax.f32 %v2521, %v3116
      %v3133 = vmax.f32 %v2522, %v3117
      %v3134 = vmax.f32 %v2523, %v3118
      %v3135 = vmax.f32 %v2524, %v3119
      %v3136 = vmax.f32 %v2525, %v3120
      %v3137 = vadd.f32 %v3121, %v1818
      %v3138 = vadd.f32 %v3122, %v1822
      %v3139 = vadd.f32 %v3123, %v1826
      %v3140 = vadd.f32 %v3124, %v1830
      %v3141 = vadd.f32 %v3125, %v1818
      %v3142 = vadd.f32 %v3126, %v1822
      %v3143 = vadd.f32 %v3127, %v1826
      %v3144 = vadd.f32 %v3128, %v1830
      %v3145 = vadd.f32 %v3129, %v1818
      %v3146 = vadd.f32 %v3130, %v1822
      %v3147 = vadd.f32 %v3131, %v1826
      %v3148 = vadd.f32 %v3132, %v1830
      %v3149 = vadd.f32 %v3133, %v1818
      %v3150 = vadd.f32 %v3134, %v1822
      %v3151 = vadd.f32 %v3135, %v1826
      %v3152 = vadd.f32 %v3136, %v1830
      %v3153 = vmax.f32 %v3137, 0.0
      %v3154 = vmax.f32 %v3138, 0.0
      %v3155 = vmax.f32 %v3139, 0.0
      %v3156 = vmax.f32 %v3140, 0.0
      %v3157 = vmax.f32 %v3141, 0.0
      %v3158 = vmax.f32 %v3142, 0.0
      %v3159 = vmax.f32 %v3143, 0.0
      %v3160 = vmax.f32 %v3144, 0.0
      %v3161 = vmax.f32 %v3145, 0.0
      %v3162 = vmax.f32 %v3146, 0.0
      %v3163 = vmax.f32 %v3147, 0.0
      %v3164 = vmax.f32 %v3148, 0.0
      %v3165 = vmax.f32 %v3149, 0.0
      %v3166 = vmax.f32 %v3150, 0.0
      %v3167 = vmax.f32 %v3151, 0.0
      %v3168 = vmax.f32 %v3152, 0.0
      %3181 = vrot.lane.b32.xlu0 %v3154, 32
      %v3182 = vpop.permute.xlu0 %3181
      %3183 = vrot.lane.b32.xlu0 %v3155, 32
      %v3184 = vpop.permute.xlu0 %3183
      %3185 = vrot.lane.b32.xlu0 %v3156, 32
      %v3186 = vpop.permute.xlu0 %3185
      %3187 = vrot.lane.b32.xlu0 %v3158, 32
      %v3188 = vpop.permute.xlu0 %3187
      %3189 = vrot.lane.b32.xlu0 %v3159, 32
      %v3190 = vpop.permute.xlu0 %3189
      %3191 = vrot.lane.b32.xlu0 %v3160, 32
      %v3192 = vpop.permute.xlu0 %3191
      %3193 = vrot.lane.b32.xlu0 %v3162, 32
      %v3194 = vpop.permute.xlu0 %3193
      %3195 = vrot.lane.b32.xlu0 %v3163, 32
      %v3196 = vpop.permute.xlu0 %3195
      %3197 = vrot.lane.b32.xlu0 %v3164, 32
      %v3198 = vpop.permute.xlu0 %3197
      %3199 = vrot.lane.b32.xlu0 %v3166, 32
      %v3200 = vpop.permute.xlu0 %3199
      %3201 = vrot.lane.b32.xlu0 %v3167, 32
      %v3202 = vpop.permute.xlu0 %3201
      %3203 = vrot.lane.b32.xlu0 %v3168, 32
      %v3204 = vpop.permute.xlu0 %3203
      %v3205 = vsel %vm355, %v3182, %v3184
      %v3206 = vsel %vm355, %v3184, %v3186
      %v3207 = vsel %vm355, %v3188, %v3190
      %v3208 = vsel %vm355, %v3190, %v3192
      %v3209 = vsel %vm355, %v3194, %v3196
      %v3210 = vsel %vm355, %v3196, %v3198
      %v3211 = vsel %vm355, %v3200, %v3202
      %v3212 = vsel %vm355, %v3202, %v3204
      %v3221 = vmax.f32 %v3153, %v3205
      %v3222 = vmax.f32 %v3154, %v3206
      %v3223 = vmax.f32 %v3157, %v3207
      %v3224 = vmax.f32 %v3158, %v3208
      %v3225 = vmax.f32 %v3161, %v3209
      %v3226 = vmax.f32 %v3162, %v3210
      %v3227 = vmax.f32 %v3165, %v3211
      %v3228 = vmax.f32 %v3166, %v3212
      %v3229 = vpack.c.bf16 %v3223, %v3221
      %v3230 = vpack.c.bf16 %v3224, %v3222
      %v3231 = vpack.c.bf16 %v3227, %v3225
      %v3232 = vpack.c.bf16 %v3228, %v3226
      %vm3233 = vcmask 1041408
      %vm3234 = vcmask 783364
      %vm3235 = vmor %vm3234, %vm3233
      %3236 = vst.msk [vmem:[#allocation2] sm:$0x33] %vm3235, 0
      %3237 = vst.msk [vmem:[#allocation2 + $0x20] sm:$0x33] %vm3235, 0
      %v3242 = vunpack.c.l.b16 %v1927
      %v3243 = vunpack.c.l.b16 %v1928
      %v3244 = vunpack.c.h.b16 %v1927
      %v3245 = vunpack.c.h.b16 %v1928
      %v3246 = vunpack.c.l.b16 %v1929
      %v3247 = vunpack.c.l.b16 %v1930
      %v3248 = vunpack.c.h.b16 %v1929
      %v3249 = vunpack.c.h.b16 %v1930
      %v3250 = vpack.c.b16 %v3243, %v3242
      %v3251 = vpack.c.b16 %v3245, %v3244
      %v3252 = vpack.c.b16 %v3247, %v3246
      %v3253 = vpack.c.b16 %v3249, %v3248
      %vm3254 = vcmask 1041408
      %vm3255 = vcmask 1045508
      %vm3256 = vmor %vm3254, %vm3255
      %v3257 = vrot.slane %v3250, 6
      %v3258 = vrot.slane %v3257, 4
      %v3259 = vrot.slane %v3251, 6
      %v3260 = vsel %vm3256, %v3258, %v3259
      %v3261 = vrot.slane %v3259, 4
      %v3262 = vrot.slane %v3252, 6
      %v3263 = vsel %vm3256, %v3261, %v3262
      %v3264 = vrot.slane %v3262, 4
      %v3265 = vrot.slane %v3253, 6
      %v3266 = vsel %vm3256, %v3264, %v3265
      %vm3271 = vcmask 1043458
      %vm3272 = vcmask 785414
      %vm3273 = vmor %vm3272, %vm3271
      %3274 = vst.msk [vmem:[#allocation2] sm:$0xcc] %vm3273, %v3257
      %vm3275 = vcmask 1043456
      %vm3276 = vcmask 785412
      %vm3277 = vmor %vm3276, %vm3275
      %3278 = vst.msk [vmem:[#allocation2 + $0x8] sm:$0xff] %vm3277, %v3260
      %3279 = vst.msk [vmem:[#allocation2 + $0x10] sm:$0xff] %vm3277, %v3263
      %3280 = vst.msk [vmem:[#allocation2 + $0x18] sm:$0xff] %vm3277, %v3266
      %3281 = vst.msk [vmem:[#allocation3] sm:$0x33] %vm3235, 0
      %3282 = vst.msk [vmem:[#allocation3 + $0x20] sm:$0x33] %vm3235, 0
      %v3287 = vunpack.c.l.b16 %v3229
      %v3288 = vunpack.c.l.b16 %v3230
      %v3289 = vunpack.c.h.b16 %v3229
      %v3290 = vunpack.c.h.b16 %v3230
      %v3291 = vunpack.c.l.b16 %v3231
      %v3292 = vunpack.c.l.b16 %v3232
      %v3293 = vunpack.c.h.b16 %v3231
      %v3294 = vunpack.c.h.b16 %v3232
      %v3295 = vpack.c.b16 %v3288, %v3287
      %v3296 = vpack.c.b16 %v3290, %v3289
      %v3297 = vpack.c.b16 %v3292, %v3291
      %v3298 = vpack.c.b16 %v3294, %v3293
      %v3299 = vrot.slane %v3295, 6
      %v3300 = vrot.slane %v3299, 4
      %v3301 = vrot.slane %v3296, 6
      %v3302 = vsel %vm3256, %v3300, %v3301
      %v3303 = vrot.slane %v3301, 4
      %v3304 = vrot.slane %v3297, 6
      %v3305 = vsel %vm3256, %v3303, %v3304
      %v3306 = vrot.slane %v3304, 4
      %v3307 = vrot.slane %v3298, 6
      %v3308 = vsel %vm3256, %v3306, %v3307
      %3313 = vst.msk [vmem:[#allocation3] sm:$0xcc] %vm3273, %v3299
      %3314 = vst.msk [vmem:[#allocation3 + $0x8] sm:$0xff] %vm3277, %v3302
      %3315 = vst.msk [vmem:[#allocation3 + $0x10] sm:$0xff] %vm3277, %v3305
      %3316 = vst.msk [vmem:[#allocation3 + $0x18] sm:$0xff] %vm3277, %v3308
      %v3317 = vld [vmem:[%s3] sm:$0xff]
      %v3318 = vld [vmem:[%s3 + $0x8] sm:$0xff]
      %v3319 = vld [vmem:[%s3 + $0x10] sm:$0xff]
      %v3320 = vld [vmem:[%s3 + $0x18] sm:$0xff]
      %v3321 = vld [vmem:[%s3 + $0x20] sm:$0xff]
      %v3322 = vld [vmem:[%s3 + $0x28] sm:$0xff]
      %v3323 = vld [vmem:[%s3 + $0x30] sm:$0xff]
      %v3324 = vld [vmem:[%s3 + $0x38] sm:$0xff]
      %v3325 = vld [vmem:[%s3 + $0x40] sm:$0xff]
      %v3326 = vld [vmem:[%s3 + $0x48] sm:$0xff]
      %v3327 = vld [vmem:[%s3 + $0x50] sm:$0xff]
      %v3328 = vld [vmem:[%s3 + $0x58] sm:$0xff]
      %v3329 = vld [vmem:[%s3 + $0x60] sm:$0xff]
      %v3330 = vld [vmem:[%s3 + $0x68] sm:$0xff]
      %v3331 = vld [vmem:[%s3 + $0x70] sm:$0xff]
      %v3332 = vld [vmem:[%s3 + $0x78] sm:$0xff]
      %v3333 = vld [vmem:[%s3 + $0x80] sm:$0xff]
      %v3334 = vld [vmem:[%s3 + $0x88] sm:$0xff]
      %v3335 = vld [vmem:[%s3 + $0x90] sm:$0xff]
      %v3336 = vld [vmem:[%s3 + $0x98] sm:$0xff]
      %v3337 = vld [vmem:[%s3 + $0xa0] sm:$0xff]
      %v3338 = vld [vmem:[%s3 + $0xa8] sm:$0xff]
      %v3339 = vld [vmem:[%s3 + $0xb0] sm:$0xff]
      %v3340 = vld [vmem:[%s3 + $0xb8] sm:$0xff]
      %v3341 = vld [vmem:[%s3 + $0xc0] sm:$0xff]
      %v3342 = vld [vmem:[%s3 + $0xc8] sm:$0xff]
      %v3343 = vld [vmem:[%s3 + $0xd0] sm:$0xff]
      %v3344 = vld [vmem:[%s3 + $0xd8] sm:$0xff]
      %v3345 = vld [vmem:[%s3 + $0xe0] sm:$0xff]
      %v3346 = vld [vmem:[%s3 + $0xe8] sm:$0xff]
      %v3347 = vld [vmem:[%s3 + $0xf0] sm:$0xff]
      %v3348 = vld [vmem:[%s3 + $0xf8] sm:$0xff]
      %v3349 = vld [vmem:[%s3 + $0x100] sm:$0xff]
      %v3350 = vld [vmem:[%s3 + $0x108] sm:$0xff]
      %v3351 = vld [vmem:[%s3 + $0x110] sm:$0xff]
      %v3352 = vld [vmem:[%s3 + $0x118] sm:$0xff]
      %v3353 = vld [vmem:[%s3 + $0x120] sm:$0xff]
      %v3354 = vld [vmem:[%s3 + $0x128] sm:$0xff]
      %v3355 = vld [vmem:[%s3 + $0x130] sm:$0xff]
      %v3356 = vld [vmem:[%s3 + $0x138] sm:$0xff]
      %v3357 = vld [vmem:[%s3 + $0x140] sm:$0xff]
      %v3358 = vld [vmem:[%s3 + $0x148] sm:$0xff]
      %v3359 = vld [vmem:[%s3 + $0x150] sm:$0xff]
      %v3360 = vld [vmem:[%s3 + $0x158] sm:$0xff]
      %v3361 = vld [vmem:[%s3 + $0x160] sm:$0xff]
      %v3362 = vld [vmem:[%s3 + $0x168] sm:$0xff]
      %v3363 = vld [vmem:[%s3 + $0x170] sm:$0xff]
      %v3364 = vld [vmem:[%s3 + $0x178] sm:$0xff]
      %v3365 = vld [vmem:[%s3 + $0x180] sm:$0xff]
      %v3366 = vld [vmem:[%s3 + $0x188] sm:$0xff]
      %v3367 = vld [vmem:[%s3 + $0x190] sm:$0xff]
      %v3368 = vld [vmem:[%s3 + $0x198] sm:$0xff]
      %v3369 = vld [vmem:[%s3 + $0x1a0] sm:$0xff]
      %v3370 = vld [vmem:[%s3 + $0x1a8] sm:$0xff]
      %v3371 = vld [vmem:[%s3 + $0x1b0] sm:$0xff]
      %v3372 = vld [vmem:[%s3 + $0x1b8] sm:$0xff]
      %v3373 = vld [vmem:[#allocation2] sm:$0xff]
      %v3374 = vld [vmem:[#allocation2 + $0x8] sm:$0xff]
      %v3375 = vld [vmem:[#allocation2 + $0x10] sm:$0xff]
      %v3376 = vld [vmem:[#allocation2 + $0x18] sm:$0x33]
      %v3377 = vld [vmem:[#allocation3] sm:$0xff]
      %v3378 = vld [vmem:[#allocation3 + $0x8] sm:$0xff]
      %v3379 = vld [vmem:[#allocation3 + $0x10] sm:$0xff]
      %v3380 = vld [vmem:[#allocation3 + $0x18] sm:$0x33]
      %s3381 = scalar_lea.vmem %s3, 448
      %v3382 = vld [vmem:[%s3381] sm:$0xff]
      %v3383 = vld [vmem:[%s3381 + $0x8] sm:$0xff]
      %v3384 = vld [vmem:[%s3381 + $0x10] sm:$0xff]
      %v3385 = vld [vmem:[%s3381 + $0x18] sm:$0xff]
      %v3386 = vld [vmem:[%s3381 + $0x20] sm:$0xff]
      %v3387 = vld [vmem:[%s3381 + $0x28] sm:$0xff]
      %v3388 = vld [vmem:[%s3381 + $0x30] sm:$0xff]
      %v3389 = vld [vmem:[%s3381 + $0x38] sm:$0xff]
      %v3390 = vld [vmem:[%s3381 + $0x40] sm:$0xff]
      %v3391 = vld [vmem:[%s3381 + $0x48] sm:$0xff]
      %v3392 = vld [vmem:[%s3381 + $0x50] sm:$0xff]
      %v3393 = vld [vmem:[%s3381 + $0x58] sm:$0xff]
      %v3394 = vld [vmem:[%s3381 + $0x60] sm:$0xff]
      %v3395 = vld [vmem:[%s3381 + $0x68] sm:$0xff]
      %v3396 = vld [vmem:[%s3381 + $0x70] sm:$0xff]
      %v3397 = vld [vmem:[%s3381 + $0x78] sm:$0xff]
      %v3398 = vld [vmem:[%s3381 + $0x80] sm:$0xff]
      %v3399 = vld [vmem:[%s3381 + $0x88] sm:$0xff]
      %v3400 = vld [vmem:[%s3381 + $0x90] sm:$0xff]
      %v3401 = vld [vmem:[%s3381 + $0x98] sm:$0xff]
      %v3402 = vld [vmem:[%s3381 + $0xa0] sm:$0xff]
      %v3403 = vld [vmem:[%s3381 + $0xa8] sm:$0xff]
      %v3404 = vld [vmem:[%s3381 + $0xb0] sm:$0xff]
      %v3405 = vld [vmem:[%s3381 + $0xb8] sm:$0xff]
      %v3406 = vld [vmem:[%s3381 + $0xc0] sm:$0xff]
      %v3407 = vld [vmem:[%s3381 + $0xc8] sm:$0xff]
      %v3408 = vld [vmem:[%s3381 + $0xd0] sm:$0xff]
      %v3409 = vld [vmem:[%s3381 + $0xd8] sm:$0xff]
      %v3410 = vld [vmem:[%s3381 + $0xe0] sm:$0xff]
      %v3411 = vld [vmem:[%s3381 + $0xe8] sm:$0xff]
      %v3412 = vld [vmem:[%s3381 + $0xf0] sm:$0xff]
      %v3413 = vld [vmem:[%s3381 + $0xf8] sm:$0xff]
      %v3414 = vld [vmem:[%s3381 + $0x100] sm:$0xff]
      %v3415 = vld [vmem:[%s3381 + $0x108] sm:$0xff]
      %v3416 = vld [vmem:[%s3381 + $0x110] sm:$0xff]
      %v3417 = vld [vmem:[%s3381 + $0x118] sm:$0xff]
      %v3418 = vld [vmem:[%s3381 + $0x120] sm:$0xff]
      %v3419 = vld [vmem:[%s3381 + $0x128] sm:$0xff]
      %v3420 = vld [vmem:[%s3381 + $0x130] sm:$0xff]
      %v3421 = vld [vmem:[%s3381 + $0x138] sm:$0xff]
      %v3422 = vld [vmem:[%s3381 + $0x140] sm:$0xff]
      %v3423 = vld [vmem:[%s3381 + $0x148] sm:$0xff]
      %v3424 = vld [vmem:[%s3381 + $0x150] sm:$0xff]
      %v3425 = vld [vmem:[%s3381 + $0x158] sm:$0xff]
      %v3426 = vld [vmem:[%s3381 + $0x160] sm:$0xff]
      %v3427 = vld [vmem:[%s3381 + $0x168] sm:$0xff]
      %v3428 = vld [vmem:[%s3381 + $0x170] sm:$0xff]
      %v3429 = vld [vmem:[%s3381 + $0x178] sm:$0xff]
      %v3430 = vld [vmem:[%s3381 + $0x180] sm:$0xff]
      %v3431 = vld [vmem:[%s3381 + $0x188] sm:$0xff]
      %v3432 = vld [vmem:[%s3381 + $0x190] sm:$0xff]
      %v3433 = vld [vmem:[%s3381 + $0x198] sm:$0xff]
      %v3434 = vld [vmem:[%s3381 + $0x1a0] sm:$0xff]
      %v3435 = vld [vmem:[%s3381 + $0x1a8] sm:$0xff]
      %v3436 = vld [vmem:[%s3381 + $0x1b0] sm:$0xff]
      %v3437 = vld [vmem:[%s3381 + $0x1b8] sm:$0xff]
      %v3438 = vld [vmem:[#allocation2] sm:$0xcc]
      %v3439 = vld [vmem:[#allocation2 + $0x18] sm:$0xff]
      %v3444 = vunpack.c.l.b16 %v3377
      %v3445 = vunpack.c.h.b16 %v3377
      %v3446 = vunpack.c.l.b16 %v3378
      %v3447 = vunpack.c.h.b16 %v3378
      %v3448 = vunpack.c.l.b16 %v3379
      %v3449 = vunpack.c.h.b16 %v3379
      %v3450 = vunpack.c.l.b16 %v3380
      %v3451 = vunpack.c.h.b16 %v3380
      %v3452 = vpack.c.b16 %v3446, %v3444
      %v3453 = vpack.c.b16 %v3447, %v3445
      %v3454 = vpack.c.b16 %v3450, %v3448
      %v3455 = vpack.c.b16 %v3451, %v3449
      %v3514 = vunpack.c.l.b16 %v3382
      %v3515 = vunpack.c.h.b16 %v3382
      %v3516 = vunpack.c.l.b16 %v3383
      %v3517 = vunpack.c.h.b16 %v3383
      %v3518 = vunpack.c.l.b16 %v3384
      %v3519 = vunpack.c.h.b16 %v3384
      %v3520 = vunpack.c.l.b16 %v3385
      %v3521 = vunpack.c.h.b16 %v3385
      %v3522 = vunpack.c.l.b16 %v3386
      %v3523 = vunpack.c.h.b16 %v3386
      %v3524 = vunpack.c.l.b16 %v3387
      %v3525 = vunpack.c.h.b16 %v3387
      %v3526 = vunpack.c.l.b16 %v3388
      %v3527 = vunpack.c.h.b16 %v3388
      %v3528 = vunpack.c.l.b16 %v3389
      %v3529 = vunpack.c.h.b16 %v3389
      %v3530 = vunpack.c.l.b16 %v3390
      %v3531 = vunpack.c.h.b16 %v3390
      %v3532 = vunpack.c.l.b16 %v3391
      %v3533 = vunpack.c.h.b16 %v3391
      %v3534 = vunpack.c.l.b16 %v3392
      %v3535 = vunpack.c.h.b16 %v3392
      %v3536 = vunpack.c.l.b16 %v3393
      %v3537 = vunpack.c.h.b16 %v3393
      %v3538 = vunpack.c.l.b16 %v3394
      %v3539 = vunpack.c.h.b16 %v3394
      %v3540 = vunpack.c.l.b16 %v3395
      %v3541 = vunpack.c.h.b16 %v3395
      %v3542 = vunpack.c.l.b16 %v3396
      %v3543 = vunpack.c.h.b16 %v3396
      %v3544 = vunpack.c.l.b16 %v3397
      %v3545 = vunpack.c.h.b16 %v3397
      %v3546 = vunpack.c.l.b16 %v3398
      %v3547 = vunpack.c.h.b16 %v3398
      %v3548 = vunpack.c.l.b16 %v3399
      %v3549 = vunpack.c.h.b16 %v3399
      %v3550 = vunpack.c.l.b16 %v3400
      %v3551 = vunpack.c.h.b16 %v3400
      %v3552 = vunpack.c.l.b16 %v3401
      %v3553 = vunpack.c.h.b16 %v3401
      %v3554 = vunpack.c.l.b16 %v3402
      %v3555 = vunpack.c.h.b16 %v3402
      %v3556 = vunpack.c.l.b16 %v3403
      %v3557 = vunpack.c.h.b16 %v3403
      %v3558 = vunpack.c.l.b16 %v3404
      %v3559 = vunpack.c.h.b16 %v3404
      %v3560 = vunpack.c.l.b16 %v3405
      %v3561 = vunpack.c.h.b16 %v3405
      %v3562 = vunpack.c.l.b16 %v3406
      %v3563 = vunpack.c.h.b16 %v3406
      %v3564 = vunpack.c.l.b16 %v3407
      %v3565 = vunpack.c.h.b16 %v3407
      %v3566 = vunpack.c.l.b16 %v3408
      %v3567 = vunpack.c.h.b16 %v3408
      %v3568 = vunpack.c.l.b16 %v3409
      %v3569 = vunpack.c.h.b16 %v3409
      %v3570 = vunpack.c.l.b16 %v3410
      %v3571 = vunpack.c.h.b16 %v3410
      %v3572 = vunpack.c.l.b16 %v3411
      %v3573 = vunpack.c.h.b16 %v3411
      %v3574 = vunpack.c.l.b16 %v3412
      %v3575 = vunpack.c.h.b16 %v3412
      %v3576 = vunpack.c.l.b16 %v3413
      %v3577 = vunpack.c.h.b16 %v3413
      %v3578 = vunpack.c.l.b16 %v3414
      %v3579 = vunpack.c.h.b16 %v3414
      %v3580 = vunpack.c.l.b16 %v3415
      %v3581 = vunpack.c.h.b16 %v3415
      %v3582 = vunpack.c.l.b16 %v3416
      %v3583 = vunpack.c.h.b16 %v3416
      %v3584 = vunpack.c.l.b16 %v3417
      %v3585 = vunpack.c.h.b16 %v3417
      %v3586 = vunpack.c.l.b16 %v3418
      %v3587 = vunpack.c.h.b16 %v3418
      %v3588 = vunpack.c.l.b16 %v3419
      %v3589 = vunpack.c.h.b16 %v3419
      %v3590 = vunpack.c.l.b16 %v3420
      %v3591 = vunpack.c.h.b16 %v3420
      %v3592 = vunpack.c.l.b16 %v3421
      %v3593 = vunpack.c.h.b16 %v3421
      %v3594 = vunpack.c.l.b16 %v3422
      %v3595 = vunpack.c.h.b16 %v3422
      %v3596 = vunpack.c.l.b16 %v3423
      %v3597 = vunpack.c.h.b16 %v3423
      %v3598 = vunpack.c.l.b16 %v3424
      %v3599 = vunpack.c.h.b16 %v3424
      %v3600 = vunpack.c.l.b16 %v3425
      %v3601 = vunpack.c.h.b16 %v3425
      %v3602 = vunpack.c.l.b16 %v3426
      %v3603 = vunpack.c.h.b16 %v3426
      %v3604 = vunpack.c.l.b16 %v3427
      %v3605 = vunpack.c.h.b16 %v3427
      %v3606 = vunpack.c.l.b16 %v3428
      %v3607 = vunpack.c.h.b16 %v3428
      %v3608 = vunpack.c.l.b16 %v3429
      %v3609 = vunpack.c.h.b16 %v3429
      %v3610 = vunpack.c.l.b16 %v3430
      %v3611 = vunpack.c.h.b16 %v3430
      %v3612 = vunpack.c.l.b16 %v3431
      %v3613 = vunpack.c.h.b16 %v3431
      %v3614 = vunpack.c.l.b16 %v3432
      %v3615 = vunpack.c.h.b16 %v3432
      %v3616 = vunpack.c.l.b16 %v3433
      %v3617 = vunpack.c.h.b16 %v3433
      %v3618 = vunpack.c.l.b16 %v3434
      %v3619 = vunpack.c.h.b16 %v3434
      %v3620 = vunpack.c.l.b16 %v3435
      %v3621 = vunpack.c.h.b16 %v3435
      %v3622 = vunpack.c.l.b16 %v3436
      %v3623 = vunpack.c.h.b16 %v3436
      %v3624 = vunpack.c.l.b16 %v3437
      %v3625 = vunpack.c.h.b16 %v3437
      %v3626 = vpack.c.b16 %v3518, %v3514
      %v3627 = vpack.c.b16 %v3519, %v3515
      %v3628 = vpack.c.b16 %v3520, %v3516
      %v3629 = vpack.c.b16 %v3521, %v3517
      %v3630 = vpack.c.b16 %v3526, %v3522
      %v3631 = vpack.c.b16 %v3527, %v3523
      %v3632 = vpack.c.b16 %v3528, %v3524
      %v3633 = vpack.c.b16 %v3529, %v3525
      %v3634 = vpack.c.b16 %v3534, %v3530
      %v3635 = vpack.c.b16 %v3535, %v3531
      %v3636 = vpack.c.b16 %v3536, %v3532
      %v3637 = vpack.c.b16 %v3537, %v3533
      %v3638 = vpack.c.b16 %v3542, %v3538
      %v3639 = vpack.c.b16 %v3543, %v3539
      %v3640 = vpack.c.b16 %v3544, %v3540
      %v3641 = vpack.c.b16 %v3545, %v3541
      %v3642 = vpack.c.b16 %v3550, %v3546
      %v3643 = vpack.c.b16 %v3551, %v3547
      %v3644 = vpack.c.b16 %v3552, %v3548
      %v3645 = vpack.c.b16 %v3553, %v3549
      %v3646 = vpack.c.b16 %v3558, %v3554
      %v3647 = vpack.c.b16 %v3559, %v3555
      %v3648 = vpack.c.b16 %v3560, %v3556
      %v3649 = vpack.c.b16 %v3561, %v3557
      %v3650 = vpack.c.b16 %v3566, %v3562
      %v3651 = vpack.c.b16 %v3567, %v3563
      %v3652 = vpack.c.b16 %v3568, %v3564
      %v3653 = vpack.c.b16 %v3569, %v3565
      %v3654 = vpack.c.b16 %v3574, %v3570
      %v3655 = vpack.c.b16 %v3575, %v3571
      %v3656 = vpack.c.b16 %v3576, %v3572
      %v3657 = vpack.c.b16 %v3577, %v3573
      %v3658 = vpack.c.b16 %v3582, %v3578
      %v3659 = vpack.c.b16 %v3583, %v3579
      %v3660 = vpack.c.b16 %v3584, %v3580
      %v3661 = vpack.c.b16 %v3585, %v3581
      %v3662 = vpack.c.b16 %v3590, %v3586
      %v3663 = vpack.c.b16 %v3591, %v3587
      %v3664 = vpack.c.b16 %v3592, %v3588
      %v3665 = vpack.c.b16 %v3593, %v3589
      %v3666 = vpack.c.b16 %v3598, %v3594
      %v3667 = vpack.c.b16 %v3599, %v3595
      %v3668 = vpack.c.b16 %v3600, %v3596
      %v3669 = vpack.c.b16 %v3601, %v3597
      %v3670 = vpack.c.b16 %v3606, %v3602
      %v3671 = vpack.c.b16 %v3607, %v3603
      %v3672 = vpack.c.b16 %v3608, %v3604
      %v3673 = vpack.c.b16 %v3609, %v3605
      %v3674 = vpack.c.b16 %v3614, %v3610
      %v3675 = vpack.c.b16 %v3615, %v3611
      %v3676 = vpack.c.b16 %v3616, %v3612
      %v3677 = vpack.c.b16 %v3617, %v3613
      %v3678 = vpack.c.b16 %v3622, %v3618
      %v3679 = vpack.c.b16 %v3623, %v3619
      %v3680 = vpack.c.b16 %v3624, %v3620
      %v3681 = vpack.c.b16 %v3625, %v3621
      %vm3738 = vcmask 785408
      %v3740 = vsel %vm3738, %v3453, 0
      %v3743 = vsel %vm3738, %v3455, 0
      %3745 = vmatprep.subr.bf16.mxu0 %v3655
      %3746 = vmatpush1.bf16.msra.mxu0 %v3654
      %3747 = vmatprep.subr.bf16.mxu0 %v3651
      %3748 = vmatpush1.bf16.msra.mxu0 %v3650
      %3749 = vmatprep.subr.bf16.mxu0 %v3647
      %3750 = vmatpush1.bf16.msra.mxu0 %v3646
      %3751 = vmatprep.subr.bf16.mxu0 %v3643
      %3752 = vmatpush1.bf16.msra.mxu0 %v3642
      %3753 = vmatprep.subr.bf16.mxu0 %v3639
      %3754 = vmatpush1.bf16.msra.mxu0 %v3638
      %3755 = vmatprep.subr.bf16.mxu0 %v3635
      %3756 = vmatpush1.bf16.msra.mxu0 %v3634
      %3757 = vmatprep.subr.bf16.mxu0 %v3631
      %3758 = vmatpush1.bf16.msra.mxu0 %v3630
      %3759 = vmatprep.subr.bf16.mxu0 %v3627
      %3760 = vmatpush1.bf16.msra.mxu0 %v3626
      %3761 = vmatprep.subr.bf16.mxu0 0
      %3762 = vmatpush2.bf16.msra.mxu0 0
      %3763 = vmatprep.subr.bf16.mxu0 0
      %3764 = vmatpush2.bf16.msra.mxu0 0
      %3765 = vmatprep.subr.bf16.mxu0 %v3679
      %3766 = vmatpush2.bf16.msra.mxu0 %v3678
      %3767 = vmatprep.subr.bf16.mxu0 %v3675
      %3768 = vmatpush2.bf16.msra.mxu0 %v3674
      %3769 = vmatprep.subr.bf16.mxu0 %v3671
      %3770 = vmatpush2.bf16.msra.mxu0 %v3670
      %3771 = vmatprep.subr.bf16.mxu0 %v3667
      %3772 = vmatpush2.bf16.msra.mxu0 %v3666
      %3773 = vmatprep.subr.bf16.mxu0 %v3663
      %3774 = vmatpush2.bf16.msra.mxu0 %v3662
      %3775 = vmatprep.subr.bf16.mxu0 %v3659
      %3776 = vmatpush2.bf16.msra.mxu0 %v3658
      %3777 = vmatprep.mubr.bf16.mxu0 %v3740
      %3778 = vmatmul.mubr.bf16.gmra.mxu0 %v3452
      %v3779 = vpop.f32.mrf.mxu0
      %v3780 = vadd.f32 0.0, %v3779
      %v3781 = vpop.f32.mrf.mxu0
      %v3782 = vadd.f32 0.0, %v3781
      %v3783 = vpop.f32.mrf.mxu0
      %v3784 = vadd.f32 0.0, %v3783
      %v3785 = vpop.f32.mrf.mxu0
      %v3786 = vadd.f32 0.0, %v3785
      %3787 = vmatprep.mubr.bf16.mxu0 %v3743
      %3788 = vmatmul.mubr.bf16.gmra.mxu0 %v3454
      %v3789 = vpop.f32.mrf.mxu0
      %v3790 = vadd.f32 0.0, %v3789
      %v3791 = vpop.f32.mrf.mxu0
      %v3792 = vadd.f32 0.0, %v3791
      %v3793 = vpop.f32.mrf.mxu0
      %v3794 = vadd.f32 0.0, %v3793
      %v3795 = vpop.f32.mrf.mxu0
      %v3796 = vadd.f32 0.0, %v3795
      %3797 = vdwg.mxu0
      %3798 = vmatprep.subr.bf16.mxu0 %v3657
      %3799 = vmatpush1.bf16.msra.mxu0 %v3656
      %3800 = vmatprep.subr.bf16.mxu0 %v3653
      %3801 = vmatpush1.bf16.msra.mxu0 %v3652
      %3802 = vmatprep.subr.bf16.mxu0 %v3649
      %3803 = vmatpush1.bf16.msra.mxu0 %v3648
      %3804 = vmatprep.subr.bf16.mxu0 %v3645
      %3805 = vmatpush1.bf16.msra.mxu0 %v3644
      %3806 = vmatprep.subr.bf16.mxu0 %v3641
      %3807 = vmatpush1.bf16.msra.mxu0 %v3640
      %3808 = vmatprep.subr.bf16.mxu0 %v3637
      %3809 = vmatpush1.bf16.msra.mxu0 %v3636
      %3810 = vmatprep.subr.bf16.mxu0 %v3633
      %3811 = vmatpush1.bf16.msra.mxu0 %v3632
      %3812 = vmatprep.subr.bf16.mxu0 %v3629
      %3813 = vmatpush1.bf16.msra.mxu0 %v3628
      %3814 = vmatprep.subr.bf16.mxu0 0
      %3815 = vmatpush2.bf16.msra.mxu0 0
      %3816 = vmatprep.subr.bf16.mxu0 0
      %3817 = vmatpush2.bf16.msra.mxu0 0
      %3818 = vmatprep.subr.bf16.mxu0 %v3681
      %3819 = vmatpush2.bf16.msra.mxu0 %v3680
      %3820 = vmatprep.subr.bf16.mxu0 %v3677
      %3821 = vmatpush2.bf16.msra.mxu0 %v3676
      %3822 = vmatprep.subr.bf16.mxu0 %v3673
      %3823 = vmatpush2.bf16.msra.mxu0 %v3672
      %3824 = vmatprep.subr.bf16.mxu0 %v3669
      %3825 = vmatpush2.bf16.msra.mxu0 %v3668
      %3826 = vmatprep.subr.bf16.mxu0 %v3665
      %3827 = vmatpush2.bf16.msra.mxu0 %v3664
      %3828 = vmatprep.subr.bf16.mxu0 %v3661
      %3829 = vmatpush2.bf16.msra.mxu0 %v3660
      %3830 = vmatprep.mubr.bf16.mxu0 %v3740
      %3831 = vmatmul.mubr.bf16.gmra.mxu0 %v3452
      %v3832 = vpop.f32.mrf.mxu0
      %v3833 = vadd.f32 0.0, %v3832
      %v3834 = vpop.f32.mrf.mxu0
      %v3835 = vadd.f32 0.0, %v3834
      %v3836 = vpop.f32.mrf.mxu0
      %v3837 = vadd.f32 0.0, %v3836
      %v3838 = vpop.f32.mrf.mxu0
      %v3839 = vadd.f32 0.0, %v3838
      %3840 = vmatprep.mubr.bf16.mxu0 %v3743
      %3841 = vmatmul.mubr.bf16.gmra.mxu0 %v3454
      %v3842 = vpop.f32.mrf.mxu0
      %v3843 = vadd.f32 0.0, %v3842
      %v3844 = vpop.f32.mrf.mxu0
      %v3845 = vadd.f32 0.0, %v3844
      %v3846 = vpop.f32.mrf.mxu0
      %v3847 = vadd.f32 0.0, %v3846
      %v3848 = vpop.f32.mrf.mxu0
      %v3849 = vadd.f32 0.0, %v3848
      %3850 = vdwg.mxu0
      %v3855 = vunpack.c.l.b16 %v3373
      %v3856 = vunpack.c.h.b16 %v3373
      %v3857 = vunpack.c.l.b16 %v3374
      %v3858 = vunpack.c.h.b16 %v3374
      %v3859 = vunpack.c.l.b16 %v3375
      %v3860 = vunpack.c.h.b16 %v3375
      %v3861 = vunpack.c.l.b16 %v3376
      %v3862 = vunpack.c.h.b16 %v3376
      %v3863 = vpack.c.b16 %v3857, %v3855
      %v3864 = vpack.c.b16 %v3858, %v3856
      %v3865 = vpack.c.b16 %v3861, %v3859
      %v3866 = vpack.c.b16 %v3862, %v3860
      %v3925 = vunpack.c.l.b16 %v3317
      %v3926 = vunpack.c.h.b16 %v3317
      %v3927 = vunpack.c.l.b16 %v3318
      %v3928 = vunpack.c.h.b16 %v3318
      %v3929 = vunpack.c.l.b16 %v3319
      %v3930 = vunpack.c.h.b16 %v3319
      %v3931 = vunpack.c.l.b16 %v3320
      %v3932 = vunpack.c.h.b16 %v3320
      %v3933 = vunpack.c.l.b16 %v3321
      %v3934 = vunpack.c.h.b16 %v3321
      %v3935 = vunpack.c.l.b16 %v3322
      %v3936 = vunpack.c.h.b16 %v3322
      %v3937 = vunpack.c.l.b16 %v3323
      %v3938 = vunpack.c.h.b16 %v3323
      %v3939 = vunpack.c.l.b16 %v3324
      %v3940 = vunpack.c.h.b16 %v3324
      %v3941 = vunpack.c.l.b16 %v3325
      %v3942 = vunpack.c.h.b16 %v3325
      %v3943 = vunpack.c.l.b16 %v3326
      %v3944 = vunpack.c.h.b16 %v3326
      %v3945 = vunpack.c.l.b16 %v3327
      %v3946 = vunpack.c.h.b16 %v3327
      %v3947 = vunpack.c.l.b16 %v3328
      %v3948 = vunpack.c.h.b16 %v3328
      %v3949 = vunpack.c.l.b16 %v3329
      %v3950 = vunpack.c.h.b16 %v3329
      %v3951 = vunpack.c.l.b16 %v3330
      %v3952 = vunpack.c.h.b16 %v3330
      %v3953 = vunpack.c.l.b16 %v3331
      %v3954 = vunpack.c.h.b16 %v3331
      %v3955 = vunpack.c.l.b16 %v3332
      %v3956 = vunpack.c.h.b16 %v3332
      %v3957 = vunpack.c.l.b16 %v3333
      %v3958 = vunpack.c.h.b16 %v3333
      %v3959 = vunpack.c.l.b16 %v3334
      %v3960 = vunpack.c.h.b16 %v3334
      %v3961 = vunpack.c.l.b16 %v3335
      %v3962 = vunpack.c.h.b16 %v3335
      %v3963 = vunpack.c.l.b16 %v3336
      %v3964 = vunpack.c.h.b16 %v3336
      %v3965 = vunpack.c.l.b16 %v3337
      %v3966 = vunpack.c.h.b16 %v3337
      %v3967 = vunpack.c.l.b16 %v3338
      %v3968 = vunpack.c.h.b16 %v3338
      %v3969 = vunpack.c.l.b16 %v3339
      %v3970 = vunpack.c.h.b16 %v3339
      %v3971 = vunpack.c.l.b16 %v3340
      %v3972 = vunpack.c.h.b16 %v3340
      %v3973 = vunpack.c.l.b16 %v3341
      %v3974 = vunpack.c.h.b16 %v3341
      %v3975 = vunpack.c.l.b16 %v3342
      %v3976 = vunpack.c.h.b16 %v3342
      %v3977 = vunpack.c.l.b16 %v3343
      %v3978 = vunpack.c.h.b16 %v3343
      %v3979 = vunpack.c.l.b16 %v3344
      %v3980 = vunpack.c.h.b16 %v3344
      %v3981 = vunpack.c.l.b16 %v3345
      %v3982 = vunpack.c.h.b16 %v3345
      %v3983 = vunpack.c.l.b16 %v3346
      %v3984 = vunpack.c.h.b16 %v3346
      %v3985 = vunpack.c.l.b16 %v3347
      %v3986 = vunpack.c.h.b16 %v3347
      %v3987 = vunpack.c.l.b16 %v3348
      %v3988 = vunpack.c.h.b16 %v3348
      %v3989 = vunpack.c.l.b16 %v3349
      %v3990 = vunpack.c.h.b16 %v3349
      %v3991 = vunpack.c.l.b16 %v3350
      %v3992 = vunpack.c.h.b16 %v3350
      %v3993 = vunpack.c.l.b16 %v3351
      %v3994 = vunpack.c.h.b16 %v3351
      %v3995 = vunpack.c.l.b16 %v3352
      %v3996 = vunpack.c.h.b16 %v3352
      %v3997 = vunpack.c.l.b16 %v3353
      %v3998 = vunpack.c.h.b16 %v3353
      %v3999 = vunpack.c.l.b16 %v3354
      %v4000 = vunpack.c.h.b16 %v3354
      %v4001 = vunpack.c.l.b16 %v3355
      %v4002 = vunpack.c.h.b16 %v3355
      %v4003 = vunpack.c.l.b16 %v3356
      %v4004 = vunpack.c.h.b16 %v3356
      %v4005 = vunpack.c.l.b16 %v3357
      %v4006 = vunpack.c.h.b16 %v3357
      %v4007 = vunpack.c.l.b16 %v3358
      %v4008 = vunpack.c.h.b16 %v3358
      %v4009 = vunpack.c.l.b16 %v3359
      %v4010 = vunpack.c.h.b16 %v3359
      %v4011 = vunpack.c.l.b16 %v3360
      %v4012 = vunpack.c.h.b16 %v3360
      %v4013 = vunpack.c.l.b16 %v3361
      %v4014 = vunpack.c.h.b16 %v3361
      %v4015 = vunpack.c.l.b16 %v3362
      %v4016 = vunpack.c.h.b16 %v3362
      %v4017 = vunpack.c.l.b16 %v3363
      %v4018 = vunpack.c.h.b16 %v3363
      %v4019 = vunpack.c.l.b16 %v3364
      %v4020 = vunpack.c.h.b16 %v3364
      %v4021 = vunpack.c.l.b16 %v3365
      %v4022 = vunpack.c.h.b16 %v3365
      %v4023 = vunpack.c.l.b16 %v3366
      %v4024 = vunpack.c.h.b16 %v3366
      %v4025 = vunpack.c.l.b16 %v3367
      %v4026 = vunpack.c.h.b16 %v3367
      %v4027 = vunpack.c.l.b16 %v3368
      %v4028 = vunpack.c.h.b16 %v3368
      %v4029 = vunpack.c.l.b16 %v3369
      %v4030 = vunpack.c.h.b16 %v3369
      %v4031 = vunpack.c.l.b16 %v3370
      %v4032 = vunpack.c.h.b16 %v3370
      %v4033 = vunpack.c.l.b16 %v3371
      %v4034 = vunpack.c.h.b16 %v3371
      %v4035 = vunpack.c.l.b16 %v3372
      %v4036 = vunpack.c.h.b16 %v3372
      %v4037 = vpack.c.b16 %v3929, %v3925
      %v4038 = vpack.c.b16 %v3930, %v3926
      %v4039 = vpack.c.b16 %v3931, %v3927
      %v4040 = vpack.c.b16 %v3932, %v3928
      %v4041 = vpack.c.b16 %v3937, %v3933
      %v4042 = vpack.c.b16 %v3938, %v3934
      %v4043 = vpack.c.b16 %v3939, %v3935
      %v4044 = vpack.c.b16 %v3940, %v3936
      %v4045 = vpack.c.b16 %v3945, %v3941
      %v4046 = vpack.c.b16 %v3946, %v3942
      %v4047 = vpack.c.b16 %v3947, %v3943
      %v4048 = vpack.c.b16 %v3948, %v3944
      %v4049 = vpack.c.b16 %v3953, %v3949
      %v4050 = vpack.c.b16 %v3954, %v3950
      %v4051 = vpack.c.b16 %v3955, %v3951
      %v4052 = vpack.c.b16 %v3956, %v3952
      %v4053 = vpack.c.b16 %v3961, %v3957
      %v4054 = vpack.c.b16 %v3962, %v3958
      %v4055 = vpack.c.b16 %v3963, %v3959
      %v4056 = vpack.c.b16 %v3964, %v3960
      %v4057 = vpack.c.b16 %v3969, %v3965
      %v4058 = vpack.c.b16 %v3970, %v3966
      %v4059 = vpack.c.b16 %v3971, %v3967
      %v4060 = vpack.c.b16 %v3972, %v3968
      %v4061 = vpack.c.b16 %v3977, %v3973
      %v4062 = vpack.c.b16 %v3978, %v3974
      %v4063 = vpack.c.b16 %v3979, %v3975
      %v4064 = vpack.c.b16 %v3980, %v3976
      %v4065 = vpack.c.b16 %v3985, %v3981
      %v4066 = vpack.c.b16 %v3986, %v3982
      %v4067 = vpack.c.b16 %v3987, %v3983
      %v4068 = vpack.c.b16 %v3988, %v3984
      %v4069 = vpack.c.b16 %v3993, %v3989
      %v4070 = vpack.c.b16 %v3994, %v3990
      %v4071 = vpack.c.b16 %v3995, %v3991
      %v4072 = vpack.c.b16 %v3996, %v3992
      %v4073 = vpack.c.b16 %v4001, %v3997
      %v4074 = vpack.c.b16 %v4002, %v3998
      %v4075 = vpack.c.b16 %v4003, %v3999
      %v4076 = vpack.c.b16 %v4004, %v4000
      %v4077 = vpack.c.b16 %v4009, %v4005
      %v4078 = vpack.c.b16 %v4010, %v4006
      %v4079 = vpack.c.b16 %v4011, %v4007
      %v4080 = vpack.c.b16 %v4012, %v4008
      %v4081 = vpack.c.b16 %v4017, %v4013
      %v4082 = vpack.c.b16 %v4018, %v4014
      %v4083 = vpack.c.b16 %v4019, %v4015
      %v4084 = vpack.c.b16 %v4020, %v4016
      %v4085 = vpack.c.b16 %v4025, %v4021
      %v4086 = vpack.c.b16 %v4026, %v4022
      %v4087 = vpack.c.b16 %v4027, %v4023
      %v4088 = vpack.c.b16 %v4028, %v4024
      %v4089 = vpack.c.b16 %v4033, %v4029
      %v4090 = vpack.c.b16 %v4034, %v4030
      %v4091 = vpack.c.b16 %v4035, %v4031
      %v4092 = vpack.c.b16 %v4036, %v4032
      %v4150 = vsel %vm3738, %v3864, 0
      %v4153 = vsel %vm3738, %v3866, 0
      %4155 = vmatprep.subr.bf16.mxu0 %v4066
      %4156 = vmatpush1.bf16.msra.mxu0 %v4065
      %4157 = vmatprep.subr.bf16.mxu0 %v4062
      %4158 = vmatpush1.bf16.msra.mxu0 %v4061
      %4159 = vmatprep.subr.bf16.mxu0 %v4058
      %4160 = vmatpush1.bf16.msra.mxu0 %v4057
      %4161 = vmatprep.subr.bf16.mxu0 %v4054
      %4162 = vmatpush1.bf16.msra.mxu0 %v4053
      %4163 = vmatprep.subr.bf16.mxu0 %v4050
      %4164 = vmatpush1.bf16.msra.mxu0 %v4049
      %4165 = vmatprep.subr.bf16.mxu0 %v4046
      %4166 = vmatpush1.bf16.msra.mxu0 %v4045
      %4167 = vmatprep.subr.bf16.mxu0 %v4042
      %4168 = vmatpush1.bf16.msra.mxu0 %v4041
      %4169 = vmatprep.subr.bf16.mxu0 %v4038
      %4170 = vmatpush1.bf16.msra.mxu0 %v4037
      %4171 = vmatprep.subr.bf16.mxu0 0
      %4172 = vmatpush2.bf16.msra.mxu0 0
      %4173 = vmatprep.subr.bf16.mxu0 0
      %4174 = vmatpush2.bf16.msra.mxu0 0
      %4175 = vmatprep.subr.bf16.mxu0 %v4090
      %4176 = vmatpush2.bf16.msra.mxu0 %v4089
      %4177 = vmatprep.subr.bf16.mxu0 %v4086
      %4178 = vmatpush2.bf16.msra.mxu0 %v4085
      %4179 = vmatprep.subr.bf16.mxu0 %v4082
      %4180 = vmatpush2.bf16.msra.mxu0 %v4081
      %4181 = vmatprep.subr.bf16.mxu0 %v4078
      %4182 = vmatpush2.bf16.msra.mxu0 %v4077
      %4183 = vmatprep.subr.bf16.mxu0 %v4074
      %4184 = vmatpush2.bf16.msra.mxu0 %v4073
      %4185 = vmatprep.subr.bf16.mxu0 %v4070
      %4186 = vmatpush2.bf16.msra.mxu0 %v4069
      %4187 = vmatprep.mubr.bf16.mxu0 %v4150
      %4188 = vmatmul.mubr.bf16.gmra.mxu0 %v3863
      %v4189 = vpop.f32.mrf.mxu0
      %v4190 = vadd.f32 %v3780, %v4189
      %v4191 = vpop.f32.mrf.mxu0
      %v4192 = vadd.f32 %v3782, %v4191
      %v4193 = vpop.f32.mrf.mxu0
      %v4194 = vadd.f32 %v3784, %v4193
      %v4195 = vpop.f32.mrf.mxu0
      %v4196 = vadd.f32 %v3786, %v4195
      %4197 = vmatprep.mubr.bf16.mxu0 %v4153
      %4198 = vmatmul.mubr.bf16.gmra.mxu0 %v3865
      %v4199 = vpop.f32.mrf.mxu0
      %v4200 = vadd.f32 %v3790, %v4199
      %v4201 = vpop.f32.mrf.mxu0
      %v4202 = vadd.f32 %v3792, %v4201
      %v4203 = vpop.f32.mrf.mxu0
      %v4204 = vadd.f32 %v3794, %v4203
      %v4205 = vpop.f32.mrf.mxu0
      %v4206 = vadd.f32 %v3796, %v4205
      %4207 = vdwg.mxu0
      %4208 = vmatprep.subr.bf16.mxu0 %v4068
      %4209 = vmatpush1.bf16.msra.mxu0 %v4067
      %4210 = vmatprep.subr.bf16.mxu0 %v4064
      %4211 = vmatpush1.bf16.msra.mxu0 %v4063
      %4212 = vmatprep.subr.bf16.mxu0 %v4060
      %4213 = vmatpush1.bf16.msra.mxu0 %v4059
      %4214 = vmatprep.subr.bf16.mxu0 %v4056
      %4215 = vmatpush1.bf16.msra.mxu0 %v4055
      %4216 = vmatprep.subr.bf16.mxu0 %v4052
      %4217 = vmatpush1.bf16.msra.mxu0 %v4051
      %4218 = vmatprep.subr.bf16.mxu0 %v4048
      %4219 = vmatpush1.bf16.msra.mxu0 %v4047
      %4220 = vmatprep.subr.bf16.mxu0 %v4044
      %4221 = vmatpush1.bf16.msra.mxu0 %v4043
      %4222 = vmatprep.subr.bf16.mxu0 %v4040
      %4223 = vmatpush1.bf16.msra.mxu0 %v4039
      %4224 = vmatprep.subr.bf16.mxu0 0
      %4225 = vmatpush2.bf16.msra.mxu0 0
      %4226 = vmatprep.subr.bf16.mxu0 0
      %4227 = vmatpush2.bf16.msra.mxu0 0
      %4228 = vmatprep.subr.bf16.mxu0 %v4092
      %4229 = vmatpush2.bf16.msra.mxu0 %v4091
      %4230 = vmatprep.subr.bf16.mxu0 %v4088
      %4231 = vmatpush2.bf16.msra.mxu0 %v4087
      %4232 = vmatprep.subr.bf16.mxu0 %v4084
      %4233 = vmatpush2.bf16.msra.mxu0 %v4083
      %4234 = vmatprep.subr.bf16.mxu0 %v4080
      %4235 = vmatpush2.bf16.msra.mxu0 %v4079
      %4236 = vmatprep.subr.bf16.mxu0 %v4076
      %4237 = vmatpush2.bf16.msra.mxu0 %v4075
      %4238 = vmatprep.subr.bf16.mxu0 %v4072
      %4239 = vmatpush2.bf16.msra.mxu0 %v4071
      %4240 = vmatprep.mubr.bf16.mxu0 %v4150
      %4241 = vmatmul.mubr.bf16.gmra.mxu0 %v3863
      %v4242 = vpop.f32.mrf.mxu0
      %v4243 = vadd.f32 %v3833, %v4242
      %v4244 = vpop.f32.mrf.mxu0
      %v4245 = vadd.f32 %v3835, %v4244
      %v4246 = vpop.f32.mrf.mxu0
      %v4247 = vadd.f32 %v3837, %v4246
      %v4248 = vpop.f32.mrf.mxu0
      %v4249 = vadd.f32 %v3839, %v4248
      %4250 = vmatprep.mubr.bf16.mxu0 %v4153
      %4251 = vmatmul.mubr.bf16.gmra.mxu0 %v3865
      %v4252 = vpop.f32.mrf.mxu0
      %v4253 = vadd.f32 %v3843, %v4252
      %v4254 = vpop.f32.mrf.mxu0
      %v4255 = vadd.f32 %v3845, %v4254
      %v4256 = vpop.f32.mrf.mxu0
      %v4257 = vadd.f32 %v3847, %v4256
      %v4258 = vpop.f32.mrf.mxu0
      %v4259 = vadd.f32 %v3849, %v4258
      %4260 = vdwg.mxu0
      %v4263 = vunpack.c.l.b16 %v3438
      %v4264 = vunpack.c.h.b16 %v3438
      %v4265 = vunpack.c.l.b16 %v3439
      %v4266 = vunpack.c.h.b16 %v3439
      %v4267 = vpack.c.b16 %v3857, %v4263
      %v4268 = vpack.c.b16 %v3858, %v4264
      %v4269 = vpack.c.b16 %v4265, %v3859
      %v4270 = vpack.c.b16 %v4266, %v3860
      %v4271 = vrot.slane %v4267, 2
      %v4272 = vrot.slane %v4269, 2
      %v4273 = vsel %vm1031, %v4271, %v4272
      %v4274 = vrot.slane %v4268, 2
      %v4275 = vrot.slane %v4270, 2
      %v4276 = vsel %vm1031, %v4274, %v4275
      %v4280 = vsel %vm3738, %v4276, 0
      %v4283 = vsel %vm3738, %v4275, 0
      %4285 = vmatprep.subr.bf16.mxu0 %v3655
      %4286 = vmatpush1.bf16.msra.mxu0 %v3654
      %4287 = vmatprep.subr.bf16.mxu0 %v3651
      %4288 = vmatpush1.bf16.msra.mxu0 %v3650
      %4289 = vmatprep.subr.bf16.mxu0 %v3647
      %4290 = vmatpush1.bf16.msra.mxu0 %v3646
      %4291 = vmatprep.subr.bf16.mxu0 %v3643
      %4292 = vmatpush1.bf16.msra.mxu0 %v3642
      %4293 = vmatprep.subr.bf16.mxu0 %v3639
      %4294 = vmatpush1.bf16.msra.mxu0 %v3638
      %4295 = vmatprep.subr.bf16.mxu0 %v3635
      %4296 = vmatpush1.bf16.msra.mxu0 %v3634
      %4297 = vmatprep.subr.bf16.mxu0 %v3631
      %4298 = vmatpush1.bf16.msra.mxu0 %v3630
      %4299 = vmatprep.subr.bf16.mxu0 %v3627
      %4300 = vmatpush1.bf16.msra.mxu0 %v3626
      %4301 = vmatprep.subr.bf16.mxu0 0
      %4302 = vmatpush2.bf16.msra.mxu0 0
      %4303 = vmatprep.subr.bf16.mxu0 0
      %4304 = vmatpush2.bf16.msra.mxu0 0
      %4305 = vmatprep.subr.bf16.mxu0 %v3679
      %4306 = vmatpush2.bf16.msra.mxu0 %v3678
      %4307 = vmatprep.subr.bf16.mxu0 %v3675
      %4308 = vmatpush2.bf16.msra.mxu0 %v3674
      %4309 = vmatprep.subr.bf16.mxu0 %v3671
      %4310 = vmatpush2.bf16.msra.mxu0 %v3670
      %4311 = vmatprep.subr.bf16.mxu0 %v3667
      %4312 = vmatpush2.bf16.msra.mxu0 %v3666
      %4313 = vmatprep.subr.bf16.mxu0 %v3663
      %4314 = vmatpush2.bf16.msra.mxu0 %v3662
      %4315 = vmatprep.subr.bf16.mxu0 %v3659
      %4316 = vmatpush2.bf16.msra.mxu0 %v3658
      %4317 = vmatprep.mubr.bf16.mxu0 %v4280
      %4318 = vmatmul.mubr.bf16.gmra.mxu0 %v4273
      %v4319 = vpop.f32.mrf.mxu0
      %v4320 = vadd.f32 0.0, %v4319
      %v4321 = vpop.f32.mrf.mxu0
      %v4322 = vadd.f32 0.0, %v4321
      %v4323 = vpop.f32.mrf.mxu0
      %v4324 = vadd.f32 0.0, %v4323
      %v4325 = vpop.f32.mrf.mxu0
      %v4326 = vadd.f32 0.0, %v4325
      %4327 = vmatprep.mubr.bf16.mxu0 %v4283
      %4328 = vmatmul.mubr.bf16.gmra.mxu0 %v4272
      %v4329 = vpop.f32.mrf.mxu0
      %v4330 = vadd.f32 0.0, %v4329
      %v4331 = vpop.f32.mrf.mxu0
      %v4332 = vadd.f32 0.0, %v4331
      %v4333 = vpop.f32.mrf.mxu0
      %v4334 = vadd.f32 0.0, %v4333
      %v4335 = vpop.f32.mrf.mxu0
      %v4336 = vadd.f32 0.0, %v4335
      %4337 = vdwg.mxu0
      %4338 = vmatprep.subr.bf16.mxu0 %v3657
      %4339 = vmatpush1.bf16.msra.mxu0 %v3656
      %4340 = vmatprep.subr.bf16.mxu0 %v3653
      %4341 = vmatpush1.bf16.msra.mxu0 %v3652
      %4342 = vmatprep.subr.bf16.mxu0 %v3649
      %4343 = vmatpush1.bf16.msra.mxu0 %v3648
      %4344 = vmatprep.subr.bf16.mxu0 %v3645
      %4345 = vmatpush1.bf16.msra.mxu0 %v3644
      %4346 = vmatprep.subr.bf16.mxu0 %v3641
      %4347 = vmatpush1.bf16.msra.mxu0 %v3640
      %4348 = vmatprep.subr.bf16.mxu0 %v3637
      %4349 = vmatpush1.bf16.msra.mxu0 %v3636
      %4350 = vmatprep.subr.bf16.mxu0 %v3633
      %4351 = vmatpush1.bf16.msra.mxu0 %v3632
      %4352 = vmatprep.subr.bf16.mxu0 %v3629
      %4353 = vmatpush1.bf16.msra.mxu0 %v3628
      %4354 = vmatprep.subr.bf16.mxu0 0
      %4355 = vmatpush2.bf16.msra.mxu0 0
      %4356 = vmatprep.subr.bf16.mxu0 0
      %4357 = vmatpush2.bf16.msra.mxu0 0
      %4358 = vmatprep.subr.bf16.mxu0 %v3681
      %4359 = vmatpush2.bf16.msra.mxu0 %v3680
      %4360 = vmatprep.subr.bf16.mxu0 %v3677
      %4361 = vmatpush2.bf16.msra.mxu0 %v3676
      %4362 = vmatprep.subr.bf16.mxu0 %v3673
      %4363 = vmatpush2.bf16.msra.mxu0 %v3672
      %4364 = vmatprep.subr.bf16.mxu0 %v3669
      %4365 = vmatpush2.bf16.msra.mxu0 %v3668
      %4366 = vmatprep.subr.bf16.mxu0 %v3665
      %4367 = vmatpush2.bf16.msra.mxu0 %v3664
      %4368 = vmatprep.subr.bf16.mxu0 %v3661
      %4369 = vmatpush2.bf16.msra.mxu0 %v3660
      %4370 = vmatprep.mubr.bf16.mxu0 %v4280
      %4371 = vmatmul.mubr.bf16.gmra.mxu0 %v4273
      %v4372 = vpop.f32.mrf.mxu0
      %v4373 = vadd.f32 0.0, %v4372
      %v4374 = vpop.f32.mrf.mxu0
      %v4375 = vadd.f32 0.0, %v4374
      %v4376 = vpop.f32.mrf.mxu0
      %v4377 = vadd.f32 0.0, %v4376
      %v4378 = vpop.f32.mrf.mxu0
      %v4379 = vadd.f32 0.0, %v4378
      %4380 = vmatprep.mubr.bf16.mxu0 %v4283
      %4381 = vmatmul.mubr.bf16.gmra.mxu0 %v4272
      %v4382 = vpop.f32.mrf.mxu0
      %v4383 = vadd.f32 0.0, %v4382
      %v4384 = vpop.f32.mrf.mxu0
      %v4385 = vadd.f32 0.0, %v4384
      %v4386 = vpop.f32.mrf.mxu0
      %v4387 = vadd.f32 0.0, %v4386
      %v4388 = vpop.f32.mrf.mxu0
      %v4389 = vadd.f32 0.0, %v4388
      %4390 = vdwg.mxu0
      %4391 = vmatprep.subr.bf16.mxu0 %v4066
      %4392 = vmatpush1.bf16.msra.mxu0 %v4065
      %4393 = vmatprep.subr.bf16.mxu0 %v4062
      %4394 = vmatpush1.bf16.msra.mxu0 %v4061
      %4395 = vmatprep.subr.bf16.mxu0 %v4058
      %4396 = vmatpush1.bf16.msra.mxu0 %v4057
      %4397 = vmatprep.subr.bf16.mxu0 %v4054
      %4398 = vmatpush1.bf16.msra.mxu0 %v4053
      %4399 = vmatprep.subr.bf16.mxu0 %v4050
      %4400 = vmatpush1.bf16.msra.mxu0 %v4049
      %4401 = vmatprep.subr.bf16.mxu0 %v4046
      %4402 = vmatpush1.bf16.msra.mxu0 %v4045
      %4403 = vmatprep.subr.bf16.mxu0 %v4042
      %4404 = vmatpush1.bf16.msra.mxu0 %v4041
      %4405 = vmatprep.subr.bf16.mxu0 %v4038
      %4406 = vmatpush1.bf16.msra.mxu0 %v4037
      %4407 = vmatprep.subr.bf16.mxu0 0
      %4408 = vmatpush2.bf16.msra.mxu0 0
      %4409 = vmatprep.subr.bf16.mxu0 0
      %4410 = vmatpush2.bf16.msra.mxu0 0
      %4411 = vmatprep.subr.bf16.mxu0 %v4090
      %4412 = vmatpush2.bf16.msra.mxu0 %v4089
      %4413 = vmatprep.subr.bf16.mxu0 %v4086
      %4414 = vmatpush2.bf16.msra.mxu0 %v4085
      %4415 = vmatprep.subr.bf16.mxu0 %v4082
      %4416 = vmatpush2.bf16.msra.mxu0 %v4081
      %4417 = vmatprep.subr.bf16.mxu0 %v4078
      %4418 = vmatpush2.bf16.msra.mxu0 %v4077
      %4419 = vmatprep.subr.bf16.mxu0 %v4074
      %4420 = vmatpush2.bf16.msra.mxu0 %v4073
      %4421 = vmatprep.subr.bf16.mxu0 %v4070
      %4422 = vmatpush2.bf16.msra.mxu0 %v4069
      %4423 = vmatprep.mubr.bf16.mxu0 %v3740
      %4424 = vmatmul.mubr.bf16.gmra.mxu0 %v3452
      %v4425 = vpop.f32.mrf.mxu0
      %v4426 = vadd.f32 %v4320, %v4425
      %v4427 = vpop.f32.mrf.mxu0
      %v4428 = vadd.f32 %v4322, %v4427
      %v4429 = vpop.f32.mrf.mxu0
      %v4430 = vadd.f32 %v4324, %v4429
      %v4431 = vpop.f32.mrf.mxu0
      %v4432 = vadd.f32 %v4326, %v4431
      %4433 = vmatprep.mubr.bf16.mxu0 %v3743
      %4434 = vmatmul.mubr.bf16.gmra.mxu0 %v3454
      %v4435 = vpop.f32.mrf.mxu0
      %v4436 = vadd.f32 %v4330, %v4435
      %v4437 = vpop.f32.mrf.mxu0
      %v4438 = vadd.f32 %v4332, %v4437
      %v4439 = vpop.f32.mrf.mxu0
      %v4440 = vadd.f32 %v4334, %v4439
      %v4441 = vpop.f32.mrf.mxu0
      %v4442 = vadd.f32 %v4336, %v4441
      %4443 = vdwg.mxu0
      %4444 = vmatprep.subr.bf16.mxu0 %v4068
      %4445 = vmatpush1.bf16.msra.mxu0 %v4067
      %4446 = vmatprep.subr.bf16.mxu0 %v4064
      %4447 = vmatpush1.bf16.msra.mxu0 %v4063
      %4448 = vmatprep.subr.bf16.mxu0 %v4060
      %4449 = vmatpush1.bf16.msra.mxu0 %v4059
      %4450 = vmatprep.subr.bf16.mxu0 %v4056
      %4451 = vmatpush1.bf16.msra.mxu0 %v4055
      %4452 = vmatprep.subr.bf16.mxu0 %v4052
      %4453 = vmatpush1.bf16.msra.mxu0 %v4051
      %4454 = vmatprep.subr.bf16.mxu0 %v4048
      %4455 = vmatpush1.bf16.msra.mxu0 %v4047
      %4456 = vmatprep.subr.bf16.mxu0 %v4044
      %4457 = vmatpush1.bf16.msra.mxu0 %v4043
      %4458 = vmatprep.subr.bf16.mxu0 %v4040
      %4459 = vmatpush1.bf16.msra.mxu0 %v4039
      %4460 = vmatprep.subr.bf16.mxu0 0
      %4461 = vmatpush2.bf16.msra.mxu0 0
      %4462 = vmatprep.subr.bf16.mxu0 0
      %4463 = vmatpush2.bf16.msra.mxu0 0
      %4464 = vmatprep.subr.bf16.mxu0 %v4092
      %4465 = vmatpush2.bf16.msra.mxu0 %v4091
      %4466 = vmatprep.subr.bf16.mxu0 %v4088
      %4467 = vmatpush2.bf16.msra.mxu0 %v4087
      %4468 = vmatprep.subr.bf16.mxu0 %v4084
      %4469 = vmatpush2.bf16.msra.mxu0 %v4083
      %4470 = vmatprep.subr.bf16.mxu0 %v4080
      %4471 = vmatpush2.bf16.msra.mxu0 %v4079
      %4472 = vmatprep.subr.bf16.mxu0 %v4076
      %4473 = vmatpush2.bf16.msra.mxu0 %v4075
      %4474 = vmatprep.subr.bf16.mxu0 %v4072
      %4475 = vmatpush2.bf16.msra.mxu0 %v4071
      %4476 = vmatprep.mubr.bf16.mxu0 %v3740
      %4477 = vmatmul.mubr.bf16.gmra.mxu0 %v3452
      %v4478 = vpop.f32.mrf.mxu0
      %v4479 = vadd.f32 %v4373, %v4478
      %v4480 = vpop.f32.mrf.mxu0
      %v4481 = vadd.f32 %v4375, %v4480
      %v4482 = vpop.f32.mrf.mxu0
      %v4483 = vadd.f32 %v4377, %v4482
      %v4484 = vpop.f32.mrf.mxu0
      %v4485 = vadd.f32 %v4379, %v4484
      %4486 = vmatprep.mubr.bf16.mxu0 %v3743
      %4487 = vmatmul.mubr.bf16.gmra.mxu0 %v3454
      %v4488 = vpop.f32.mrf.mxu0
      %v4489 = vadd.f32 %v4383, %v4488
      %v4490 = vpop.f32.mrf.mxu0
      %v4491 = vadd.f32 %v4385, %v4490
      %v4492 = vpop.f32.mrf.mxu0
      %v4493 = vadd.f32 %v4387, %v4492
      %v4494 = vpop.f32.mrf.mxu0
      %v4495 = vadd.f32 %v4389, %v4494
      %4496 = vdwg.mxu0
      %s4497 = scalar_lea.vmem %s3, 896
      %v4498 = vld [vmem:[%s4497] sm:$0xff]
      %v4499 = vld [vmem:[%s4497 + $0x8] sm:$0xff]
      %v4500 = vld [vmem:[%s4497 + $0x10] sm:$0xff]
      %v4501 = vld [vmem:[%s4497 + $0x18] sm:$0xff]
      %v4502 = vld [vmem:[%s4497 + $0x20] sm:$0xff]
      %v4503 = vld [vmem:[%s4497 + $0x28] sm:$0xff]
      %v4504 = vld [vmem:[%s4497 + $0x30] sm:$0xff]
      %v4505 = vld [vmem:[%s4497 + $0x38] sm:$0xff]
      %v4506 = vld [vmem:[%s4497 + $0x40] sm:$0xff]
      %v4507 = vld [vmem:[%s4497 + $0x48] sm:$0xff]
      %v4508 = vld [vmem:[%s4497 + $0x50] sm:$0xff]
      %v4509 = vld [vmem:[%s4497 + $0x58] sm:$0xff]
      %v4510 = vld [vmem:[%s4497 + $0x60] sm:$0xff]
      %v4511 = vld [vmem:[%s4497 + $0x68] sm:$0xff]
      %v4512 = vld [vmem:[%s4497 + $0x70] sm:$0xff]
      %v4513 = vld [vmem:[%s4497 + $0x78] sm:$0xff]
      %v4514 = vld [vmem:[%s4497 + $0x80] sm:$0xff]
      %v4515 = vld [vmem:[%s4497 + $0x88] sm:$0xff]
      %v4516 = vld [vmem:[%s4497 + $0x90] sm:$0xff]
      %v4517 = vld [vmem:[%s4497 + $0x98] sm:$0xff]
      %v4518 = vld [vmem:[%s4497 + $0xa0] sm:$0xff]
      %v4519 = vld [vmem:[%s4497 + $0xa8] sm:$0xff]
      %v4520 = vld [vmem:[%s4497 + $0xb0] sm:$0xff]
      %v4521 = vld [vmem:[%s4497 + $0xb8] sm:$0xff]
      %v4522 = vld [vmem:[%s4497 + $0xc0] sm:$0xff]
      %v4523 = vld [vmem:[%s4497 + $0xc8] sm:$0xff]
      %v4524 = vld [vmem:[%s4497 + $0xd0] sm:$0xff]
      %v4525 = vld [vmem:[%s4497 + $0xd8] sm:$0xff]
      %v4526 = vld [vmem:[%s4497 + $0xe0] sm:$0xff]
      %v4527 = vld [vmem:[%s4497 + $0xe8] sm:$0xff]
      %v4528 = vld [vmem:[%s4497 + $0xf0] sm:$0xff]
      %v4529 = vld [vmem:[%s4497 + $0xf8] sm:$0xff]
      %v4530 = vld [vmem:[%s4497 + $0x100] sm:$0xff]
      %v4531 = vld [vmem:[%s4497 + $0x108] sm:$0xff]
      %v4532 = vld [vmem:[%s4497 + $0x110] sm:$0xff]
      %v4533 = vld [vmem:[%s4497 + $0x118] sm:$0xff]
      %v4534 = vld [vmem:[%s4497 + $0x120] sm:$0xff]
      %v4535 = vld [vmem:[%s4497 + $0x128] sm:$0xff]
      %v4536 = vld [vmem:[%s4497 + $0x130] sm:$0xff]
      %v4537 = vld [vmem:[%s4497 + $0x138] sm:$0xff]
      %v4538 = vld [vmem:[%s4497 + $0x140] sm:$0xff]
      %v4539 = vld [vmem:[%s4497 + $0x148] sm:$0xff]
      %v4540 = vld [vmem:[%s4497 + $0x150] sm:$0xff]
      %v4541 = vld [vmem:[%s4497 + $0x158] sm:$0xff]
      %v4542 = vld [vmem:[%s4497 + $0x160] sm:$0xff]
      %v4543 = vld [vmem:[%s4497 + $0x168] sm:$0xff]
      %v4544 = vld [vmem:[%s4497 + $0x170] sm:$0xff]
      %v4545 = vld [vmem:[%s4497 + $0x178] sm:$0xff]
      %v4546 = vld [vmem:[%s4497 + $0x180] sm:$0xff]
      %v4547 = vld [vmem:[%s4497 + $0x188] sm:$0xff]
      %v4548 = vld [vmem:[%s4497 + $0x190] sm:$0xff]
      %v4549 = vld [vmem:[%s4497 + $0x198] sm:$0xff]
      %v4550 = vld [vmem:[%s4497 + $0x1a0] sm:$0xff]
      %v4551 = vld [vmem:[%s4497 + $0x1a8] sm:$0xff]
      %v4552 = vld [vmem:[%s4497 + $0x1b0] sm:$0xff]
      %v4553 = vld [vmem:[%s4497 + $0x1b8] sm:$0xff]
      %v4554 = vld [vmem:[#allocation3] sm:$0xcc]
      %v4555 = vld [vmem:[#allocation3 + $0x18] sm:$0xff]
      %v4612 = vunpack.c.l.b16 %v4498
      %v4613 = vunpack.c.h.b16 %v4498
      %v4614 = vunpack.c.l.b16 %v4499
      %v4615 = vunpack.c.h.b16 %v4499
      %v4616 = vunpack.c.l.b16 %v4500
      %v4617 = vunpack.c.h.b16 %v4500
      %v4618 = vunpack.c.l.b16 %v4501
      %v4619 = vunpack.c.h.b16 %v4501
      %v4620 = vunpack.c.l.b16 %v4502
      %v4621 = vunpack.c.h.b16 %v4502
      %v4622 = vunpack.c.l.b16 %v4503
      %v4623 = vunpack.c.h.b16 %v4503
      %v4624 = vunpack.c.l.b16 %v4504
      %v4625 = vunpack.c.h.b16 %v4504
      %v4626 = vunpack.c.l.b16 %v4505
      %v4627 = vunpack.c.h.b16 %v4505
      %v4628 = vunpack.c.l.b16 %v4506
      %v4629 = vunpack.c.h.b16 %v4506
      %v4630 = vunpack.c.l.b16 %v4507
      %v4631 = vunpack.c.h.b16 %v4507
      %v4632 = vunpack.c.l.b16 %v4508
      %v4633 = vunpack.c.h.b16 %v4508
      %v4634 = vunpack.c.l.b16 %v4509
      %v4635 = vunpack.c.h.b16 %v4509
      %v4636 = vunpack.c.l.b16 %v4510
      %v4637 = vunpack.c.h.b16 %v4510
      %v4638 = vunpack.c.l.b16 %v4511
      %v4639 = vunpack.c.h.b16 %v4511
      %v4640 = vunpack.c.l.b16 %v4512
      %v4641 = vunpack.c.h.b16 %v4512
      %v4642 = vunpack.c.l.b16 %v4513
      %v4643 = vunpack.c.h.b16 %v4513
      %v4644 = vunpack.c.l.b16 %v4514
      %v4645 = vunpack.c.h.b16 %v4514
      %v4646 = vunpack.c.l.b16 %v4515
      %v4647 = vunpack.c.h.b16 %v4515
      %v4648 = vunpack.c.l.b16 %v4516
      %v4649 = vunpack.c.h.b16 %v4516
      %v4650 = vunpack.c.l.b16 %v4517
      %v4651 = vunpack.c.h.b16 %v4517
      %v4652 = vunpack.c.l.b16 %v4518
      %v4653 = vunpack.c.h.b16 %v4518
      %v4654 = vunpack.c.l.b16 %v4519
      %v4655 = vunpack.c.h.b16 %v4519
      %v4656 = vunpack.c.l.b16 %v4520
      %v4657 = vunpack.c.h.b16 %v4520
      %v4658 = vunpack.c.l.b16 %v4521
      %v4659 = vunpack.c.h.b16 %v4521
      %v4660 = vunpack.c.l.b16 %v4522
      %v4661 = vunpack.c.h.b16 %v4522
      %v4662 = vunpack.c.l.b16 %v4523
      %v4663 = vunpack.c.h.b16 %v4523
      %v4664 = vunpack.c.l.b16 %v4524
      %v4665 = vunpack.c.h.b16 %v4524
      %v4666 = vunpack.c.l.b16 %v4525
      %v4667 = vunpack.c.h.b16 %v4525
      %v4668 = vunpack.c.l.b16 %v4526
      %v4669 = vunpack.c.h.b16 %v4526
      %v4670 = vunpack.c.l.b16 %v4527
      %v4671 = vunpack.c.h.b16 %v4527
      %v4672 = vunpack.c.l.b16 %v4528
      %v4673 = vunpack.c.h.b16 %v4528
      %v4674 = vunpack.c.l.b16 %v4529
      %v4675 = vunpack.c.h.b16 %v4529
      %v4676 = vunpack.c.l.b16 %v4530
      %v4677 = vunpack.c.h.b16 %v4530
      %v4678 = vunpack.c.l.b16 %v4531
      %v4679 = vunpack.c.h.b16 %v4531
      %v4680 = vunpack.c.l.b16 %v4532
      %v4681 = vunpack.c.h.b16 %v4532
      %v4682 = vunpack.c.l.b16 %v4533
      %v4683 = vunpack.c.h.b16 %v4533
      %v4684 = vunpack.c.l.b16 %v4534
      %v4685 = vunpack.c.h.b16 %v4534
      %v4686 = vunpack.c.l.b16 %v4535
      %v4687 = vunpack.c.h.b16 %v4535
      %v4688 = vunpack.c.l.b16 %v4536
      %v4689 = vunpack.c.h.b16 %v4536
      %v4690 = vunpack.c.l.b16 %v4537
      %v4691 = vunpack.c.h.b16 %v4537
      %v4692 = vunpack.c.l.b16 %v4538
      %v4693 = vunpack.c.h.b16 %v4538
      %v4694 = vunpack.c.l.b16 %v4539
      %v4695 = vunpack.c.h.b16 %v4539
      %v4696 = vunpack.c.l.b16 %v4540
      %v4697 = vunpack.c.h.b16 %v4540
      %v4698 = vunpack.c.l.b16 %v4541
      %v4699 = vunpack.c.h.b16 %v4541
      %v4700 = vunpack.c.l.b16 %v4542
      %v4701 = vunpack.c.h.b16 %v4542
      %v4702 = vunpack.c.l.b16 %v4543
      %v4703 = vunpack.c.h.b16 %v4543
      %v4704 = vunpack.c.l.b16 %v4544
      %v4705 = vunpack.c.h.b16 %v4544
      %v4706 = vunpack.c.l.b16 %v4545
      %v4707 = vunpack.c.h.b16 %v4545
      %v4708 = vunpack.c.l.b16 %v4546
      %v4709 = vunpack.c.h.b16 %v4546
      %v4710 = vunpack.c.l.b16 %v4547
      %v4711 = vunpack.c.h.b16 %v4547
      %v4712 = vunpack.c.l.b16 %v4548
      %v4713 = vunpack.c.h.b16 %v4548
      %v4714 = vunpack.c.l.b16 %v4549
      %v4715 = vunpack.c.h.b16 %v4549
      %v4716 = vunpack.c.l.b16 %v4550
      %v4717 = vunpack.c.h.b16 %v4550
      %v4718 = vunpack.c.l.b16 %v4551
      %v4719 = vunpack.c.h.b16 %v4551
      %v4720 = vunpack.c.l.b16 %v4552
      %v4721 = vunpack.c.h.b16 %v4552
      %v4722 = vunpack.c.l.b16 %v4553
      %v4723 = vunpack.c.h.b16 %v4553
      %v4724 = vpack.c.b16 %v4616, %v4612
      %v4725 = vpack.c.b16 %v4617, %v4613
      %v4726 = vpack.c.b16 %v4618, %v4614
      %v4727 = vpack.c.b16 %v4619, %v4615
      %v4728 = vpack.c.b16 %v4624, %v4620
      %v4729 = vpack.c.b16 %v4625, %v4621
      %v4730 = vpack.c.b16 %v4626, %v4622
      %v4731 = vpack.c.b16 %v4627, %v4623
      %v4732 = vpack.c.b16 %v4632, %v4628
      %v4733 = vpack.c.b16 %v4633, %v4629
      %v4734 = vpack.c.b16 %v4634, %v4630
      %v4735 = vpack.c.b16 %v4635, %v4631
      %v4736 = vpack.c.b16 %v4640, %v4636
      %v4737 = vpack.c.b16 %v4641, %v4637
      %v4738 = vpack.c.b16 %v4642, %v4638
      %v4739 = vpack.c.b16 %v4643, %v4639
      %v4740 = vpack.c.b16 %v4648, %v4644
      %v4741 = vpack.c.b16 %v4649, %v4645
      %v4742 = vpack.c.b16 %v4650, %v4646
      %v4743 = vpack.c.b16 %v4651, %v4647
      %v4744 = vpack.c.b16 %v4656, %v4652
      %v4745 = vpack.c.b16 %v4657, %v4653
      %v4746 = vpack.c.b16 %v4658, %v4654
      %v4747 = vpack.c.b16 %v4659, %v4655
      %v4748 = vpack.c.b16 %v4664, %v4660
      %v4749 = vpack.c.b16 %v4665, %v4661
      %v4750 = vpack.c.b16 %v4666, %v4662
      %v4751 = vpack.c.b16 %v4667, %v4663
      %v4752 = vpack.c.b16 %v4672, %v4668
      %v4753 = vpack.c.b16 %v4673, %v4669
      %v4754 = vpack.c.b16 %v4674, %v4670
      %v4755 = vpack.c.b16 %v4675, %v4671
      %v4756 = vpack.c.b16 %v4680, %v4676
      %v4757 = vpack.c.b16 %v4681, %v4677
      %v4758 = vpack.c.b16 %v4682, %v4678
      %v4759 = vpack.c.b16 %v4683, %v4679
      %v4760 = vpack.c.b16 %v4688, %v4684
      %v4761 = vpack.c.b16 %v4689, %v4685
      %v4762 = vpack.c.b16 %v4690, %v4686
      %v4763 = vpack.c.b16 %v4691, %v4687
      %v4764 = vpack.c.b16 %v4696, %v4692
      %v4765 = vpack.c.b16 %v4697, %v4693
      %v4766 = vpack.c.b16 %v4698, %v4694
      %v4767 = vpack.c.b16 %v4699, %v4695
      %v4768 = vpack.c.b16 %v4704, %v4700
      %v4769 = vpack.c.b16 %v4705, %v4701
      %v4770 = vpack.c.b16 %v4706, %v4702
      %v4771 = vpack.c.b16 %v4707, %v4703
      %v4772 = vpack.c.b16 %v4712, %v4708
      %v4773 = vpack.c.b16 %v4713, %v4709
      %v4774 = vpack.c.b16 %v4714, %v4710
      %v4775 = vpack.c.b16 %v4715, %v4711
      %v4776 = vpack.c.b16 %v4720, %v4716
      %v4777 = vpack.c.b16 %v4721, %v4717
      %v4778 = vpack.c.b16 %v4722, %v4718
      %v4779 = vpack.c.b16 %v4723, %v4719
      %4836 = vmatprep.subr.bf16.mxu0 %v4753
      %4837 = vmatpush1.bf16.msra.mxu0 %v4752
      %4838 = vmatprep.subr.bf16.mxu0 %v4749
      %4839 = vmatpush1.bf16.msra.mxu0 %v4748
      %4840 = vmatprep.subr.bf16.mxu0 %v4745
      %4841 = vmatpush1.bf16.msra.mxu0 %v4744
      %4842 = vmatprep.subr.bf16.mxu0 %v4741
      %4843 = vmatpush1.bf16.msra.mxu0 %v4740
      %4844 = vmatprep.subr.bf16.mxu0 %v4737
      %4845 = vmatpush1.bf16.msra.mxu0 %v4736
      %4846 = vmatprep.subr.bf16.mxu0 %v4733
      %4847 = vmatpush1.bf16.msra.mxu0 %v4732
      %4848 = vmatprep.subr.bf16.mxu0 %v4729
      %4849 = vmatpush1.bf16.msra.mxu0 %v4728
      %4850 = vmatprep.subr.bf16.mxu0 %v4725
      %4851 = vmatpush1.bf16.msra.mxu0 %v4724
      %4852 = vmatprep.subr.bf16.mxu0 0
      %4853 = vmatpush2.bf16.msra.mxu0 0
      %4854 = vmatprep.subr.bf16.mxu0 0
      %4855 = vmatpush2.bf16.msra.mxu0 0
      %4856 = vmatprep.subr.bf16.mxu0 %v4777
      %4857 = vmatpush2.bf16.msra.mxu0 %v4776
      %4858 = vmatprep.subr.bf16.mxu0 %v4773
      %4859 = vmatpush2.bf16.msra.mxu0 %v4772
      %4860 = vmatprep.subr.bf16.mxu0 %v4769
      %4861 = vmatpush2.bf16.msra.mxu0 %v4768
      %4862 = vmatprep.subr.bf16.mxu0 %v4765
      %4863 = vmatpush2.bf16.msra.mxu0 %v4764
      %4864 = vmatprep.subr.bf16.mxu0 %v4761
      %4865 = vmatpush2.bf16.msra.mxu0 %v4760
      %4866 = vmatprep.subr.bf16.mxu0 %v4757
      %4867 = vmatpush2.bf16.msra.mxu0 %v4756
      %4868 = vmatprep.mubr.bf16.mxu0 %v4280
      %4869 = vmatmul.mubr.bf16.gmra.mxu0 %v4273
      %v4870 = vpop.f32.mrf.mxu0
      %v4871 = vadd.f32 0.0, %v4870
      %v4872 = vpop.f32.mrf.mxu0
      %v4873 = vadd.f32 0.0, %v4872
      %v4874 = vpop.f32.mrf.mxu0
      %v4875 = vadd.f32 0.0, %v4874
      %v4876 = vpop.f32.mrf.mxu0
      %v4877 = vadd.f32 0.0, %v4876
      %4878 = vmatprep.mubr.bf16.mxu0 %v4283
      %4879 = vmatmul.mubr.bf16.gmra.mxu0 %v4272
      %v4880 = vpop.f32.mrf.mxu0
      %v4881 = vadd.f32 0.0, %v4880
      %v4882 = vpop.f32.mrf.mxu0
      %v4883 = vadd.f32 0.0, %v4882
      %v4884 = vpop.f32.mrf.mxu0
      %v4885 = vadd.f32 0.0, %v4884
      %v4886 = vpop.f32.mrf.mxu0
      %v4887 = vadd.f32 0.0, %v4886
      %4888 = vdwg.mxu0
      %4889 = vmatprep.subr.bf16.mxu0 %v4755
      %4890 = vmatpush1.bf16.msra.mxu0 %v4754
      %4891 = vmatprep.subr.bf16.mxu0 %v4751
      %4892 = vmatpush1.bf16.msra.mxu0 %v4750
      %4893 = vmatprep.subr.bf16.mxu0 %v4747
      %4894 = vmatpush1.bf16.msra.mxu0 %v4746
      %4895 = vmatprep.subr.bf16.mxu0 %v4743
      %4896 = vmatpush1.bf16.msra.mxu0 %v4742
      %4897 = vmatprep.subr.bf16.mxu0 %v4739
      %4898 = vmatpush1.bf16.msra.mxu0 %v4738
      %4899 = vmatprep.subr.bf16.mxu0 %v4735
      %4900 = vmatpush1.bf16.msra.mxu0 %v4734
      %4901 = vmatprep.subr.bf16.mxu0 %v4731
      %4902 = vmatpush1.bf16.msra.mxu0 %v4730
      %4903 = vmatprep.subr.bf16.mxu0 %v4727
      %4904 = vmatpush1.bf16.msra.mxu0 %v4726
      %4905 = vmatprep.subr.bf16.mxu0 0
      %4906 = vmatpush2.bf16.msra.mxu0 0
      %4907 = vmatprep.subr.bf16.mxu0 0
      %4908 = vmatpush2.bf16.msra.mxu0 0
      %4909 = vmatprep.subr.bf16.mxu0 %v4779
      %4910 = vmatpush2.bf16.msra.mxu0 %v4778
      %4911 = vmatprep.subr.bf16.mxu0 %v4775
      %4912 = vmatpush2.bf16.msra.mxu0 %v4774
      %4913 = vmatprep.subr.bf16.mxu0 %v4771
      %4914 = vmatpush2.bf16.msra.mxu0 %v4770
      %4915 = vmatprep.subr.bf16.mxu0 %v4767
      %4916 = vmatpush2.bf16.msra.mxu0 %v4766
      %4917 = vmatprep.subr.bf16.mxu0 %v4763
      %4918 = vmatpush2.bf16.msra.mxu0 %v4762
      %4919 = vmatprep.subr.bf16.mxu0 %v4759
      %4920 = vmatpush2.bf16.msra.mxu0 %v4758
      %4921 = vmatprep.mubr.bf16.mxu0 %v4280
      %4922 = vmatmul.mubr.bf16.gmra.mxu0 %v4273
      %v4923 = vpop.f32.mrf.mxu0
      %v4924 = vadd.f32 0.0, %v4923
      %v4925 = vpop.f32.mrf.mxu0
      %v4926 = vadd.f32 0.0, %v4925
      %v4927 = vpop.f32.mrf.mxu0
      %v4928 = vadd.f32 0.0, %v4927
      %v4929 = vpop.f32.mrf.mxu0
      %v4930 = vadd.f32 0.0, %v4929
      %4931 = vmatprep.mubr.bf16.mxu0 %v4283
      %4932 = vmatmul.mubr.bf16.gmra.mxu0 %v4272
      %v4933 = vpop.f32.mrf.mxu0
      %v4934 = vadd.f32 0.0, %v4933
      %v4935 = vpop.f32.mrf.mxu0
      %v4936 = vadd.f32 0.0, %v4935
      %v4937 = vpop.f32.mrf.mxu0
      %v4938 = vadd.f32 0.0, %v4937
      %v4939 = vpop.f32.mrf.mxu0
      %v4940 = vadd.f32 0.0, %v4939
      %4941 = vdwg.mxu0
      %v4942 = vadd.f32 %v4190, %v4871
      %v4943 = vadd.f32 %v4192, %v4873
      %v4944 = vadd.f32 %v4243, %v4924
      %v4945 = vadd.f32 %v4245, %v4926
      %v4946 = vadd.f32 %v4194, %v4875
      %v4947 = vadd.f32 %v4196, %v4877
      %v4948 = vadd.f32 %v4247, %v4928
      %v4949 = vadd.f32 %v4249, %v4930
      %v4950 = vadd.f32 %v4200, %v4881
      %v4951 = vadd.f32 %v4202, %v4883
      %v4952 = vadd.f32 %v4253, %v4934
      %v4953 = vadd.f32 %v4255, %v4936
      %v4954 = vadd.f32 %v4204, %v4885
      %v4955 = vadd.f32 %v4206, %v4887
      %v4956 = vadd.f32 %v4257, %v4938
      %v4957 = vadd.f32 %v4259, %v4940
      %v4960 = vunpack.c.l.b16 %v4554
      %v4961 = vunpack.c.h.b16 %v4554
      %v4962 = vunpack.c.l.b16 %v4555
      %v4963 = vunpack.c.h.b16 %v4555
      %v4964 = vpack.c.b16 %v3446, %v4960
      %v4965 = vpack.c.b16 %v3447, %v4961
      %v4966 = vpack.c.b16 %v4962, %v3448
      %v4967 = vpack.c.b16 %v4963, %v3449
      %v4968 = vrot.slane %v4964, 2
      %v4969 = vrot.slane %v4966, 2
      %v4970 = vsel %vm1031, %v4968, %v4969
      %v4971 = vrot.slane %v4965, 2
      %v4972 = vrot.slane %v4967, 2
      %v4973 = vsel %vm1031, %v4971, %v4972
      %v4977 = vsel %vm3738, %v4973, 0
      %v4980 = vsel %vm3738, %v4972, 0
      %4982 = vmatprep.subr.bf16.mxu0 %v4753
      %4983 = vmatpush1.bf16.msra.mxu0 %v4752
      %4984 = vmatprep.subr.bf16.mxu0 %v4749
      %4985 = vmatpush1.bf16.msra.mxu0 %v4748
      %4986 = vmatprep.subr.bf16.mxu0 %v4745
      %4987 = vmatpush1.bf16.msra.mxu0 %v4744
      %4988 = vmatprep.subr.bf16.mxu0 %v4741
      %4989 = vmatpush1.bf16.msra.mxu0 %v4740
      %4990 = vmatprep.subr.bf16.mxu0 %v4737
      %4991 = vmatpush1.bf16.msra.mxu0 %v4736
      %4992 = vmatprep.subr.bf16.mxu0 %v4733
      %4993 = vmatpush1.bf16.msra.mxu0 %v4732
      %4994 = vmatprep.subr.bf16.mxu0 %v4729
      %4995 = vmatpush1.bf16.msra.mxu0 %v4728
      %4996 = vmatprep.subr.bf16.mxu0 %v4725
      %4997 = vmatpush1.bf16.msra.mxu0 %v4724
      %4998 = vmatprep.subr.bf16.mxu0 0
      %4999 = vmatpush2.bf16.msra.mxu0 0
      %5000 = vmatprep.subr.bf16.mxu0 0
      %5001 = vmatpush2.bf16.msra.mxu0 0
      %5002 = vmatprep.subr.bf16.mxu0 %v4777
      %5003 = vmatpush2.bf16.msra.mxu0 %v4776
      %5004 = vmatprep.subr.bf16.mxu0 %v4773
      %5005 = vmatpush2.bf16.msra.mxu0 %v4772
      %5006 = vmatprep.subr.bf16.mxu0 %v4769
      %5007 = vmatpush2.bf16.msra.mxu0 %v4768
      %5008 = vmatprep.subr.bf16.mxu0 %v4765
      %5009 = vmatpush2.bf16.msra.mxu0 %v4764
      %5010 = vmatprep.subr.bf16.mxu0 %v4761
      %5011 = vmatpush2.bf16.msra.mxu0 %v4760
      %5012 = vmatprep.subr.bf16.mxu0 %v4757
      %5013 = vmatpush2.bf16.msra.mxu0 %v4756
      %5014 = vmatprep.mubr.bf16.mxu0 %v4977
      %5015 = vmatmul.mubr.bf16.gmra.mxu0 %v4970
      %v5016 = vpop.f32.mrf.mxu0
      %v5017 = vadd.f32 0.0, %v5016
      %v5018 = vpop.f32.mrf.mxu0
      %v5019 = vadd.f32 0.0, %v5018
      %v5020 = vpop.f32.mrf.mxu0
      %v5021 = vadd.f32 0.0, %v5020
      %v5022 = vpop.f32.mrf.mxu0
      %v5023 = vadd.f32 0.0, %v5022
      %5024 = vmatprep.mubr.bf16.mxu0 %v4980
      %5025 = vmatmul.mubr.bf16.gmra.mxu0 %v4969
      %v5026 = vpop.f32.mrf.mxu0
      %v5027 = vadd.f32 0.0, %v5026
      %v5028 = vpop.f32.mrf.mxu0
      %v5029 = vadd.f32 0.0, %v5028
      %v5030 = vpop.f32.mrf.mxu0
      %v5031 = vadd.f32 0.0, %v5030
      %v5032 = vpop.f32.mrf.mxu0
      %v5033 = vadd.f32 0.0, %v5032
      %5034 = vdwg.mxu0
      %5035 = vmatprep.subr.bf16.mxu0 %v4755
      %5036 = vmatpush1.bf16.msra.mxu0 %v4754
      %5037 = vmatprep.subr.bf16.mxu0 %v4751
      %5038 = vmatpush1.bf16.msra.mxu0 %v4750
      %5039 = vmatprep.subr.bf16.mxu0 %v4747
      %5040 = vmatpush1.bf16.msra.mxu0 %v4746
      %5041 = vmatprep.subr.bf16.mxu0 %v4743
      %5042 = vmatpush1.bf16.msra.mxu0 %v4742
      %5043 = vmatprep.subr.bf16.mxu0 %v4739
      %5044 = vmatpush1.bf16.msra.mxu0 %v4738
      %5045 = vmatprep.subr.bf16.mxu0 %v4735
      %5046 = vmatpush1.bf16.msra.mxu0 %v4734
      %5047 = vmatprep.subr.bf16.mxu0 %v4731
      %5048 = vmatpush1.bf16.msra.mxu0 %v4730
      %5049 = vmatprep.subr.bf16.mxu0 %v4727
      %5050 = vmatpush1.bf16.msra.mxu0 %v4726
      %5051 = vmatprep.subr.bf16.mxu0 0
      %5052 = vmatpush2.bf16.msra.mxu0 0
      %5053 = vmatprep.subr.bf16.mxu0 0
      %5054 = vmatpush2.bf16.msra.mxu0 0
      %5055 = vmatprep.subr.bf16.mxu0 %v4779
      %5056 = vmatpush2.bf16.msra.mxu0 %v4778
      %5057 = vmatprep.subr.bf16.mxu0 %v4775
      %5058 = vmatpush2.bf16.msra.mxu0 %v4774
      %5059 = vmatprep.subr.bf16.mxu0 %v4771
      %5060 = vmatpush2.bf16.msra.mxu0 %v4770
      %5061 = vmatprep.subr.bf16.mxu0 %v4767
      %5062 = vmatpush2.bf16.msra.mxu0 %v4766
      %5063 = vmatprep.subr.bf16.mxu0 %v4763
      %5064 = vmatpush2.bf16.msra.mxu0 %v4762
      %5065 = vmatprep.subr.bf16.mxu0 %v4759
      %5066 = vmatpush2.bf16.msra.mxu0 %v4758
      %5067 = vmatprep.mubr.bf16.mxu0 %v4977
      %5068 = vmatmul.mubr.bf16.gmra.mxu0 %v4970
      %v5069 = vpop.f32.mrf.mxu0
      %v5070 = vadd.f32 0.0, %v5069
      %v5071 = vpop.f32.mrf.mxu0
      %v5072 = vadd.f32 0.0, %v5071
      %v5073 = vpop.f32.mrf.mxu0
      %v5074 = vadd.f32 0.0, %v5073
      %v5075 = vpop.f32.mrf.mxu0
      %v5076 = vadd.f32 0.0, %v5075
      %5077 = vmatprep.mubr.bf16.mxu0 %v4980
      %5078 = vmatmul.mubr.bf16.gmra.mxu0 %v4969
      %v5079 = vpop.f32.mrf.mxu0
      %v5080 = vadd.f32 0.0, %v5079
      %v5081 = vpop.f32.mrf.mxu0
      %v5082 = vadd.f32 0.0, %v5081
      %v5083 = vpop.f32.mrf.mxu0
      %v5084 = vadd.f32 0.0, %v5083
      %v5085 = vpop.f32.mrf.mxu0
      %v5086 = vadd.f32 0.0, %v5085
      %5087 = vdwg.mxu0
      %v5088 = vadd.f32 %v4426, %v5017
      %v5089 = vadd.f32 %v4428, %v5019
      %v5090 = vadd.f32 %v4479, %v5070
      %v5091 = vadd.f32 %v4481, %v5072
      %v5092 = vadd.f32 %v4430, %v5021
      %v5093 = vadd.f32 %v4432, %v5023
      %v5094 = vadd.f32 %v4483, %v5074
      %v5095 = vadd.f32 %v4485, %v5076
      %v5096 = vadd.f32 %v4436, %v5027
      %v5097 = vadd.f32 %v4438, %v5029
      %v5098 = vadd.f32 %v4489, %v5080
      %v5099 = vadd.f32 %v4491, %v5082
      %v5100 = vadd.f32 %v4440, %v5031
      %v5101 = vadd.f32 %v4442, %v5033
      %v5102 = vadd.f32 %v4493, %v5084
      %v5103 = vadd.f32 %v4495, %v5086
      %s5104 = scalar_lea.vmem %s3, 1344
      %v5105 = vld [vmem:[%s5104] sm:$0xff]
      %v5106 = vld [vmem:[%s5104 + $0x8] sm:$0xff]
      %v5107 = vld [vmem:[%s5104 + $0x10] sm:$0xff]
      %v5108 = vld [vmem:[%s5104 + $0x18] sm:$0xff]
      %v5109 = vld [vmem:[%s5104 + $0x20] sm:$0xff]
      %v5110 = vld [vmem:[%s5104 + $0x28] sm:$0xff]
      %v5111 = vld [vmem:[%s5104 + $0x30] sm:$0xff]
      %v5112 = vld [vmem:[%s5104 + $0x38] sm:$0xff]
      %v5113 = vld [vmem:[%s5104 + $0x40] sm:$0xff]
      %v5114 = vld [vmem:[%s5104 + $0x48] sm:$0xff]
      %v5115 = vld [vmem:[%s5104 + $0x50] sm:$0xff]
      %v5116 = vld [vmem:[%s5104 + $0x58] sm:$0xff]
      %v5117 = vld [vmem:[%s5104 + $0x60] sm:$0xff]
      %v5118 = vld [vmem:[%s5104 + $0x68] sm:$0xff]
      %v5119 = vld [vmem:[%s5104 + $0x70] sm:$0xff]
      %v5120 = vld [vmem:[%s5104 + $0x78] sm:$0xff]
      %v5121 = vld [vmem:[%s5104 + $0x80] sm:$0xff]
      %v5122 = vld [vmem:[%s5104 + $0x88] sm:$0xff]
      %v5123 = vld [vmem:[%s5104 + $0x90] sm:$0xff]
      %v5124 = vld [vmem:[%s5104 + $0x98] sm:$0xff]
      %v5125 = vld [vmem:[%s5104 + $0xa0] sm:$0xff]
      %v5126 = vld [vmem:[%s5104 + $0xa8] sm:$0xff]
      %v5127 = vld [vmem:[%s5104 + $0xb0] sm:$0xff]
      %v5128 = vld [vmem:[%s5104 + $0xb8] sm:$0xff]
      %v5129 = vld [vmem:[%s5104 + $0xc0] sm:$0xff]
      %v5130 = vld [vmem:[%s5104 + $0xc8] sm:$0xff]
      %v5131 = vld [vmem:[%s5104 + $0xd0] sm:$0xff]
      %v5132 = vld [vmem:[%s5104 + $0xd8] sm:$0xff]
      %v5133 = vld [vmem:[%s5104 + $0xe0] sm:$0xff]
      %v5134 = vld [vmem:[%s5104 + $0xe8] sm:$0xff]
      %v5135 = vld [vmem:[%s5104 + $0xf0] sm:$0xff]
      %v5136 = vld [vmem:[%s5104 + $0xf8] sm:$0xff]
      %v5137 = vld [vmem:[%s5104 + $0x100] sm:$0xff]
      %v5138 = vld [vmem:[%s5104 + $0x108] sm:$0xff]
      %v5139 = vld [vmem:[%s5104 + $0x110] sm:$0xff]
      %v5140 = vld [vmem:[%s5104 + $0x118] sm:$0xff]
      %v5141 = vld [vmem:[%s5104 + $0x120] sm:$0xff]
      %v5142 = vld [vmem:[%s5104 + $0x128] sm:$0xff]
      %v5143 = vld [vmem:[%s5104 + $0x130] sm:$0xff]
      %v5144 = vld [vmem:[%s5104 + $0x138] sm:$0xff]
      %v5145 = vld [vmem:[%s5104 + $0x140] sm:$0xff]
      %v5146 = vld [vmem:[%s5104 + $0x148] sm:$0xff]
      %v5147 = vld [vmem:[%s5104 + $0x150] sm:$0xff]
      %v5148 = vld [vmem:[%s5104 + $0x158] sm:$0xff]
      %v5149 = vld [vmem:[%s5104 + $0x160] sm:$0xff]
      %v5150 = vld [vmem:[%s5104 + $0x168] sm:$0xff]
      %v5151 = vld [vmem:[%s5104 + $0x170] sm:$0xff]
      %v5152 = vld [vmem:[%s5104 + $0x178] sm:$0xff]
      %v5153 = vld [vmem:[%s5104 + $0x180] sm:$0xff]
      %v5154 = vld [vmem:[%s5104 + $0x188] sm:$0xff]
      %v5155 = vld [vmem:[%s5104 + $0x190] sm:$0xff]
      %v5156 = vld [vmem:[%s5104 + $0x198] sm:$0xff]
      %v5157 = vld [vmem:[%s5104 + $0x1a0] sm:$0xff]
      %v5158 = vld [vmem:[%s5104 + $0x1a8] sm:$0xff]
      %v5159 = vld [vmem:[%s5104 + $0x1b0] sm:$0xff]
      %v5160 = vld [vmem:[%s5104 + $0x1b8] sm:$0xff]
      %v5161 = vld [vmem:[#allocation2 + $0x8] sm:$0xff]
      %v5162 = vld [vmem:[#allocation2 + $0x10] sm:$0xff]
      %v5163 = vld [vmem:[#allocation2 + $0x18] sm:$0xff]
      %v5164 = vld [vmem:[#allocation2 + $0x20] sm:$0x33]
      %v5221 = vunpack.c.l.b16 %v5105
      %v5222 = vunpack.c.h.b16 %v5105
      %v5223 = vunpack.c.l.b16 %v5106
      %v5224 = vunpack.c.h.b16 %v5106
      %v5225 = vunpack.c.l.b16 %v5107
      %v5226 = vunpack.c.h.b16 %v5107
      %v5227 = vunpack.c.l.b16 %v5108
      %v5228 = vunpack.c.h.b16 %v5108
      %v5229 = vunpack.c.l.b16 %v5109
      %v5230 = vunpack.c.h.b16 %v5109
      %v5231 = vunpack.c.l.b16 %v5110
      %v5232 = vunpack.c.h.b16 %v5110
      %v5233 = vunpack.c.l.b16 %v5111
      %v5234 = vunpack.c.h.b16 %v5111
      %v5235 = vunpack.c.l.b16 %v5112
      %v5236 = vunpack.c.h.b16 %v5112
      %v5237 = vunpack.c.l.b16 %v5113
      %v5238 = vunpack.c.h.b16 %v5113
      %v5239 = vunpack.c.l.b16 %v5114
      %v5240 = vunpack.c.h.b16 %v5114
      %v5241 = vunpack.c.l.b16 %v5115
      %v5242 = vunpack.c.h.b16 %v5115
      %v5243 = vunpack.c.l.b16 %v5116
      %v5244 = vunpack.c.h.b16 %v5116
      %v5245 = vunpack.c.l.b16 %v5117
      %v5246 = vunpack.c.h.b16 %v5117
      %v5247 = vunpack.c.l.b16 %v5118
      %v5248 = vunpack.c.h.b16 %v5118
      %v5249 = vunpack.c.l.b16 %v5119
      %v5250 = vunpack.c.h.b16 %v5119
      %v5251 = vunpack.c.l.b16 %v5120
      %v5252 = vunpack.c.h.b16 %v5120
      %v5253 = vunpack.c.l.b16 %v5121
      %v5254 = vunpack.c.h.b16 %v5121
      %v5255 = vunpack.c.l.b16 %v5122
      %v5256 = vunpack.c.h.b16 %v5122
      %v5257 = vunpack.c.l.b16 %v5123
      %v5258 = vunpack.c.h.b16 %v5123
      %v5259 = vunpack.c.l.b16 %v5124
      %v5260 = vunpack.c.h.b16 %v5124
      %v5261 = vunpack.c.l.b16 %v5125
      %v5262 = vunpack.c.h.b16 %v5125
      %v5263 = vunpack.c.l.b16 %v5126
      %v5264 = vunpack.c.h.b16 %v5126
      %v5265 = vunpack.c.l.b16 %v5127
      %v5266 = vunpack.c.h.b16 %v5127
      %v5267 = vunpack.c.l.b16 %v5128
      %v5268 = vunpack.c.h.b16 %v5128
      %v5269 = vunpack.c.l.b16 %v5129
      %v5270 = vunpack.c.h.b16 %v5129
      %v5271 = vunpack.c.l.b16 %v5130
      %v5272 = vunpack.c.h.b16 %v5130
      %v5273 = vunpack.c.l.b16 %v5131
      %v5274 = vunpack.c.h.b16 %v5131
      %v5275 = vunpack.c.l.b16 %v5132
      %v5276 = vunpack.c.h.b16 %v5132
      %v5277 = vunpack.c.l.b16 %v5133
      %v5278 = vunpack.c.h.b16 %v5133
      %v5279 = vunpack.c.l.b16 %v5134
      %v5280 = vunpack.c.h.b16 %v5134
      %v5281 = vunpack.c.l.b16 %v5135
      %v5282 = vunpack.c.h.b16 %v5135
      %v5283 = vunpack.c.l.b16 %v5136
      %v5284 = vunpack.c.h.b16 %v5136
      %v5285 = vunpack.c.l.b16 %v5137
      %v5286 = vunpack.c.h.b16 %v5137
      %v5287 = vunpack.c.l.b16 %v5138
      %v5288 = vunpack.c.h.b16 %v5138
      %v5289 = vunpack.c.l.b16 %v5139
      %v5290 = vunpack.c.h.b16 %v5139
      %v5291 = vunpack.c.l.b16 %v5140
      %v5292 = vunpack.c.h.b16 %v5140
      %v5293 = vunpack.c.l.b16 %v5141
      %v5294 = vunpack.c.h.b16 %v5141
      %v5295 = vunpack.c.l.b16 %v5142
      %v5296 = vunpack.c.h.b16 %v5142
      %v5297 = vunpack.c.l.b16 %v5143
      %v5298 = vunpack.c.h.b16 %v5143
      %v5299 = vunpack.c.l.b16 %v5144
      %v5300 = vunpack.c.h.b16 %v5144
      %v5301 = vunpack.c.l.b16 %v5145
      %v5302 = vunpack.c.h.b16 %v5145
      %v5303 = vunpack.c.l.b16 %v5146
      %v5304 = vunpack.c.h.b16 %v5146
      %v5305 = vunpack.c.l.b16 %v5147
      %v5306 = vunpack.c.h.b16 %v5147
      %v5307 = vunpack.c.l.b16 %v5148
      %v5308 = vunpack.c.h.b16 %v5148
      %v5309 = vunpack.c.l.b16 %v5149
      %v5310 = vunpack.c.h.b16 %v5149
      %v5311 = vunpack.c.l.b16 %v5150
      %v5312 = vunpack.c.h.b16 %v5150
      %v5313 = vunpack.c.l.b16 %v5151
      %v5314 = vunpack.c.h.b16 %v5151
      %v5315 = vunpack.c.l.b16 %v5152
      %v5316 = vunpack.c.h.b16 %v5152
      %v5317 = vunpack.c.l.b16 %v5153
      %v5318 = vunpack.c.h.b16 %v5153
      %v5319 = vunpack.c.l.b16 %v5154
      %v5320 = vunpack.c.h.b16 %v5154
      %v5321 = vunpack.c.l.b16 %v5155
      %v5322 = vunpack.c.h.b16 %v5155
      %v5323 = vunpack.c.l.b16 %v5156
      %v5324 = vunpack.c.h.b16 %v5156
      %v5325 = vunpack.c.l.b16 %v5157
      %v5326 = vunpack.c.h.b16 %v5157
      %v5327 = vunpack.c.l.b16 %v5158
      %v5328 = vunpack.c.h.b16 %v5158
      %v5329 = vunpack.c.l.b16 %v5159
      %v5330 = vunpack.c.h.b16 %v5159
      %v5331 = vunpack.c.l.b16 %v5160
      %v5332 = vunpack.c.h.b16 %v5160
      %v5333 = vpack.c.b16 %v5225, %v5221
      %v5334 = vpack.c.b16 %v5226, %v5222
      %v5335 = vpack.c.b16 %v5227, %v5223
      %v5336 = vpack.c.b16 %v5228, %v5224
      %v5337 = vpack.c.b16 %v5233, %v5229
      %v5338 = vpack.c.b16 %v5234, %v5230
      %v5339 = vpack.c.b16 %v5235, %v5231
      %v5340 = vpack.c.b16 %v5236, %v5232
      %v5341 = vpack.c.b16 %v5241, %v5237
      %v5342 = vpack.c.b16 %v5242, %v5238
      %v5343 = vpack.c.b16 %v5243, %v5239
      %v5344 = vpack.c.b16 %v5244, %v5240
      %v5345 = vpack.c.b16 %v5249, %v5245
      %v5346 = vpack.c.b16 %v5250, %v5246
      %v5347 = vpack.c.b16 %v5251, %v5247
      %v5348 = vpack.c.b16 %v5252, %v5248
      %v5349 = vpack.c.b16 %v5257, %v5253
      %v5350 = vpack.c.b16 %v5258, %v5254
      %v5351 = vpack.c.b16 %v5259, %v5255
      %v5352 = vpack.c.b16 %v5260, %v5256
      %v5353 = vpack.c.b16 %v5265, %v5261
      %v5354 = vpack.c.b16 %v5266, %v5262
      %v5355 = vpack.c.b16 %v5267, %v5263
      %v5356 = vpack.c.b16 %v5268, %v5264
      %v5357 = vpack.c.b16 %v5273, %v5269
      %v5358 = vpack.c.b16 %v5274, %v5270
      %v5359 = vpack.c.b16 %v5275, %v5271
      %v5360 = vpack.c.b16 %v5276, %v5272
      %v5361 = vpack.c.b16 %v5281, %v5277
      %v5362 = vpack.c.b16 %v5282, %v5278
      %v5363 = vpack.c.b16 %v5283, %v5279
      %v5364 = vpack.c.b16 %v5284, %v5280
      %v5365 = vpack.c.b16 %v5289, %v5285
      %v5366 = vpack.c.b16 %v5290, %v5286
      %v5367 = vpack.c.b16 %v5291, %v5287
      %v5368 = vpack.c.b16 %v5292, %v5288
      %v5369 = vpack.c.b16 %v5297, %v5293
      %v5370 = vpack.c.b16 %v5298, %v5294
      %v5371 = vpack.c.b16 %v5299, %v5295
      %v5372 = vpack.c.b16 %v5300, %v5296
      %v5373 = vpack.c.b16 %v5305, %v5301
      %v5374 = vpack.c.b16 %v5306, %v5302
      %v5375 = vpack.c.b16 %v5307, %v5303
      %v5376 = vpack.c.b16 %v5308, %v5304
      %v5377 = vpack.c.b16 %v5313, %v5309
      %v5378 = vpack.c.b16 %v5314, %v5310
      %v5379 = vpack.c.b16 %v5315, %v5311
      %v5380 = vpack.c.b16 %v5316, %v5312
      %v5381 = vpack.c.b16 %v5321, %v5317
      %v5382 = vpack.c.b16 %v5322, %v5318
      %v5383 = vpack.c.b16 %v5323, %v5319
      %v5384 = vpack.c.b16 %v5324, %v5320
      %v5385 = vpack.c.b16 %v5329, %v5325
      %v5386 = vpack.c.b16 %v5330, %v5326
      %v5387 = vpack.c.b16 %v5331, %v5327
      %v5388 = vpack.c.b16 %v5332, %v5328
      %5445 = vmatprep.subr.bf16.mxu0 %v5362
      %5446 = vmatpush1.bf16.msra.mxu0 %v5361
      %5447 = vmatprep.subr.bf16.mxu0 %v5358
      %5448 = vmatpush1.bf16.msra.mxu0 %v5357
      %5449 = vmatprep.subr.bf16.mxu0 %v5354
      %5450 = vmatpush1.bf16.msra.mxu0 %v5353
      %5451 = vmatprep.subr.bf16.mxu0 %v5350
      %5452 = vmatpush1.bf16.msra.mxu0 %v5349
      %5453 = vmatprep.subr.bf16.mxu0 %v5346
      %5454 = vmatpush1.bf16.msra.mxu0 %v5345
      %5455 = vmatprep.subr.bf16.mxu0 %v5342
      %5456 = vmatpush1.bf16.msra.mxu0 %v5341
      %5457 = vmatprep.subr.bf16.mxu0 %v5338
      %5458 = vmatpush1.bf16.msra.mxu0 %v5337
      %5459 = vmatprep.subr.bf16.mxu0 %v5334
      %5460 = vmatpush1.bf16.msra.mxu0 %v5333
      %5461 = vmatprep.subr.bf16.mxu0 0
      %5462 = vmatpush2.bf16.msra.mxu0 0
      %5463 = vmatprep.subr.bf16.mxu0 0
      %5464 = vmatpush2.bf16.msra.mxu0 0
      %5465 = vmatprep.subr.bf16.mxu0 %v5386
      %5466 = vmatpush2.bf16.msra.mxu0 %v5385
      %5467 = vmatprep.subr.bf16.mxu0 %v5382
      %5468 = vmatpush2.bf16.msra.mxu0 %v5381
      %5469 = vmatprep.subr.bf16.mxu0 %v5378
      %5470 = vmatpush2.bf16.msra.mxu0 %v5377
      %5471 = vmatprep.subr.bf16.mxu0 %v5374
      %5472 = vmatpush2.bf16.msra.mxu0 %v5373
      %5473 = vmatprep.subr.bf16.mxu0 %v5370
      %5474 = vmatpush2.bf16.msra.mxu0 %v5369
      %5475 = vmatprep.subr.bf16.mxu0 %v5366
      %5476 = vmatpush2.bf16.msra.mxu0 %v5365
      %5477 = vmatprep.mubr.bf16.mxu0 %v4977
      %5478 = vmatmul.mubr.bf16.gmra.mxu0 %v4970
      %v5479 = vpop.f32.mrf.mxu0
      %v5480 = vadd.f32 0.0, %v5479
      %v5481 = vpop.f32.mrf.mxu0
      %v5482 = vadd.f32 0.0, %v5481
      %v5483 = vpop.f32.mrf.mxu0
      %v5484 = vadd.f32 0.0, %v5483
      %v5485 = vpop.f32.mrf.mxu0
      %v5486 = vadd.f32 0.0, %v5485
      %5487 = vmatprep.mubr.bf16.mxu0 %v4980
      %5488 = vmatmul.mubr.bf16.gmra.mxu0 %v4969
      %v5489 = vpop.f32.mrf.mxu0
      %v5490 = vadd.f32 0.0, %v5489
      %v5491 = vpop.f32.mrf.mxu0
      %v5492 = vadd.f32 0.0, %v5491
      %v5493 = vpop.f32.mrf.mxu0
      %v5494 = vadd.f32 0.0, %v5493
      %v5495 = vpop.f32.mrf.mxu0
      %v5496 = vadd.f32 0.0, %v5495
      %5497 = vdwg.mxu0
      %5498 = vmatprep.subr.bf16.mxu0 %v5364
      %5499 = vmatpush1.bf16.msra.mxu0 %v5363
      %5500 = vmatprep.subr.bf16.mxu0 %v5360
      %5501 = vmatpush1.bf16.msra.mxu0 %v5359
      %5502 = vmatprep.subr.bf16.mxu0 %v5356
      %5503 = vmatpush1.bf16.msra.mxu0 %v5355
      %5504 = vmatprep.subr.bf16.mxu0 %v5352
      %5505 = vmatpush1.bf16.msra.mxu0 %v5351
      %5506 = vmatprep.subr.bf16.mxu0 %v5348
      %5507 = vmatpush1.bf16.msra.mxu0 %v5347
      %5508 = vmatprep.subr.bf16.mxu0 %v5344
      %5509 = vmatpush1.bf16.msra.mxu0 %v5343
      %5510 = vmatprep.subr.bf16.mxu0 %v5340
      %5511 = vmatpush1.bf16.msra.mxu0 %v5339
      %5512 = vmatprep.subr.bf16.mxu0 %v5336
      %5513 = vmatpush1.bf16.msra.mxu0 %v5335
      %5514 = vmatprep.subr.bf16.mxu0 0
      %5515 = vmatpush2.bf16.msra.mxu0 0
      %5516 = vmatprep.subr.bf16.mxu0 0
      %5517 = vmatpush2.bf16.msra.mxu0 0
      %5518 = vmatprep.subr.bf16.mxu0 %v5388
      %5519 = vmatpush2.bf16.msra.mxu0 %v5387
      %5520 = vmatprep.subr.bf16.mxu0 %v5384
      %5521 = vmatpush2.bf16.msra.mxu0 %v5383
      %5522 = vmatprep.subr.bf16.mxu0 %v5380
      %5523 = vmatpush2.bf16.msra.mxu0 %v5379
      %5524 = vmatprep.subr.bf16.mxu0 %v5376
      %5525 = vmatpush2.bf16.msra.mxu0 %v5375
      %5526 = vmatprep.subr.bf16.mxu0 %v5372
      %5527 = vmatpush2.bf16.msra.mxu0 %v5371
      %5528 = vmatprep.subr.bf16.mxu0 %v5368
      %5529 = vmatpush2.bf16.msra.mxu0 %v5367
      %5530 = vmatprep.mubr.bf16.mxu0 %v4977
      %5531 = vmatmul.mubr.bf16.gmra.mxu0 %v4970
      %v5532 = vpop.f32.mrf.mxu0
      %v5533 = vadd.f32 0.0, %v5532
      %v5534 = vpop.f32.mrf.mxu0
      %v5535 = vadd.f32 0.0, %v5534
      %v5536 = vpop.f32.mrf.mxu0
      %v5537 = vadd.f32 0.0, %v5536
      %v5538 = vpop.f32.mrf.mxu0
      %v5539 = vadd.f32 0.0, %v5538
      %5540 = vmatprep.mubr.bf16.mxu0 %v4980
      %5541 = vmatmul.mubr.bf16.gmra.mxu0 %v4969
      %v5542 = vpop.f32.mrf.mxu0
      %v5543 = vadd.f32 0.0, %v5542
      %v5544 = vpop.f32.mrf.mxu0
      %v5545 = vadd.f32 0.0, %v5544
      %v5546 = vpop.f32.mrf.mxu0
      %v5547 = vadd.f32 0.0, %v5546
      %v5548 = vpop.f32.mrf.mxu0
      %v5549 = vadd.f32 0.0, %v5548
      %5550 = vdwg.mxu0
      %v5551 = vadd.f32 %v4942, %v5480
      %v5552 = vadd.f32 %v4943, %v5482
      %v5553 = vadd.f32 %v4944, %v5533
      %v5554 = vadd.f32 %v4945, %v5535
      %v5555 = vadd.f32 %v4946, %v5484
      %v5556 = vadd.f32 %v4947, %v5486
      %v5557 = vadd.f32 %v4948, %v5537
      %v5558 = vadd.f32 %v4949, %v5539
      %v5559 = vadd.f32 %v4950, %v5490
      %v5560 = vadd.f32 %v4951, %v5492
      %v5561 = vadd.f32 %v4952, %v5543
      %v5562 = vadd.f32 %v4953, %v5545
      %v5563 = vadd.f32 %v4954, %v5494
      %v5564 = vadd.f32 %v4955, %v5496
      %v5565 = vadd.f32 %v4956, %v5547
      %v5566 = vadd.f32 %v4957, %v5549
      %v5571 = vunpack.c.l.b16 %v5161
      %v5572 = vunpack.c.h.b16 %v5161
      %v5573 = vunpack.c.l.b16 %v5162
      %v5574 = vunpack.c.h.b16 %v5162
      %v5575 = vunpack.c.l.b16 %v5163
      %v5576 = vunpack.c.h.b16 %v5163
      %v5577 = vunpack.c.l.b16 %v5164
      %v5578 = vunpack.c.h.b16 %v5164
      %v5579 = vpack.c.b16 %v5573, %v5571
      %v5580 = vpack.c.b16 %v5574, %v5572
      %v5581 = vpack.c.b16 %v5577, %v5575
      %v5582 = vpack.c.b16 %v5578, %v5576
      %v5586 = vsel %vm3738, %v5580, 0
      %v5589 = vsel %vm3738, %v5582, 0
      %5591 = vmatprep.subr.bf16.mxu0 %v5362
      %5592 = vmatpush1.bf16.msra.mxu0 %v5361
      %5593 = vmatprep.subr.bf16.mxu0 %v5358
      %5594 = vmatpush1.bf16.msra.mxu0 %v5357
      %5595 = vmatprep.subr.bf16.mxu0 %v5354
      %5596 = vmatpush1.bf16.msra.mxu0 %v5353
      %5597 = vmatprep.subr.bf16.mxu0 %v5350
      %5598 = vmatpush1.bf16.msra.mxu0 %v5349
      %5599 = vmatprep.subr.bf16.mxu0 %v5346
      %5600 = vmatpush1.bf16.msra.mxu0 %v5345
      %5601 = vmatprep.subr.bf16.mxu0 %v5342
      %5602 = vmatpush1.bf16.msra.mxu0 %v5341
      %5603 = vmatprep.subr.bf16.mxu0 %v5338
      %5604 = vmatpush1.bf16.msra.mxu0 %v5337
      %5605 = vmatprep.subr.bf16.mxu0 %v5334
      %5606 = vmatpush1.bf16.msra.mxu0 %v5333
      %5607 = vmatprep.subr.bf16.mxu0 0
      %5608 = vmatpush2.bf16.msra.mxu0 0
      %5609 = vmatprep.subr.bf16.mxu0 0
      %5610 = vmatpush2.bf16.msra.mxu0 0
      %5611 = vmatprep.subr.bf16.mxu0 %v5386
      %5612 = vmatpush2.bf16.msra.mxu0 %v5385
      %5613 = vmatprep.subr.bf16.mxu0 %v5382
      %5614 = vmatpush2.bf16.msra.mxu0 %v5381
      %5615 = vmatprep.subr.bf16.mxu0 %v5378
      %5616 = vmatpush2.bf16.msra.mxu0 %v5377
      %5617 = vmatprep.subr.bf16.mxu0 %v5374
      %5618 = vmatpush2.bf16.msra.mxu0 %v5373
      %5619 = vmatprep.subr.bf16.mxu0 %v5370
      %5620 = vmatpush2.bf16.msra.mxu0 %v5369
      %5621 = vmatprep.subr.bf16.mxu0 %v5366
      %5622 = vmatpush2.bf16.msra.mxu0 %v5365
      %5623 = vmatprep.mubr.bf16.mxu0 %v5586
      %5624 = vmatmul.mubr.bf16.gmra.mxu0 %v5579
      %v5625 = vpop.f32.mrf.mxu0
      %v5626 = vadd.f32 0.0, %v5625
      %v5627 = vpop.f32.mrf.mxu0
      %v5628 = vadd.f32 0.0, %v5627
      %v5629 = vpop.f32.mrf.mxu0
      %v5630 = vadd.f32 0.0, %v5629
      %v5631 = vpop.f32.mrf.mxu0
      %v5632 = vadd.f32 0.0, %v5631
      %5633 = vmatprep.mubr.bf16.mxu0 %v5589
      %5634 = vmatmul.mubr.bf16.gmra.mxu0 %v5581
      %v5635 = vpop.f32.mrf.mxu0
      %v5636 = vadd.f32 0.0, %v5635
      %v5637 = vpop.f32.mrf.mxu0
      %v5638 = vadd.f32 0.0, %v5637
      %v5639 = vpop.f32.mrf.mxu0
      %v5640 = vadd.f32 0.0, %v5639
      %v5641 = vpop.f32.mrf.mxu0
      %v5642 = vadd.f32 0.0, %v5641
      %5643 = vdwg.mxu0
      %5644 = vmatprep.subr.bf16.mxu0 %v5364
      %5645 = vmatpush1.bf16.msra.mxu0 %v5363
      %5646 = vmatprep.subr.bf16.mxu0 %v5360
      %5647 = vmatpush1.bf16.msra.mxu0 %v5359
      %5648 = vmatprep.subr.bf16.mxu0 %v5356
      %5649 = vmatpush1.bf16.msra.mxu0 %v5355
      %5650 = vmatprep.subr.bf16.mxu0 %v5352
      %5651 = vmatpush1.bf16.msra.mxu0 %v5351
      %5652 = vmatprep.subr.bf16.mxu0 %v5348
      %5653 = vmatpush1.bf16.msra.mxu0 %v5347
      %5654 = vmatprep.subr.bf16.mxu0 %v5344
      %5655 = vmatpush1.bf16.msra.mxu0 %v5343
      %5656 = vmatprep.subr.bf16.mxu0 %v5340
      %5657 = vmatpush1.bf16.msra.mxu0 %v5339
      %5658 = vmatprep.subr.bf16.mxu0 %v5336
      %5659 = vmatpush1.bf16.msra.mxu0 %v5335
      %5660 = vmatprep.subr.bf16.mxu0 0
      %5661 = vmatpush2.bf16.msra.mxu0 0
      %5662 = vmatprep.subr.bf16.mxu0 0
      %5663 = vmatpush2.bf16.msra.mxu0 0
      %5664 = vmatprep.subr.bf16.mxu0 %v5388
      %5665 = vmatpush2.bf16.msra.mxu0 %v5387
      %5666 = vmatprep.subr.bf16.mxu0 %v5384
      %5667 = vmatpush2.bf16.msra.mxu0 %v5383
      %5668 = vmatprep.subr.bf16.mxu0 %v5380
      %5669 = vmatpush2.bf16.msra.mxu0 %v5379
      %5670 = vmatprep.subr.bf16.mxu0 %v5376
      %5671 = vmatpush2.bf16.msra.mxu0 %v5375
      %5672 = vmatprep.subr.bf16.mxu0 %v5372
      %5673 = vmatpush2.bf16.msra.mxu0 %v5371
      %5674 = vmatprep.subr.bf16.mxu0 %v5368
      %5675 = vmatpush2.bf16.msra.mxu0 %v5367
      %5676 = vmatprep.mubr.bf16.mxu0 %v5586
      %5677 = vmatmul.mubr.bf16.gmra.mxu0 %v5579
      %v5678 = vpop.f32.mrf.mxu0
      %v5679 = vadd.f32 0.0, %v5678
      %v5680 = vpop.f32.mrf.mxu0
      %v5681 = vadd.f32 0.0, %v5680
      %v5682 = vpop.f32.mrf.mxu0
      %v5683 = vadd.f32 0.0, %v5682
      %v5684 = vpop.f32.mrf.mxu0
      %v5685 = vadd.f32 0.0, %v5684
      %5686 = vmatprep.mubr.bf16.mxu0 %v5589
      %5687 = vmatmul.mubr.bf16.gmra.mxu0 %v5581
      %v5688 = vpop.f32.mrf.mxu0
      %v5689 = vadd.f32 0.0, %v5688
      %v5690 = vpop.f32.mrf.mxu0
      %v5691 = vadd.f32 0.0, %v5690
      %v5692 = vpop.f32.mrf.mxu0
      %v5693 = vadd.f32 0.0, %v5692
      %v5694 = vpop.f32.mrf.mxu0
      %v5695 = vadd.f32 0.0, %v5694
      %5696 = vdwg.mxu0
      %v5697 = vadd.f32 %v5088, %v5626
      %v5698 = vadd.f32 %v5089, %v5628
      %v5699 = vadd.f32 %v5090, %v5679
      %v5700 = vadd.f32 %v5091, %v5681
      %v5701 = vadd.f32 %v5092, %v5630
      %v5702 = vadd.f32 %v5093, %v5632
      %v5703 = vadd.f32 %v5094, %v5683
      %v5704 = vadd.f32 %v5095, %v5685
      %v5705 = vadd.f32 %v5096, %v5636
      %v5706 = vadd.f32 %v5097, %v5638
      %v5707 = vadd.f32 %v5098, %v5689
      %v5708 = vadd.f32 %v5099, %v5691
      %v5709 = vadd.f32 %v5100, %v5640
      %v5710 = vadd.f32 %v5101, %v5642
      %v5711 = vadd.f32 %v5102, %v5693
      %v5712 = vadd.f32 %v5103, %v5695
      %s5713 = scalar_lea.vmem %s3, 1792
      %v5714 = vld [vmem:[%s5713] sm:$0xff]
      %v5715 = vld [vmem:[%s5713 + $0x8] sm:$0xff]
      %v5716 = vld [vmem:[%s5713 + $0x10] sm:$0xff]
      %v5717 = vld [vmem:[%s5713 + $0x18] sm:$0xff]
      %v5718 = vld [vmem:[%s5713 + $0x20] sm:$0xff]
      %v5719 = vld [vmem:[%s5713 + $0x28] sm:$0xff]
      %v5720 = vld [vmem:[%s5713 + $0x30] sm:$0xff]
      %v5721 = vld [vmem:[%s5713 + $0x38] sm:$0xff]
      %v5722 = vld [vmem:[%s5713 + $0x40] sm:$0xff]
      %v5723 = vld [vmem:[%s5713 + $0x48] sm:$0xff]
      %v5724 = vld [vmem:[%s5713 + $0x50] sm:$0xff]
      %v5725 = vld [vmem:[%s5713 + $0x58] sm:$0xff]
      %v5726 = vld [vmem:[%s5713 + $0x60] sm:$0xff]
      %v5727 = vld [vmem:[%s5713 + $0x68] sm:$0xff]
      %v5728 = vld [vmem:[%s5713 + $0x70] sm:$0xff]
      %v5729 = vld [vmem:[%s5713 + $0x78] sm:$0xff]
      %v5730 = vld [vmem:[%s5713 + $0x80] sm:$0xff]
      %v5731 = vld [vmem:[%s5713 + $0x88] sm:$0xff]
      %v5732 = vld [vmem:[%s5713 + $0x90] sm:$0xff]
      %v5733 = vld [vmem:[%s5713 + $0x98] sm:$0xff]
      %v5734 = vld [vmem:[%s5713 + $0xa0] sm:$0xff]
      %v5735 = vld [vmem:[%s5713 + $0xa8] sm:$0xff]
      %v5736 = vld [vmem:[%s5713 + $0xb0] sm:$0xff]
      %v5737 = vld [vmem:[%s5713 + $0xb8] sm:$0xff]
      %v5738 = vld [vmem:[%s5713 + $0xc0] sm:$0xff]
      %v5739 = vld [vmem:[%s5713 + $0xc8] sm:$0xff]
      %v5740 = vld [vmem:[%s5713 + $0xd0] sm:$0xff]
      %v5741 = vld [vmem:[%s5713 + $0xd8] sm:$0xff]
      %v5742 = vld [vmem:[%s5713 + $0xe0] sm:$0xff]
      %v5743 = vld [vmem:[%s5713 + $0xe8] sm:$0xff]
      %v5744 = vld [vmem:[%s5713 + $0xf0] sm:$0xff]
      %v5745 = vld [vmem:[%s5713 + $0xf8] sm:$0xff]
      %v5746 = vld [vmem:[%s5713 + $0x100] sm:$0xff]
      %v5747 = vld [vmem:[%s5713 + $0x108] sm:$0xff]
      %v5748 = vld [vmem:[%s5713 + $0x110] sm:$0xff]
      %v5749 = vld [vmem:[%s5713 + $0x118] sm:$0xff]
      %v5750 = vld [vmem:[%s5713 + $0x120] sm:$0xff]
      %v5751 = vld [vmem:[%s5713 + $0x128] sm:$0xff]
      %v5752 = vld [vmem:[%s5713 + $0x130] sm:$0xff]
      %v5753 = vld [vmem:[%s5713 + $0x138] sm:$0xff]
      %v5754 = vld [vmem:[%s5713 + $0x140] sm:$0xff]
      %v5755 = vld [vmem:[%s5713 + $0x148] sm:$0xff]
      %v5756 = vld [vmem:[%s5713 + $0x150] sm:$0xff]
      %v5757 = vld [vmem:[%s5713 + $0x158] sm:$0xff]
      %v5758 = vld [vmem:[%s5713 + $0x160] sm:$0xff]
      %v5759 = vld [vmem:[%s5713 + $0x168] sm:$0xff]
      %v5760 = vld [vmem:[%s5713 + $0x170] sm:$0xff]
      %v5761 = vld [vmem:[%s5713 + $0x178] sm:$0xff]
      %v5762 = vld [vmem:[%s5713 + $0x180] sm:$0xff]
      %v5763 = vld [vmem:[%s5713 + $0x188] sm:$0xff]
      %v5764 = vld [vmem:[%s5713 + $0x190] sm:$0xff]
      %v5765 = vld [vmem:[%s5713 + $0x198] sm:$0xff]
      %v5766 = vld [vmem:[%s5713 + $0x1a0] sm:$0xff]
      %v5767 = vld [vmem:[%s5713 + $0x1a8] sm:$0xff]
      %v5768 = vld [vmem:[%s5713 + $0x1b0] sm:$0xff]
      %v5769 = vld [vmem:[%s5713 + $0x1b8] sm:$0xff]
      %v5770 = vld [vmem:[#allocation3 + $0x8] sm:$0xff]
      %v5771 = vld [vmem:[#allocation3 + $0x10] sm:$0xff]
      %v5772 = vld [vmem:[#allocation3 + $0x18] sm:$0xff]
      %v5773 = vld [vmem:[#allocation3 + $0x20] sm:$0x33]
      %v5830 = vunpack.c.l.b16 %v5714
      %v5831 = vunpack.c.h.b16 %v5714
      %v5832 = vunpack.c.l.b16 %v5715
      %v5833 = vunpack.c.h.b16 %v5715
      %v5834 = vunpack.c.l.b16 %v5716
      %v5835 = vunpack.c.h.b16 %v5716
      %v5836 = vunpack.c.l.b16 %v5717
      %v5837 = vunpack.c.h.b16 %v5717
      %v5838 = vunpack.c.l.b16 %v5718
      %v5839 = vunpack.c.h.b16 %v5718
      %v5840 = vunpack.c.l.b16 %v5719
      %v5841 = vunpack.c.h.b16 %v5719
      %v5842 = vunpack.c.l.b16 %v5720
      %v5843 = vunpack.c.h.b16 %v5720
      %v5844 = vunpack.c.l.b16 %v5721
      %v5845 = vunpack.c.h.b16 %v5721
      %v5846 = vunpack.c.l.b16 %v5722
      %v5847 = vunpack.c.h.b16 %v5722
      %v5848 = vunpack.c.l.b16 %v5723
      %v5849 = vunpack.c.h.b16 %v5723
      %v5850 = vunpack.c.l.b16 %v5724
      %v5851 = vunpack.c.h.b16 %v5724
      %v5852 = vunpack.c.l.b16 %v5725
      %v5853 = vunpack.c.h.b16 %v5725
      %v5854 = vunpack.c.l.b16 %v5726
      %v5855 = vunpack.c.h.b16 %v5726
      %v5856 = vunpack.c.l.b16 %v5727
      %v5857 = vunpack.c.h.b16 %v5727
      %v5858 = vunpack.c.l.b16 %v5728
      %v5859 = vunpack.c.h.b16 %v5728
      %v5860 = vunpack.c.l.b16 %v5729
      %v5861 = vunpack.c.h.b16 %v5729
      %v5862 = vunpack.c.l.b16 %v5730
      %v5863 = vunpack.c.h.b16 %v5730
      %v5864 = vunpack.c.l.b16 %v5731
      %v5865 = vunpack.c.h.b16 %v5731
      %v5866 = vunpack.c.l.b16 %v5732
      %v5867 = vunpack.c.h.b16 %v5732
      %v5868 = vunpack.c.l.b16 %v5733
      %v5869 = vunpack.c.h.b16 %v5733
      %v5870 = vunpack.c.l.b16 %v5734
      %v5871 = vunpack.c.h.b16 %v5734
      %v5872 = vunpack.c.l.b16 %v5735
      %v5873 = vunpack.c.h.b16 %v5735
      %v5874 = vunpack.c.l.b16 %v5736
      %v5875 = vunpack.c.h.b16 %v5736
      %v5876 = vunpack.c.l.b16 %v5737
      %v5877 = vunpack.c.h.b16 %v5737
      %v5878 = vunpack.c.l.b16 %v5738
      %v5879 = vunpack.c.h.b16 %v5738
      %v5880 = vunpack.c.l.b16 %v5739
      %v5881 = vunpack.c.h.b16 %v5739
      %v5882 = vunpack.c.l.b16 %v5740
      %v5883 = vunpack.c.h.b16 %v5740
      %v5884 = vunpack.c.l.b16 %v5741
      %v5885 = vunpack.c.h.b16 %v5741
      %v5886 = vunpack.c.l.b16 %v5742
      %v5887 = vunpack.c.h.b16 %v5742
      %v5888 = vunpack.c.l.b16 %v5743
      %v5889 = vunpack.c.h.b16 %v5743
      %v5890 = vunpack.c.l.b16 %v5744
      %v5891 = vunpack.c.h.b16 %v5744
      %v5892 = vunpack.c.l.b16 %v5745
      %v5893 = vunpack.c.h.b16 %v5745
      %v5894 = vunpack.c.l.b16 %v5746
      %v5895 = vunpack.c.h.b16 %v5746
      %v5896 = vunpack.c.l.b16 %v5747
      %v5897 = vunpack.c.h.b16 %v5747
      %v5898 = vunpack.c.l.b16 %v5748
      %v5899 = vunpack.c.h.b16 %v5748
      %v5900 = vunpack.c.l.b16 %v5749
      %v5901 = vunpack.c.h.b16 %v5749
      %v5902 = vunpack.c.l.b16 %v5750
      %v5903 = vunpack.c.h.b16 %v5750
      %v5904 = vunpack.c.l.b16 %v5751
      %v5905 = vunpack.c.h.b16 %v5751
      %v5906 = vunpack.c.l.b16 %v5752
      %v5907 = vunpack.c.h.b16 %v5752
      %v5908 = vunpack.c.l.b16 %v5753
      %v5909 = vunpack.c.h.b16 %v5753
      %v5910 = vunpack.c.l.b16 %v5754
      %v5911 = vunpack.c.h.b16 %v5754
      %v5912 = vunpack.c.l.b16 %v5755
      %v5913 = vunpack.c.h.b16 %v5755
      %v5914 = vunpack.c.l.b16 %v5756
      %v5915 = vunpack.c.h.b16 %v5756
      %v5916 = vunpack.c.l.b16 %v5757
      %v5917 = vunpack.c.h.b16 %v5757
      %v5918 = vunpack.c.l.b16 %v5758
      %v5919 = vunpack.c.h.b16 %v5758
      %v5920 = vunpack.c.l.b16 %v5759
      %v5921 = vunpack.c.h.b16 %v5759
      %v5922 = vunpack.c.l.b16 %v5760
      %v5923 = vunpack.c.h.b16 %v5760
      %v5924 = vunpack.c.l.b16 %v5761
      %v5925 = vunpack.c.h.b16 %v5761
      %v5926 = vunpack.c.l.b16 %v5762
      %v5927 = vunpack.c.h.b16 %v5762
      %v5928 = vunpack.c.l.b16 %v5763
      %v5929 = vunpack.c.h.b16 %v5763
      %v5930 = vunpack.c.l.b16 %v5764
      %v5931 = vunpack.c.h.b16 %v5764
      %v5932 = vunpack.c.l.b16 %v5765
      %v5933 = vunpack.c.h.b16 %v5765
      %v5934 = vunpack.c.l.b16 %v5766
      %v5935 = vunpack.c.h.b16 %v5766
      %v5936 = vunpack.c.l.b16 %v5767
      %v5937 = vunpack.c.h.b16 %v5767
      %v5938 = vunpack.c.l.b16 %v5768
      %v5939 = vunpack.c.h.b16 %v5768
      %v5940 = vunpack.c.l.b16 %v5769
      %v5941 = vunpack.c.h.b16 %v5769
      %v5942 = vpack.c.b16 %v5834, %v5830
      %v5943 = vpack.c.b16 %v5835, %v5831
      %v5944 = vpack.c.b16 %v5836, %v5832
      %v5945 = vpack.c.b16 %v5837, %v5833
      %v5946 = vpack.c.b16 %v5842, %v5838
      %v5947 = vpack.c.b16 %v5843, %v5839
      %v5948 = vpack.c.b16 %v5844, %v5840
      %v5949 = vpack.c.b16 %v5845, %v5841
      %v5950 = vpack.c.b16 %v5850, %v5846
      %v5951 = vpack.c.b16 %v5851, %v5847
      %v5952 = vpack.c.b16 %v5852, %v5848
      %v5953 = vpack.c.b16 %v5853, %v5849
      %v5954 = vpack.c.b16 %v5858, %v5854
      %v5955 = vpack.c.b16 %v5859, %v5855
      %v5956 = vpack.c.b16 %v5860, %v5856
      %v5957 = vpack.c.b16 %v5861, %v5857
      %v5958 = vpack.c.b16 %v5866, %v5862
      %v5959 = vpack.c.b16 %v5867, %v5863
      %v5960 = vpack.c.b16 %v5868, %v5864
      %v5961 = vpack.c.b16 %v5869, %v5865
      %v5962 = vpack.c.b16 %v5874, %v5870
      %v5963 = vpack.c.b16 %v5875, %v5871
      %v5964 = vpack.c.b16 %v5876, %v5872
      %v5965 = vpack.c.b16 %v5877, %v5873
      %v5966 = vpack.c.b16 %v5882, %v5878
      %v5967 = vpack.c.b16 %v5883, %v5879
      %v5968 = vpack.c.b16 %v5884, %v5880
      %v5969 = vpack.c.b16 %v5885, %v5881
      %v5970 = vpack.c.b16 %v5890, %v5886
      %v5971 = vpack.c.b16 %v5891, %v5887
      %v5972 = vpack.c.b16 %v5892, %v5888
      %v5973 = vpack.c.b16 %v5893, %v5889
      %v5974 = vpack.c.b16 %v5898, %v5894
      %v5975 = vpack.c.b16 %v5899, %v5895
      %v5976 = vpack.c.b16 %v5900, %v5896
      %v5977 = vpack.c.b16 %v5901, %v5897
      %v5978 = vpack.c.b16 %v5906, %v5902
      %v5979 = vpack.c.b16 %v5907, %v5903
      %v5980 = vpack.c.b16 %v5908, %v5904
      %v5981 = vpack.c.b16 %v5909, %v5905
      %v5982 = vpack.c.b16 %v5914, %v5910
      %v5983 = vpack.c.b16 %v5915, %v5911
      %v5984 = vpack.c.b16 %v5916, %v5912
      %v5985 = vpack.c.b16 %v5917, %v5913
      %v5986 = vpack.c.b16 %v5922, %v5918
      %v5987 = vpack.c.b16 %v5923, %v5919
      %v5988 = vpack.c.b16 %v5924, %v5920
      %v5989 = vpack.c.b16 %v5925, %v5921
      %v5990 = vpack.c.b16 %v5930, %v5926
      %v5991 = vpack.c.b16 %v5931, %v5927
      %v5992 = vpack.c.b16 %v5932, %v5928
      %v5993 = vpack.c.b16 %v5933, %v5929
      %v5994 = vpack.c.b16 %v5938, %v5934
      %v5995 = vpack.c.b16 %v5939, %v5935
      %v5996 = vpack.c.b16 %v5940, %v5936
      %v5997 = vpack.c.b16 %v5941, %v5937
      %6054 = vmatprep.subr.bf16.mxu0 %v5971
      %6055 = vmatpush1.bf16.msra.mxu0 %v5970
      %6056 = vmatprep.subr.bf16.mxu0 %v5967
      %6057 = vmatpush1.bf16.msra.mxu0 %v5966
      %6058 = vmatprep.subr.bf16.mxu0 %v5963
      %6059 = vmatpush1.bf16.msra.mxu0 %v5962
      %6060 = vmatprep.subr.bf16.mxu0 %v5959
      %6061 = vmatpush1.bf16.msra.mxu0 %v5958
      %6062 = vmatprep.subr.bf16.mxu0 %v5955
      %6063 = vmatpush1.bf16.msra.mxu0 %v5954
      %6064 = vmatprep.subr.bf16.mxu0 %v5951
      %6065 = vmatpush1.bf16.msra.mxu0 %v5950
      %6066 = vmatprep.subr.bf16.mxu0 %v5947
      %6067 = vmatpush1.bf16.msra.mxu0 %v5946
      %6068 = vmatprep.subr.bf16.mxu0 %v5943
      %6069 = vmatpush1.bf16.msra.mxu0 %v5942
      %6070 = vmatprep.subr.bf16.mxu0 0
      %6071 = vmatpush2.bf16.msra.mxu0 0
      %6072 = vmatprep.subr.bf16.mxu0 0
      %6073 = vmatpush2.bf16.msra.mxu0 0
      %6074 = vmatprep.subr.bf16.mxu0 %v5995
      %6075 = vmatpush2.bf16.msra.mxu0 %v5994
      %6076 = vmatprep.subr.bf16.mxu0 %v5991
      %6077 = vmatpush2.bf16.msra.mxu0 %v5990
      %6078 = vmatprep.subr.bf16.mxu0 %v5987
      %6079 = vmatpush2.bf16.msra.mxu0 %v5986
      %6080 = vmatprep.subr.bf16.mxu0 %v5983
      %6081 = vmatpush2.bf16.msra.mxu0 %v5982
      %6082 = vmatprep.subr.bf16.mxu0 %v5979
      %6083 = vmatpush2.bf16.msra.mxu0 %v5978
      %6084 = vmatprep.subr.bf16.mxu0 %v5975
      %6085 = vmatpush2.bf16.msra.mxu0 %v5974
      %6086 = vmatprep.mubr.bf16.mxu0 %v5586
      %6087 = vmatmul.mubr.bf16.gmra.mxu0 %v5579
      %v6088 = vpop.f32.mrf.mxu0
      %v6089 = vadd.f32 0.0, %v6088
      %v6090 = vpop.f32.mrf.mxu0
      %v6091 = vadd.f32 0.0, %v6090
      %v6092 = vpop.f32.mrf.mxu0
      %v6093 = vadd.f32 0.0, %v6092
      %v6094 = vpop.f32.mrf.mxu0
      %v6095 = vadd.f32 0.0, %v6094
      %6096 = vmatprep.mubr.bf16.mxu0 %v5589
      %6097 = vmatmul.mubr.bf16.gmra.mxu0 %v5581
      %v6098 = vpop.f32.mrf.mxu0
      %v6099 = vadd.f32 0.0, %v6098
      %v6100 = vpop.f32.mrf.mxu0
      %v6101 = vadd.f32 0.0, %v6100
      %v6102 = vpop.f32.mrf.mxu0
      %v6103 = vadd.f32 0.0, %v6102
      %v6104 = vpop.f32.mrf.mxu0
      %v6105 = vadd.f32 0.0, %v6104
      %6106 = vdwg.mxu0
      %6107 = vmatprep.subr.bf16.mxu0 %v5973
      %6108 = vmatpush1.bf16.msra.mxu0 %v5972
      %6109 = vmatprep.subr.bf16.mxu0 %v5969
      %6110 = vmatpush1.bf16.msra.mxu0 %v5968
      %6111 = vmatprep.subr.bf16.mxu0 %v5965
      %6112 = vmatpush1.bf16.msra.mxu0 %v5964
      %6113 = vmatprep.subr.bf16.mxu0 %v5961
      %6114 = vmatpush1.bf16.msra.mxu0 %v5960
      %6115 = vmatprep.subr.bf16.mxu0 %v5957
      %6116 = vmatpush1.bf16.msra.mxu0 %v5956
      %6117 = vmatprep.subr.bf16.mxu0 %v5953
      %6118 = vmatpush1.bf16.msra.mxu0 %v5952
      %6119 = vmatprep.subr.bf16.mxu0 %v5949
      %6120 = vmatpush1.bf16.msra.mxu0 %v5948
      %6121 = vmatprep.subr.bf16.mxu0 %v5945
      %6122 = vmatpush1.bf16.msra.mxu0 %v5944
      %6123 = vmatprep.subr.bf16.mxu0 0
      %6124 = vmatpush2.bf16.msra.mxu0 0
      %6125 = vmatprep.subr.bf16.mxu0 0
      %6126 = vmatpush2.bf16.msra.mxu0 0
      %6127 = vmatprep.subr.bf16.mxu0 %v5997
      %6128 = vmatpush2.bf16.msra.mxu0 %v5996
      %6129 = vmatprep.subr.bf16.mxu0 %v5993
      %6130 = vmatpush2.bf16.msra.mxu0 %v5992
      %6131 = vmatprep.subr.bf16.mxu0 %v5989
      %6132 = vmatpush2.bf16.msra.mxu0 %v5988
      %6133 = vmatprep.subr.bf16.mxu0 %v5985
      %6134 = vmatpush2.bf16.msra.mxu0 %v5984
      %6135 = vmatprep.subr.bf16.mxu0 %v5981
      %6136 = vmatpush2.bf16.msra.mxu0 %v5980
      %6137 = vmatprep.subr.bf16.mxu0 %v5977
      %6138 = vmatpush2.bf16.msra.mxu0 %v5976
      %6139 = vmatprep.mubr.bf16.mxu0 %v5586
      %6140 = vmatmul.mubr.bf16.gmra.mxu0 %v5579
      %v6141 = vpop.f32.mrf.mxu0
      %v6142 = vadd.f32 0.0, %v6141
      %v6143 = vpop.f32.mrf.mxu0
      %v6144 = vadd.f32 0.0, %v6143
      %v6145 = vpop.f32.mrf.mxu0
      %v6146 = vadd.f32 0.0, %v6145
      %v6147 = vpop.f32.mrf.mxu0
      %v6148 = vadd.f32 0.0, %v6147
      %6149 = vmatprep.mubr.bf16.mxu0 %v5589
      %6150 = vmatmul.mubr.bf16.gmra.mxu0 %v5581
      %v6151 = vpop.f32.mrf.mxu0
      %v6152 = vadd.f32 0.0, %v6151
      %v6153 = vpop.f32.mrf.mxu0
      %v6154 = vadd.f32 0.0, %v6153
      %v6155 = vpop.f32.mrf.mxu0
      %v6156 = vadd.f32 0.0, %v6155
      %v6157 = vpop.f32.mrf.mxu0
      %v6158 = vadd.f32 0.0, %v6157
      %6159 = vdwg.mxu0
      %v6160 = vadd.f32 %v5551, %v6089
      %v6161 = vadd.f32 %v5552, %v6091
      %v6162 = vadd.f32 %v5553, %v6142
      %v6163 = vadd.f32 %v5554, %v6144
      %v6164 = vadd.f32 %v5555, %v6093
      %v6165 = vadd.f32 %v5556, %v6095
      %v6166 = vadd.f32 %v5557, %v6146
      %v6167 = vadd.f32 %v5558, %v6148
      %v6168 = vadd.f32 %v5559, %v6099
      %v6169 = vadd.f32 %v5560, %v6101
      %v6170 = vadd.f32 %v5561, %v6152
      %v6171 = vadd.f32 %v5562, %v6154
      %v6172 = vadd.f32 %v5563, %v6103
      %v6173 = vadd.f32 %v5564, %v6105
      %v6174 = vadd.f32 %v5565, %v6156
      %v6175 = vadd.f32 %v5566, %v6158
      %v6180 = vunpack.c.l.b16 %v5770
      %v6181 = vunpack.c.h.b16 %v5770
      %v6182 = vunpack.c.l.b16 %v5771
      %v6183 = vunpack.c.h.b16 %v5771
      %v6184 = vunpack.c.l.b16 %v5772
      %v6185 = vunpack.c.h.b16 %v5772
      %v6186 = vunpack.c.l.b16 %v5773
      %v6187 = vunpack.c.h.b16 %v5773
      %v6188 = vpack.c.b16 %v6182, %v6180
      %v6189 = vpack.c.b16 %v6183, %v6181
      %v6190 = vpack.c.b16 %v6186, %v6184
      %v6191 = vpack.c.b16 %v6187, %v6185
      %v6195 = vsel %vm3738, %v6189, 0
      %v6198 = vsel %vm3738, %v6191, 0
      %6200 = vmatprep.subr.bf16.mxu0 %v5971
      %6201 = vmatpush1.bf16.msra.mxu0 %v5970
      %6202 = vmatprep.subr.bf16.mxu0 %v5967
      %6203 = vmatpush1.bf16.msra.mxu0 %v5966
      %6204 = vmatprep.subr.bf16.mxu0 %v5963
      %6205 = vmatpush1.bf16.msra.mxu0 %v5962
      %6206 = vmatprep.subr.bf16.mxu0 %v5959
      %6207 = vmatpush1.bf16.msra.mxu0 %v5958
      %6208 = vmatprep.subr.bf16.mxu0 %v5955
      %6209 = vmatpush1.bf16.msra.mxu0 %v5954
      %6210 = vmatprep.subr.bf16.mxu0 %v5951
      %6211 = vmatpush1.bf16.msra.mxu0 %v5950
      %6212 = vmatprep.subr.bf16.mxu0 %v5947
      %6213 = vmatpush1.bf16.msra.mxu0 %v5946
      %6214 = vmatprep.subr.bf16.mxu0 %v5943
      %6215 = vmatpush1.bf16.msra.mxu0 %v5942
      %6216 = vmatprep.subr.bf16.mxu0 0
      %6217 = vmatpush2.bf16.msra.mxu0 0
      %6218 = vmatprep.subr.bf16.mxu0 0
      %6219 = vmatpush2.bf16.msra.mxu0 0
      %6220 = vmatprep.subr.bf16.mxu0 %v5995
      %6221 = vmatpush2.bf16.msra.mxu0 %v5994
      %6222 = vmatprep.subr.bf16.mxu0 %v5991
      %6223 = vmatpush2.bf16.msra.mxu0 %v5990
      %6224 = vmatprep.subr.bf16.mxu0 %v5987
      %6225 = vmatpush2.bf16.msra.mxu0 %v5986
      %6226 = vmatprep.subr.bf16.mxu0 %v5983
      %6227 = vmatpush2.bf16.msra.mxu0 %v5982
      %6228 = vmatprep.subr.bf16.mxu0 %v5979
      %6229 = vmatpush2.bf16.msra.mxu0 %v5978
      %6230 = vmatprep.subr.bf16.mxu0 %v5975
      %6231 = vmatpush2.bf16.msra.mxu0 %v5974
      %6232 = vmatprep.mubr.bf16.mxu0 %v6195
      %6233 = vmatmul.mubr.bf16.gmra.mxu0 %v6188
      %v6234 = vpop.f32.mrf.mxu0
      %v6235 = vadd.f32 0.0, %v6234
      %v6236 = vpop.f32.mrf.mxu0
      %v6237 = vadd.f32 0.0, %v6236
      %v6238 = vpop.f32.mrf.mxu0
      %v6239 = vadd.f32 0.0, %v6238
      %v6240 = vpop.f32.mrf.mxu0
      %v6241 = vadd.f32 0.0, %v6240
      %6242 = vmatprep.mubr.bf16.mxu0 %v6198
      %6243 = vmatmul.mubr.bf16.gmra.mxu0 %v6190
      %v6244 = vpop.f32.mrf.mxu0
      %v6245 = vadd.f32 0.0, %v6244
      %v6246 = vpop.f32.mrf.mxu0
      %v6247 = vadd.f32 0.0, %v6246
      %v6248 = vpop.f32.mrf.mxu0
      %v6249 = vadd.f32 0.0, %v6248
      %v6250 = vpop.f32.mrf.mxu0
      %v6251 = vadd.f32 0.0, %v6250
      %6252 = vdwg.mxu0
      %6253 = vmatprep.subr.bf16.mxu0 %v5973
      %6254 = vmatpush1.bf16.msra.mxu0 %v5972
      %6255 = vmatprep.subr.bf16.mxu0 %v5969
      %6256 = vmatpush1.bf16.msra.mxu0 %v5968
      %6257 = vmatprep.subr.bf16.mxu0 %v5965
      %6258 = vmatpush1.bf16.msra.mxu0 %v5964
      %6259 = vmatprep.subr.bf16.mxu0 %v5961
      %6260 = vmatpush1.bf16.msra.mxu0 %v5960
      %6261 = vmatprep.subr.bf16.mxu0 %v5957
      %6262 = vmatpush1.bf16.msra.mxu0 %v5956
      %6263 = vmatprep.subr.bf16.mxu0 %v5953
      %6264 = vmatpush1.bf16.msra.mxu0 %v5952
      %6265 = vmatprep.subr.bf16.mxu0 %v5949
      %6266 = vmatpush1.bf16.msra.mxu0 %v5948
      %6267 = vmatprep.subr.bf16.mxu0 %v5945
      %6268 = vmatpush1.bf16.msra.mxu0 %v5944
      %6269 = vmatprep.subr.bf16.mxu0 0
      %6270 = vmatpush2.bf16.msra.mxu0 0
      %6271 = vmatprep.subr.bf16.mxu0 0
      %6272 = vmatpush2.bf16.msra.mxu0 0
      %6273 = vmatprep.subr.bf16.mxu0 %v5997
      %6274 = vmatpush2.bf16.msra.mxu0 %v5996
      %6275 = vmatprep.subr.bf16.mxu0 %v5993
      %6276 = vmatpush2.bf16.msra.mxu0 %v5992
      %6277 = vmatprep.subr.bf16.mxu0 %v5989
      %6278 = vmatpush2.bf16.msra.mxu0 %v5988
      %6279 = vmatprep.subr.bf16.mxu0 %v5985
      %6280 = vmatpush2.bf16.msra.mxu0 %v5984
      %6281 = vmatprep.subr.bf16.mxu0 %v5981
      %6282 = vmatpush2.bf16.msra.mxu0 %v5980
      %6283 = vmatprep.subr.bf16.mxu0 %v5977
      %6284 = vmatpush2.bf16.msra.mxu0 %v5976
      %6285 = vmatprep.mubr.bf16.mxu0 %v6195
      %6286 = vmatmul.mubr.bf16.gmra.mxu0 %v6188
      %v6287 = vpop.f32.mrf.mxu0
      %v6288 = vadd.f32 0.0, %v6287
      %v6289 = vpop.f32.mrf.mxu0
      %v6290 = vadd.f32 0.0, %v6289
      %v6291 = vpop.f32.mrf.mxu0
      %v6292 = vadd.f32 0.0, %v6291
      %v6293 = vpop.f32.mrf.mxu0
      %v6294 = vadd.f32 0.0, %v6293
      %6295 = vmatprep.mubr.bf16.mxu0 %v6198
      %6296 = vmatmul.mubr.bf16.gmra.mxu0 %v6190
      %v6297 = vpop.f32.mrf.mxu0
      %v6298 = vadd.f32 0.0, %v6297
      %v6299 = vpop.f32.mrf.mxu0
      %v6300 = vadd.f32 0.0, %v6299
      %v6301 = vpop.f32.mrf.mxu0
      %v6302 = vadd.f32 0.0, %v6301
      %v6303 = vpop.f32.mrf.mxu0
      %v6304 = vadd.f32 0.0, %v6303
      %6305 = vdwg.mxu0
      %v6306 = vadd.f32 %v5697, %v6235
      %v6307 = vadd.f32 %v5698, %v6237
      %v6308 = vadd.f32 %v5699, %v6288
      %v6309 = vadd.f32 %v5700, %v6290
      %v6310 = vadd.f32 %v5701, %v6239
      %v6311 = vadd.f32 %v5702, %v6241
      %v6312 = vadd.f32 %v5703, %v6292
      %v6313 = vadd.f32 %v5704, %v6294
      %v6314 = vadd.f32 %v5705, %v6245
      %v6315 = vadd.f32 %v5706, %v6247
      %v6316 = vadd.f32 %v5707, %v6298
      %v6317 = vadd.f32 %v5708, %v6300
      %v6318 = vadd.f32 %v5709, %v6249
      %v6319 = vadd.f32 %v5710, %v6251
      %v6320 = vadd.f32 %v5711, %v6302
      %v6321 = vadd.f32 %v5712, %v6304
      %v6322 = vmax.f32 %v6160, %v6306
      %v6323 = vmax.f32 %v6161, %v6307
      %v6324 = vmax.f32 %v6162, %v6308
      %v6325 = vmax.f32 %v6163, %v6309
      %v6326 = vmax.f32 %v6164, %v6310
      %v6327 = vmax.f32 %v6165, %v6311
      %v6328 = vmax.f32 %v6166, %v6312
      %v6329 = vmax.f32 %v6167, %v6313
      %v6330 = vmax.f32 %v6168, %v6314
      %v6331 = vmax.f32 %v6169, %v6315
      %v6332 = vmax.f32 %v6170, %v6316
      %v6333 = vmax.f32 %v6171, %v6317
      %v6334 = vmax.f32 %v6172, %v6318
      %v6335 = vmax.f32 %v6173, %v6319
      %v6336 = vmax.f32 %v6174, %v6320
      %v6337 = vmax.f32 %v6175, %v6321
      %v6338 = vld [vmem:[%s4] sm:$0xf]
      %v6340 = vlaneseq
      %v6341 = vshrl.u32 %v6340, 7
      %v6342 = vsub.s32 0, %v6341
      %v6343 = vrot.slane %v6338, %v6342
      %v6344 = vlaneseq
      %v6345 = vshrl.u32 %v6344, 7
      %v6346 = vsub.s32 1, %v6345
      %v6347 = vrot.slane %v6338, %v6346
      %v6348 = vlaneseq
      %v6349 = vshrl.u32 %v6348, 7
      %v6350 = vsub.s32 2, %v6349
      %v6351 = vrot.slane %v6338, %v6350
      %v6352 = vlaneseq
      %v6353 = vshrl.u32 %v6352, 7
      %v6354 = vsub.s32 3, %v6353
      %v6355 = vrot.slane %v6338, %v6354
      %v6360 = vadd.f32 %v6322, %v6343
      %v6361 = vadd.f32 %v6323, %v6347
      %v6362 = vadd.f32 %v6324, %v6351
      %v6363 = vadd.f32 %v6325, %v6355
      %v6364 = vadd.f32 %v6326, %v6343
      %v6365 = vadd.f32 %v6327, %v6347
      %v6366 = vadd.f32 %v6328, %v6351
      %v6367 = vadd.f32 %v6329, %v6355
      %v6368 = vadd.f32 %v6330, %v6343
      %v6369 = vadd.f32 %v6331, %v6347
      %v6370 = vadd.f32 %v6332, %v6351
      %v6371 = vadd.f32 %v6333, %v6355
      %v6372 = vadd.f32 %v6334, %v6343
      %v6373 = vadd.f32 %v6335, %v6347
      %v6374 = vadd.f32 %v6336, %v6351
      %v6375 = vadd.f32 %v6337, %v6355
      %v6376 = vmax.f32 %v6360, 0.0
      %v6377 = vmax.f32 %v6361, 0.0
      %v6378 = vmax.f32 %v6362, 0.0
      %v6379 = vmax.f32 %v6363, 0.0
      %v6380 = vmax.f32 %v6364, 0.0
      %v6381 = vmax.f32 %v6365, 0.0
      %v6382 = vmax.f32 %v6366, 0.0
      %v6383 = vmax.f32 %v6367, 0.0
      %v6384 = vmax.f32 %v6368, 0.0
      %v6385 = vmax.f32 %v6369, 0.0
      %v6386 = vmax.f32 %v6370, 0.0
      %v6387 = vmax.f32 %v6371, 0.0
      %v6388 = vmax.f32 %v6372, 0.0
      %v6389 = vmax.f32 %v6373, 0.0
      %v6390 = vmax.f32 %v6374, 0.0
      %v6391 = vmax.f32 %v6375, 0.0
      %6404 = vrot.lane.b32.xlu0 %v6377, 32
      %v6405 = vpop.permute.xlu0 %6404
      %6406 = vrot.lane.b32.xlu0 %v6378, 32
      %v6407 = vpop.permute.xlu0 %6406
      %6408 = vrot.lane.b32.xlu0 %v6379, 32
      %v6409 = vpop.permute.xlu0 %6408
      %6410 = vrot.lane.b32.xlu0 %v6381, 32
      %v6411 = vpop.permute.xlu0 %6410
      %6412 = vrot.lane.b32.xlu0 %v6382, 32
      %v6413 = vpop.permute.xlu0 %6412
      %6414 = vrot.lane.b32.xlu0 %v6383, 32
      %v6415 = vpop.permute.xlu0 %6414
      %6416 = vrot.lane.b32.xlu0 %v6385, 32
      %v6417 = vpop.permute.xlu0 %6416
      %6418 = vrot.lane.b32.xlu0 %v6386, 32
      %v6419 = vpop.permute.xlu0 %6418
      %6420 = vrot.lane.b32.xlu0 %v6387, 32
      %v6421 = vpop.permute.xlu0 %6420
      %6422 = vrot.lane.b32.xlu0 %v6389, 32
      %v6423 = vpop.permute.xlu0 %6422
      %6424 = vrot.lane.b32.xlu0 %v6390, 32
      %v6425 = vpop.permute.xlu0 %6424
      %6426 = vrot.lane.b32.xlu0 %v6391, 32
      %v6427 = vpop.permute.xlu0 %6426
      %v6428 = vsel %vm355, %v6405, %v6407
      %v6429 = vsel %vm355, %v6407, %v6409
      %v6430 = vsel %vm355, %v6411, %v6413
      %v6431 = vsel %vm355, %v6413, %v6415
      %v6432 = vsel %vm355, %v6417, %v6419
      %v6433 = vsel %vm355, %v6419, %v6421
      %v6434 = vsel %vm355, %v6423, %v6425
      %v6435 = vsel %vm355, %v6425, %v6427
      %v6444 = vmax.f32 %v6376, %v6428
      %v6445 = vmax.f32 %v6377, %v6429
      %v6446 = vmax.f32 %v6380, %v6430
      %v6447 = vmax.f32 %v6381, %v6431
      %v6448 = vmax.f32 %v6384, %v6432
      %v6449 = vmax.f32 %v6385, %v6433
      %v6450 = vmax.f32 %v6388, %v6434
      %v6451 = vmax.f32 %v6389, %v6435
      %v6452 = vpack.c.bf16 %v6446, %v6444
      %v6453 = vpack.c.bf16 %v6447, %v6445
      %v6454 = vpack.c.bf16 %v6450, %v6448
      %v6455 = vpack.c.bf16 %v6451, %v6449
      %v6456 = vld [vmem:[%s5] sm:$0xf]
      %v6457 = vld [vmem:[%s5 + $0x4] sm:$0xf]
      %v6458 = vld [vmem:[%s5 + $0x8] sm:$0xf]
      %v6459 = vld [vmem:[%s5 + $0xc] sm:$0xf]
      %v6460 = vld [vmem:[%s5 + $0x10] sm:$0xf]
      %v6461 = vld [vmem:[%s5 + $0x14] sm:$0xf]
      %v6462 = vld [vmem:[%s5 + $0x18] sm:$0xf]
      %v6463 = vld [vmem:[%s5 + $0x1c] sm:$0xf]
      %v6464 = vld [vmem:[%s5 + $0x20] sm:$0xf]
      %v6465 = vld [vmem:[%s5 + $0x24] sm:$0xf]
      %v6466 = vld [vmem:[%s5 + $0x28] sm:$0xf]
      %v6467 = vld [vmem:[%s5 + $0x2c] sm:$0xf]
      %v6468 = vld [vmem:[%s5 + $0x30] sm:$0xf]
      %v6469 = vld [vmem:[%s5 + $0x34] sm:$0xf]
      %v6470 = vld [vmem:[%s5 + $0x38] sm:$0xf]
      %v6471 = vld [vmem:[%s5 + $0x3c] sm:$0xf]
      %v6472 = vld [vmem:[%s5 + $0x40] sm:$0xf]
      %v6473 = vld [vmem:[%s5 + $0x44] sm:$0xf]
      %v6474 = vld [vmem:[%s5 + $0x48] sm:$0xf]
      %v6475 = vld [vmem:[%s5 + $0x4c] sm:$0xf]
      %v6476 = vld [vmem:[%s5 + $0x50] sm:$0xf]
      %v6477 = vld [vmem:[%s5 + $0x54] sm:$0xf]
      %v6478 = vld [vmem:[%s5 + $0x58] sm:$0xf]
      %v6479 = vld [vmem:[%s5 + $0x5c] sm:$0xf]
      %v6480 = vld [vmem:[%s5 + $0x60] sm:$0xf]
      %v6481 = vld [vmem:[%s5 + $0x64] sm:$0xf]
      %v6482 = vld [vmem:[%s5 + $0x68] sm:$0xf]
      %v6483 = vld [vmem:[%s5 + $0x6c] sm:$0xf]
      %s6484 = scalar_lea.vmem %s5, 112
      %v6485 = vld [vmem:[%s6484] sm:$0xf]
      %v6486 = vld [vmem:[%s6484 + $0x4] sm:$0xf]
      %v6487 = vld [vmem:[%s6484 + $0x8] sm:$0xf]
      %v6488 = vld [vmem:[%s6484 + $0xc] sm:$0xf]
      %v6489 = vld [vmem:[%s6484 + $0x10] sm:$0xf]
      %v6490 = vld [vmem:[%s6484 + $0x14] sm:$0xf]
      %v6491 = vld [vmem:[%s6484 + $0x18] sm:$0xf]
      %v6492 = vld [vmem:[%s6484 + $0x1c] sm:$0xf]
      %v6493 = vld [vmem:[%s6484 + $0x20] sm:$0xf]
      %v6494 = vld [vmem:[%s6484 + $0x24] sm:$0xf]
      %v6495 = vld [vmem:[%s6484 + $0x28] sm:$0xf]
      %v6496 = vld [vmem:[%s6484 + $0x2c] sm:$0xf]
      %v6497 = vld [vmem:[%s6484 + $0x30] sm:$0xf]
      %v6498 = vld [vmem:[%s6484 + $0x34] sm:$0xf]
      %v6499 = vld [vmem:[%s6484 + $0x38] sm:$0xf]
      %v6500 = vld [vmem:[%s6484 + $0x3c] sm:$0xf]
      %v6501 = vld [vmem:[%s6484 + $0x40] sm:$0xf]
      %v6502 = vld [vmem:[%s6484 + $0x44] sm:$0xf]
      %v6503 = vld [vmem:[%s6484 + $0x48] sm:$0xf]
      %v6504 = vld [vmem:[%s6484 + $0x4c] sm:$0xf]
      %v6505 = vld [vmem:[%s6484 + $0x50] sm:$0xf]
      %v6506 = vld [vmem:[%s6484 + $0x54] sm:$0xf]
      %v6507 = vld [vmem:[%s6484 + $0x58] sm:$0xf]
      %v6508 = vld [vmem:[%s6484 + $0x5c] sm:$0xf]
      %v6509 = vld [vmem:[%s6484 + $0x60] sm:$0xf]
      %v6510 = vld [vmem:[%s6484 + $0x64] sm:$0xf]
      %v6511 = vld [vmem:[%s6484 + $0x68] sm:$0xf]
      %v6512 = vld [vmem:[%s6484 + $0x6c] sm:$0xf]
      %v6515 = vrot.slane %v6452, 2
      %v6516 = vrot.slane %v6453, 2
      %v6546 = vunpack.c.l.b16 %v6485
      %v6547 = vunpack.c.l.b16 %v6486
      %v6548 = vunpack.c.l.b16 %v6487
      %v6549 = vunpack.c.l.b16 %v6488
      %v6550 = vunpack.c.l.b16 %v6489
      %v6551 = vunpack.c.l.b16 %v6490
      %v6552 = vunpack.c.l.b16 %v6491
      %v6553 = vunpack.c.l.b16 %v6492
      %v6554 = vunpack.c.l.b16 %v6493
      %v6555 = vunpack.c.l.b16 %v6494
      %v6556 = vunpack.c.l.b16 %v6495
      %v6557 = vunpack.c.l.b16 %v6496
      %v6558 = vunpack.c.l.b16 %v6497
      %v6559 = vunpack.c.l.b16 %v6498
      %v6560 = vunpack.c.l.b16 %v6499
      %v6561 = vunpack.c.l.b16 %v6500
      %v6562 = vunpack.c.l.b16 %v6501
      %v6563 = vunpack.c.l.b16 %v6502
      %v6564 = vunpack.c.l.b16 %v6503
      %v6565 = vunpack.c.l.b16 %v6504
      %v6566 = vunpack.c.l.b16 %v6505
      %v6567 = vunpack.c.l.b16 %v6506
      %v6568 = vunpack.c.l.b16 %v6507
      %v6569 = vunpack.c.l.b16 %v6508
      %v6570 = vunpack.c.l.b16 %v6509
      %v6571 = vunpack.c.l.b16 %v6510
      %v6572 = vunpack.c.l.b16 %v6511
      %v6573 = vunpack.c.l.b16 %v6512
      %v6574 = vpack.c.b16 %v6547, %v6546
      %v6575 = vpack.c.b16 %v6549, %v6548
      %v6576 = vpack.c.b16 %v6551, %v6550
      %v6577 = vpack.c.b16 %v6553, %v6552
      %v6578 = vpack.c.b16 %v6555, %v6554
      %v6579 = vpack.c.b16 %v6557, %v6556
      %v6580 = vpack.c.b16 %v6559, %v6558
      %v6581 = vpack.c.b16 %v6561, %v6560
      %v6582 = vpack.c.b16 %v6563, %v6562
      %v6583 = vpack.c.b16 %v6565, %v6564
      %v6584 = vpack.c.b16 %v6567, %v6566
      %v6585 = vpack.c.b16 %v6569, %v6568
      %v6586 = vpack.c.b16 %v6571, %v6570
      %v6587 = vpack.c.b16 %v6573, %v6572
      %v6603 = vsel %vm3738, %v6516, 0
      %6605 = vmatprep.subr.bf16.mxu0 0
      %6606 = vmatpush1.bf16.msra.mxu0 %v6581
      %6607 = vmatprep.subr.bf16.mxu0 0
      %6608 = vmatpush1.bf16.msra.mxu0 %v6580
      %6609 = vmatprep.subr.bf16.mxu0 0
      %6610 = vmatpush1.bf16.msra.mxu0 %v6579
      %6611 = vmatprep.subr.bf16.mxu0 0
      %6612 = vmatpush1.bf16.msra.mxu0 %v6578
      %6613 = vmatprep.subr.bf16.mxu0 0
      %6614 = vmatpush1.bf16.msra.mxu0 %v6577
      %6615 = vmatprep.subr.bf16.mxu0 0
      %6616 = vmatpush1.bf16.msra.mxu0 %v6576
      %6617 = vmatprep.subr.bf16.mxu0 0
      %6618 = vmatpush1.bf16.msra.mxu0 %v6575
      %6619 = vmatprep.subr.bf16.mxu0 0
      %6620 = vmatpush1.bf16.msra.mxu0 %v6574
      %6621 = vmatprep.subr.bf16.mxu0 0
      %6622 = vmatpush2.bf16.msra.mxu0 0
      %6623 = vmatprep.subr.bf16.mxu0 0
      %6624 = vmatpush2.bf16.msra.mxu0 0
      %6625 = vmatprep.subr.bf16.mxu0 0
      %6626 = vmatpush2.bf16.msra.mxu0 %v6587
      %6627 = vmatprep.subr.bf16.mxu0 0
      %6628 = vmatpush2.bf16.msra.mxu0 %v6586
      %6629 = vmatprep.subr.bf16.mxu0 0
      %6630 = vmatpush2.bf16.msra.mxu0 %v6585
      %6631 = vmatprep.subr.bf16.mxu0 0
      %6632 = vmatpush2.bf16.msra.mxu0 %v6584
      %6633 = vmatprep.subr.bf16.mxu0 0
      %6634 = vmatpush2.bf16.msra.mxu0 %v6583
      %6635 = vmatprep.subr.bf16.mxu0 0
      %6636 = vmatpush2.bf16.msra.mxu0 %v6582
      %6637 = vmatprep.mubr.bf16.mxu0 %v6603
      %6638 = vmatmul.mubr.bf16.gmra.mxu0 %v6515
      %v6639 = vpop.f32.mrf.mxu0
      %v6640 = vadd.f32 0.0, %v6639
      %v6641 = vpop.f32.mrf.mxu0
      %v6642 = vpop.f32.mrf.mxu0
      %v6643 = vpop.f32.mrf.mxu0
      %6644 = vdwg.mxu0
      %v6673 = vunpack.c.l.b16 %v6456
      %v6674 = vunpack.c.l.b16 %v6457
      %v6675 = vunpack.c.l.b16 %v6458
      %v6676 = vunpack.c.l.b16 %v6459
      %v6677 = vunpack.c.l.b16 %v6460
      %v6678 = vunpack.c.l.b16 %v6461
      %v6679 = vunpack.c.l.b16 %v6462
      %v6680 = vunpack.c.l.b16 %v6463
      %v6681 = vunpack.c.l.b16 %v6464
      %v6682 = vunpack.c.l.b16 %v6465
      %v6683 = vunpack.c.l.b16 %v6466
      %v6684 = vunpack.c.l.b16 %v6467
      %v6685 = vunpack.c.l.b16 %v6468
      %v6686 = vunpack.c.l.b16 %v6469
      %v6687 = vunpack.c.l.b16 %v6470
      %v6688 = vunpack.c.l.b16 %v6471
      %v6689 = vunpack.c.l.b16 %v6472
      %v6690 = vunpack.c.l.b16 %v6473
      %v6691 = vunpack.c.l.b16 %v6474
      %v6692 = vunpack.c.l.b16 %v6475
      %v6693 = vunpack.c.l.b16 %v6476
      %v6694 = vunpack.c.l.b16 %v6477
      %v6695 = vunpack.c.l.b16 %v6478
      %v6696 = vunpack.c.l.b16 %v6479
      %v6697 = vunpack.c.l.b16 %v6480
      %v6698 = vunpack.c.l.b16 %v6481
      %v6699 = vunpack.c.l.b16 %v6482
      %v6700 = vunpack.c.l.b16 %v6483
      %v6701 = vpack.c.b16 %v6674, %v6673
      %v6702 = vpack.c.b16 %v6676, %v6675
      %v6703 = vpack.c.b16 %v6678, %v6677
      %v6704 = vpack.c.b16 %v6680, %v6679
      %v6705 = vpack.c.b16 %v6682, %v6681
      %v6706 = vpack.c.b16 %v6684, %v6683
      %v6707 = vpack.c.b16 %v6686, %v6685
      %v6708 = vpack.c.b16 %v6688, %v6687
      %v6709 = vpack.c.b16 %v6690, %v6689
      %v6710 = vpack.c.b16 %v6692, %v6691
      %v6711 = vpack.c.b16 %v6694, %v6693
      %v6712 = vpack.c.b16 %v6696, %v6695
      %v6713 = vpack.c.b16 %v6698, %v6697
      %v6714 = vpack.c.b16 %v6700, %v6699
      %v6730 = vsel %vm3738, %v6453, 0
      %6732 = vmatprep.subr.bf16.mxu0 0
      %6733 = vmatpush1.bf16.msra.mxu0 %v6708
      %6734 = vmatprep.subr.bf16.mxu0 0
      %6735 = vmatpush1.bf16.msra.mxu0 %v6707
      %6736 = vmatprep.subr.bf16.mxu0 0
      %6737 = vmatpush1.bf16.msra.mxu0 %v6706
      %6738 = vmatprep.subr.bf16.mxu0 0
      %6739 = vmatpush1.bf16.msra.mxu0 %v6705
      %6740 = vmatprep.subr.bf16.mxu0 0
      %6741 = vmatpush1.bf16.msra.mxu0 %v6704
      %6742 = vmatprep.subr.bf16.mxu0 0
      %6743 = vmatpush1.bf16.msra.mxu0 %v6703
      %6744 = vmatprep.subr.bf16.mxu0 0
      %6745 = vmatpush1.bf16.msra.mxu0 %v6702
      %6746 = vmatprep.subr.bf16.mxu0 0
      %6747 = vmatpush1.bf16.msra.mxu0 %v6701
      %6748 = vmatprep.subr.bf16.mxu0 0
      %6749 = vmatpush2.bf16.msra.mxu0 0
      %6750 = vmatprep.subr.bf16.mxu0 0
      %6751 = vmatpush2.bf16.msra.mxu0 0
      %6752 = vmatprep.subr.bf16.mxu0 0
      %6753 = vmatpush2.bf16.msra.mxu0 %v6714
      %6754 = vmatprep.subr.bf16.mxu0 0
      %6755 = vmatpush2.bf16.msra.mxu0 %v6713
      %6756 = vmatprep.subr.bf16.mxu0 0
      %6757 = vmatpush2.bf16.msra.mxu0 %v6712
      %6758 = vmatprep.subr.bf16.mxu0 0
      %6759 = vmatpush2.bf16.msra.mxu0 %v6711
      %6760 = vmatprep.subr.bf16.mxu0 0
      %6761 = vmatpush2.bf16.msra.mxu0 %v6710
      %6762 = vmatprep.subr.bf16.mxu0 0
      %6763 = vmatpush2.bf16.msra.mxu0 %v6709
      %6764 = vmatprep.mubr.bf16.mxu0 %v6730
      %6765 = vmatmul.mubr.bf16.gmra.mxu0 %v6452
      %v6766 = vpop.f32.mrf.mxu0
      %v6767 = vadd.f32 %v6640, %v6766
      %v6768 = vpop.f32.mrf.mxu0
      %v6769 = vpop.f32.mrf.mxu0
      %v6770 = vpop.f32.mrf.mxu0
      %6771 = vdwg.mxu0
      %s6772 = scalar_lea.vmem %s5, 224
      %v6773 = vld [vmem:[%s6772] sm:$0xf]
      %v6774 = vld [vmem:[%s6772 + $0x4] sm:$0xf]
      %v6775 = vld [vmem:[%s6772 + $0x8] sm:$0xf]
      %v6776 = vld [vmem:[%s6772 + $0xc] sm:$0xf]
      %v6777 = vld [vmem:[%s6772 + $0x10] sm:$0xf]
      %v6778 = vld [vmem:[%s6772 + $0x14] sm:$0xf]
      %v6779 = vld [vmem:[%s6772 + $0x18] sm:$0xf]
      %v6780 = vld [vmem:[%s6772 + $0x1c] sm:$0xf]
      %v6781 = vld [vmem:[%s6772 + $0x20] sm:$0xf]
      %v6782 = vld [vmem:[%s6772 + $0x24] sm:$0xf]
      %v6783 = vld [vmem:[%s6772 + $0x28] sm:$0xf]
      %v6784 = vld [vmem:[%s6772 + $0x2c] sm:$0xf]
      %v6785 = vld [vmem:[%s6772 + $0x30] sm:$0xf]
      %v6786 = vld [vmem:[%s6772 + $0x34] sm:$0xf]
      %v6787 = vld [vmem:[%s6772 + $0x38] sm:$0xf]
      %v6788 = vld [vmem:[%s6772 + $0x3c] sm:$0xf]
      %v6789 = vld [vmem:[%s6772 + $0x40] sm:$0xf]
      %v6790 = vld [vmem:[%s6772 + $0x44] sm:$0xf]
      %v6791 = vld [vmem:[%s6772 + $0x48] sm:$0xf]
      %v6792 = vld [vmem:[%s6772 + $0x4c] sm:$0xf]
      %v6793 = vld [vmem:[%s6772 + $0x50] sm:$0xf]
      %v6794 = vld [vmem:[%s6772 + $0x54] sm:$0xf]
      %v6795 = vld [vmem:[%s6772 + $0x58] sm:$0xf]
      %v6796 = vld [vmem:[%s6772 + $0x5c] sm:$0xf]
      %v6797 = vld [vmem:[%s6772 + $0x60] sm:$0xf]
      %v6798 = vld [vmem:[%s6772 + $0x64] sm:$0xf]
      %v6799 = vld [vmem:[%s6772 + $0x68] sm:$0xf]
      %v6800 = vld [vmem:[%s6772 + $0x6c] sm:$0xf]
      %v6801 = vrot.slane %v6452, 4
      %v6802 = vrot.slane %v6453, 4
      %v6832 = vunpack.c.l.b16 %v6773
      %v6833 = vunpack.c.l.b16 %v6774
      %v6834 = vunpack.c.l.b16 %v6775
      %v6835 = vunpack.c.l.b16 %v6776
      %v6836 = vunpack.c.l.b16 %v6777
      %v6837 = vunpack.c.l.b16 %v6778
      %v6838 = vunpack.c.l.b16 %v6779
      %v6839 = vunpack.c.l.b16 %v6780
      %v6840 = vunpack.c.l.b16 %v6781
      %v6841 = vunpack.c.l.b16 %v6782
      %v6842 = vunpack.c.l.b16 %v6783
      %v6843 = vunpack.c.l.b16 %v6784
      %v6844 = vunpack.c.l.b16 %v6785
      %v6845 = vunpack.c.l.b16 %v6786
      %v6846 = vunpack.c.l.b16 %v6787
      %v6847 = vunpack.c.l.b16 %v6788
      %v6848 = vunpack.c.l.b16 %v6789
      %v6849 = vunpack.c.l.b16 %v6790
      %v6850 = vunpack.c.l.b16 %v6791
      %v6851 = vunpack.c.l.b16 %v6792
      %v6852 = vunpack.c.l.b16 %v6793
      %v6853 = vunpack.c.l.b16 %v6794
      %v6854 = vunpack.c.l.b16 %v6795
      %v6855 = vunpack.c.l.b16 %v6796
      %v6856 = vunpack.c.l.b16 %v6797
      %v6857 = vunpack.c.l.b16 %v6798
      %v6858 = vunpack.c.l.b16 %v6799
      %v6859 = vunpack.c.l.b16 %v6800
      %v6860 = vpack.c.b16 %v6833, %v6832
      %v6861 = vpack.c.b16 %v6835, %v6834
      %v6862 = vpack.c.b16 %v6837, %v6836
      %v6863 = vpack.c.b16 %v6839, %v6838
      %v6864 = vpack.c.b16 %v6841, %v6840
      %v6865 = vpack.c.b16 %v6843, %v6842
      %v6866 = vpack.c.b16 %v6845, %v6844
      %v6867 = vpack.c.b16 %v6847, %v6846
      %v6868 = vpack.c.b16 %v6849, %v6848
      %v6869 = vpack.c.b16 %v6851, %v6850
      %v6870 = vpack.c.b16 %v6853, %v6852
      %v6871 = vpack.c.b16 %v6855, %v6854
      %v6872 = vpack.c.b16 %v6857, %v6856
      %v6873 = vpack.c.b16 %v6859, %v6858
      %v6889 = vsel %vm3738, %v6802, 0
      %6891 = vmatprep.subr.bf16.mxu0 0
      %6892 = vmatpush1.bf16.msra.mxu0 %v6867
      %6893 = vmatprep.subr.bf16.mxu0 0
      %6894 = vmatpush1.bf16.msra.mxu0 %v6866
      %6895 = vmatprep.subr.bf16.mxu0 0
      %6896 = vmatpush1.bf16.msra.mxu0 %v6865
      %6897 = vmatprep.subr.bf16.mxu0 0
      %6898 = vmatpush1.bf16.msra.mxu0 %v6864
      %6899 = vmatprep.subr.bf16.mxu0 0
      %6900 = vmatpush1.bf16.msra.mxu0 %v6863
      %6901 = vmatprep.subr.bf16.mxu0 0
      %6902 = vmatpush1.bf16.msra.mxu0 %v6862
      %6903 = vmatprep.subr.bf16.mxu0 0
      %6904 = vmatpush1.bf16.msra.mxu0 %v6861
      %6905 = vmatprep.subr.bf16.mxu0 0
      %6906 = vmatpush1.bf16.msra.mxu0 %v6860
      %6907 = vmatprep.subr.bf16.mxu0 0
      %6908 = vmatpush2.bf16.msra.mxu0 0
      %6909 = vmatprep.subr.bf16.mxu0 0
      %6910 = vmatpush2.bf16.msra.mxu0 0
      %6911 = vmatprep.subr.bf16.mxu0 0
      %6912 = vmatpush2.bf16.msra.mxu0 %v6873
      %6913 = vmatprep.subr.bf16.mxu0 0
      %6914 = vmatpush2.bf16.msra.mxu0 %v6872
      %6915 = vmatprep.subr.bf16.mxu0 0
      %6916 = vmatpush2.bf16.msra.mxu0 %v6871
      %6917 = vmatprep.subr.bf16.mxu0 0
      %6918 = vmatpush2.bf16.msra.mxu0 %v6870
      %6919 = vmatprep.subr.bf16.mxu0 0
      %6920 = vmatpush2.bf16.msra.mxu0 %v6869
      %6921 = vmatprep.subr.bf16.mxu0 0
      %6922 = vmatpush2.bf16.msra.mxu0 %v6868
      %6923 = vmatprep.mubr.bf16.mxu0 %v6889
      %6924 = vmatmul.mubr.bf16.gmra.mxu0 %v6801
      %v6925 = vpop.f32.mrf.mxu0
      %v6926 = vadd.f32 0.0, %v6925
      %v6927 = vpop.f32.mrf.mxu0
      %v6928 = vpop.f32.mrf.mxu0
      %v6929 = vpop.f32.mrf.mxu0
      %6930 = vdwg.mxu0
      %v6931 = vadd.f32 %v6767, %v6926
      %s6932 = scalar_lea.vmem %s5, 336
      %v6933 = vld [vmem:[%s6932] sm:$0xf]
      %v6934 = vld [vmem:[%s6932 + $0x4] sm:$0xf]
      %v6935 = vld [vmem:[%s6932 + $0x8] sm:$0xf]
      %v6936 = vld [vmem:[%s6932 + $0xc] sm:$0xf]
      %v6937 = vld [vmem:[%s6932 + $0x10] sm:$0xf]
      %v6938 = vld [vmem:[%s6932 + $0x14] sm:$0xf]
      %v6939 = vld [vmem:[%s6932 + $0x18] sm:$0xf]
      %v6940 = vld [vmem:[%s6932 + $0x1c] sm:$0xf]
      %v6941 = vld [vmem:[%s6932 + $0x20] sm:$0xf]
      %v6942 = vld [vmem:[%s6932 + $0x24] sm:$0xf]
      %v6943 = vld [vmem:[%s6932 + $0x28] sm:$0xf]
      %v6944 = vld [vmem:[%s6932 + $0x2c] sm:$0xf]
      %v6945 = vld [vmem:[%s6932 + $0x30] sm:$0xf]
      %v6946 = vld [vmem:[%s6932 + $0x34] sm:$0xf]
      %v6947 = vld [vmem:[%s6932 + $0x38] sm:$0xf]
      %v6948 = vld [vmem:[%s6932 + $0x3c] sm:$0xf]
      %v6949 = vld [vmem:[%s6932 + $0x40] sm:$0xf]
      %v6950 = vld [vmem:[%s6932 + $0x44] sm:$0xf]
      %v6951 = vld [vmem:[%s6932 + $0x48] sm:$0xf]
      %v6952 = vld [vmem:[%s6932 + $0x4c] sm:$0xf]
      %v6953 = vld [vmem:[%s6932 + $0x50] sm:$0xf]
      %v6954 = vld [vmem:[%s6932 + $0x54] sm:$0xf]
      %v6955 = vld [vmem:[%s6932 + $0x58] sm:$0xf]
      %v6956 = vld [vmem:[%s6932 + $0x5c] sm:$0xf]
      %v6957 = vld [vmem:[%s6932 + $0x60] sm:$0xf]
      %v6958 = vld [vmem:[%s6932 + $0x64] sm:$0xf]
      %v6959 = vld [vmem:[%s6932 + $0x68] sm:$0xf]
      %v6960 = vld [vmem:[%s6932 + $0x6c] sm:$0xf]
      %v6961 = vrot.slane %v6452, 6
      %v6962 = vrot.slane %v6453, 6
      %v6992 = vunpack.c.l.b16 %v6933
      %v6993 = vunpack.c.l.b16 %v6934
      %v6994 = vunpack.c.l.b16 %v6935
      %v6995 = vunpack.c.l.b16 %v6936
      %v6996 = vunpack.c.l.b16 %v6937
      %v6997 = vunpack.c.l.b16 %v6938
      %v6998 = vunpack.c.l.b16 %v6939
      %v6999 = vunpack.c.l.b16 %v6940
      %v7000 = vunpack.c.l.b16 %v6941
      %v7001 = vunpack.c.l.b16 %v6942
      %v7002 = vunpack.c.l.b16 %v6943
      %v7003 = vunpack.c.l.b16 %v6944
      %v7004 = vunpack.c.l.b16 %v6945
      %v7005 = vunpack.c.l.b16 %v6946
      %v7006 = vunpack.c.l.b16 %v6947
      %v7007 = vunpack.c.l.b16 %v6948
      %v7008 = vunpack.c.l.b16 %v6949
      %v7009 = vunpack.c.l.b16 %v6950
      %v7010 = vunpack.c.l.b16 %v6951
      %v7011 = vunpack.c.l.b16 %v6952
      %v7012 = vunpack.c.l.b16 %v6953
      %v7013 = vunpack.c.l.b16 %v6954
      %v7014 = vunpack.c.l.b16 %v6955
      %v7015 = vunpack.c.l.b16 %v6956
      %v7016 = vunpack.c.l.b16 %v6957
      %v7017 = vunpack.c.l.b16 %v6958
      %v7018 = vunpack.c.l.b16 %v6959
      %v7019 = vunpack.c.l.b16 %v6960
      %v7020 = vpack.c.b16 %v6993, %v6992
      %v7021 = vpack.c.b16 %v6995, %v6994
      %v7022 = vpack.c.b16 %v6997, %v6996
      %v7023 = vpack.c.b16 %v6999, %v6998
      %v7024 = vpack.c.b16 %v7001, %v7000
      %v7025 = vpack.c.b16 %v7003, %v7002
      %v7026 = vpack.c.b16 %v7005, %v7004
      %v7027 = vpack.c.b16 %v7007, %v7006
      %v7028 = vpack.c.b16 %v7009, %v7008
      %v7029 = vpack.c.b16 %v7011, %v7010
      %v7030 = vpack.c.b16 %v7013, %v7012
      %v7031 = vpack.c.b16 %v7015, %v7014
      %v7032 = vpack.c.b16 %v7017, %v7016
      %v7033 = vpack.c.b16 %v7019, %v7018
      %v7049 = vsel %vm3738, %v6962, 0
      %7051 = vmatprep.subr.bf16.mxu0 0
      %7052 = vmatpush1.bf16.msra.mxu0 %v7027
      %7053 = vmatprep.subr.bf16.mxu0 0
      %7054 = vmatpush1.bf16.msra.mxu0 %v7026
      %7055 = vmatprep.subr.bf16.mxu0 0
      %7056 = vmatpush1.bf16.msra.mxu0 %v7025
      %7057 = vmatprep.subr.bf16.mxu0 0
      %7058 = vmatpush1.bf16.msra.mxu0 %v7024
      %7059 = vmatprep.subr.bf16.mxu0 0
      %7060 = vmatpush1.bf16.msra.mxu0 %v7023
      %7061 = vmatprep.subr.bf16.mxu0 0
      %7062 = vmatpush1.bf16.msra.mxu0 %v7022
      %7063 = vmatprep.subr.bf16.mxu0 0
      %7064 = vmatpush1.bf16.msra.mxu0 %v7021
      %7065 = vmatprep.subr.bf16.mxu0 0
      %7066 = vmatpush1.bf16.msra.mxu0 %v7020
      %7067 = vmatprep.subr.bf16.mxu0 0
      %7068 = vmatpush2.bf16.msra.mxu0 0
      %7069 = vmatprep.subr.bf16.mxu0 0
      %7070 = vmatpush2.bf16.msra.mxu0 0
      %7071 = vmatprep.subr.bf16.mxu0 0
      %7072 = vmatpush2.bf16.msra.mxu0 %v7033
      %7073 = vmatprep.subr.bf16.mxu0 0
      %7074 = vmatpush2.bf16.msra.mxu0 %v7032
      %7075 = vmatprep.subr.bf16.mxu0 0
      %7076 = vmatpush2.bf16.msra.mxu0 %v7031
      %7077 = vmatprep.subr.bf16.mxu0 0
      %7078 = vmatpush2.bf16.msra.mxu0 %v7030
      %7079 = vmatprep.subr.bf16.mxu0 0
      %7080 = vmatpush2.bf16.msra.mxu0 %v7029
      %7081 = vmatprep.subr.bf16.mxu0 0
      %7082 = vmatpush2.bf16.msra.mxu0 %v7028
      %7083 = vmatprep.mubr.bf16.mxu0 %v7049
      %7084 = vmatmul.mubr.bf16.gmra.mxu0 %v6961
      %v7085 = vpop.f32.mrf.mxu0
      %v7086 = vadd.f32 0.0, %v7085
      %v7087 = vpop.f32.mrf.mxu0
      %v7088 = vpop.f32.mrf.mxu0
      %v7089 = vpop.f32.mrf.mxu0
      %7090 = vdwg.mxu0
      %v7091 = vadd.f32 %v6931, %v7086
      %s7092 = scalar_lea.vmem %s5, 448
      %v7093 = vld [vmem:[%s7092] sm:$0xf]
      %v7094 = vld [vmem:[%s7092 + $0x4] sm:$0xf]
      %v7095 = vld [vmem:[%s7092 + $0x8] sm:$0xf]
      %v7096 = vld [vmem:[%s7092 + $0xc] sm:$0xf]
      %v7097 = vld [vmem:[%s7092 + $0x10] sm:$0xf]
      %v7098 = vld [vmem:[%s7092 + $0x14] sm:$0xf]
      %v7099 = vld [vmem:[%s7092 + $0x18] sm:$0xf]
      %v7100 = vld [vmem:[%s7092 + $0x1c] sm:$0xf]
      %v7101 = vld [vmem:[%s7092 + $0x20] sm:$0xf]
      %v7102 = vld [vmem:[%s7092 + $0x24] sm:$0xf]
      %v7103 = vld [vmem:[%s7092 + $0x28] sm:$0xf]
      %v7104 = vld [vmem:[%s7092 + $0x2c] sm:$0xf]
      %v7105 = vld [vmem:[%s7092 + $0x30] sm:$0xf]
      %v7106 = vld [vmem:[%s7092 + $0x34] sm:$0xf]
      %v7107 = vld [vmem:[%s7092 + $0x38] sm:$0xf]
      %v7108 = vld [vmem:[%s7092 + $0x3c] sm:$0xf]
      %v7109 = vld [vmem:[%s7092 + $0x40] sm:$0xf]
      %v7110 = vld [vmem:[%s7092 + $0x44] sm:$0xf]
      %v7111 = vld [vmem:[%s7092 + $0x48] sm:$0xf]
      %v7112 = vld [vmem:[%s7092 + $0x4c] sm:$0xf]
      %v7113 = vld [vmem:[%s7092 + $0x50] sm:$0xf]
      %v7114 = vld [vmem:[%s7092 + $0x54] sm:$0xf]
      %v7115 = vld [vmem:[%s7092 + $0x58] sm:$0xf]
      %v7116 = vld [vmem:[%s7092 + $0x5c] sm:$0xf]
      %v7117 = vld [vmem:[%s7092 + $0x60] sm:$0xf]
      %v7118 = vld [vmem:[%s7092 + $0x64] sm:$0xf]
      %v7119 = vld [vmem:[%s7092 + $0x68] sm:$0xf]
      %v7120 = vld [vmem:[%s7092 + $0x6c] sm:$0xf]
      %v7149 = vunpack.c.l.b16 %v7093
      %v7150 = vunpack.c.l.b16 %v7094
      %v7151 = vunpack.c.l.b16 %v7095
      %v7152 = vunpack.c.l.b16 %v7096
      %v7153 = vunpack.c.l.b16 %v7097
      %v7154 = vunpack.c.l.b16 %v7098
      %v7155 = vunpack.c.l.b16 %v7099
      %v7156 = vunpack.c.l.b16 %v7100
      %v7157 = vunpack.c.l.b16 %v7101
      %v7158 = vunpack.c.l.b16 %v7102
      %v7159 = vunpack.c.l.b16 %v7103
      %v7160 = vunpack.c.l.b16 %v7104
      %v7161 = vunpack.c.l.b16 %v7105
      %v7162 = vunpack.c.l.b16 %v7106
      %v7163 = vunpack.c.l.b16 %v7107
      %v7164 = vunpack.c.l.b16 %v7108
      %v7165 = vunpack.c.l.b16 %v7109
      %v7166 = vunpack.c.l.b16 %v7110
      %v7167 = vunpack.c.l.b16 %v7111
      %v7168 = vunpack.c.l.b16 %v7112
      %v7169 = vunpack.c.l.b16 %v7113
      %v7170 = vunpack.c.l.b16 %v7114
      %v7171 = vunpack.c.l.b16 %v7115
      %v7172 = vunpack.c.l.b16 %v7116
      %v7173 = vunpack.c.l.b16 %v7117
      %v7174 = vunpack.c.l.b16 %v7118
      %v7175 = vunpack.c.l.b16 %v7119
      %v7176 = vunpack.c.l.b16 %v7120
      %v7177 = vpack.c.b16 %v7150, %v7149
      %v7178 = vpack.c.b16 %v7152, %v7151
      %v7179 = vpack.c.b16 %v7154, %v7153
      %v7180 = vpack.c.b16 %v7156, %v7155
      %v7181 = vpack.c.b16 %v7158, %v7157
      %v7182 = vpack.c.b16 %v7160, %v7159
      %v7183 = vpack.c.b16 %v7162, %v7161
      %v7184 = vpack.c.b16 %v7164, %v7163
      %v7185 = vpack.c.b16 %v7166, %v7165
      %v7186 = vpack.c.b16 %v7168, %v7167
      %v7187 = vpack.c.b16 %v7170, %v7169
      %v7188 = vpack.c.b16 %v7172, %v7171
      %v7189 = vpack.c.b16 %v7174, %v7173
      %v7190 = vpack.c.b16 %v7176, %v7175
      %v7206 = vsel %vm3738, %v6455, 0
      %7208 = vmatprep.subr.bf16.mxu0 0
      %7209 = vmatpush1.bf16.msra.mxu0 %v7184
      %7210 = vmatprep.subr.bf16.mxu0 0
      %7211 = vmatpush1.bf16.msra.mxu0 %v7183
      %7212 = vmatprep.subr.bf16.mxu0 0
      %7213 = vmatpush1.bf16.msra.mxu0 %v7182
      %7214 = vmatprep.subr.bf16.mxu0 0
      %7215 = vmatpush1.bf16.msra.mxu0 %v7181
      %7216 = vmatprep.subr.bf16.mxu0 0
      %7217 = vmatpush1.bf16.msra.mxu0 %v7180
      %7218 = vmatprep.subr.bf16.mxu0 0
      %7219 = vmatpush1.bf16.msra.mxu0 %v7179
      %7220 = vmatprep.subr.bf16.mxu0 0
      %7221 = vmatpush1.bf16.msra.mxu0 %v7178
      %7222 = vmatprep.subr.bf16.mxu0 0
      %7223 = vmatpush1.bf16.msra.mxu0 %v7177
      %7224 = vmatprep.subr.bf16.mxu0 0
      %7225 = vmatpush2.bf16.msra.mxu0 0
      %7226 = vmatprep.subr.bf16.mxu0 0
      %7227 = vmatpush2.bf16.msra.mxu0 0
      %7228 = vmatprep.subr.bf16.mxu0 0
      %7229 = vmatpush2.bf16.msra.mxu0 %v7190
      %7230 = vmatprep.subr.bf16.mxu0 0
      %7231 = vmatpush2.bf16.msra.mxu0 %v7189
      %7232 = vmatprep.subr.bf16.mxu0 0
      %7233 = vmatpush2.bf16.msra.mxu0 %v7188
      %7234 = vmatprep.subr.bf16.mxu0 0
      %7235 = vmatpush2.bf16.msra.mxu0 %v7187
      %7236 = vmatprep.subr.bf16.mxu0 0
      %7237 = vmatpush2.bf16.msra.mxu0 %v7186
      %7238 = vmatprep.subr.bf16.mxu0 0
      %7239 = vmatpush2.bf16.msra.mxu0 %v7185
      %7240 = vmatprep.mubr.bf16.mxu0 %v7206
      %7241 = vmatmul.mubr.bf16.gmra.mxu0 %v6454
      %v7242 = vpop.f32.mrf.mxu0
      %v7243 = vadd.f32 0.0, %v7242
      %v7244 = vpop.f32.mrf.mxu0
      %v7245 = vpop.f32.mrf.mxu0
      %v7246 = vpop.f32.mrf.mxu0
      %7247 = vdwg.mxu0
      %v7248 = vadd.f32 %v7091, %v7243
      %s7249 = scalar_lea.vmem %s5, 560
      %v7250 = vld [vmem:[%s7249] sm:$0xf]
      %v7251 = vld [vmem:[%s7249 + $0x4] sm:$0xf]
      %v7252 = vld [vmem:[%s7249 + $0x8] sm:$0xf]
      %v7253 = vld [vmem:[%s7249 + $0xc] sm:$0xf]
      %v7254 = vld [vmem:[%s7249 + $0x10] sm:$0xf]
      %v7255 = vld [vmem:[%s7249 + $0x14] sm:$0xf]
      %v7256 = vld [vmem:[%s7249 + $0x18] sm:$0xf]
      %v7257 = vld [vmem:[%s7249 + $0x1c] sm:$0xf]
      %v7258 = vld [vmem:[%s7249 + $0x20] sm:$0xf]
      %v7259 = vld [vmem:[%s7249 + $0x24] sm:$0xf]
      %v7260 = vld [vmem:[%s7249 + $0x28] sm:$0xf]
      %v7261 = vld [vmem:[%s7249 + $0x2c] sm:$0xf]
      %v7262 = vld [vmem:[%s7249 + $0x30] sm:$0xf]
      %v7263 = vld [vmem:[%s7249 + $0x34] sm:$0xf]
      %v7264 = vld [vmem:[%s7249 + $0x38] sm:$0xf]
      %v7265 = vld [vmem:[%s7249 + $0x3c] sm:$0xf]
      %v7266 = vld [vmem:[%s7249 + $0x40] sm:$0xf]
      %v7267 = vld [vmem:[%s7249 + $0x44] sm:$0xf]
      %v7268 = vld [vmem:[%s7249 + $0x48] sm:$0xf]
      %v7269 = vld [vmem:[%s7249 + $0x4c] sm:$0xf]
      %v7270 = vld [vmem:[%s7249 + $0x50] sm:$0xf]
      %v7271 = vld [vmem:[%s7249 + $0x54] sm:$0xf]
      %v7272 = vld [vmem:[%s7249 + $0x58] sm:$0xf]
      %v7273 = vld [vmem:[%s7249 + $0x5c] sm:$0xf]
      %v7274 = vld [vmem:[%s7249 + $0x60] sm:$0xf]
      %v7275 = vld [vmem:[%s7249 + $0x64] sm:$0xf]
      %v7276 = vld [vmem:[%s7249 + $0x68] sm:$0xf]
      %v7277 = vld [vmem:[%s7249 + $0x6c] sm:$0xf]
      %v7280 = vrot.slane %v6454, 2
      %v7281 = vrot.slane %v6455, 2
      %v7311 = vunpack.c.l.b16 %v7250
      %v7312 = vunpack.c.l.b16 %v7251
      %v7313 = vunpack.c.l.b16 %v7252
      %v7314 = vunpack.c.l.b16 %v7253
      %v7315 = vunpack.c.l.b16 %v7254
      %v7316 = vunpack.c.l.b16 %v7255
      %v7317 = vunpack.c.l.b16 %v7256
      %v7318 = vunpack.c.l.b16 %v7257
      %v7319 = vunpack.c.l.b16 %v7258
      %v7320 = vunpack.c.l.b16 %v7259
      %v7321 = vunpack.c.l.b16 %v7260
      %v7322 = vunpack.c.l.b16 %v7261
      %v7323 = vunpack.c.l.b16 %v7262
      %v7324 = vunpack.c.l.b16 %v7263
      %v7325 = vunpack.c.l.b16 %v7264
      %v7326 = vunpack.c.l.b16 %v7265
      %v7327 = vunpack.c.l.b16 %v7266
      %v7328 = vunpack.c.l.b16 %v7267
      %v7329 = vunpack.c.l.b16 %v7268
      %v7330 = vunpack.c.l.b16 %v7269
      %v7331 = vunpack.c.l.b16 %v7270
      %v7332 = vunpack.c.l.b16 %v7271
      %v7333 = vunpack.c.l.b16 %v7272
      %v7334 = vunpack.c.l.b16 %v7273
      %v7335 = vunpack.c.l.b16 %v7274
      %v7336 = vunpack.c.l.b16 %v7275
      %v7337 = vunpack.c.l.b16 %v7276
      %v7338 = vunpack.c.l.b16 %v7277
      %v7339 = vpack.c.b16 %v7312, %v7311
      %v7340 = vpack.c.b16 %v7314, %v7313
      %v7341 = vpack.c.b16 %v7316, %v7315
      %v7342 = vpack.c.b16 %v7318, %v7317
      %v7343 = vpack.c.b16 %v7320, %v7319
      %v7344 = vpack.c.b16 %v7322, %v7321
      %v7345 = vpack.c.b16 %v7324, %v7323
      %v7346 = vpack.c.b16 %v7326, %v7325
      %v7347 = vpack.c.b16 %v7328, %v7327
      %v7348 = vpack.c.b16 %v7330, %v7329
      %v7349 = vpack.c.b16 %v7332, %v7331
      %v7350 = vpack.c.b16 %v7334, %v7333
      %v7351 = vpack.c.b16 %v7336, %v7335
      %v7352 = vpack.c.b16 %v7338, %v7337
      %v7368 = vsel %vm3738, %v7281, 0
      %7370 = vmatprep.subr.bf16.mxu0 0
      %7371 = vmatpush1.bf16.msra.mxu0 %v7346
      %7372 = vmatprep.subr.bf16.mxu0 0
      %7373 = vmatpush1.bf16.msra.mxu0 %v7345
      %7374 = vmatprep.subr.bf16.mxu0 0
      %7375 = vmatpush1.bf16.msra.mxu0 %v7344
      %7376 = vmatprep.subr.bf16.mxu0 0
      %7377 = vmatpush1.bf16.msra.mxu0 %v7343
      %7378 = vmatprep.subr.bf16.mxu0 0
      %7379 = vmatpush1.bf16.msra.mxu0 %v7342
      %7380 = vmatprep.subr.bf16.mxu0 0
      %7381 = vmatpush1.bf16.msra.mxu0 %v7341
      %7382 = vmatprep.subr.bf16.mxu0 0
      %7383 = vmatpush1.bf16.msra.mxu0 %v7340
      %7384 = vmatprep.subr.bf16.mxu0 0
      %7385 = vmatpush1.bf16.msra.mxu0 %v7339
      %7386 = vmatprep.subr.bf16.mxu0 0
      %7387 = vmatpush2.bf16.msra.mxu0 0
      %7388 = vmatprep.subr.bf16.mxu0 0
      %7389 = vmatpush2.bf16.msra.mxu0 0
      %7390 = vmatprep.subr.bf16.mxu0 0
      %7391 = vmatpush2.bf16.msra.mxu0 %v7352
      %7392 = vmatprep.subr.bf16.mxu0 0
      %7393 = vmatpush2.bf16.msra.mxu0 %v7351
      %7394 = vmatprep.subr.bf16.mxu0 0
      %7395 = vmatpush2.bf16.msra.mxu0 %v7350
      %7396 = vmatprep.subr.bf16.mxu0 0
      %7397 = vmatpush2.bf16.msra.mxu0 %v7349
      %7398 = vmatprep.subr.bf16.mxu0 0
      %7399 = vmatpush2.bf16.msra.mxu0 %v7348
      %7400 = vmatprep.subr.bf16.mxu0 0
      %7401 = vmatpush2.bf16.msra.mxu0 %v7347
      %7402 = vmatprep.mubr.bf16.mxu0 %v7368
      %7403 = vmatmul.mubr.bf16.gmra.mxu0 %v7280
      %v7404 = vpop.f32.mrf.mxu0
      %v7405 = vadd.f32 0.0, %v7404
      %v7406 = vpop.f32.mrf.mxu0
      %v7407 = vpop.f32.mrf.mxu0
      %v7408 = vpop.f32.mrf.mxu0
      %7409 = vdwg.mxu0
      %v7410 = vadd.f32 %v7248, %v7405
      %s7411 = scalar_lea.vmem %s5, 672
      %v7412 = vld [vmem:[%s7411] sm:$0xf]
      %v7413 = vld [vmem:[%s7411 + $0x4] sm:$0xf]
      %v7414 = vld [vmem:[%s7411 + $0x8] sm:$0xf]
      %v7415 = vld [vmem:[%s7411 + $0xc] sm:$0xf]
      %v7416 = vld [vmem:[%s7411 + $0x10] sm:$0xf]
      %v7417 = vld [vmem:[%s7411 + $0x14] sm:$0xf]
      %v7418 = vld [vmem:[%s7411 + $0x18] sm:$0xf]
      %v7419 = vld [vmem:[%s7411 + $0x1c] sm:$0xf]
      %v7420 = vld [vmem:[%s7411 + $0x20] sm:$0xf]
      %v7421 = vld [vmem:[%s7411 + $0x24] sm:$0xf]
      %v7422 = vld [vmem:[%s7411 + $0x28] sm:$0xf]
      %v7423 = vld [vmem:[%s7411 + $0x2c] sm:$0xf]
      %v7424 = vld [vmem:[%s7411 + $0x30] sm:$0xf]
      %v7425 = vld [vmem:[%s7411 + $0x34] sm:$0xf]
      %v7426 = vld [vmem:[%s7411 + $0x38] sm:$0xf]
      %v7427 = vld [vmem:[%s7411 + $0x3c] sm:$0xf]
      %v7428 = vld [vmem:[%s7411 + $0x40] sm:$0xf]
      %v7429 = vld [vmem:[%s7411 + $0x44] sm:$0xf]
      %v7430 = vld [vmem:[%s7411 + $0x48] sm:$0xf]
      %v7431 = vld [vmem:[%s7411 + $0x4c] sm:$0xf]
      %v7432 = vld [vmem:[%s7411 + $0x50] sm:$0xf]
      %v7433 = vld [vmem:[%s7411 + $0x54] sm:$0xf]
      %v7434 = vld [vmem:[%s7411 + $0x58] sm:$0xf]
      %v7435 = vld [vmem:[%s7411 + $0x5c] sm:$0xf]
      %v7436 = vld [vmem:[%s7411 + $0x60] sm:$0xf]
      %v7437 = vld [vmem:[%s7411 + $0x64] sm:$0xf]
      %v7438 = vld [vmem:[%s7411 + $0x68] sm:$0xf]
      %v7439 = vld [vmem:[%s7411 + $0x6c] sm:$0xf]
      %v7440 = vrot.slane %v6454, 4
      %v7441 = vrot.slane %v6455, 4
      %v7471 = vunpack.c.l.b16 %v7412
      %v7472 = vunpack.c.l.b16 %v7413
      %v7473 = vunpack.c.l.b16 %v7414
      %v7474 = vunpack.c.l.b16 %v7415
      %v7475 = vunpack.c.l.b16 %v7416
      %v7476 = vunpack.c.l.b16 %v7417
      %v7477 = vunpack.c.l.b16 %v7418
      %v7478 = vunpack.c.l.b16 %v7419
      %v7479 = vunpack.c.l.b16 %v7420
      %v7480 = vunpack.c.l.b16 %v7421
      %v7481 = vunpack.c.l.b16 %v7422
      %v7482 = vunpack.c.l.b16 %v7423
      %v7483 = vunpack.c.l.b16 %v7424
      %v7484 = vunpack.c.l.b16 %v7425
      %v7485 = vunpack.c.l.b16 %v7426
      %v7486 = vunpack.c.l.b16 %v7427
      %v7487 = vunpack.c.l.b16 %v7428
      %v7488 = vunpack.c.l.b16 %v7429
      %v7489 = vunpack.c.l.b16 %v7430
      %v7490 = vunpack.c.l.b16 %v7431
      %v7491 = vunpack.c.l.b16 %v7432
      %v7492 = vunpack.c.l.b16 %v7433
      %v7493 = vunpack.c.l.b16 %v7434
      %v7494 = vunpack.c.l.b16 %v7435
      %v7495 = vunpack.c.l.b16 %v7436
      %v7496 = vunpack.c.l.b16 %v7437
      %v7497 = vunpack.c.l.b16 %v7438
      %v7498 = vunpack.c.l.b16 %v7439
      %v7499 = vpack.c.b16 %v7472, %v7471
      %v7500 = vpack.c.b16 %v7474, %v7473
      %v7501 = vpack.c.b16 %v7476, %v7475
      %v7502 = vpack.c.b16 %v7478, %v7477
      %v7503 = vpack.c.b16 %v7480, %v7479
      %v7504 = vpack.c.b16 %v7482, %v7481
      %v7505 = vpack.c.b16 %v7484, %v7483
      %v7506 = vpack.c.b16 %v7486, %v7485
      %v7507 = vpack.c.b16 %v7488, %v7487
      %v7508 = vpack.c.b16 %v7490, %v7489
      %v7509 = vpack.c.b16 %v7492, %v7491
      %v7510 = vpack.c.b16 %v7494, %v7493
      %v7511 = vpack.c.b16 %v7496, %v7495
      %v7512 = vpack.c.b16 %v7498, %v7497
      %v7528 = vsel %vm3738, %v7441, 0
      %7530 = vmatprep.subr.bf16.mxu0 0
      %7531 = vmatpush1.bf16.msra.mxu0 %v7506
      %7532 = vmatprep.subr.bf16.mxu0 0
      %7533 = vmatpush1.bf16.msra.mxu0 %v7505
      %7534 = vmatprep.subr.bf16.mxu0 0
      %7535 = vmatpush1.bf16.msra.mxu0 %v7504
      %7536 = vmatprep.subr.bf16.mxu0 0
      %7537 = vmatpush1.bf16.msra.mxu0 %v7503
      %7538 = vmatprep.subr.bf16.mxu0 0
      %7539 = vmatpush1.bf16.msra.mxu0 %v7502
      %7540 = vmatprep.subr.bf16.mxu0 0
      %7541 = vmatpush1.bf16.msra.mxu0 %v7501
      %7542 = vmatprep.subr.bf16.mxu0 0
      %7543 = vmatpush1.bf16.msra.mxu0 %v7500
      %7544 = vmatprep.subr.bf16.mxu0 0
      %7545 = vmatpush1.bf16.msra.mxu0 %v7499
      %7546 = vmatprep.subr.bf16.mxu0 0
      %7547 = vmatpush2.bf16.msra.mxu0 0
      %7548 = vmatprep.subr.bf16.mxu0 0
      %7549 = vmatpush2.bf16.msra.mxu0 0
      %7550 = vmatprep.subr.bf16.mxu0 0
      %7551 = vmatpush2.bf16.msra.mxu0 %v7512
      %7552 = vmatprep.subr.bf16.mxu0 0
      %7553 = vmatpush2.bf16.msra.mxu0 %v7511
      %7554 = vmatprep.subr.bf16.mxu0 0
      %7555 = vmatpush2.bf16.msra.mxu0 %v7510
      %7556 = vmatprep.subr.bf16.mxu0 0
      %7557 = vmatpush2.bf16.msra.mxu0 %v7509
      %7558 = vmatprep.subr.bf16.mxu0 0
      %7559 = vmatpush2.bf16.msra.mxu0 %v7508
      %7560 = vmatprep.subr.bf16.mxu0 0
      %7561 = vmatpush2.bf16.msra.mxu0 %v7507
      %7562 = vmatprep.mubr.bf16.mxu0 %v7528
      %7563 = vmatmul.mubr.bf16.gmra.mxu0 %v7440
      %v7564 = vpop.f32.mrf.mxu0
      %v7565 = vadd.f32 0.0, %v7564
      %v7566 = vpop.f32.mrf.mxu0
      %v7567 = vpop.f32.mrf.mxu0
      %v7568 = vpop.f32.mrf.mxu0
      %7569 = vdwg.mxu0
      %v7570 = vadd.f32 %v7410, %v7565
      %v7571 = vld [vmem:[%s6] sm:$0x1]
      %v7573 = vlaneseq
      %v7574 = vshrl.u32 %v7573, 7
      %v7575 = vsub.s32 0, %v7574
      %v7576 = vrot.slane %v7571, %v7575
      %v7578 = vadd.f32 %v7570, %v7576
      %vm7579 = vcmask 76800
      %7580 = vst.msk [vmem:[%s276] sm:$0xf] %vm7579, %v7578
      %p7581 = scmp.lt.s32.totalorder %s18, 2
      %s7582 = scalar_select %p7581, %s18, 2
      %s7583 = smul.addr %s7582, 4
      %s7584 = scalar_lea.vmem %s7, %s7583
      // Predicated region
      $region49: #{ocrnum_forward.1} parent=47 // pred_check
        %p7585 = pneg %p188
      $region50: #{ocrnum_forward.1} parent=47 // pred_check_branch
        %7587 = sbr.rel (%p7585) target = $region52
      $region51: #{ocrnum_forward.1} parent=47 // pred_region
        _
      $region52: #{ocrnum_forward.1} parent=47 // pred_fallthru
        _
    $region48: #{ocrnum_forward.1} parent=5 // pred_fallthru
      _
    %p7588 = scmp.le.s32.totalorder 2, %s13
    // Predicated region
    $region53: #{ocrnum_forward.1} parent=5 // pred_check
      %p7589 = pneg %p7588
    $region54: #{ocrnum_forward.1} parent=5 // pred_check_branch
      %7591 = sbr.rel (%p7589) target = $region56
    $region55: #{ocrnum_forward.1} parent=5 // pred_region
      %s7592 = ssub.s32 %s13, 2
      // Predicated region
      $region57: #{ocrnum_forward.1} parent=55 // pred_check
        %p7593 = pneg %p194
      $region58: #{ocrnum_forward.1} parent=55 // pred_check_branch
        %7595 = sbr.rel (%p7593) target = $region60
      $region59: #{ocrnum_forward.1} parent=55 // pred_region
        %p7596 = scmp.lt.s32.totalorder %s19, 2
        %s7597 = scalar_select %p7596, %s19, 2
        %s7598 = smul.addr %s7597, 4
        %s7599 = scalar_lea.vmem %s7, %s7598
      $region60: #{ocrnum_forward.1} parent=55 // pred_fallthru
        _
    $region56: #{ocrnum_forward.1} parent=5 // pred_fallthru
      _
  $region6: #{ocrnum_forward.1} parent=0 // loop_footer
    %s17 = sadd.s32 1, %s13
  $region7: #{ocrnum_forward.1} parent=0 // loop_footer_branch
    %12 = sbr.rel target = $region3
  $region8: #{ocrnum_forward.1} parent=0 // loop_exit
    _

</llo_original>
